<compile_context>
chip_gen: v6e
topology: v6e:2x2x1
jax: 0.10.0
libtpu: 0.0.40
codegen_flags: <defaults>
</compile_context>

<pallas_src>
import functools
import math

import jax
import jax.numpy as jnp
from jax import lax
from jax.experimental import pallas as pl
from jax.experimental.pallas import tpu as pltpu


# ----------------------------------------------------------------------------
# Config (synthetic, small)
# ----------------------------------------------------------------------------
class Config:
    model_name = "roberta"
    wordnet = True
    nell = False
    freeze = True
    content_dim = 16
    seq_len = 8
    hidden_size = 32
    num_heads = 4
    intermediate_size = 64
    num_layers = 3
    start_layer = 2   # -> index 1
    merge_layer = 3   # -> index 2
    n_concepts = 3    # concepts per token (before sentinel)
    wn_vocab = 20
    layer_norm_eps = 1e-5


# ----------------------------------------------------------------------------
# In-kernel helpers (traced inside the Pallas kernel body)
# ----------------------------------------------------------------------------
def _mdot(a, b):
    """2-D matmul, bf16 operands for the MXU, f32 accumulation."""
    return jnp.dot(a.astype(jnp.bfloat16), b.astype(jnp.bfloat16),
                   preferred_element_type=jnp.float32)


def _bmm(a, b, ca=2, cb=1):
    """Batched matmul over the leading dim, bf16 operands, f32 accumulation."""
    return lax.dot_general(
        a.astype(jnp.bfloat16), b.astype(jnp.bfloat16),
        dimension_numbers=(((ca,), (cb,)), ((0,), (0,))),
        preferred_element_type=jnp.float32)


def _softmax_last(x):
    m = jnp.max(x, axis=-1, keepdims=True)
    e = jnp.exp(x - m)
    return e * pl.reciprocal(jnp.sum(e, axis=-1, keepdims=True), approx=True)


def _layer_norm(x, g, b, eps):
    mu = jnp.mean(x, axis=-1, keepdims=True)
    var = jnp.mean((x - mu) ** 2, axis=-1, keepdims=True)
    return (x - mu) * lax.rsqrt(var + eps) * g + b


def _mha(x_q, x_kv, madd, wqkv, bqkv, wo, bo, num_heads):
    """Head-batched multi-head attention.

    x_q, x_kv : (S, H)
    wqkv      : (3*nH, H, Dh) ordered [Q heads | K heads | V heads]
    bqkv      : (3*nH, 1, Dh)
    wo        : (nH, Dh, H),  bo: (1, H)
    madd      : (1, S) additive key mask
    """
    S, H = x_q.shape
    nH = num_heads
    dh = H // nH
    scale = 1.0 / math.sqrt(dh)

    q = _bmm(jnp.broadcast_to(x_q[None], (nH, S, H)), wqkv[0:nH]) + bqkv[0:nH]
    kv = _bmm(jnp.broadcast_to(x_kv[None], (2 * nH, S, H)),
              wqkv[nH:3 * nH]) + bqkv[nH:3 * nH]
    k = kv[0:nH]
    v = kv[nH:2 * nH]

    s = _bmm(q, k, 2, 2) * scale + madd          # (nH, S, S)
    p = _softmax_last(s)
    ctx = _bmm(p, v)                             # (nH, S, Dh)
    out = _bmm(ctx, wo)                          # (nH, S, H)
    return jnp.sum(out, axis=0) + bo             # (S, H)


def _encoder_layer(h, madd, refs, li, num_heads, eps):
    (wqkv_r, bqkv_r, wo_r, bo_r, ln1g_r, ln1b_r,
     wi_r, bi_r, wf_r, bf_r, ln2g_r, ln2b_r) = refs
    attn = _mha(h, h, madd, wqkv_r[li], bqkv_r[li], wo_r[li], bo_r[li], num_heads)
    h1 = _layer_norm(attn + h, ln1g_r[li], ln1b_r[li], eps)
    inter = jax.nn.gelu(_mdot(h1, wi_r[li]) + bi_r[li], approximate=True)
    ffn = _mdot(inter, wf_r[li]) + bf_r[li]
    return _layer_norm(ffn + h1, ln2g_r[li], ln2b_r[li], eps)


# ----------------------------------------------------------------------------
# The single fused KT-NET kernel (one grid step = one batch element)
# ----------------------------------------------------------------------------
def _ktnet_kernel(x_ref, am_ref, cont_ref, cmask_ref,
                  l_wqkv_ref, l_bqkv_ref, l_wo_ref, l_bo_ref,
                  l_ln1g_ref, l_ln1b_ref, l_wi_ref, l_bi_ref,
                  l_wf_ref, l_bf_ref, l_ln2g_ref, l_ln2b_ref,
                  ki_w1t_ref, ki_b1_ref, ki_w2_ref, ki_b2_ref,
                  sm_wh_ref, sm_wc_ref, sm_b_ref,
                  mg_wmh_ref, mg_wmc_ref, mg_bm_ref,
                  mg_wqkv_ref, mg_bqkv_ref, mg_wo_ref, mg_bo_ref,
                  mg_lng_ref, mg_lnb_ref,
                  o_ref, *,
                  num_heads, eps, num_layers, merge_layer, start_layer,
                  n_concepts):
    S, H = x_ref.shape[1], x_ref.shape[2]
    K = n_concepts

    am = am_ref[0]                               # (1, S) 0/1 key mask
    madd = (1.0 - am) * -10000.0                 # additive mask on key/column axis

    layer_refs = (l_wqkv_ref, l_bqkv_ref, l_wo_ref, l_bo_ref,
                  l_ln1g_ref, l_ln1b_ref, l_wi_ref, l_bi_ref,
                  l_wf_ref, l_bf_ref, l_ln2g_ref, l_ln2b_ref)

    # ---- encoder layers before the merge layer -----------------------------
    h = x_ref[0]                                 # (S, H)
    hidden = []
    for li in range(merge_layer):
        h = _encoder_layer(h, madd, layer_refs, li, num_heads, eps)
        hidden.append(h)
    hs = hidden[start_layer]                     # start-layer output
    hl = hidden[-1]                              # last hidden state before merge

    # ---- knowledge integration (score = c . (W1^T h) + b1 . h) -------------
    bw = _mdot(hs, ki_w1t_ref[...])                                   # (S, C)
    bb = jnp.sum(hs * ki_b1_ref[...], axis=-1, keepdims=True)         # (S, 1)
    sentinel = _mdot(hs[0:1, :], ki_w2_ref[...]) + ki_b2_ref[...]     # (1, C)

    scores = []
    for k in range(K):
        scores.append(jnp.sum(cont_ref[k, 0] * bw, axis=-1, keepdims=True) + bb)
    scores.append(jnp.sum(sentinel * bw, axis=-1, keepdims=True) + bb)
    masked = [scores[k] + (1.0 - cmask_ref[k, 0]) * -10000.0 for k in range(K + 1)]

    mx = masked[0]
    for k in range(1, K + 1):
        mx = jnp.maximum(mx, masked[k])
    ex = [jnp.exp(m - mx) for m in masked]
    denom = ex[0]
    for k in range(1, K + 1):
        denom = denom + ex[k]
    inv = pl.reciprocal(denom, approx=True)
    # attention weight = softmax(masked score) * mask (no renorm), per reference
    ki = (ex[K] * inv * cmask_ref[K, 0]) * sentinel                   # (S, C)
    for k in range(K):
        ki = ki + (ex[k] * inv * cmask_ref[k, 0]) * cont_ref[k, 0]

    # ---- self-matching on x = [hs | ki], block-decomposed (no lane concat) --
    w1h, w2h, w3h = sm_wh_ref[0], sm_wh_ref[1], sm_wh_ref[2]          # (1, H)
    w1c, w2c, w3c = sm_wc_ref[0], sm_wc_ref[1], sm_wc_ref[2]          # (1, C)
    ai = (jnp.sum(hs * w1h, axis=-1, keepdims=True)
          + jnp.sum(ki * w1c, axis=-1, keepdims=True))                # (S, 1)
    bj = (jnp.sum(hs * w2h, axis=-1, keepdims=True)
          + jnp.sum(ki * w2c, axis=-1, keepdims=True))                # (S, 1)
    cross = lax.dot_general((hs * w3h).astype(jnp.bfloat16), hs.astype(jnp.bfloat16),
                            (((1,), (1,)), ((), ())),
                            preferred_element_type=jnp.float32)
    cross = cross + lax.dot_general((ki * w3c).astype(jnp.bfloat16),
                                    ki.astype(jnp.bfloat16),
                                    (((1,), (1,)), ((), ())),
                                    preferred_element_type=jnp.float32)
    score = cross + ai + jnp.transpose(bj) + sm_b_ref[...] + madd     # (S, S)
    Wt = _softmax_last(score)

    V1h = _mdot(Wt, hs)
    V1c = _mdot(Wt, ki)
    Wt2 = _mdot(Wt, Wt)
    V2h = _mdot(Wt2, hs)
    V2c = _mdot(Wt2, ki)

    # ---- merge.linear over cat(x, V1, x-V1, x*V1, V2, x-V2), folded to
    #      x@(W0+W2+W5) + V1@(W1-W2) + (x*V1)@W3 + V2@(W4-W5)  (weights folded
    #      host-side), split into bert-part / knowledge-part blocks -----------
    UVh = hs * V1h
    UVc = ki * V1c
    mlin = (_mdot(hs, mg_wmh_ref[0]) + _mdot(V1h, mg_wmh_ref[1])
            + _mdot(UVh, mg_wmh_ref[2]) + _mdot(V2h, mg_wmh_ref[3])
            + _mdot(ki, mg_wmc_ref[0]) + _mdot(V1c, mg_wmc_ref[1])
            + _mdot(UVc, mg_wmc_ref[2]) + _mdot(V2c, mg_wmc_ref[3])
            + mg_bm_ref[...])                                          # (S, H)

    # ---- merge: multi-head cross-attention stand-in for GATResMergerLayer --
    attn = _mha(hl, mlin, madd, mg_wqkv_ref[...], mg_bqkv_ref[...],
                mg_wo_ref[...], mg_bo_ref[...], num_heads)
    h = _layer_norm(attn + hl, mg_lng_ref[...], mg_lnb_ref[...], eps)

    # ---- encoder layers after the merge layer -------------------------------
    for li in range(merge_layer, num_layers):
        h = _encoder_layer(h, madd, layer_refs, li, num_heads, eps)

    o_ref[0] = h


# ----------------------------------------------------------------------------
# Forward: host glue (embedding gather, layout transposes) + one pallas_call
# ----------------------------------------------------------------------------
def ktnet_forward(packed, input_embedding, attention_mask,
                  wordnet_content_id, wn_mask, *, config):
    B, S, H = input_embedding.shape
    K = wordnet_content_id.shape[2]
    C = config.content_dim

    am = attention_mask.astype(jnp.float32).reshape(B, 1, S)
    contents = packed["content_embedding"][wordnet_content_id]        # (B,S,K,C)
    contents = contents[:, config.seq_len - S:, :, :]                 # roberta slice
    cont_t = jnp.transpose(contents, (2, 0, 1, 3))                    # (K,B,S,C)
    cmask_t = jnp.transpose(wn_mask.astype(jnp.float32), (2, 0, 1))[..., None]  # (K+1,B,S,1)

    lp = packed["layers"]
    kp = packed["knowledge"]

    kernel = functools.partial(
        _ktnet_kernel,
        num_heads=config.num_heads, eps=config.layer_norm_eps,
        num_layers=config.num_layers, merge_layer=config.merge_layer - 1,
        start_layer=config.start_layer - 1, n_concepts=K)

    data_args = (input_embedding, am, cont_t, cmask_t)
    weight_args = (lp["wqkv"], lp["bqkv"], lp["wo"], lp["bo"],
                   lp["ln1_g"], lp["ln1_b"], lp["wi"], lp["bi"],
                   lp["wf"], lp["bf"], lp["ln2_g"], lp["ln2_b"],
                   kp["w1t"], kp["b1r"], kp["w2"], kp["b2"],
                   kp["wsm_h"], kp["wsm_c"], kp["bsm"],
                   kp["wm_h"], kp["wm_c"], kp["bm"],
                   kp["wqkv"], kp["bqkv"], kp["wo"], kp["bo"],
                   kp["ln_g"], kp["ln_b"])

    in_specs = [
        pl.BlockSpec((1, S, H), lambda b: (b, 0, 0)),                 # input embedding
        pl.BlockSpec((1, 1, S), lambda b: (b, 0, 0)),                 # attention mask
        pl.BlockSpec((K, 1, S, C), lambda b: (0, b, 0, 0)),           # contents (slot-major)
        pl.BlockSpec((K + 1, 1, S, 1), lambda b: (0, b, 0, 0)),       # wn mask (slot-major)
    ]
    for w in weight_args:
        nd = w.ndim
        in_specs.append(pl.BlockSpec(w.shape, lambda b, _nd=nd: (0,) * _nd))

    return pl.pallas_call(
        kernel,
        out_shape=jax.ShapeDtypeStruct((B, S, H), jnp.float32),
        grid=(B,),
        in_specs=in_specs,
        out_specs=pl.BlockSpec((1, S, H), lambda b: (b, 0, 0)),
        compiler_params=pltpu.CompilerParams(dimension_semantics=("parallel",)),
    )(*data_args, *weight_args)


# ----------------------------------------------------------------------------
# Parameter initialization and packing into kernel-friendly layouts
# ----------------------------------------------------------------------------
def init_params(key, config):
    H, C, I = config.hidden_size, config.content_dim, config.intermediate_size
    E = C + H
    keys = iter(jax.random.split(key, 64))

    def lin(din, dout):
        return (0.02 * jax.random.normal(next(keys), (din, dout), jnp.float32),
                jnp.zeros((dout,), jnp.float32))

    layers = []
    for _ in range(config.num_layers):
        Wq, bq = lin(H, H); Wk, bk = lin(H, H); Wv, bv = lin(H, H); Wo, bo = lin(H, H)
        Wi, bi = lin(H, I); Wf, bf = lin(I, H)
        layers.append(dict(Wq=Wq, bq=bq, Wk=Wk, bk=bk, Wv=Wv, bv=bv, Wo=Wo, bo=bo,
                           Wi=Wi, bi=bi, Wf=Wf, bf=bf,
                           ln1_g=jnp.ones((H,), jnp.float32), ln1_b=jnp.zeros((H,), jnp.float32),
                           ln2_g=jnp.ones((H,), jnp.float32), ln2_b=jnp.zeros((H,), jnp.float32)))

    W1, b1 = lin(C, H)          # knowledge_integration.linear
    W2, b2 = lin(H, C)          # knowledge_integration.linear2
    content_embedding = 0.1 * jax.random.normal(next(keys), (config.wn_vocab, C), jnp.float32)
    integrate = dict(W1=W1, b1=b1, W2=W2, b2=b2, content_embedding=content_embedding)

    Wsm, bsm = lin(3 * E, 1)    # self_matching.linear
    match = dict(W=Wsm, b=bsm)

    Wm, bm = lin(6 * E, H)      # merge.linear
    mWq, mbq = lin(H, H); mWk, mbk = lin(H, H); mWv, mbv = lin(H, H); mWo, mbo = lin(H, H)
    merge_p = dict(Wm=Wm, bm=bm, Wq=mWq, bq=mbq, Wk=mWk, bk=mbk, Wv=mWv, bv=mbv,
                   Wo=mWo, bo=mbo,
                   ln_g=jnp.ones((H,), jnp.float32), ln_b=jnp.zeros((H,), jnp.float32))

    return dict(layers=layers, integrate=integrate, match=match, merge=merge_p)


def _pack_attention(Wq, bq, Wk, bk, Wv, bv, Wo, bo, num_heads):
    H = Wq.shape[0]
    Dh = Wq.shape[1] // num_heads

    def cols(W):   # (H, H) -> (nH, H, Dh): head h uses output columns [h*Dh:(h+1)*Dh]
        return jnp.transpose(W.reshape(H, num_heads, Dh), (1, 0, 2))

    def bcols(b):
        return b.reshape(num_heads, 1, Dh)

    wqkv = jnp.concatenate([cols(Wq), cols(Wk), cols(Wv)], axis=0)     # (3nH, H, Dh)
    bqkv = jnp.concatenate([bcols(bq), bcols(bk), bcols(bv)], axis=0)  # (3nH, 1, Dh)
    wo_h = Wo.reshape(num_heads, Dh, H)                                # rows per head
    return wqkv, bqkv, wo_h, bo.reshape(1, H)


def pack_params(params, config):
    H, C = config.hidden_size, config.content_dim
    E = H + C
    nH = config.num_heads

    per_layer = []
    for p in params["layers"]:
        wqkv, bqkv, wo_h, bo = _pack_attention(p["Wq"], p["bq"], p["Wk"], p["bk"],
                                               p["Wv"], p["bv"], p["Wo"], p["bo"], nH)
        per_layer.append(dict(wqkv=wqkv, bqkv=bqkv, wo=wo_h, bo=bo,
                              ln1_g=p["ln1_g"].reshape(1, H), ln1_b=p["ln1_b"].reshape(1, H),
                              wi=p["Wi"], bi=p["bi"].reshape(1, -1),
                              wf=p["Wf"], bf=p["bf"].reshape(1, H),
                              ln2_g=p["ln2_g"].reshape(1, H), ln2_b=p["ln2_b"].reshape(1, H)))
    # Stack every per-layer tensor along a leading layer axis (single fused kernel).
    layers = {name: jnp.stack([d[name] for d in per_layer], axis=0)
              for name in per_layer[0]}

    ip, mp, gp = params["integrate"], params["match"], params["merge"]

    Wsm = mp["W"].reshape(3 * E)
    w1, w2, w3 = Wsm[0:E], Wsm[E:2 * E], Wsm[2 * E:3 * E]
    wsm_h = jnp.stack([w1[:H], w2[:H], w3[:H]], axis=0).reshape(3, 1, H)
    wsm_c = jnp.stack([w1[H:], w2[H:], w3[H:]], axis=0).reshape(3, 1, C)

    # merge.linear over cat(x, V1, x-V1, x*V1, V2, x-V2) algebraically folded to
    # 4 effective blocks acting on (x, V1, x*V1, V2):
    #   Wx = W0+W2+W5, Wv1 = W1-W2, Wuv = W3, Wv2 = W4-W5
    Wm = gp["Wm"]
    blocks = [Wm[j * E:(j + 1) * E, :] for j in range(6)]
    folded = [blocks[0] + blocks[2] + blocks[5],
              blocks[1] - blocks[2],
              blocks[3],
              blocks[4] - blocks[5]]
    wm_h = jnp.stack([f[:H, :] for f in folded], axis=0)   # (4, H, H)
    wm_c = jnp.stack([f[H:, :] for f in folded], axis=0)   # (4, C, H)

    mwqkv, mbqkv, mwo, mbo = _pack_attention(gp["Wq"], gp["bq"], gp["Wk"], gp["bk"],
                                             gp["Wv"], gp["bv"], gp["Wo"], gp["bo"], nH)

    knowledge = dict(
        w1t=jnp.transpose(ip["W1"]),            # (H, C)
        b1r=ip["b1"].reshape(1, H),
        w2=ip["W2"], b2=ip["b2"].reshape(1, C),
        wsm_h=wsm_h, wsm_c=wsm_c, bsm=mp["b"].reshape(1, 1),
        wm_h=wm_h, wm_c=wm_c, bm=gp["bm"].reshape(1, H),
        wqkv=mwqkv, bqkv=mbqkv, wo=mwo, bo=mbo,
        ln_g=gp["ln_g"].reshape(1, H), ln_b=gp["ln_b"].reshape(1, H))

    return dict(layers=layers, knowledge=knowledge,
                content_embedding=ip["content_embedding"])


# ----------------------------------------------------------------------------
# Main
# ----------------------------------------------------------------------------
if __name__ == "__main__":
    config = Config()
    key = jax.random.PRNGKey(0)
    kparam, kx, kid, kmask = jax.random.split(key, 4)

    params = init_params(kparam, config)
    packed = pack_params(params, config)

    B, S, H = 2, config.seq_len, config.hidden_size
    K = config.n_concepts

    input_embedding = jax.random.normal(kx, (B, S, H), jnp.float32)
    attention_mask = jnp.ones((B, S), jnp.float32).at[1, 6:].set(0.0)
    wordnet_content_id = jax.random.randint(kid, (B, S, K), 0, config.wn_vocab)
    wn_mask = (jax.random.uniform(kmask, (B, S, K + 1)) > 0.3).astype(jnp.float32)
    wn_mask = wn_mask.at[:, :, -1].set(1.0)   # sentinel slot always valid

    fwd = jax.jit(functools.partial(ktnet_forward, config=config))
    out = fwd(packed, input_embedding, attention_mask, wordnet_content_id, wn_mask)
    out = jax.block_until_ready(out)
    assert out.shape == (B, S, H), out.shape
    assert bool(jnp.all(jnp.isfinite(out)))
    print("KERNEL_OK")
</pallas_src>

<mosaic_0001>
module attributes {stable_mosaic.version = 11 : i64} {
  func.func @_ktnet_kernel(%arg0: i32, %arg1: memref<1x8x32xf32, #tpu.memory_space<vmem>>, %arg2: memref<1x1x8xf32, #tpu.memory_space<vmem>>, %arg3: memref<3x1x8x16xf32, #tpu.memory_space<vmem>>, %arg4: memref<4x1x8x1xf32, #tpu.memory_space<vmem>>, %arg5: memref<3x12x32x8xf32, #tpu.memory_space<vmem>>, %arg6: memref<3x12x1x8xf32, #tpu.memory_space<vmem>>, %arg7: memref<3x4x8x32xf32, #tpu.memory_space<vmem>>, %arg8: memref<3x1x32xf32, #tpu.memory_space<vmem>>, %arg9: memref<3x1x32xf32, #tpu.memory_space<vmem>>, %arg10: memref<3x1x32xf32, #tpu.memory_space<vmem>>, %arg11: memref<3x32x64xf32, #tpu.memory_space<vmem>>, %arg12: memref<3x1x64xf32, #tpu.memory_space<vmem>>, %arg13: memref<3x64x32xf32, #tpu.memory_space<vmem>>, %arg14: memref<3x1x32xf32, #tpu.memory_space<vmem>>, %arg15: memref<3x1x32xf32, #tpu.memory_space<vmem>>, %arg16: memref<3x1x32xf32, #tpu.memory_space<vmem>>, %arg17: memref<32x16xf32, #tpu.memory_space<vmem>>, %arg18: memref<1x32xf32, #tpu.memory_space<vmem>>, %arg19: memref<32x16xf32, #tpu.memory_space<vmem>>, %arg20: memref<1x16xf32, #tpu.memory_space<vmem>>, %arg21: memref<3x1x32xf32, #tpu.memory_space<vmem>>, %arg22: memref<3x1x16xf32, #tpu.memory_space<vmem>>, %arg23: memref<1x1xf32, #tpu.memory_space<vmem>>, %arg24: memref<4x32x32xf32, #tpu.memory_space<vmem>>, %arg25: memref<4x16x32xf32, #tpu.memory_space<vmem>>, %arg26: memref<1x32xf32, #tpu.memory_space<vmem>>, %arg27: memref<12x32x8xf32, #tpu.memory_space<vmem>>, %arg28: memref<12x1x8xf32, #tpu.memory_space<vmem>>, %arg29: memref<4x8x32xf32, #tpu.memory_space<vmem>>, %arg30: memref<1x32xf32, #tpu.memory_space<vmem>>, %arg31: memref<1x32xf32, #tpu.memory_space<vmem>>, %arg32: memref<1x32xf32, #tpu.memory_space<vmem>>, %arg33: memref<1x8x32xf32, #tpu.memory_space<vmem>>) attributes {dimension_semantics = [#tpu.dimension_semantics<parallel>], iteration_bounds = array<i64: 2>, scalar_prefetch = 0 : i64, scratch_operands = 0 : i64, tpu.core_type = #tpu.core_type<tc>, window_params = [{transform_indices = @transform_0, window_bounds = array<i64: 1, 8, 32>}, {transform_indices = @transform_1, window_bounds = array<i64: 1, 1, 8>}, {transform_indices = @transform_2, window_bounds = array<i64: 3, 1, 8, 16>}, {transform_indices = @transform_3, window_bounds = array<i64: 4, 1, 8, 1>}, {pipeline_mode = #tpu.pipeline_mode<synchronous>, transform_indices = @transform_4, window_bounds = array<i64: 3, 12, 32, 8>}, {pipeline_mode = #tpu.pipeline_mode<synchronous>, transform_indices = @transform_5, window_bounds = array<i64: 3, 12, 1, 8>}, {pipeline_mode = #tpu.pipeline_mode<synchronous>, transform_indices = @transform_6, window_bounds = array<i64: 3, 4, 8, 32>}, {pipeline_mode = #tpu.pipeline_mode<synchronous>, transform_indices = @transform_7, window_bounds = array<i64: 3, 1, 32>}, {pipeline_mode = #tpu.pipeline_mode<synchronous>, transform_indices = @transform_8, window_bounds = array<i64: 3, 1, 32>}, {pipeline_mode = #tpu.pipeline_mode<synchronous>, transform_indices = @transform_9, window_bounds = array<i64: 3, 1, 32>}, {pipeline_mode = #tpu.pipeline_mode<synchronous>, transform_indices = @transform_10, window_bounds = array<i64: 3, 32, 64>}, {pipeline_mode = #tpu.pipeline_mode<synchronous>, transform_indices = @transform_11, window_bounds = array<i64: 3, 1, 64>}, {pipeline_mode = #tpu.pipeline_mode<synchronous>, transform_indices = @transform_12, window_bounds = array<i64: 3, 64, 32>}, {pipeline_mode = #tpu.pipeline_mode<synchronous>, transform_indices = @transform_13, window_bounds = array<i64: 3, 1, 32>}, {pipeline_mode = #tpu.pipeline_mode<synchronous>, transform_indices = @transform_14, window_bounds = array<i64: 3, 1, 32>}, {pipeline_mode = #tpu.pipeline_mode<synchronous>, transform_indices = @transform_15, window_bounds = array<i64: 3, 1, 32>}, {pipeline_mode = #tpu.pipeline_mode<synchronous>, transform_indices = @transform_16, window_bounds = array<i64: 32, 16>}, {pipeline_mode = #tpu.pipeline_mode<synchronous>, transform_indices = @transform_17, window_bounds = array<i64: 1, 32>}, {pipeline_mode = #tpu.pipeline_mode<synchronous>, transform_indices = @transform_18, window_bounds = array<i64: 32, 16>}, {pipeline_mode = #tpu.pipeline_mode<synchronous>, transform_indices = @transform_19, window_bounds = array<i64: 1, 16>}, {pipeline_mode = #tpu.pipeline_mode<synchronous>, transform_indices = @transform_20, window_bounds = array<i64: 3, 1, 32>}, {pipeline_mode = #tpu.pipeline_mode<synchronous>, transform_indices = @transform_21, window_bounds = array<i64: 3, 1, 16>}, {pipeline_mode = #tpu.pipeline_mode<synchronous>, transform_indices = @transform_22, window_bounds = array<i64: 1, 1>}, {pipeline_mode = #tpu.pipeline_mode<synchronous>, transform_indices = @transform_23, window_bounds = array<i64: 4, 32, 32>}, {pipeline_mode = #tpu.pipeline_mode<synchronous>, transform_indices = @transform_24, window_bounds = array<i64: 4, 16, 32>}, {pipeline_mode = #tpu.pipeline_mode<synchronous>, transform_indices = @transform_25, window_bounds = array<i64: 1, 32>}, {pipeline_mode = #tpu.pipeline_mode<synchronous>, transform_indices = @transform_26, window_bounds = array<i64: 12, 32, 8>}, {pipeline_mode = #tpu.pipeline_mode<synchronous>, transform_indices = @transform_27, window_bounds = array<i64: 12, 1, 8>}, {pipeline_mode = #tpu.pipeline_mode<synchronous>, transform_indices = @transform_28, window_bounds = array<i64: 4, 8, 32>}, {pipeline_mode = #tpu.pipeline_mode<synchronous>, transform_indices = @transform_29, window_bounds = array<i64: 1, 32>}, {pipeline_mode = #tpu.pipeline_mode<synchronous>, transform_indices = @transform_30, window_bounds = array<i64: 1, 32>}, {pipeline_mode = #tpu.pipeline_mode<synchronous>, transform_indices = @transform_31, window_bounds = array<i64: 1, 32>}, {transform_indices = @transform_32, window_bounds = array<i64: 1, 8, 32>}]} {
    %c0 = arith.constant 0 : index
    %c0_0 = arith.constant 0 : index
    %c0_1 = arith.constant 0 : index
    %0 = vector.load %arg2[%c0, %c0_0, %c0_1] : memref<1x1x8xf32, #tpu.memory_space<vmem>>, vector<1x1x8xf32>
    %1 = vector.shape_cast %0 : vector<1x1x8xf32> to vector<1x8xf32>
    %cst = arith.constant 1.000000e+00 : f32
    %2 = vector.broadcast %cst : f32 to vector<1x8xf32>
    %3 = arith.subf %2, %1 : vector<1x8xf32>
    %cst_2 = arith.constant -1.000000e+04 : f32
    %4 = vector.broadcast %cst_2 : f32 to vector<1x8xf32>
    %5 = arith.mulf %3, %4 : vector<1x8xf32>
    %c0_3 = arith.constant 0 : index
    %c0_4 = arith.constant 0 : index
    %c0_5 = arith.constant 0 : index
    %6 = vector.load %arg1[%c0_3, %c0_4, %c0_5] : memref<1x8x32xf32, #tpu.memory_space<vmem>>, vector<1x8x32xf32>
    %7 = vector.shape_cast %6 : vector<1x8x32xf32> to vector<8x32xf32>
    %c0_6 = arith.constant 0 : index
    %c0_7 = arith.constant 0 : index
    %c0_8 = arith.constant 0 : index
    %c0_9 = arith.constant 0 : index
    %8 = vector.load %arg5[%c0_6, %c0_7, %c0_8, %c0_9] : memref<3x12x32x8xf32, #tpu.memory_space<vmem>>, vector<1x12x32x8xf32>
    %9 = vector.shape_cast %8 : vector<1x12x32x8xf32> to vector<12x32x8xf32>
    %c0_10 = arith.constant 0 : index
    %c0_11 = arith.constant 0 : index
    %c0_12 = arith.constant 0 : index
    %c0_13 = arith.constant 0 : index
    %10 = vector.load %arg6[%c0_10, %c0_11, %c0_12, %c0_13] : memref<3x12x1x8xf32, #tpu.memory_space<vmem>>, vector<1x12x1x8xf32>
    %11 = vector.shape_cast %10 : vector<1x12x1x8xf32> to vector<12x1x8xf32>
    %c0_14 = arith.constant 0 : index
    %c0_15 = arith.constant 0 : index
    %c0_16 = arith.constant 0 : index
    %c0_17 = arith.constant 0 : index
    %12 = vector.load %arg7[%c0_14, %c0_15, %c0_16, %c0_17] : memref<3x4x8x32xf32, #tpu.memory_space<vmem>>, vector<1x4x8x32xf32>
    %13 = vector.shape_cast %12 : vector<1x4x8x32xf32> to vector<4x8x32xf32>
    %c0_18 = arith.constant 0 : index
    %c0_19 = arith.constant 0 : index
    %c0_20 = arith.constant 0 : index
    %14 = vector.load %arg8[%c0_18, %c0_19, %c0_20] : memref<3x1x32xf32, #tpu.memory_space<vmem>>, vector<1x1x32xf32>
    %15 = vector.shape_cast %14 : vector<1x1x32xf32> to vector<1x32xf32>
    %16 = vector.shape_cast %7 : vector<8x32xf32> to vector<1x8x32xf32>
    %17 = vector.shape_cast %16 : vector<1x8x32xf32> to vector<1x8x32xf32>
    %18 = vector.broadcast %17 : vector<1x8x32xf32> to vector<4x8x32xf32>
    %19 = vector.extract_strided_slice %9 {offsets = [0, 0, 0], sizes = [4, 32, 8], strides = [1, 1, 1]} : vector<12x32x8xf32> to vector<4x32x8xf32>
    %20 = arith.truncf %18 : vector<4x8x32xf32> to vector<4x8x32xbf16>
    %21 = arith.truncf %19 : vector<4x32x8xf32> to vector<4x32x8xbf16>
    %cst_21 = arith.constant dense<0.000000e+00> : vector<4x8x8xf32>
    %22 = tpu.matmul %20, %21, %cst_21 {dimension_numbers = #tpu.dot_dimension_numbers<[2], [1], [1], [2], [0, 0, 0, 1, 1, 2], [0], [0]>} : vector<4x8x32xbf16>, vector<4x32x8xbf16>, vector<4x8x8xf32> -> vector<4x8x8xf32>
    %23 = vector.extract_strided_slice %11 {offsets = [0, 0, 0], sizes = [4, 1, 8], strides = [1, 1, 1]} : vector<12x1x8xf32> to vector<4x1x8xf32>
    %24 = vector.broadcast %23 : vector<4x1x8xf32> to vector<4x8x8xf32>
    %25 = arith.addf %22, %24 : vector<4x8x8xf32>
    %26 = vector.shape_cast %7 : vector<8x32xf32> to vector<1x8x32xf32>
    %27 = vector.shape_cast %26 : vector<1x8x32xf32> to vector<1x8x32xf32>
    %28 = vector.broadcast %27 : vector<1x8x32xf32> to vector<8x8x32xf32>
    %29 = vector.extract_strided_slice %9 {offsets = [4, 0, 0], sizes = [8, 32, 8], strides = [1, 1, 1]} : vector<12x32x8xf32> to vector<8x32x8xf32>
    %30 = arith.truncf %28 : vector<8x8x32xf32> to vector<8x8x32xbf16>
    %31 = arith.truncf %29 : vector<8x32x8xf32> to vector<8x32x8xbf16>
    %cst_22 = arith.constant dense<0.000000e+00> : vector<8x8x8xf32>
    %32 = tpu.matmul %30, %31, %cst_22 {dimension_numbers = #tpu.dot_dimension_numbers<[2], [1], [1], [2], [0, 0, 0, 1, 1, 2], [0], [0]>} : vector<8x8x32xbf16>, vector<8x32x8xbf16>, vector<8x8x8xf32> -> vector<8x8x8xf32>
    %33 = vector.extract_strided_slice %11 {offsets = [4, 0, 0], sizes = [8, 1, 8], strides = [1, 1, 1]} : vector<12x1x8xf32> to vector<8x1x8xf32>
    %34 = vector.broadcast %33 : vector<8x1x8xf32> to vector<8x8x8xf32>
    %35 = arith.addf %32, %34 : vector<8x8x8xf32>
    %36 = vector.extract_strided_slice %35 {offsets = [0, 0, 0], sizes = [4, 8, 8], strides = [1, 1, 1]} : vector<8x8x8xf32> to vector<4x8x8xf32>
    %37 = vector.extract_strided_slice %35 {offsets = [4, 0, 0], sizes = [4, 8, 8], strides = [1, 1, 1]} : vector<8x8x8xf32> to vector<4x8x8xf32>
    %38 = arith.truncf %25 : vector<4x8x8xf32> to vector<4x8x8xbf16>
    %39 = arith.truncf %36 : vector<4x8x8xf32> to vector<4x8x8xbf16>
    %cst_23 = arith.constant dense<0.000000e+00> : vector<4x8x8xf32>
    %40 = tpu.matmul %38, %39, %cst_23 {dimension_numbers = #tpu.dot_dimension_numbers<[2], [2], [1], [1], [0, 0, 0, 1, 1, 1], [0], [0]>} : vector<4x8x8xbf16>, vector<4x8x8xbf16>, vector<4x8x8xf32> -> vector<4x8x8xf32>
    %cst_24 = arith.constant 0.353553385 : f32
    %41 = vector.broadcast %cst_24 : f32 to vector<4x8x8xf32>
    %42 = arith.mulf %40, %41 : vector<4x8x8xf32>
    %43 = vector.shape_cast %5 : vector<1x8xf32> to vector<1x1x8xf32>
    %44 = vector.broadcast %43 : vector<1x1x8xf32> to vector<4x8x8xf32>
    %45 = arith.addf %42, %44 : vector<4x8x8xf32>
    %cst_25 = arith.constant dense<0xFF800000> : vector<4x8xf32>
    %46 = vector.multi_reduction <maximumf>, %45, %cst_25 [2] : vector<4x8x8xf32> to vector<4x8xf32>
    %47 = vector.shape_cast %46 : vector<4x8xf32> to vector<4x8x1xf32>
    %48 = vector.broadcast %47 : vector<4x8x1xf32> to vector<4x8x8xf32>
    %49 = arith.subf %45, %48 : vector<4x8x8xf32>
    %50 = math.exp %49 : vector<4x8x8xf32>
    %cst_26 = arith.constant dense<0.000000e+00> : vector<4x8xf32>
    %51 = vector.multi_reduction <add>, %50, %cst_26 [2] : vector<4x8x8xf32> to vector<4x8xf32>
    %52 = vector.shape_cast %51 : vector<4x8xf32> to vector<4x8x1xf32>
    %53 = tpu.reciprocal %52 {approx = true} : vector<4x8x1xf32> -> vector<4x8x1xf32>
    %54 = vector.broadcast %53 : vector<4x8x1xf32> to vector<4x8x8xf32>
    %55 = arith.mulf %50, %54 : vector<4x8x8xf32>
    %56 = arith.truncf %55 : vector<4x8x8xf32> to vector<4x8x8xbf16>
    %57 = arith.truncf %37 : vector<4x8x8xf32> to vector<4x8x8xbf16>
    %cst_27 = arith.constant dense<0.000000e+00> : vector<4x8x8xf32>
    %58 = tpu.matmul %56, %57, %cst_27 {dimension_numbers = #tpu.dot_dimension_numbers<[2], [1], [1], [2], [0, 0, 0, 1, 1, 2], [0], [0]>} : vector<4x8x8xbf16>, vector<4x8x8xbf16>, vector<4x8x8xf32> -> vector<4x8x8xf32>
    %59 = arith.truncf %58 : vector<4x8x8xf32> to vector<4x8x8xbf16>
    %60 = arith.truncf %13 : vector<4x8x32xf32> to vector<4x8x32xbf16>
    %cst_28 = arith.constant dense<0.000000e+00> : vector<4x8x32xf32>
    %61 = tpu.matmul %59, %60, %cst_28 {dimension_numbers = #tpu.dot_dimension_numbers<[2], [1], [1], [2], [0, 0, 0, 1, 1, 2], [0], [0]>} : vector<4x8x8xbf16>, vector<4x8x32xbf16>, vector<4x8x32xf32> -> vector<4x8x32xf32>
    %cst_29 = arith.constant dense<0.000000e+00> : vector<8x32xf32>
    %62 = vector.multi_reduction <add>, %61, %cst_29 [0] : vector<4x8x32xf32> to vector<8x32xf32>
    %63 = vector.broadcast %15 : vector<1x32xf32> to vector<8x32xf32>
    %64 = arith.addf %62, %63 : vector<8x32xf32>
    %65 = arith.addf %64, %7 : vector<8x32xf32>
    %c0_30 = arith.constant 0 : index
    %c0_31 = arith.constant 0 : index
    %c0_32 = arith.constant 0 : index
    %66 = vector.load %arg9[%c0_30, %c0_31, %c0_32] : memref<3x1x32xf32, #tpu.memory_space<vmem>>, vector<1x1x32xf32>
    %67 = vector.shape_cast %66 : vector<1x1x32xf32> to vector<1x32xf32>
    %c0_33 = arith.constant 0 : index
    %c0_34 = arith.constant 0 : index
    %c0_35 = arith.constant 0 : index
    %68 = vector.load %arg10[%c0_33, %c0_34, %c0_35] : memref<3x1x32xf32, #tpu.memory_space<vmem>>, vector<1x1x32xf32>
    %69 = vector.shape_cast %68 : vector<1x1x32xf32> to vector<1x32xf32>
    %cst_36 = arith.constant dense<0.000000e+00> : vector<8xf32>
    %70 = vector.multi_reduction <add>, %65, %cst_36 [1] : vector<8x32xf32> to vector<8xf32>
    %71 = vector.shape_cast %70 : vector<8xf32> to vector<8x1xf32>
    %cst_37 = arith.constant 3.200000e+01 : f32
    %72 = vector.broadcast %cst_37 : f32 to vector<8x1xf32>
    %73 = arith.divf %71, %72 : vector<8x1xf32>
    %74 = vector.broadcast %73 : vector<8x1xf32> to vector<8x32xf32>
    %75 = arith.subf %65, %74 : vector<8x32xf32>
    %76 = arith.mulf %75, %75 : vector<8x32xf32>
    %cst_38 = arith.constant dense<0.000000e+00> : vector<8xf32>
    %77 = vector.multi_reduction <add>, %76, %cst_38 [1] : vector<8x32xf32> to vector<8xf32>
    %78 = vector.shape_cast %77 : vector<8xf32> to vector<8x1xf32>
    %cst_39 = arith.constant 3.200000e+01 : f32
    %79 = vector.broadcast %cst_39 : f32 to vector<8x1xf32>
    %80 = arith.divf %78, %79 : vector<8x1xf32>
    %81 = vector.broadcast %73 : vector<8x1xf32> to vector<8x32xf32>
    %82 = arith.subf %65, %81 : vector<8x32xf32>
    %cst_40 = arith.constant 9.99999974E-6 : f32
    %83 = vector.broadcast %cst_40 : f32 to vector<8x1xf32>
    %84 = arith.addf %80, %83 : vector<8x1xf32>
    %85 = math.rsqrt %84 : vector<8x1xf32>
    %86 = vector.broadcast %85 : vector<8x1xf32> to vector<8x32xf32>
    %87 = arith.mulf %82, %86 : vector<8x32xf32>
    %88 = vector.broadcast %67 : vector<1x32xf32> to vector<8x32xf32>
    %89 = arith.mulf %87, %88 : vector<8x32xf32>
    %90 = vector.broadcast %69 : vector<1x32xf32> to vector<8x32xf32>
    %91 = arith.addf %89, %90 : vector<8x32xf32>
    %c0_41 = arith.constant 0 : index
    %c0_42 = arith.constant 0 : index
    %c0_43 = arith.constant 0 : index
    %92 = vector.load %arg11[%c0_41, %c0_42, %c0_43] : memref<3x32x64xf32, #tpu.memory_space<vmem>>, vector<1x32x64xf32>
    %93 = vector.shape_cast %92 : vector<1x32x64xf32> to vector<32x64xf32>
    %94 = arith.truncf %91 : vector<8x32xf32> to vector<8x32xbf16>
    %95 = arith.truncf %93 : vector<32x64xf32> to vector<32x64xbf16>
    %cst_44 = arith.constant dense<0.000000e+00> : vector<8x64xf32>
    %96 = tpu.matmul %94, %95, %cst_44 {dimension_numbers = #tpu.dot_dimension_numbers<[1], [0], [0], [1], [0, 0, 1, 1], [], []>} : vector<8x32xbf16>, vector<32x64xbf16>, vector<8x64xf32> -> vector<8x64xf32>
    %c0_45 = arith.constant 0 : index
    %c0_46 = arith.constant 0 : index
    %c0_47 = arith.constant 0 : index
    %97 = vector.load %arg12[%c0_45, %c0_46, %c0_47] : memref<3x1x64xf32, #tpu.memory_space<vmem>>, vector<1x1x64xf32>
    %98 = vector.shape_cast %97 : vector<1x1x64xf32> to vector<1x64xf32>
    %99 = vector.broadcast %98 : vector<1x64xf32> to vector<8x64xf32>
    %100 = arith.addf %96, %99 : vector<8x64xf32>
    %101 = arith.mulf %100, %100 : vector<8x64xf32>
    %102 = arith.mulf %100, %101 : vector<8x64xf32>
    %cst_48 = arith.constant 4.471500e-02 : f32
    %103 = vector.broadcast %cst_48 : f32 to vector<8x64xf32>
    %104 = arith.mulf %103, %102 : vector<8x64xf32>
    %105 = arith.addf %100, %104 : vector<8x64xf32>
    %cst_49 = arith.constant 0.797884583 : f32
    %106 = vector.broadcast %cst_49 : f32 to vector<8x64xf32>
    %107 = arith.mulf %106, %105 : vector<8x64xf32>
    %108 = math.tanh %107 : vector<8x64xf32>
    %cst_50 = arith.constant 1.000000e+00 : f32
    %109 = vector.broadcast %cst_50 : f32 to vector<8x64xf32>
    %110 = arith.addf %109, %108 : vector<8x64xf32>
    %cst_51 = arith.constant 5.000000e-01 : f32
    %111 = vector.broadcast %cst_51 : f32 to vector<8x64xf32>
    %112 = arith.mulf %111, %110 : vector<8x64xf32>
    %113 = arith.mulf %100, %112 : vector<8x64xf32>
    %c0_52 = arith.constant 0 : index
    %c0_53 = arith.constant 0 : index
    %c0_54 = arith.constant 0 : index
    %114 = vector.load %arg13[%c0_52, %c0_53, %c0_54] : memref<3x64x32xf32, #tpu.memory_space<vmem>>, vector<1x64x32xf32>
    %115 = vector.shape_cast %114 : vector<1x64x32xf32> to vector<64x32xf32>
    %116 = arith.truncf %113 : vector<8x64xf32> to vector<8x64xbf16>
    %117 = arith.truncf %115 : vector<64x32xf32> to vector<64x32xbf16>
    %cst_55 = arith.constant dense<0.000000e+00> : vector<8x32xf32>
    %118 = tpu.matmul %116, %117, %cst_55 {dimension_numbers = #tpu.dot_dimension_numbers<[1], [0], [0], [1], [0, 0, 1, 1], [], []>} : vector<8x64xbf16>, vector<64x32xbf16>, vector<8x32xf32> -> vector<8x32xf32>
    %c0_56 = arith.constant 0 : index
    %c0_57 = arith.constant 0 : index
    %c0_58 = arith.constant 0 : index
    %119 = vector.load %arg14[%c0_56, %c0_57, %c0_58] : memref<3x1x32xf32, #tpu.memory_space<vmem>>, vector<1x1x32xf32>
    %120 = vector.shape_cast %119 : vector<1x1x32xf32> to vector<1x32xf32>
    %121 = vector.broadcast %120 : vector<1x32xf32> to vector<8x32xf32>
    %122 = arith.addf %118, %121 : vector<8x32xf32>
    %123 = arith.addf %122, %91 : vector<8x32xf32>
    %c0_59 = arith.constant 0 : index
    %c0_60 = arith.constant 0 : index
    %c0_61 = arith.constant 0 : index
    %124 = vector.load %arg15[%c0_59, %c0_60, %c0_61] : memref<3x1x32xf32, #tpu.memory_space<vmem>>, vector<1x1x32xf32>
    %125 = vector.shape_cast %124 : vector<1x1x32xf32> to vector<1x32xf32>
    %c0_62 = arith.constant 0 : index
    %c0_63 = arith.constant 0 : index
    %c0_64 = arith.constant 0 : index
    %126 = vector.load %arg16[%c0_62, %c0_63, %c0_64] : memref<3x1x32xf32, #tpu.memory_space<vmem>>, vector<1x1x32xf32>
    %127 = vector.shape_cast %126 : vector<1x1x32xf32> to vector<1x32xf32>
    %cst_65 = arith.constant dense<0.000000e+00> : vector<8xf32>
    %128 = vector.multi_reduction <add>, %123, %cst_65 [1] : vector<8x32xf32> to vector<8xf32>
    %129 = vector.shape_cast %128 : vector<8xf32> to vector<8x1xf32>
    %cst_66 = arith.constant 3.200000e+01 : f32
    %130 = vector.broadcast %cst_66 : f32 to vector<8x1xf32>
    %131 = arith.divf %129, %130 : vector<8x1xf32>
    %132 = vector.broadcast %131 : vector<8x1xf32> to vector<8x32xf32>
    %133 = arith.subf %123, %132 : vector<8x32xf32>
    %134 = arith.mulf %133, %133 : vector<8x32xf32>
    %cst_67 = arith.constant dense<0.000000e+00> : vector<8xf32>
    %135 = vector.multi_reduction <add>, %134, %cst_67 [1] : vector<8x32xf32> to vector<8xf32>
    %136 = vector.shape_cast %135 : vector<8xf32> to vector<8x1xf32>
    %cst_68 = arith.constant 3.200000e+01 : f32
    %137 = vector.broadcast %cst_68 : f32 to vector<8x1xf32>
    %138 = arith.divf %136, %137 : vector<8x1xf32>
    %139 = vector.broadcast %131 : vector<8x1xf32> to vector<8x32xf32>
    %140 = arith.subf %123, %139 : vector<8x32xf32>
    %cst_69 = arith.constant 9.99999974E-6 : f32
    %141 = vector.broadcast %cst_69 : f32 to vector<8x1xf32>
    %142 = arith.addf %138, %141 : vector<8x1xf32>
    %143 = math.rsqrt %142 : vector<8x1xf32>
    %144 = vector.broadcast %143 : vector<8x1xf32> to vector<8x32xf32>
    %145 = arith.mulf %140, %144 : vector<8x32xf32>
    %146 = vector.broadcast %125 : vector<1x32xf32> to vector<8x32xf32>
    %147 = arith.mulf %145, %146 : vector<8x32xf32>
    %148 = vector.broadcast %127 : vector<1x32xf32> to vector<8x32xf32>
    %149 = arith.addf %147, %148 : vector<8x32xf32>
    %c1 = arith.constant 1 : index
    %c0_70 = arith.constant 0 : index
    %c0_71 = arith.constant 0 : index
    %c0_72 = arith.constant 0 : index
    %150 = vector.load %arg5[%c1, %c0_70, %c0_71, %c0_72] : memref<3x12x32x8xf32, #tpu.memory_space<vmem>>, vector<1x12x32x8xf32>
    %151 = vector.shape_cast %150 : vector<1x12x32x8xf32> to vector<12x32x8xf32>
    %c1_73 = arith.constant 1 : index
    %c0_74 = arith.constant 0 : index
    %c0_75 = arith.constant 0 : index
    %c0_76 = arith.constant 0 : index
    %152 = vector.load %arg6[%c1_73, %c0_74, %c0_75, %c0_76] : memref<3x12x1x8xf32, #tpu.memory_space<vmem>>, vector<1x12x1x8xf32>
    %153 = vector.shape_cast %152 : vector<1x12x1x8xf32> to vector<12x1x8xf32>
    %c1_77 = arith.constant 1 : index
    %c0_78 = arith.constant 0 : index
    %c0_79 = arith.constant 0 : index
    %c0_80 = arith.constant 0 : index
    %154 = vector.load %arg7[%c1_77, %c0_78, %c0_79, %c0_80] : memref<3x4x8x32xf32, #tpu.memory_space<vmem>>, vector<1x4x8x32xf32>
    %155 = vector.shape_cast %154 : vector<1x4x8x32xf32> to vector<4x8x32xf32>
    %c1_81 = arith.constant 1 : index
    %c0_82 = arith.constant 0 : index
    %c0_83 = arith.constant 0 : index
    %156 = vector.load %arg8[%c1_81, %c0_82, %c0_83] : memref<3x1x32xf32, #tpu.memory_space<vmem>>, vector<1x1x32xf32>
    %157 = vector.shape_cast %156 : vector<1x1x32xf32> to vector<1x32xf32>
    %158 = vector.shape_cast %149 : vector<8x32xf32> to vector<1x8x32xf32>
    %159 = vector.shape_cast %158 : vector<1x8x32xf32> to vector<1x8x32xf32>
    %160 = vector.broadcast %159 : vector<1x8x32xf32> to vector<4x8x32xf32>
    %161 = vector.extract_strided_slice %151 {offsets = [0, 0, 0], sizes = [4, 32, 8], strides = [1, 1, 1]} : vector<12x32x8xf32> to vector<4x32x8xf32>
    %162 = arith.truncf %160 : vector<4x8x32xf32> to vector<4x8x32xbf16>
    %163 = arith.truncf %161 : vector<4x32x8xf32> to vector<4x32x8xbf16>
    %cst_84 = arith.constant dense<0.000000e+00> : vector<4x8x8xf32>
    %164 = tpu.matmul %162, %163, %cst_84 {dimension_numbers = #tpu.dot_dimension_numbers<[2], [1], [1], [2], [0, 0, 0, 1, 1, 2], [0], [0]>} : vector<4x8x32xbf16>, vector<4x32x8xbf16>, vector<4x8x8xf32> -> vector<4x8x8xf32>
    %165 = vector.extract_strided_slice %153 {offsets = [0, 0, 0], sizes = [4, 1, 8], strides = [1, 1, 1]} : vector<12x1x8xf32> to vector<4x1x8xf32>
    %166 = vector.broadcast %165 : vector<4x1x8xf32> to vector<4x8x8xf32>
    %167 = arith.addf %164, %166 : vector<4x8x8xf32>
    %168 = vector.shape_cast %149 : vector<8x32xf32> to vector<1x8x32xf32>
    %169 = vector.shape_cast %168 : vector<1x8x32xf32> to vector<1x8x32xf32>
    %170 = vector.broadcast %169 : vector<1x8x32xf32> to vector<8x8x32xf32>
    %171 = vector.extract_strided_slice %151 {offsets = [4, 0, 0], sizes = [8, 32, 8], strides = [1, 1, 1]} : vector<12x32x8xf32> to vector<8x32x8xf32>
    %172 = arith.truncf %170 : vector<8x8x32xf32> to vector<8x8x32xbf16>
    %173 = arith.truncf %171 : vector<8x32x8xf32> to vector<8x32x8xbf16>
    %cst_85 = arith.constant dense<0.000000e+00> : vector<8x8x8xf32>
    %174 = tpu.matmul %172, %173, %cst_85 {dimension_numbers = #tpu.dot_dimension_numbers<[2], [1], [1], [2], [0, 0, 0, 1, 1, 2], [0], [0]>} : vector<8x8x32xbf16>, vector<8x32x8xbf16>, vector<8x8x8xf32> -> vector<8x8x8xf32>
    %175 = vector.extract_strided_slice %153 {offsets = [4, 0, 0], sizes = [8, 1, 8], strides = [1, 1, 1]} : vector<12x1x8xf32> to vector<8x1x8xf32>
    %176 = vector.broadcast %175 : vector<8x1x8xf32> to vector<8x8x8xf32>
    %177 = arith.addf %174, %176 : vector<8x8x8xf32>
    %178 = vector.extract_strided_slice %177 {offsets = [0, 0, 0], sizes = [4, 8, 8], strides = [1, 1, 1]} : vector<8x8x8xf32> to vector<4x8x8xf32>
    %179 = vector.extract_strided_slice %177 {offsets = [4, 0, 0], sizes = [4, 8, 8], strides = [1, 1, 1]} : vector<8x8x8xf32> to vector<4x8x8xf32>
    %180 = arith.truncf %167 : vector<4x8x8xf32> to vector<4x8x8xbf16>
    %181 = arith.truncf %178 : vector<4x8x8xf32> to vector<4x8x8xbf16>
    %cst_86 = arith.constant dense<0.000000e+00> : vector<4x8x8xf32>
    %182 = tpu.matmul %180, %181, %cst_86 {dimension_numbers = #tpu.dot_dimension_numbers<[2], [2], [1], [1], [0, 0, 0, 1, 1, 1], [0], [0]>} : vector<4x8x8xbf16>, vector<4x8x8xbf16>, vector<4x8x8xf32> -> vector<4x8x8xf32>
    %cst_87 = arith.constant 0.353553385 : f32
    %183 = vector.broadcast %cst_87 : f32 to vector<4x8x8xf32>
    %184 = arith.mulf %182, %183 : vector<4x8x8xf32>
    %185 = vector.shape_cast %5 : vector<1x8xf32> to vector<1x1x8xf32>
    %186 = vector.broadcast %185 : vector<1x1x8xf32> to vector<4x8x8xf32>
    %187 = arith.addf %184, %186 : vector<4x8x8xf32>
    %cst_88 = arith.constant dense<0xFF800000> : vector<4x8xf32>
    %188 = vector.multi_reduction <maximumf>, %187, %cst_88 [2] : vector<4x8x8xf32> to vector<4x8xf32>
    %189 = vector.shape_cast %188 : vector<4x8xf32> to vector<4x8x1xf32>
    %190 = vector.broadcast %189 : vector<4x8x1xf32> to vector<4x8x8xf32>
    %191 = arith.subf %187, %190 : vector<4x8x8xf32>
    %192 = math.exp %191 : vector<4x8x8xf32>
    %cst_89 = arith.constant dense<0.000000e+00> : vector<4x8xf32>
    %193 = vector.multi_reduction <add>, %192, %cst_89 [2] : vector<4x8x8xf32> to vector<4x8xf32>
    %194 = vector.shape_cast %193 : vector<4x8xf32> to vector<4x8x1xf32>
    %195 = tpu.reciprocal %194 {approx = true} : vector<4x8x1xf32> -> vector<4x8x1xf32>
    %196 = vector.broadcast %195 : vector<4x8x1xf32> to vector<4x8x8xf32>
    %197 = arith.mulf %192, %196 : vector<4x8x8xf32>
    %198 = arith.truncf %197 : vector<4x8x8xf32> to vector<4x8x8xbf16>
    %199 = arith.truncf %179 : vector<4x8x8xf32> to vector<4x8x8xbf16>
    %cst_90 = arith.constant dense<0.000000e+00> : vector<4x8x8xf32>
    %200 = tpu.matmul %198, %199, %cst_90 {dimension_numbers = #tpu.dot_dimension_numbers<[2], [1], [1], [2], [0, 0, 0, 1, 1, 2], [0], [0]>} : vector<4x8x8xbf16>, vector<4x8x8xbf16>, vector<4x8x8xf32> -> vector<4x8x8xf32>
    %201 = arith.truncf %200 : vector<4x8x8xf32> to vector<4x8x8xbf16>
    %202 = arith.truncf %155 : vector<4x8x32xf32> to vector<4x8x32xbf16>
    %cst_91 = arith.constant dense<0.000000e+00> : vector<4x8x32xf32>
    %203 = tpu.matmul %201, %202, %cst_91 {dimension_numbers = #tpu.dot_dimension_numbers<[2], [1], [1], [2], [0, 0, 0, 1, 1, 2], [0], [0]>} : vector<4x8x8xbf16>, vector<4x8x32xbf16>, vector<4x8x32xf32> -> vector<4x8x32xf32>
    %cst_92 = arith.constant dense<0.000000e+00> : vector<8x32xf32>
    %204 = vector.multi_reduction <add>, %203, %cst_92 [0] : vector<4x8x32xf32> to vector<8x32xf32>
    %205 = vector.broadcast %157 : vector<1x32xf32> to vector<8x32xf32>
    %206 = arith.addf %204, %205 : vector<8x32xf32>
    %207 = arith.addf %206, %149 : vector<8x32xf32>
    %c1_93 = arith.constant 1 : index
    %c0_94 = arith.constant 0 : index
    %c0_95 = arith.constant 0 : index
    %208 = vector.load %arg9[%c1_93, %c0_94, %c0_95] : memref<3x1x32xf32, #tpu.memory_space<vmem>>, vector<1x1x32xf32>
    %209 = vector.shape_cast %208 : vector<1x1x32xf32> to vector<1x32xf32>
    %c1_96 = arith.constant 1 : index
    %c0_97 = arith.constant 0 : index
    %c0_98 = arith.constant 0 : index
    %210 = vector.load %arg10[%c1_96, %c0_97, %c0_98] : memref<3x1x32xf32, #tpu.memory_space<vmem>>, vector<1x1x32xf32>
    %211 = vector.shape_cast %210 : vector<1x1x32xf32> to vector<1x32xf32>
    %cst_99 = arith.constant dense<0.000000e+00> : vector<8xf32>
    %212 = vector.multi_reduction <add>, %207, %cst_99 [1] : vector<8x32xf32> to vector<8xf32>
    %213 = vector.shape_cast %212 : vector<8xf32> to vector<8x1xf32>
    %cst_100 = arith.constant 3.200000e+01 : f32
    %214 = vector.broadcast %cst_100 : f32 to vector<8x1xf32>
    %215 = arith.divf %213, %214 : vector<8x1xf32>
    %216 = vector.broadcast %215 : vector<8x1xf32> to vector<8x32xf32>
    %217 = arith.subf %207, %216 : vector<8x32xf32>
    %218 = arith.mulf %217, %217 : vector<8x32xf32>
    %cst_101 = arith.constant dense<0.000000e+00> : vector<8xf32>
    %219 = vector.multi_reduction <add>, %218, %cst_101 [1] : vector<8x32xf32> to vector<8xf32>
    %220 = vector.shape_cast %219 : vector<8xf32> to vector<8x1xf32>
    %cst_102 = arith.constant 3.200000e+01 : f32
    %221 = vector.broadcast %cst_102 : f32 to vector<8x1xf32>
    %222 = arith.divf %220, %221 : vector<8x1xf32>
    %223 = vector.broadcast %215 : vector<8x1xf32> to vector<8x32xf32>
    %224 = arith.subf %207, %223 : vector<8x32xf32>
    %cst_103 = arith.constant 9.99999974E-6 : f32
    %225 = vector.broadcast %cst_103 : f32 to vector<8x1xf32>
    %226 = arith.addf %222, %225 : vector<8x1xf32>
    %227 = math.rsqrt %226 : vector<8x1xf32>
    %228 = vector.broadcast %227 : vector<8x1xf32> to vector<8x32xf32>
    %229 = arith.mulf %224, %228 : vector<8x32xf32>
    %230 = vector.broadcast %209 : vector<1x32xf32> to vector<8x32xf32>
    %231 = arith.mulf %229, %230 : vector<8x32xf32>
    %232 = vector.broadcast %211 : vector<1x32xf32> to vector<8x32xf32>
    %233 = arith.addf %231, %232 : vector<8x32xf32>
    %c1_104 = arith.constant 1 : index
    %c0_105 = arith.constant 0 : index
    %c0_106 = arith.constant 0 : index
    %234 = vector.load %arg11[%c1_104, %c0_105, %c0_106] : memref<3x32x64xf32, #tpu.memory_space<vmem>>, vector<1x32x64xf32>
    %235 = vector.shape_cast %234 : vector<1x32x64xf32> to vector<32x64xf32>
    %236 = arith.truncf %233 : vector<8x32xf32> to vector<8x32xbf16>
    %237 = arith.truncf %235 : vector<32x64xf32> to vector<32x64xbf16>
    %cst_107 = arith.constant dense<0.000000e+00> : vector<8x64xf32>
    %238 = tpu.matmul %236, %237, %cst_107 {dimension_numbers = #tpu.dot_dimension_numbers<[1], [0], [0], [1], [0, 0, 1, 1], [], []>} : vector<8x32xbf16>, vector<32x64xbf16>, vector<8x64xf32> -> vector<8x64xf32>
    %c1_108 = arith.constant 1 : index
    %c0_109 = arith.constant 0 : index
    %c0_110 = arith.constant 0 : index
    %239 = vector.load %arg12[%c1_108, %c0_109, %c0_110] : memref<3x1x64xf32, #tpu.memory_space<vmem>>, vector<1x1x64xf32>
    %240 = vector.shape_cast %239 : vector<1x1x64xf32> to vector<1x64xf32>
    %241 = vector.broadcast %240 : vector<1x64xf32> to vector<8x64xf32>
    %242 = arith.addf %238, %241 : vector<8x64xf32>
    %243 = arith.mulf %242, %242 : vector<8x64xf32>
    %244 = arith.mulf %242, %243 : vector<8x64xf32>
    %cst_111 = arith.constant 4.471500e-02 : f32
    %245 = vector.broadcast %cst_111 : f32 to vector<8x64xf32>
    %246 = arith.mulf %245, %244 : vector<8x64xf32>
    %247 = arith.addf %242, %246 : vector<8x64xf32>
    %cst_112 = arith.constant 0.797884583 : f32
    %248 = vector.broadcast %cst_112 : f32 to vector<8x64xf32>
    %249 = arith.mulf %248, %247 : vector<8x64xf32>
    %250 = math.tanh %249 : vector<8x64xf32>
    %cst_113 = arith.constant 1.000000e+00 : f32
    %251 = vector.broadcast %cst_113 : f32 to vector<8x64xf32>
    %252 = arith.addf %251, %250 : vector<8x64xf32>
    %cst_114 = arith.constant 5.000000e-01 : f32
    %253 = vector.broadcast %cst_114 : f32 to vector<8x64xf32>
    %254 = arith.mulf %253, %252 : vector<8x64xf32>
    %255 = arith.mulf %242, %254 : vector<8x64xf32>
    %c1_115 = arith.constant 1 : index
    %c0_116 = arith.constant 0 : index
    %c0_117 = arith.constant 0 : index
    %256 = vector.load %arg13[%c1_115, %c0_116, %c0_117] : memref<3x64x32xf32, #tpu.memory_space<vmem>>, vector<1x64x32xf32>
    %257 = vector.shape_cast %256 : vector<1x64x32xf32> to vector<64x32xf32>
    %258 = arith.truncf %255 : vector<8x64xf32> to vector<8x64xbf16>
    %259 = arith.truncf %257 : vector<64x32xf32> to vector<64x32xbf16>
    %cst_118 = arith.constant dense<0.000000e+00> : vector<8x32xf32>
    %260 = tpu.matmul %258, %259, %cst_118 {dimension_numbers = #tpu.dot_dimension_numbers<[1], [0], [0], [1], [0, 0, 1, 1], [], []>} : vector<8x64xbf16>, vector<64x32xbf16>, vector<8x32xf32> -> vector<8x32xf32>
    %c1_119 = arith.constant 1 : index
    %c0_120 = arith.constant 0 : index
    %c0_121 = arith.constant 0 : index
    %261 = vector.load %arg14[%c1_119, %c0_120, %c0_121] : memref<3x1x32xf32, #tpu.memory_space<vmem>>, vector<1x1x32xf32>
    %262 = vector.shape_cast %261 : vector<1x1x32xf32> to vector<1x32xf32>
    %263 = vector.broadcast %262 : vector<1x32xf32> to vector<8x32xf32>
    %264 = arith.addf %260, %263 : vector<8x32xf32>
    %265 = arith.addf %264, %233 : vector<8x32xf32>
    %c1_122 = arith.constant 1 : index
    %c0_123 = arith.constant 0 : index
    %c0_124 = arith.constant 0 : index
    %266 = vector.load %arg15[%c1_122, %c0_123, %c0_124] : memref<3x1x32xf32, #tpu.memory_space<vmem>>, vector<1x1x32xf32>
    %267 = vector.shape_cast %266 : vector<1x1x32xf32> to vector<1x32xf32>
    %c1_125 = arith.constant 1 : index
    %c0_126 = arith.constant 0 : index
    %c0_127 = arith.constant 0 : index
    %268 = vector.load %arg16[%c1_125, %c0_126, %c0_127] : memref<3x1x32xf32, #tpu.memory_space<vmem>>, vector<1x1x32xf32>
    %269 = vector.shape_cast %268 : vector<1x1x32xf32> to vector<1x32xf32>
    %cst_128 = arith.constant dense<0.000000e+00> : vector<8xf32>
    %270 = vector.multi_reduction <add>, %265, %cst_128 [1] : vector<8x32xf32> to vector<8xf32>
    %271 = vector.shape_cast %270 : vector<8xf32> to vector<8x1xf32>
    %cst_129 = arith.constant 3.200000e+01 : f32
    %272 = vector.broadcast %cst_129 : f32 to vector<8x1xf32>
    %273 = arith.divf %271, %272 : vector<8x1xf32>
    %274 = vector.broadcast %273 : vector<8x1xf32> to vector<8x32xf32>
    %275 = arith.subf %265, %274 : vector<8x32xf32>
    %276 = arith.mulf %275, %275 : vector<8x32xf32>
    %cst_130 = arith.constant dense<0.000000e+00> : vector<8xf32>
    %277 = vector.multi_reduction <add>, %276, %cst_130 [1] : vector<8x32xf32> to vector<8xf32>
    %278 = vector.shape_cast %277 : vector<8xf32> to vector<8x1xf32>
    %cst_131 = arith.constant 3.200000e+01 : f32
    %279 = vector.broadcast %cst_131 : f32 to vector<8x1xf32>
    %280 = arith.divf %278, %279 : vector<8x1xf32>
    %281 = vector.broadcast %273 : vector<8x1xf32> to vector<8x32xf32>
    %282 = arith.subf %265, %281 : vector<8x32xf32>
    %cst_132 = arith.constant 9.99999974E-6 : f32
    %283 = vector.broadcast %cst_132 : f32 to vector<8x1xf32>
    %284 = arith.addf %280, %283 : vector<8x1xf32>
    %285 = math.rsqrt %284 : vector<8x1xf32>
    %286 = vector.broadcast %285 : vector<8x1xf32> to vector<8x32xf32>
    %287 = arith.mulf %282, %286 : vector<8x32xf32>
    %288 = vector.broadcast %267 : vector<1x32xf32> to vector<8x32xf32>
    %289 = arith.mulf %287, %288 : vector<8x32xf32>
    %290 = vector.broadcast %269 : vector<1x32xf32> to vector<8x32xf32>
    %291 = arith.addf %289, %290 : vector<8x32xf32>
    %c0_133 = arith.constant 0 : index
    %c0_134 = arith.constant 0 : index
    %292 = vector.load %arg17[%c0_133, %c0_134] : memref<32x16xf32, #tpu.memory_space<vmem>>, vector<32x16xf32>
    %293 = arith.truncf %291 : vector<8x32xf32> to vector<8x32xbf16>
    %294 = arith.truncf %292 : vector<32x16xf32> to vector<32x16xbf16>
    %cst_135 = arith.constant dense<0.000000e+00> : vector<8x16xf32>
    %295 = tpu.matmul %293, %294, %cst_135 {dimension_numbers = #tpu.dot_dimension_numbers<[1], [0], [0], [1], [0, 0, 1, 1], [], []>} : vector<8x32xbf16>, vector<32x16xbf16>, vector<8x16xf32> -> vector<8x16xf32>
    %c0_136 = arith.constant 0 : index
    %c0_137 = arith.constant 0 : index
    %296 = vector.load %arg18[%c0_136, %c0_137] : memref<1x32xf32, #tpu.memory_space<vmem>>, vector<1x32xf32>
    %297 = vector.broadcast %296 : vector<1x32xf32> to vector<8x32xf32>
    %298 = arith.mulf %291, %297 : vector<8x32xf32>
    %cst_138 = arith.constant dense<0.000000e+00> : vector<8xf32>
    %299 = vector.multi_reduction <add>, %298, %cst_138 [1] : vector<8x32xf32> to vector<8xf32>
    %300 = vector.shape_cast %299 : vector<8xf32> to vector<8x1xf32>
    %301 = vector.extract_strided_slice %291 {offsets = [0, 0], sizes = [1, 32], strides = [1, 1]} : vector<8x32xf32> to vector<1x32xf32>
    %c0_139 = arith.constant 0 : index
    %c0_140 = arith.constant 0 : index
    %302 = vector.load %arg19[%c0_139, %c0_140] : memref<32x16xf32, #tpu.memory_space<vmem>>, vector<32x16xf32>
    %303 = arith.truncf %301 : vector<1x32xf32> to vector<1x32xbf16>
    %304 = arith.truncf %302 : vector<32x16xf32> to vector<32x16xbf16>
    %cst_141 = arith.constant dense<0.000000e+00> : vector<1x16xf32>
    %305 = tpu.matmul %303, %304, %cst_141 {dimension_numbers = #tpu.dot_dimension_numbers<[1], [0], [0], [1], [0, 0, 1, 1], [], []>} : vector<1x32xbf16>, vector<32x16xbf16>, vector<1x16xf32> -> vector<1x16xf32>
    %c0_142 = arith.constant 0 : index
    %c0_143 = arith.constant 0 : index
    %306 = vector.load %arg20[%c0_142, %c0_143] : memref<1x16xf32, #tpu.memory_space<vmem>>, vector<1x16xf32>
    %307 = arith.addf %305, %306 : vector<1x16xf32>
    %c0_144 = arith.constant 0 : index
    %c0_145 = arith.constant 0 : index
    %c0_146 = arith.constant 0 : index
    %c0_147 = arith.constant 0 : index
    %308 = vector.load %arg3[%c0_144, %c0_145, %c0_146, %c0_147] : memref<3x1x8x16xf32, #tpu.memory_space<vmem>>, vector<1x1x8x16xf32>
    %309 = vector.shape_cast %308 : vector<1x1x8x16xf32> to vector<8x16xf32>
    %310 = arith.mulf %309, %295 : vector<8x16xf32>
    %cst_148 = arith.constant dense<0.000000e+00> : vector<8xf32>
    %311 = vector.multi_reduction <add>, %310, %cst_148 [1] : vector<8x16xf32> to vector<8xf32>
    %312 = vector.shape_cast %311 : vector<8xf32> to vector<8x1xf32>
    %313 = arith.addf %312, %300 : vector<8x1xf32>
    %c1_149 = arith.constant 1 : index
    %c0_150 = arith.constant 0 : index
    %c0_151 = arith.constant 0 : index
    %c0_152 = arith.constant 0 : index
    %314 = vector.load %arg3[%c1_149, %c0_150, %c0_151, %c0_152] : memref<3x1x8x16xf32, #tpu.memory_space<vmem>>, vector<1x1x8x16xf32>
    %315 = vector.shape_cast %314 : vector<1x1x8x16xf32> to vector<8x16xf32>
    %316 = arith.mulf %315, %295 : vector<8x16xf32>
    %cst_153 = arith.constant dense<0.000000e+00> : vector<8xf32>
    %317 = vector.multi_reduction <add>, %316, %cst_153 [1] : vector<8x16xf32> to vector<8xf32>
    %318 = vector.shape_cast %317 : vector<8xf32> to vector<8x1xf32>
    %319 = arith.addf %318, %300 : vector<8x1xf32>
    %c2 = arith.constant 2 : index
    %c0_154 = arith.constant 0 : index
    %c0_155 = arith.constant 0 : index
    %c0_156 = arith.constant 0 : index
    %320 = vector.load %arg3[%c2, %c0_154, %c0_155, %c0_156] : memref<3x1x8x16xf32, #tpu.memory_space<vmem>>, vector<1x1x8x16xf32>
    %321 = vector.shape_cast %320 : vector<1x1x8x16xf32> to vector<8x16xf32>
    %322 = arith.mulf %321, %295 : vector<8x16xf32>
    %cst_157 = arith.constant dense<0.000000e+00> : vector<8xf32>
    %323 = vector.multi_reduction <add>, %322, %cst_157 [1] : vector<8x16xf32> to vector<8xf32>
    %324 = vector.shape_cast %323 : vector<8xf32> to vector<8x1xf32>
    %325 = arith.addf %324, %300 : vector<8x1xf32>
    %326 = vector.broadcast %307 : vector<1x16xf32> to vector<8x16xf32>
    %327 = arith.mulf %326, %295 : vector<8x16xf32>
    %cst_158 = arith.constant dense<0.000000e+00> : vector<8xf32>
    %328 = vector.multi_reduction <add>, %327, %cst_158 [1] : vector<8x16xf32> to vector<8xf32>
    %329 = vector.shape_cast %328 : vector<8xf32> to vector<8x1xf32>
    %330 = arith.addf %329, %300 : vector<8x1xf32>
    %c0_159 = arith.constant 0 : index
    %c0_160 = arith.constant 0 : index
    %c0_161 = arith.constant 0 : index
    %c0_162 = arith.constant 0 : index
    %331 = vector.load %arg4[%c0_159, %c0_160, %c0_161, %c0_162] : memref<4x1x8x1xf32, #tpu.memory_space<vmem>>, vector<1x1x8x1xf32>
    %332 = vector.shape_cast %331 : vector<1x1x8x1xf32> to vector<8x1xf32>
    %cst_163 = arith.constant 1.000000e+00 : f32
    %333 = vector.broadcast %cst_163 : f32 to vector<8x1xf32>
    %334 = arith.subf %333, %332 : vector<8x1xf32>
    %cst_164 = arith.constant -1.000000e+04 : f32
    %335 = vector.broadcast %cst_164 : f32 to vector<8x1xf32>
    %336 = arith.mulf %334, %335 : vector<8x1xf32>
    %337 = arith.addf %313, %336 : vector<8x1xf32>
    %c1_165 = arith.constant 1 : index
    %c0_166 = arith.constant 0 : index
    %c0_167 = arith.constant 0 : index
    %c0_168 = arith.constant 0 : index
    %338 = vector.load %arg4[%c1_165, %c0_166, %c0_167, %c0_168] : memref<4x1x8x1xf32, #tpu.memory_space<vmem>>, vector<1x1x8x1xf32>
    %339 = vector.shape_cast %338 : vector<1x1x8x1xf32> to vector<8x1xf32>
    %cst_169 = arith.constant 1.000000e+00 : f32
    %340 = vector.broadcast %cst_169 : f32 to vector<8x1xf32>
    %341 = arith.subf %340, %339 : vector<8x1xf32>
    %cst_170 = arith.constant -1.000000e+04 : f32
    %342 = vector.broadcast %cst_170 : f32 to vector<8x1xf32>
    %343 = arith.mulf %341, %342 : vector<8x1xf32>
    %344 = arith.addf %319, %343 : vector<8x1xf32>
    %c2_171 = arith.constant 2 : index
    %c0_172 = arith.constant 0 : index
    %c0_173 = arith.constant 0 : index
    %c0_174 = arith.constant 0 : index
    %345 = vector.load %arg4[%c2_171, %c0_172, %c0_173, %c0_174] : memref<4x1x8x1xf32, #tpu.memory_space<vmem>>, vector<1x1x8x1xf32>
    %346 = vector.shape_cast %345 : vector<1x1x8x1xf32> to vector<8x1xf32>
    %cst_175 = arith.constant 1.000000e+00 : f32
    %347 = vector.broadcast %cst_175 : f32 to vector<8x1xf32>
    %348 = arith.subf %347, %346 : vector<8x1xf32>
    %cst_176 = arith.constant -1.000000e+04 : f32
    %349 = vector.broadcast %cst_176 : f32 to vector<8x1xf32>
    %350 = arith.mulf %348, %349 : vector<8x1xf32>
    %351 = arith.addf %325, %350 : vector<8x1xf32>
    %c3 = arith.constant 3 : index
    %c0_177 = arith.constant 0 : index
    %c0_178 = arith.constant 0 : index
    %c0_179 = arith.constant 0 : index
    %352 = vector.load %arg4[%c3, %c0_177, %c0_178, %c0_179] : memref<4x1x8x1xf32, #tpu.memory_space<vmem>>, vector<1x1x8x1xf32>
    %353 = vector.shape_cast %352 : vector<1x1x8x1xf32> to vector<8x1xf32>
    %cst_180 = arith.constant 1.000000e+00 : f32
    %354 = vector.broadcast %cst_180 : f32 to vector<8x1xf32>
    %355 = arith.subf %354, %353 : vector<8x1xf32>
    %cst_181 = arith.constant -1.000000e+04 : f32
    %356 = vector.broadcast %cst_181 : f32 to vector<8x1xf32>
    %357 = arith.mulf %355, %356 : vector<8x1xf32>
    %358 = arith.addf %330, %357 : vector<8x1xf32>
    %359 = arith.maximumf %337, %344 : vector<8x1xf32>
    %360 = arith.maximumf %359, %351 : vector<8x1xf32>
    %361 = arith.maximumf %360, %358 : vector<8x1xf32>
    %362 = arith.subf %337, %361 : vector<8x1xf32>
    %363 = math.exp %362 : vector<8x1xf32>
    %364 = arith.subf %344, %361 : vector<8x1xf32>
    %365 = math.exp %364 : vector<8x1xf32>
    %366 = arith.subf %351, %361 : vector<8x1xf32>
    %367 = math.exp %366 : vector<8x1xf32>
    %368 = arith.subf %358, %361 : vector<8x1xf32>
    %369 = math.exp %368 : vector<8x1xf32>
    %370 = arith.addf %363, %365 : vector<8x1xf32>
    %371 = arith.addf %370, %367 : vector<8x1xf32>
    %372 = arith.addf %371, %369 : vector<8x1xf32>
    %373 = tpu.reciprocal %372 {approx = true} : vector<8x1xf32> -> vector<8x1xf32>
    %374 = arith.mulf %369, %373 : vector<8x1xf32>
    %c3_182 = arith.constant 3 : index
    %c0_183 = arith.constant 0 : index
    %c0_184 = arith.constant 0 : index
    %c0_185 = arith.constant 0 : index
    %375 = vector.load %arg4[%c3_182, %c0_183, %c0_184, %c0_185] : memref<4x1x8x1xf32, #tpu.memory_space<vmem>>, vector<1x1x8x1xf32>
    %376 = vector.shape_cast %375 : vector<1x1x8x1xf32> to vector<8x1xf32>
    %377 = arith.mulf %374, %376 : vector<8x1xf32>
    %378 = vector.broadcast %377 : vector<8x1xf32> to vector<8x16xf32>
    %379 = vector.broadcast %307 : vector<1x16xf32> to vector<8x16xf32>
    %380 = arith.mulf %378, %379 : vector<8x16xf32>
    %381 = arith.mulf %363, %373 : vector<8x1xf32>
    %c0_186 = arith.constant 0 : index
    %c0_187 = arith.constant 0 : index
    %c0_188 = arith.constant 0 : index
    %c0_189 = arith.constant 0 : index
    %382 = vector.load %arg4[%c0_186, %c0_187, %c0_188, %c0_189] : memref<4x1x8x1xf32, #tpu.memory_space<vmem>>, vector<1x1x8x1xf32>
    %383 = vector.shape_cast %382 : vector<1x1x8x1xf32> to vector<8x1xf32>
    %384 = arith.mulf %381, %383 : vector<8x1xf32>
    %c0_190 = arith.constant 0 : index
    %c0_191 = arith.constant 0 : index
    %c0_192 = arith.constant 0 : index
    %c0_193 = arith.constant 0 : index
    %385 = vector.load %arg3[%c0_190, %c0_191, %c0_192, %c0_193] : memref<3x1x8x16xf32, #tpu.memory_space<vmem>>, vector<1x1x8x16xf32>
    %386 = vector.shape_cast %385 : vector<1x1x8x16xf32> to vector<8x16xf32>
    %387 = vector.broadcast %384 : vector<8x1xf32> to vector<8x16xf32>
    %388 = arith.mulf %387, %386 : vector<8x16xf32>
    %389 = arith.addf %380, %388 : vector<8x16xf32>
    %390 = arith.mulf %365, %373 : vector<8x1xf32>
    %c1_194 = arith.constant 1 : index
    %c0_195 = arith.constant 0 : index
    %c0_196 = arith.constant 0 : index
    %c0_197 = arith.constant 0 : index
    %391 = vector.load %arg4[%c1_194, %c0_195, %c0_196, %c0_197] : memref<4x1x8x1xf32, #tpu.memory_space<vmem>>, vector<1x1x8x1xf32>
    %392 = vector.shape_cast %391 : vector<1x1x8x1xf32> to vector<8x1xf32>
    %393 = arith.mulf %390, %392 : vector<8x1xf32>
    %c1_198 = arith.constant 1 : index
    %c0_199 = arith.constant 0 : index
    %c0_200 = arith.constant 0 : index
    %c0_201 = arith.constant 0 : index
    %394 = vector.load %arg3[%c1_198, %c0_199, %c0_200, %c0_201] : memref<3x1x8x16xf32, #tpu.memory_space<vmem>>, vector<1x1x8x16xf32>
    %395 = vector.shape_cast %394 : vector<1x1x8x16xf32> to vector<8x16xf32>
    %396 = vector.broadcast %393 : vector<8x1xf32> to vector<8x16xf32>
    %397 = arith.mulf %396, %395 : vector<8x16xf32>
    %398 = arith.addf %389, %397 : vector<8x16xf32>
    %399 = arith.mulf %367, %373 : vector<8x1xf32>
    %c2_202 = arith.constant 2 : index
    %c0_203 = arith.constant 0 : index
    %c0_204 = arith.constant 0 : index
    %c0_205 = arith.constant 0 : index
    %400 = vector.load %arg4[%c2_202, %c0_203, %c0_204, %c0_205] : memref<4x1x8x1xf32, #tpu.memory_space<vmem>>, vector<1x1x8x1xf32>
    %401 = vector.shape_cast %400 : vector<1x1x8x1xf32> to vector<8x1xf32>
    %402 = arith.mulf %399, %401 : vector<8x1xf32>
    %c2_206 = arith.constant 2 : index
    %c0_207 = arith.constant 0 : index
    %c0_208 = arith.constant 0 : index
    %c0_209 = arith.constant 0 : index
    %403 = vector.load %arg3[%c2_206, %c0_207, %c0_208, %c0_209] : memref<3x1x8x16xf32, #tpu.memory_space<vmem>>, vector<1x1x8x16xf32>
    %404 = vector.shape_cast %403 : vector<1x1x8x16xf32> to vector<8x16xf32>
    %405 = vector.broadcast %402 : vector<8x1xf32> to vector<8x16xf32>
    %406 = arith.mulf %405, %404 : vector<8x16xf32>
    %407 = arith.addf %398, %406 : vector<8x16xf32>
    %c0_210 = arith.constant 0 : index
    %c0_211 = arith.constant 0 : index
    %c0_212 = arith.constant 0 : index
    %408 = vector.load %arg21[%c0_210, %c0_211, %c0_212] : memref<3x1x32xf32, #tpu.memory_space<vmem>>, vector<1x1x32xf32>
    %409 = vector.shape_cast %408 : vector<1x1x32xf32> to vector<1x32xf32>
    %c1_213 = arith.constant 1 : index
    %c0_214 = arith.constant 0 : index
    %c0_215 = arith.constant 0 : index
    %410 = vector.load %arg21[%c1_213, %c0_214, %c0_215] : memref<3x1x32xf32, #tpu.memory_space<vmem>>, vector<1x1x32xf32>
    %411 = vector.shape_cast %410 : vector<1x1x32xf32> to vector<1x32xf32>
    %c2_216 = arith.constant 2 : index
    %c0_217 = arith.constant 0 : index
    %c0_218 = arith.constant 0 : index
    %412 = vector.load %arg21[%c2_216, %c0_217, %c0_218] : memref<3x1x32xf32, #tpu.memory_space<vmem>>, vector<1x1x32xf32>
    %413 = vector.shape_cast %412 : vector<1x1x32xf32> to vector<1x32xf32>
    %c0_219 = arith.constant 0 : index
    %c0_220 = arith.constant 0 : index
    %c0_221 = arith.constant 0 : index
    %414 = vector.load %arg22[%c0_219, %c0_220, %c0_221] : memref<3x1x16xf32, #tpu.memory_space<vmem>>, vector<1x1x16xf32>
    %415 = vector.shape_cast %414 : vector<1x1x16xf32> to vector<1x16xf32>
    %c1_222 = arith.constant 1 : index
    %c0_223 = arith.constant 0 : index
    %c0_224 = arith.constant 0 : index
    %416 = vector.load %arg22[%c1_222, %c0_223, %c0_224] : memref<3x1x16xf32, #tpu.memory_space<vmem>>, vector<1x1x16xf32>
    %417 = vector.shape_cast %416 : vector<1x1x16xf32> to vector<1x16xf32>
    %c2_225 = arith.constant 2 : index
    %c0_226 = arith.constant 0 : index
    %c0_227 = arith.constant 0 : index
    %418 = vector.load %arg22[%c2_225, %c0_226, %c0_227] : memref<3x1x16xf32, #tpu.memory_space<vmem>>, vector<1x1x16xf32>
    %419 = vector.shape_cast %418 : vector<1x1x16xf32> to vector<1x16xf32>
    %420 = vector.broadcast %409 : vector<1x32xf32> to vector<8x32xf32>
    %421 = arith.mulf %291, %420 : vector<8x32xf32>
    %cst_228 = arith.constant dense<0.000000e+00> : vector<8xf32>
    %422 = vector.multi_reduction <add>, %421, %cst_228 [1] : vector<8x32xf32> to vector<8xf32>
    %423 = vector.shape_cast %422 : vector<8xf32> to vector<8x1xf32>
    %424 = vector.broadcast %415 : vector<1x16xf32> to vector<8x16xf32>
    %425 = arith.mulf %407, %424 : vector<8x16xf32>
    %cst_229 = arith.constant dense<0.000000e+00> : vector<8xf32>
    %426 = vector.multi_reduction <add>, %425, %cst_229 [1] : vector<8x16xf32> to vector<8xf32>
    %427 = vector.shape_cast %426 : vector<8xf32> to vector<8x1xf32>
    %428 = arith.addf %423, %427 : vector<8x1xf32>
    %429 = vector.broadcast %411 : vector<1x32xf32> to vector<8x32xf32>
    %430 = arith.mulf %291, %429 : vector<8x32xf32>
    %cst_230 = arith.constant dense<0.000000e+00> : vector<8xf32>
    %431 = vector.multi_reduction <add>, %430, %cst_230 [1] : vector<8x32xf32> to vector<8xf32>
    %432 = vector.shape_cast %431 : vector<8xf32> to vector<8x1xf32>
    %433 = vector.broadcast %417 : vector<1x16xf32> to vector<8x16xf32>
    %434 = arith.mulf %407, %433 : vector<8x16xf32>
    %cst_231 = arith.constant dense<0.000000e+00> : vector<8xf32>
    %435 = vector.multi_reduction <add>, %434, %cst_231 [1] : vector<8x16xf32> to vector<8xf32>
    %436 = vector.shape_cast %435 : vector<8xf32> to vector<8x1xf32>
    %437 = arith.addf %432, %436 : vector<8x1xf32>
    %438 = vector.broadcast %413 : vector<1x32xf32> to vector<8x32xf32>
    %439 = arith.mulf %291, %438 : vector<8x32xf32>
    %440 = arith.truncf %439 : vector<8x32xf32> to vector<8x32xbf16>
    %441 = arith.truncf %291 : vector<8x32xf32> to vector<8x32xbf16>
    %cst_232 = arith.constant dense<0.000000e+00> : vector<8x8xf32>
    %442 = tpu.matmul %440, %441, %cst_232 {dimension_numbers = #tpu.dot_dimension_numbers<[1], [1], [0], [0], [0, 0, 1, 0], [], []>} : vector<8x32xbf16>, vector<8x32xbf16>, vector<8x8xf32> -> vector<8x8xf32>
    %443 = vector.broadcast %419 : vector<1x16xf32> to vector<8x16xf32>
    %444 = arith.mulf %407, %443 : vector<8x16xf32>
    %445 = arith.truncf %444 : vector<8x16xf32> to vector<8x16xbf16>
    %446 = arith.truncf %407 : vector<8x16xf32> to vector<8x16xbf16>
    %cst_233 = arith.constant dense<0.000000e+00> : vector<8x8xf32>
    %447 = tpu.matmul %445, %446, %cst_233 {dimension_numbers = #tpu.dot_dimension_numbers<[1], [1], [0], [0], [0, 0, 1, 0], [], []>} : vector<8x16xbf16>, vector<8x16xbf16>, vector<8x8xf32> -> vector<8x8xf32>
    %448 = arith.addf %442, %447 : vector<8x8xf32>
    %449 = vector.broadcast %428 : vector<8x1xf32> to vector<8x8xf32>
    %450 = arith.addf %448, %449 : vector<8x8xf32>
    %451 = tpu.transpose %437, [1, 0] : vector<8x1xf32> -> vector<1x8xf32>
    %452 = vector.broadcast %451 : vector<1x8xf32> to vector<8x8xf32>
    %453 = arith.addf %450, %452 : vector<8x8xf32>
    %c0_234 = arith.constant 0 : index
    %c0_235 = arith.constant 0 : index
    %454 = vector.load %arg23[%c0_234, %c0_235] : memref<1x1xf32, #tpu.memory_space<vmem>>, vector<1x1xf32>
    %455 = vector.broadcast %454 : vector<1x1xf32> to vector<8x8xf32>
    %456 = arith.addf %453, %455 : vector<8x8xf32>
    %457 = vector.broadcast %5 : vector<1x8xf32> to vector<8x8xf32>
    %458 = arith.addf %456, %457 : vector<8x8xf32>
    %cst_236 = arith.constant dense<0xFF800000> : vector<8xf32>
    %459 = vector.multi_reduction <maximumf>, %458, %cst_236 [1] : vector<8x8xf32> to vector<8xf32>
    %460 = vector.shape_cast %459 : vector<8xf32> to vector<8x1xf32>
    %461 = vector.broadcast %460 : vector<8x1xf32> to vector<8x8xf32>
    %462 = arith.subf %458, %461 : vector<8x8xf32>
    %463 = math.exp %462 : vector<8x8xf32>
    %cst_237 = arith.constant dense<0.000000e+00> : vector<8xf32>
    %464 = vector.multi_reduction <add>, %463, %cst_237 [1] : vector<8x8xf32> to vector<8xf32>
    %465 = vector.shape_cast %464 : vector<8xf32> to vector<8x1xf32>
    %466 = tpu.reciprocal %465 {approx = true} : vector<8x1xf32> -> vector<8x1xf32>
    %467 = vector.broadcast %466 : vector<8x1xf32> to vector<8x8xf32>
    %468 = arith.mulf %463, %467 : vector<8x8xf32>
    %469 = arith.truncf %468 : vector<8x8xf32> to vector<8x8xbf16>
    %470 = arith.truncf %291 : vector<8x32xf32> to vector<8x32xbf16>
    %cst_238 = arith.constant dense<0.000000e+00> : vector<8x32xf32>
    %471 = tpu.matmul %469, %470, %cst_238 {dimension_numbers = #tpu.dot_dimension_numbers<[1], [0], [0], [1], [0, 0, 1, 1], [], []>} : vector<8x8xbf16>, vector<8x32xbf16>, vector<8x32xf32> -> vector<8x32xf32>
    %472 = arith.truncf %468 : vector<8x8xf32> to vector<8x8xbf16>
    %473 = arith.truncf %407 : vector<8x16xf32> to vector<8x16xbf16>
    %cst_239 = arith.constant dense<0.000000e+00> : vector<8x16xf32>
    %474 = tpu.matmul %472, %473, %cst_239 {dimension_numbers = #tpu.dot_dimension_numbers<[1], [0], [0], [1], [0, 0, 1, 1], [], []>} : vector<8x8xbf16>, vector<8x16xbf16>, vector<8x16xf32> -> vector<8x16xf32>
    %475 = arith.truncf %468 : vector<8x8xf32> to vector<8x8xbf16>
    %476 = arith.truncf %468 : vector<8x8xf32> to vector<8x8xbf16>
    %cst_240 = arith.constant dense<0.000000e+00> : vector<8x8xf32>
    %477 = tpu.matmul %475, %476, %cst_240 {dimension_numbers = #tpu.dot_dimension_numbers<[1], [0], [0], [1], [0, 0, 1, 1], [], []>} : vector<8x8xbf16>, vector<8x8xbf16>, vector<8x8xf32> -> vector<8x8xf32>
    %478 = arith.truncf %477 : vector<8x8xf32> to vector<8x8xbf16>
    %479 = arith.truncf %291 : vector<8x32xf32> to vector<8x32xbf16>
    %cst_241 = arith.constant dense<0.000000e+00> : vector<8x32xf32>
    %480 = tpu.matmul %478, %479, %cst_241 {dimension_numbers = #tpu.dot_dimension_numbers<[1], [0], [0], [1], [0, 0, 1, 1], [], []>} : vector<8x8xbf16>, vector<8x32xbf16>, vector<8x32xf32> -> vector<8x32xf32>
    %481 = arith.truncf %477 : vector<8x8xf32> to vector<8x8xbf16>
    %482 = arith.truncf %407 : vector<8x16xf32> to vector<8x16xbf16>
    %cst_242 = arith.constant dense<0.000000e+00> : vector<8x16xf32>
    %483 = tpu.matmul %481, %482, %cst_242 {dimension_numbers = #tpu.dot_dimension_numbers<[1], [0], [0], [1], [0, 0, 1, 1], [], []>} : vector<8x8xbf16>, vector<8x16xbf16>, vector<8x16xf32> -> vector<8x16xf32>
    %484 = arith.mulf %291, %471 : vector<8x32xf32>
    %485 = arith.mulf %407, %474 : vector<8x16xf32>
    %c0_243 = arith.constant 0 : index
    %c0_244 = arith.constant 0 : index
    %c0_245 = arith.constant 0 : index
    %486 = vector.load %arg24[%c0_243, %c0_244, %c0_245] : memref<4x32x32xf32, #tpu.memory_space<vmem>>, vector<1x32x32xf32>
    %487 = vector.shape_cast %486 : vector<1x32x32xf32> to vector<32x32xf32>
    %488 = arith.truncf %291 : vector<8x32xf32> to vector<8x32xbf16>
    %489 = arith.truncf %487 : vector<32x32xf32> to vector<32x32xbf16>
    %cst_246 = arith.constant dense<0.000000e+00> : vector<8x32xf32>
    %490 = tpu.matmul %488, %489, %cst_246 {dimension_numbers = #tpu.dot_dimension_numbers<[1], [0], [0], [1], [0, 0, 1, 1], [], []>} : vector<8x32xbf16>, vector<32x32xbf16>, vector<8x32xf32> -> vector<8x32xf32>
    %c1_247 = arith.constant 1 : index
    %c0_248 = arith.constant 0 : index
    %c0_249 = arith.constant 0 : index
    %491 = vector.load %arg24[%c1_247, %c0_248, %c0_249] : memref<4x32x32xf32, #tpu.memory_space<vmem>>, vector<1x32x32xf32>
    %492 = vector.shape_cast %491 : vector<1x32x32xf32> to vector<32x32xf32>
    %493 = arith.truncf %471 : vector<8x32xf32> to vector<8x32xbf16>
    %494 = arith.truncf %492 : vector<32x32xf32> to vector<32x32xbf16>
    %cst_250 = arith.constant dense<0.000000e+00> : vector<8x32xf32>
    %495 = tpu.matmul %493, %494, %cst_250 {dimension_numbers = #tpu.dot_dimension_numbers<[1], [0], [0], [1], [0, 0, 1, 1], [], []>} : vector<8x32xbf16>, vector<32x32xbf16>, vector<8x32xf32> -> vector<8x32xf32>
    %496 = arith.addf %490, %495 : vector<8x32xf32>
    %c2_251 = arith.constant 2 : index
    %c0_252 = arith.constant 0 : index
    %c0_253 = arith.constant 0 : index
    %497 = vector.load %arg24[%c2_251, %c0_252, %c0_253] : memref<4x32x32xf32, #tpu.memory_space<vmem>>, vector<1x32x32xf32>
    %498 = vector.shape_cast %497 : vector<1x32x32xf32> to vector<32x32xf32>
    %499 = arith.truncf %484 : vector<8x32xf32> to vector<8x32xbf16>
    %500 = arith.truncf %498 : vector<32x32xf32> to vector<32x32xbf16>
    %cst_254 = arith.constant dense<0.000000e+00> : vector<8x32xf32>
    %501 = tpu.matmul %499, %500, %cst_254 {dimension_numbers = #tpu.dot_dimension_numbers<[1], [0], [0], [1], [0, 0, 1, 1], [], []>} : vector<8x32xbf16>, vector<32x32xbf16>, vector<8x32xf32> -> vector<8x32xf32>
    %502 = arith.addf %496, %501 : vector<8x32xf32>
    %c3_255 = arith.constant 3 : index
    %c0_256 = arith.constant 0 : index
    %c0_257 = arith.constant 0 : index
    %503 = vector.load %arg24[%c3_255, %c0_256, %c0_257] : memref<4x32x32xf32, #tpu.memory_space<vmem>>, vector<1x32x32xf32>
    %504 = vector.shape_cast %503 : vector<1x32x32xf32> to vector<32x32xf32>
    %505 = arith.truncf %480 : vector<8x32xf32> to vector<8x32xbf16>
    %506 = arith.truncf %504 : vector<32x32xf32> to vector<32x32xbf16>
    %cst_258 = arith.constant dense<0.000000e+00> : vector<8x32xf32>
    %507 = tpu.matmul %505, %506, %cst_258 {dimension_numbers = #tpu.dot_dimension_numbers<[1], [0], [0], [1], [0, 0, 1, 1], [], []>} : vector<8x32xbf16>, vector<32x32xbf16>, vector<8x32xf32> -> vector<8x32xf32>
    %508 = arith.addf %502, %507 : vector<8x32xf32>
    %c0_259 = arith.constant 0 : index
    %c0_260 = arith.constant 0 : index
    %c0_261 = arith.constant 0 : index
    %509 = vector.load %arg25[%c0_259, %c0_260, %c0_261] : memref<4x16x32xf32, #tpu.memory_space<vmem>>, vector<1x16x32xf32>
    %510 = vector.shape_cast %509 : vector<1x16x32xf32> to vector<16x32xf32>
    %511 = arith.truncf %407 : vector<8x16xf32> to vector<8x16xbf16>
    %512 = arith.truncf %510 : vector<16x32xf32> to vector<16x32xbf16>
    %cst_262 = arith.constant dense<0.000000e+00> : vector<8x32xf32>
    %513 = tpu.matmul %511, %512, %cst_262 {dimension_numbers = #tpu.dot_dimension_numbers<[1], [0], [0], [1], [0, 0, 1, 1], [], []>} : vector<8x16xbf16>, vector<16x32xbf16>, vector<8x32xf32> -> vector<8x32xf32>
    %514 = arith.addf %508, %513 : vector<8x32xf32>
    %c1_263 = arith.constant 1 : index
    %c0_264 = arith.constant 0 : index
    %c0_265 = arith.constant 0 : index
    %515 = vector.load %arg25[%c1_263, %c0_264, %c0_265] : memref<4x16x32xf32, #tpu.memory_space<vmem>>, vector<1x16x32xf32>
    %516 = vector.shape_cast %515 : vector<1x16x32xf32> to vector<16x32xf32>
    %517 = arith.truncf %474 : vector<8x16xf32> to vector<8x16xbf16>
    %518 = arith.truncf %516 : vector<16x32xf32> to vector<16x32xbf16>
    %cst_266 = arith.constant dense<0.000000e+00> : vector<8x32xf32>
    %519 = tpu.matmul %517, %518, %cst_266 {dimension_numbers = #tpu.dot_dimension_numbers<[1], [0], [0], [1], [0, 0, 1, 1], [], []>} : vector<8x16xbf16>, vector<16x32xbf16>, vector<8x32xf32> -> vector<8x32xf32>
    %520 = arith.addf %514, %519 : vector<8x32xf32>
    %c2_267 = arith.constant 2 : index
    %c0_268 = arith.constant 0 : index
    %c0_269 = arith.constant 0 : index
    %521 = vector.load %arg25[%c2_267, %c0_268, %c0_269] : memref<4x16x32xf32, #tpu.memory_space<vmem>>, vector<1x16x32xf32>
    %522 = vector.shape_cast %521 : vector<1x16x32xf32> to vector<16x32xf32>
    %523 = arith.truncf %485 : vector<8x16xf32> to vector<8x16xbf16>
    %524 = arith.truncf %522 : vector<16x32xf32> to vector<16x32xbf16>
    %cst_270 = arith.constant dense<0.000000e+00> : vector<8x32xf32>
    %525 = tpu.matmul %523, %524, %cst_270 {dimension_numbers = #tpu.dot_dimension_numbers<[1], [0], [0], [1], [0, 0, 1, 1], [], []>} : vector<8x16xbf16>, vector<16x32xbf16>, vector<8x32xf32> -> vector<8x32xf32>
    %526 = arith.addf %520, %525 : vector<8x32xf32>
    %c3_271 = arith.constant 3 : index
    %c0_272 = arith.constant 0 : index
    %c0_273 = arith.constant 0 : index
    %527 = vector.load %arg25[%c3_271, %c0_272, %c0_273] : memref<4x16x32xf32, #tpu.memory_space<vmem>>, vector<1x16x32xf32>
    %528 = vector.shape_cast %527 : vector<1x16x32xf32> to vector<16x32xf32>
    %529 = arith.truncf %483 : vector<8x16xf32> to vector<8x16xbf16>
    %530 = arith.truncf %528 : vector<16x32xf32> to vector<16x32xbf16>
    %cst_274 = arith.constant dense<0.000000e+00> : vector<8x32xf32>
    %531 = tpu.matmul %529, %530, %cst_274 {dimension_numbers = #tpu.dot_dimension_numbers<[1], [0], [0], [1], [0, 0, 1, 1], [], []>} : vector<8x16xbf16>, vector<16x32xbf16>, vector<8x32xf32> -> vector<8x32xf32>
    %532 = arith.addf %526, %531 : vector<8x32xf32>
    %c0_275 = arith.constant 0 : index
    %c0_276 = arith.constant 0 : index
    %533 = vector.load %arg26[%c0_275, %c0_276] : memref<1x32xf32, #tpu.memory_space<vmem>>, vector<1x32xf32>
    %534 = vector.broadcast %533 : vector<1x32xf32> to vector<8x32xf32>
    %535 = arith.addf %532, %534 : vector<8x32xf32>
    %c0_277 = arith.constant 0 : index
    %c0_278 = arith.constant 0 : index
    %c0_279 = arith.constant 0 : index
    %536 = vector.load %arg27[%c0_277, %c0_278, %c0_279] : memref<12x32x8xf32, #tpu.memory_space<vmem>>, vector<12x32x8xf32>
    %c0_280 = arith.constant 0 : index
    %c0_281 = arith.constant 0 : index
    %c0_282 = arith.constant 0 : index
    %537 = vector.load %arg28[%c0_280, %c0_281, %c0_282] : memref<12x1x8xf32, #tpu.memory_space<vmem>>, vector<12x1x8xf32>
    %c0_283 = arith.constant 0 : index
    %c0_284 = arith.constant 0 : index
    %c0_285 = arith.constant 0 : index
    %538 = vector.load %arg29[%c0_283, %c0_284, %c0_285] : memref<4x8x32xf32, #tpu.memory_space<vmem>>, vector<4x8x32xf32>
    %c0_286 = arith.constant 0 : index
    %c0_287 = arith.constant 0 : index
    %539 = vector.load %arg30[%c0_286, %c0_287] : memref<1x32xf32, #tpu.memory_space<vmem>>, vector<1x32xf32>
    %540 = vector.shape_cast %291 : vector<8x32xf32> to vector<1x8x32xf32>
    %541 = vector.shape_cast %540 : vector<1x8x32xf32> to vector<1x8x32xf32>
    %542 = vector.broadcast %541 : vector<1x8x32xf32> to vector<4x8x32xf32>
    %543 = vector.extract_strided_slice %536 {offsets = [0, 0, 0], sizes = [4, 32, 8], strides = [1, 1, 1]} : vector<12x32x8xf32> to vector<4x32x8xf32>
    %544 = arith.truncf %542 : vector<4x8x32xf32> to vector<4x8x32xbf16>
    %545 = arith.truncf %543 : vector<4x32x8xf32> to vector<4x32x8xbf16>
    %cst_288 = arith.constant dense<0.000000e+00> : vector<4x8x8xf32>
    %546 = tpu.matmul %544, %545, %cst_288 {dimension_numbers = #tpu.dot_dimension_numbers<[2], [1], [1], [2], [0, 0, 0, 1, 1, 2], [0], [0]>} : vector<4x8x32xbf16>, vector<4x32x8xbf16>, vector<4x8x8xf32> -> vector<4x8x8xf32>
    %547 = vector.extract_strided_slice %537 {offsets = [0, 0, 0], sizes = [4, 1, 8], strides = [1, 1, 1]} : vector<12x1x8xf32> to vector<4x1x8xf32>
    %548 = vector.broadcast %547 : vector<4x1x8xf32> to vector<4x8x8xf32>
    %549 = arith.addf %546, %548 : vector<4x8x8xf32>
    %550 = vector.shape_cast %535 : vector<8x32xf32> to vector<1x8x32xf32>
    %551 = vector.shape_cast %550 : vector<1x8x32xf32> to vector<1x8x32xf32>
    %552 = vector.broadcast %551 : vector<1x8x32xf32> to vector<8x8x32xf32>
    %553 = vector.extract_strided_slice %536 {offsets = [4, 0, 0], sizes = [8, 32, 8], strides = [1, 1, 1]} : vector<12x32x8xf32> to vector<8x32x8xf32>
    %554 = arith.truncf %552 : vector<8x8x32xf32> to vector<8x8x32xbf16>
    %555 = arith.truncf %553 : vector<8x32x8xf32> to vector<8x32x8xbf16>
    %cst_289 = arith.constant dense<0.000000e+00> : vector<8x8x8xf32>
    %556 = tpu.matmul %554, %555, %cst_289 {dimension_numbers = #tpu.dot_dimension_numbers<[2], [1], [1], [2], [0, 0, 0, 1, 1, 2], [0], [0]>} : vector<8x8x32xbf16>, vector<8x32x8xbf16>, vector<8x8x8xf32> -> vector<8x8x8xf32>
    %557 = vector.extract_strided_slice %537 {offsets = [4, 0, 0], sizes = [8, 1, 8], strides = [1, 1, 1]} : vector<12x1x8xf32> to vector<8x1x8xf32>
    %558 = vector.broadcast %557 : vector<8x1x8xf32> to vector<8x8x8xf32>
    %559 = arith.addf %556, %558 : vector<8x8x8xf32>
    %560 = vector.extract_strided_slice %559 {offsets = [0, 0, 0], sizes = [4, 8, 8], strides = [1, 1, 1]} : vector<8x8x8xf32> to vector<4x8x8xf32>
    %561 = vector.extract_strided_slice %559 {offsets = [4, 0, 0], sizes = [4, 8, 8], strides = [1, 1, 1]} : vector<8x8x8xf32> to vector<4x8x8xf32>
    %562 = arith.truncf %549 : vector<4x8x8xf32> to vector<4x8x8xbf16>
    %563 = arith.truncf %560 : vector<4x8x8xf32> to vector<4x8x8xbf16>
    %cst_290 = arith.constant dense<0.000000e+00> : vector<4x8x8xf32>
    %564 = tpu.matmul %562, %563, %cst_290 {dimension_numbers = #tpu.dot_dimension_numbers<[2], [2], [1], [1], [0, 0, 0, 1, 1, 1], [0], [0]>} : vector<4x8x8xbf16>, vector<4x8x8xbf16>, vector<4x8x8xf32> -> vector<4x8x8xf32>
    %cst_291 = arith.constant 0.353553385 : f32
    %565 = vector.broadcast %cst_291 : f32 to vector<4x8x8xf32>
    %566 = arith.mulf %564, %565 : vector<4x8x8xf32>
    %567 = vector.shape_cast %5 : vector<1x8xf32> to vector<1x1x8xf32>
    %568 = vector.broadcast %567 : vector<1x1x8xf32> to vector<4x8x8xf32>
    %569 = arith.addf %566, %568 : vector<4x8x8xf32>
    %cst_292 = arith.constant dense<0xFF800000> : vector<4x8xf32>
    %570 = vector.multi_reduction <maximumf>, %569, %cst_292 [2] : vector<4x8x8xf32> to vector<4x8xf32>
    %571 = vector.shape_cast %570 : vector<4x8xf32> to vector<4x8x1xf32>
    %572 = vector.broadcast %571 : vector<4x8x1xf32> to vector<4x8x8xf32>
    %573 = arith.subf %569, %572 : vector<4x8x8xf32>
    %574 = math.exp %573 : vector<4x8x8xf32>
    %cst_293 = arith.constant dense<0.000000e+00> : vector<4x8xf32>
    %575 = vector.multi_reduction <add>, %574, %cst_293 [2] : vector<4x8x8xf32> to vector<4x8xf32>
    %576 = vector.shape_cast %575 : vector<4x8xf32> to vector<4x8x1xf32>
    %577 = tpu.reciprocal %576 {approx = true} : vector<4x8x1xf32> -> vector<4x8x1xf32>
    %578 = vector.broadcast %577 : vector<4x8x1xf32> to vector<4x8x8xf32>
    %579 = arith.mulf %574, %578 : vector<4x8x8xf32>
    %580 = arith.truncf %579 : vector<4x8x8xf32> to vector<4x8x8xbf16>
    %581 = arith.truncf %561 : vector<4x8x8xf32> to vector<4x8x8xbf16>
    %cst_294 = arith.constant dense<0.000000e+00> : vector<4x8x8xf32>
    %582 = tpu.matmul %580, %581, %cst_294 {dimension_numbers = #tpu.dot_dimension_numbers<[2], [1], [1], [2], [0, 0, 0, 1, 1, 2], [0], [0]>} : vector<4x8x8xbf16>, vector<4x8x8xbf16>, vector<4x8x8xf32> -> vector<4x8x8xf32>
    %583 = arith.truncf %582 : vector<4x8x8xf32> to vector<4x8x8xbf16>
    %584 = arith.truncf %538 : vector<4x8x32xf32> to vector<4x8x32xbf16>
    %cst_295 = arith.constant dense<0.000000e+00> : vector<4x8x32xf32>
    %585 = tpu.matmul %583, %584, %cst_295 {dimension_numbers = #tpu.dot_dimension_numbers<[2], [1], [1], [2], [0, 0, 0, 1, 1, 2], [0], [0]>} : vector<4x8x8xbf16>, vector<4x8x32xbf16>, vector<4x8x32xf32> -> vector<4x8x32xf32>
    %cst_296 = arith.constant dense<0.000000e+00> : vector<8x32xf32>
    %586 = vector.multi_reduction <add>, %585, %cst_296 [0] : vector<4x8x32xf32> to vector<8x32xf32>
    %587 = vector.broadcast %539 : vector<1x32xf32> to vector<8x32xf32>
    %588 = arith.addf %586, %587 : vector<8x32xf32>
    %589 = arith.addf %588, %291 : vector<8x32xf32>
    %c0_297 = arith.constant 0 : index
    %c0_298 = arith.constant 0 : index
    %590 = vector.load %arg31[%c0_297, %c0_298] : memref<1x32xf32, #tpu.memory_space<vmem>>, vector<1x32xf32>
    %c0_299 = arith.constant 0 : index
    %c0_300 = arith.constant 0 : index
    %591 = vector.load %arg32[%c0_299, %c0_300] : memref<1x32xf32, #tpu.memory_space<vmem>>, vector<1x32xf32>
    %cst_301 = arith.constant dense<0.000000e+00> : vector<8xf32>
    %592 = vector.multi_reduction <add>, %589, %cst_301 [1] : vector<8x32xf32> to vector<8xf32>
    %593 = vector.shape_cast %592 : vector<8xf32> to vector<8x1xf32>
    %cst_302 = arith.constant 3.200000e+01 : f32
    %594 = vector.broadcast %cst_302 : f32 to vector<8x1xf32>
    %595 = arith.divf %593, %594 : vector<8x1xf32>
    %596 = vector.broadcast %595 : vector<8x1xf32> to vector<8x32xf32>
    %597 = arith.subf %589, %596 : vector<8x32xf32>
    %598 = arith.mulf %597, %597 : vector<8x32xf32>
    %cst_303 = arith.constant dense<0.000000e+00> : vector<8xf32>
    %599 = vector.multi_reduction <add>, %598, %cst_303 [1] : vector<8x32xf32> to vector<8xf32>
    %600 = vector.shape_cast %599 : vector<8xf32> to vector<8x1xf32>
    %cst_304 = arith.constant 3.200000e+01 : f32
    %601 = vector.broadcast %cst_304 : f32 to vector<8x1xf32>
    %602 = arith.divf %600, %601 : vector<8x1xf32>
    %603 = vector.broadcast %595 : vector<8x1xf32> to vector<8x32xf32>
    %604 = arith.subf %589, %603 : vector<8x32xf32>
    %cst_305 = arith.constant 9.99999974E-6 : f32
    %605 = vector.broadcast %cst_305 : f32 to vector<8x1xf32>
    %606 = arith.addf %602, %605 : vector<8x1xf32>
    %607 = math.rsqrt %606 : vector<8x1xf32>
    %608 = vector.broadcast %607 : vector<8x1xf32> to vector<8x32xf32>
    %609 = arith.mulf %604, %608 : vector<8x32xf32>
    %610 = vector.broadcast %590 : vector<1x32xf32> to vector<8x32xf32>
    %611 = arith.mulf %609, %610 : vector<8x32xf32>
    %612 = vector.broadcast %591 : vector<1x32xf32> to vector<8x32xf32>
    %613 = arith.addf %611, %612 : vector<8x32xf32>
    %c2_306 = arith.constant 2 : index
    %c0_307 = arith.constant 0 : index
    %c0_308 = arith.constant 0 : index
    %c0_309 = arith.constant 0 : index
    %614 = vector.load %arg5[%c2_306, %c0_307, %c0_308, %c0_309] : memref<3x12x32x8xf32, #tpu.memory_space<vmem>>, vector<1x12x32x8xf32>
    %615 = vector.shape_cast %614 : vector<1x12x32x8xf32> to vector<12x32x8xf32>
    %c2_310 = arith.constant 2 : index
    %c0_311 = arith.constant 0 : index
    %c0_312 = arith.constant 0 : index
    %c0_313 = arith.constant 0 : index
    %616 = vector.load %arg6[%c2_310, %c0_311, %c0_312, %c0_313] : memref<3x12x1x8xf32, #tpu.memory_space<vmem>>, vector<1x12x1x8xf32>
    %617 = vector.shape_cast %616 : vector<1x12x1x8xf32> to vector<12x1x8xf32>
    %c2_314 = arith.constant 2 : index
    %c0_315 = arith.constant 0 : index
    %c0_316 = arith.constant 0 : index
    %c0_317 = arith.constant 0 : index
    %618 = vector.load %arg7[%c2_314, %c0_315, %c0_316, %c0_317] : memref<3x4x8x32xf32, #tpu.memory_space<vmem>>, vector<1x4x8x32xf32>
    %619 = vector.shape_cast %618 : vector<1x4x8x32xf32> to vector<4x8x32xf32>
    %c2_318 = arith.constant 2 : index
    %c0_319 = arith.constant 0 : index
    %c0_320 = arith.constant 0 : index
    %620 = vector.load %arg8[%c2_318, %c0_319, %c0_320] : memref<3x1x32xf32, #tpu.memory_space<vmem>>, vector<1x1x32xf32>
    %621 = vector.shape_cast %620 : vector<1x1x32xf32> to vector<1x32xf32>
    %622 = vector.shape_cast %613 : vector<8x32xf32> to vector<1x8x32xf32>
    %623 = vector.shape_cast %622 : vector<1x8x32xf32> to vector<1x8x32xf32>
    %624 = vector.broadcast %623 : vector<1x8x32xf32> to vector<4x8x32xf32>
    %625 = vector.extract_strided_slice %615 {offsets = [0, 0, 0], sizes = [4, 32, 8], strides = [1, 1, 1]} : vector<12x32x8xf32> to vector<4x32x8xf32>
    %626 = arith.truncf %624 : vector<4x8x32xf32> to vector<4x8x32xbf16>
    %627 = arith.truncf %625 : vector<4x32x8xf32> to vector<4x32x8xbf16>
    %cst_321 = arith.constant dense<0.000000e+00> : vector<4x8x8xf32>
    %628 = tpu.matmul %626, %627, %cst_321 {dimension_numbers = #tpu.dot_dimension_numbers<[2], [1], [1], [2], [0, 0, 0, 1, 1, 2], [0], [0]>} : vector<4x8x32xbf16>, vector<4x32x8xbf16>, vector<4x8x8xf32> -> vector<4x8x8xf32>
    %629 = vector.extract_strided_slice %617 {offsets = [0, 0, 0], sizes = [4, 1, 8], strides = [1, 1, 1]} : vector<12x1x8xf32> to vector<4x1x8xf32>
    %630 = vector.broadcast %629 : vector<4x1x8xf32> to vector<4x8x8xf32>
    %631 = arith.addf %628, %630 : vector<4x8x8xf32>
    %632 = vector.shape_cast %613 : vector<8x32xf32> to vector<1x8x32xf32>
    %633 = vector.shape_cast %632 : vector<1x8x32xf32> to vector<1x8x32xf32>
    %634 = vector.broadcast %633 : vector<1x8x32xf32> to vector<8x8x32xf32>
    %635 = vector.extract_strided_slice %615 {offsets = [4, 0, 0], sizes = [8, 32, 8], strides = [1, 1, 1]} : vector<12x32x8xf32> to vector<8x32x8xf32>
    %636 = arith.truncf %634 : vector<8x8x32xf32> to vector<8x8x32xbf16>
    %637 = arith.truncf %635 : vector<8x32x8xf32> to vector<8x32x8xbf16>
    %cst_322 = arith.constant dense<0.000000e+00> : vector<8x8x8xf32>
    %638 = tpu.matmul %636, %637, %cst_322 {dimension_numbers = #tpu.dot_dimension_numbers<[2], [1], [1], [2], [0, 0, 0, 1, 1, 2], [0], [0]>} : vector<8x8x32xbf16>, vector<8x32x8xbf16>, vector<8x8x8xf32> -> vector<8x8x8xf32>
    %639 = vector.extract_strided_slice %617 {offsets = [4, 0, 0], sizes = [8, 1, 8], strides = [1, 1, 1]} : vector<12x1x8xf32> to vector<8x1x8xf32>
    %640 = vector.broadcast %639 : vector<8x1x8xf32> to vector<8x8x8xf32>
    %641 = arith.addf %638, %640 : vector<8x8x8xf32>
    %642 = vector.extract_strided_slice %641 {offsets = [0, 0, 0], sizes = [4, 8, 8], strides = [1, 1, 1]} : vector<8x8x8xf32> to vector<4x8x8xf32>
    %643 = vector.extract_strided_slice %641 {offsets = [4, 0, 0], sizes = [4, 8, 8], strides = [1, 1, 1]} : vector<8x8x8xf32> to vector<4x8x8xf32>
    %644 = arith.truncf %631 : vector<4x8x8xf32> to vector<4x8x8xbf16>
    %645 = arith.truncf %642 : vector<4x8x8xf32> to vector<4x8x8xbf16>
    %cst_323 = arith.constant dense<0.000000e+00> : vector<4x8x8xf32>
    %646 = tpu.matmul %644, %645, %cst_323 {dimension_numbers = #tpu.dot_dimension_numbers<[2], [2], [1], [1], [0, 0, 0, 1, 1, 1], [0], [0]>} : vector<4x8x8xbf16>, vector<4x8x8xbf16>, vector<4x8x8xf32> -> vector<4x8x8xf32>
    %cst_324 = arith.constant 0.353553385 : f32
    %647 = vector.broadcast %cst_324 : f32 to vector<4x8x8xf32>
    %648 = arith.mulf %646, %647 : vector<4x8x8xf32>
    %649 = vector.shape_cast %5 : vector<1x8xf32> to vector<1x1x8xf32>
    %650 = vector.broadcast %649 : vector<1x1x8xf32> to vector<4x8x8xf32>
    %651 = arith.addf %648, %650 : vector<4x8x8xf32>
    %cst_325 = arith.constant dense<0xFF800000> : vector<4x8xf32>
    %652 = vector.multi_reduction <maximumf>, %651, %cst_325 [2] : vector<4x8x8xf32> to vector<4x8xf32>
    %653 = vector.shape_cast %652 : vector<4x8xf32> to vector<4x8x1xf32>
    %654 = vector.broadcast %653 : vector<4x8x1xf32> to vector<4x8x8xf32>
    %655 = arith.subf %651, %654 : vector<4x8x8xf32>
    %656 = math.exp %655 : vector<4x8x8xf32>
    %cst_326 = arith.constant dense<0.000000e+00> : vector<4x8xf32>
    %657 = vector.multi_reduction <add>, %656, %cst_326 [2] : vector<4x8x8xf32> to vector<4x8xf32>
    %658 = vector.shape_cast %657 : vector<4x8xf32> to vector<4x8x1xf32>
    %659 = tpu.reciprocal %658 {approx = true} : vector<4x8x1xf32> -> vector<4x8x1xf32>
    %660 = vector.broadcast %659 : vector<4x8x1xf32> to vector<4x8x8xf32>
    %661 = arith.mulf %656, %660 : vector<4x8x8xf32>
    %662 = arith.truncf %661 : vector<4x8x8xf32> to vector<4x8x8xbf16>
    %663 = arith.truncf %643 : vector<4x8x8xf32> to vector<4x8x8xbf16>
    %cst_327 = arith.constant dense<0.000000e+00> : vector<4x8x8xf32>
    %664 = tpu.matmul %662, %663, %cst_327 {dimension_numbers = #tpu.dot_dimension_numbers<[2], [1], [1], [2], [0, 0, 0, 1, 1, 2], [0], [0]>} : vector<4x8x8xbf16>, vector<4x8x8xbf16>, vector<4x8x8xf32> -> vector<4x8x8xf32>
    %665 = arith.truncf %664 : vector<4x8x8xf32> to vector<4x8x8xbf16>
    %666 = arith.truncf %619 : vector<4x8x32xf32> to vector<4x8x32xbf16>
    %cst_328 = arith.constant dense<0.000000e+00> : vector<4x8x32xf32>
    %667 = tpu.matmul %665, %666, %cst_328 {dimension_numbers = #tpu.dot_dimension_numbers<[2], [1], [1], [2], [0, 0, 0, 1, 1, 2], [0], [0]>} : vector<4x8x8xbf16>, vector<4x8x32xbf16>, vector<4x8x32xf32> -> vector<4x8x32xf32>
    %cst_329 = arith.constant dense<0.000000e+00> : vector<8x32xf32>
    %668 = vector.multi_reduction <add>, %667, %cst_329 [0] : vector<4x8x32xf32> to vector<8x32xf32>
    %669 = vector.broadcast %621 : vector<1x32xf32> to vector<8x32xf32>
    %670 = arith.addf %668, %669 : vector<8x32xf32>
    %671 = arith.addf %670, %613 : vector<8x32xf32>
    %c2_330 = arith.constant 2 : index
    %c0_331 = arith.constant 0 : index
    %c0_332 = arith.constant 0 : index
    %672 = vector.load %arg9[%c2_330, %c0_331, %c0_332] : memref<3x1x32xf32, #tpu.memory_space<vmem>>, vector<1x1x32xf32>
    %673 = vector.shape_cast %672 : vector<1x1x32xf32> to vector<1x32xf32>
    %c2_333 = arith.constant 2 : index
    %c0_334 = arith.constant 0 : index
    %c0_335 = arith.constant 0 : index
    %674 = vector.load %arg10[%c2_333, %c0_334, %c0_335] : memref<3x1x32xf32, #tpu.memory_space<vmem>>, vector<1x1x32xf32>
    %675 = vector.shape_cast %674 : vector<1x1x32xf32> to vector<1x32xf32>
    %cst_336 = arith.constant dense<0.000000e+00> : vector<8xf32>
    %676 = vector.multi_reduction <add>, %671, %cst_336 [1] : vector<8x32xf32> to vector<8xf32>
    %677 = vector.shape_cast %676 : vector<8xf32> to vector<8x1xf32>
    %cst_337 = arith.constant 3.200000e+01 : f32
    %678 = vector.broadcast %cst_337 : f32 to vector<8x1xf32>
    %679 = arith.divf %677, %678 : vector<8x1xf32>
    %680 = vector.broadcast %679 : vector<8x1xf32> to vector<8x32xf32>
    %681 = arith.subf %671, %680 : vector<8x32xf32>
    %682 = arith.mulf %681, %681 : vector<8x32xf32>
    %cst_338 = arith.constant dense<0.000000e+00> : vector<8xf32>
    %683 = vector.multi_reduction <add>, %682, %cst_338 [1] : vector<8x32xf32> to vector<8xf32>
    %684 = vector.shape_cast %683 : vector<8xf32> to vector<8x1xf32>
    %cst_339 = arith.constant 3.200000e+01 : f32
    %685 = vector.broadcast %cst_339 : f32 to vector<8x1xf32>
    %686 = arith.divf %684, %685 : vector<8x1xf32>
    %687 = vector.broadcast %679 : vector<8x1xf32> to vector<8x32xf32>
    %688 = arith.subf %671, %687 : vector<8x32xf32>
    %cst_340 = arith.constant 9.99999974E-6 : f32
    %689 = vector.broadcast %cst_340 : f32 to vector<8x1xf32>
    %690 = arith.addf %686, %689 : vector<8x1xf32>
    %691 = math.rsqrt %690 : vector<8x1xf32>
    %692 = vector.broadcast %691 : vector<8x1xf32> to vector<8x32xf32>
    %693 = arith.mulf %688, %692 : vector<8x32xf32>
    %694 = vector.broadcast %673 : vector<1x32xf32> to vector<8x32xf32>
    %695 = arith.mulf %693, %694 : vector<8x32xf32>
    %696 = vector.broadcast %675 : vector<1x32xf32> to vector<8x32xf32>
    %697 = arith.addf %695, %696 : vector<8x32xf32>
    %c2_341 = arith.constant 2 : index
    %c0_342 = arith.constant 0 : index
    %c0_343 = arith.constant 0 : index
    %698 = vector.load %arg11[%c2_341, %c0_342, %c0_343] : memref<3x32x64xf32, #tpu.memory_space<vmem>>, vector<1x32x64xf32>
    %699 = vector.shape_cast %698 : vector<1x32x64xf32> to vector<32x64xf32>
    %700 = arith.truncf %697 : vector<8x32xf32> to vector<8x32xbf16>
    %701 = arith.truncf %699 : vector<32x64xf32> to vector<32x64xbf16>
    %cst_344 = arith.constant dense<0.000000e+00> : vector<8x64xf32>
    %702 = tpu.matmul %700, %701, %cst_344 {dimension_numbers = #tpu.dot_dimension_numbers<[1], [0], [0], [1], [0, 0, 1, 1], [], []>} : vector<8x32xbf16>, vector<32x64xbf16>, vector<8x64xf32> -> vector<8x64xf32>
    %c2_345 = arith.constant 2 : index
    %c0_346 = arith.constant 0 : index
    %c0_347 = arith.constant 0 : index
    %703 = vector.load %arg12[%c2_345, %c0_346, %c0_347] : memref<3x1x64xf32, #tpu.memory_space<vmem>>, vector<1x1x64xf32>
    %704 = vector.shape_cast %703 : vector<1x1x64xf32> to vector<1x64xf32>
    %705 = vector.broadcast %704 : vector<1x64xf32> to vector<8x64xf32>
    %706 = arith.addf %702, %705 : vector<8x64xf32>
    %707 = arith.mulf %706, %706 : vector<8x64xf32>
    %708 = arith.mulf %706, %707 : vector<8x64xf32>
    %cst_348 = arith.constant 4.471500e-02 : f32
    %709 = vector.broadcast %cst_348 : f32 to vector<8x64xf32>
    %710 = arith.mulf %709, %708 : vector<8x64xf32>
    %711 = arith.addf %706, %710 : vector<8x64xf32>
    %cst_349 = arith.constant 0.797884583 : f32
    %712 = vector.broadcast %cst_349 : f32 to vector<8x64xf32>
    %713 = arith.mulf %712, %711 : vector<8x64xf32>
    %714 = math.tanh %713 : vector<8x64xf32>
    %cst_350 = arith.constant 1.000000e+00 : f32
    %715 = vector.broadcast %cst_350 : f32 to vector<8x64xf32>
    %716 = arith.addf %715, %714 : vector<8x64xf32>
    %cst_351 = arith.constant 5.000000e-01 : f32
    %717 = vector.broadcast %cst_351 : f32 to vector<8x64xf32>
    %718 = arith.mulf %717, %716 : vector<8x64xf32>
    %719 = arith.mulf %706, %718 : vector<8x64xf32>
    %c2_352 = arith.constant 2 : index
    %c0_353 = arith.constant 0 : index
    %c0_354 = arith.constant 0 : index
    %720 = vector.load %arg13[%c2_352, %c0_353, %c0_354] : memref<3x64x32xf32, #tpu.memory_space<vmem>>, vector<1x64x32xf32>
    %721 = vector.shape_cast %720 : vector<1x64x32xf32> to vector<64x32xf32>
    %722 = arith.truncf %719 : vector<8x64xf32> to vector<8x64xbf16>
    %723 = arith.truncf %721 : vector<64x32xf32> to vector<64x32xbf16>
    %cst_355 = arith.constant dense<0.000000e+00> : vector<8x32xf32>
    %724 = tpu.matmul %722, %723, %cst_355 {dimension_numbers = #tpu.dot_dimension_numbers<[1], [0], [0], [1], [0, 0, 1, 1], [], []>} : vector<8x64xbf16>, vector<64x32xbf16>, vector<8x32xf32> -> vector<8x32xf32>
    %c2_356 = arith.constant 2 : index
    %c0_357 = arith.constant 0 : index
    %c0_358 = arith.constant 0 : index
    %725 = vector.load %arg14[%c2_356, %c0_357, %c0_358] : memref<3x1x32xf32, #tpu.memory_space<vmem>>, vector<1x1x32xf32>
    %726 = vector.shape_cast %725 : vector<1x1x32xf32> to vector<1x32xf32>
    %727 = vector.broadcast %726 : vector<1x32xf32> to vector<8x32xf32>
    %728 = arith.addf %724, %727 : vector<8x32xf32>
    %729 = arith.addf %728, %697 : vector<8x32xf32>
    %c2_359 = arith.constant 2 : index
    %c0_360 = arith.constant 0 : index
    %c0_361 = arith.constant 0 : index
    %730 = vector.load %arg15[%c2_359, %c0_360, %c0_361] : memref<3x1x32xf32, #tpu.memory_space<vmem>>, vector<1x1x32xf32>
    %731 = vector.shape_cast %730 : vector<1x1x32xf32> to vector<1x32xf32>
    %c2_362 = arith.constant 2 : index
    %c0_363 = arith.constant 0 : index
    %c0_364 = arith.constant 0 : index
    %732 = vector.load %arg16[%c2_362, %c0_363, %c0_364] : memref<3x1x32xf32, #tpu.memory_space<vmem>>, vector<1x1x32xf32>
    %733 = vector.shape_cast %732 : vector<1x1x32xf32> to vector<1x32xf32>
    %cst_365 = arith.constant dense<0.000000e+00> : vector<8xf32>
    %734 = vector.multi_reduction <add>, %729, %cst_365 [1] : vector<8x32xf32> to vector<8xf32>
    %735 = vector.shape_cast %734 : vector<8xf32> to vector<8x1xf32>
    %cst_366 = arith.constant 3.200000e+01 : f32
    %736 = vector.broadcast %cst_366 : f32 to vector<8x1xf32>
    %737 = arith.divf %735, %736 : vector<8x1xf32>
    %738 = vector.broadcast %737 : vector<8x1xf32> to vector<8x32xf32>
    %739 = arith.subf %729, %738 : vector<8x32xf32>
    %740 = arith.mulf %739, %739 : vector<8x32xf32>
    %cst_367 = arith.constant dense<0.000000e+00> : vector<8xf32>
    %741 = vector.multi_reduction <add>, %740, %cst_367 [1] : vector<8x32xf32> to vector<8xf32>
    %742 = vector.shape_cast %741 : vector<8xf32> to vector<8x1xf32>
    %cst_368 = arith.constant 3.200000e+01 : f32
    %743 = vector.broadcast %cst_368 : f32 to vector<8x1xf32>
    %744 = arith.divf %742, %743 : vector<8x1xf32>
    %745 = vector.broadcast %737 : vector<8x1xf32> to vector<8x32xf32>
    %746 = arith.subf %729, %745 : vector<8x32xf32>
    %cst_369 = arith.constant 9.99999974E-6 : f32
    %747 = vector.broadcast %cst_369 : f32 to vector<8x1xf32>
    %748 = arith.addf %744, %747 : vector<8x1xf32>
    %749 = math.rsqrt %748 : vector<8x1xf32>
    %750 = vector.broadcast %749 : vector<8x1xf32> to vector<8x32xf32>
    %751 = arith.mulf %746, %750 : vector<8x32xf32>
    %752 = vector.broadcast %731 : vector<1x32xf32> to vector<8x32xf32>
    %753 = arith.mulf %751, %752 : vector<8x32xf32>
    %754 = vector.broadcast %733 : vector<1x32xf32> to vector<8x32xf32>
    %755 = arith.addf %753, %754 : vector<8x32xf32>
    %c0_370 = arith.constant 0 : index
    %c0_371 = arith.constant 0 : index
    %c0_372 = arith.constant 0 : index
    %756 = vector.load %arg33[%c0_370, %c0_371, %c0_372] : memref<1x8x32xf32, #tpu.memory_space<vmem>>, vector<1x8x32xf32>
    %757 = vector.shape_cast %756 : vector<1x8x32xf32> to vector<8x32xf32>
    %758 = vector.shape_cast %755 : vector<8x32xf32> to vector<1x8x32xf32>
    tpu.vector_store %arg33[%c0_370, %c0_371, %c0_372], %758 {strides = array<i32>} : memref<1x8x32xf32, #tpu.memory_space<vmem>>, vector<1x8x32xf32>,
    return
  }
  func.func @transform_0(%arg0: i32) -> (i32, i32, i32) {
    %c0_i32 = arith.constant 0 : i32
    %c0_i32_0 = arith.constant 0 : i32
    %c0_i32_1 = arith.constant 0 : i32
    return %arg0, %c0_i32, %c0_i32_0 : i32, i32, i32
  }
  func.func @transform_1(%arg0: i32) -> (i32, i32, i32) {
    %c0_i32 = arith.constant 0 : i32
    %c0_i32_0 = arith.constant 0 : i32
    %c0_i32_1 = arith.constant 0 : i32
    return %arg0, %c0_i32, %c0_i32_0 : i32, i32, i32
  }
  func.func @transform_2(%arg0: i32) -> (i32, i32, i32, i32) {
    %c0_i32 = arith.constant 0 : i32
    %c0_i32_0 = arith.constant 0 : i32
    %c0_i32_1 = arith.constant 0 : i32
    %c0_i32_2 = arith.constant 0 : i32
    return %c0_i32, %arg0, %c0_i32_0, %c0_i32_1 : i32, i32, i32, i32
  }
  func.func @transform_3(%arg0: i32) -> (i32, i32, i32, i32) {
    %c0_i32 = arith.constant 0 : i32
    %c0_i32_0 = arith.constant 0 : i32
    %c0_i32_1 = arith.constant 0 : i32
    %c0_i32_2 = arith.constant 0 : i32
    return %c0_i32, %arg0, %c0_i32_0, %c0_i32_1 : i32, i32, i32, i32
  }
  func.func @transform_4(%arg0: i32) -> (i32, i32, i32, i32) {
    %c0_i32 = arith.constant 0 : i32
    %c0_i32_0 = arith.constant 0 : i32
    %c0_i32_1 = arith.constant 0 : i32
    %c0_i32_2 = arith.constant 0 : i32
    %c0_i32_3 = arith.constant 0 : i32
    return %c0_i32, %c0_i32_0, %c0_i32_1, %c0_i32_2 : i32, i32, i32, i32
  }
  func.func @transform_5(%arg0: i32) -> (i32, i32, i32, i32) {
    %c0_i32 = arith.constant 0 : i32
    %c0_i32_0 = arith.constant 0 : i32
    %c0_i32_1 = arith.constant 0 : i32
    %c0_i32_2 = arith.constant 0 : i32
    %c0_i32_3 = arith.constant 0 : i32
    return %c0_i32, %c0_i32_0, %c0_i32_1, %c0_i32_2 : i32, i32, i32, i32
  }
  func.func @transform_6(%arg0: i32) -> (i32, i32, i32, i32) {
    %c0_i32 = arith.constant 0 : i32
    %c0_i32_0 = arith.constant 0 : i32
    %c0_i32_1 = arith.constant 0 : i32
    %c0_i32_2 = arith.constant 0 : i32
    %c0_i32_3 = arith.constant 0 : i32
    return %c0_i32, %c0_i32_0, %c0_i32_1, %c0_i32_2 : i32, i32, i32, i32
  }
  func.func @transform_7(%arg0: i32) -> (i32, i32, i32) {
    %c0_i32 = arith.constant 0 : i32
    %c0_i32_0 = arith.constant 0 : i32
    %c0_i32_1 = arith.constant 0 : i32
    %c0_i32_2 = arith.constant 0 : i32
    return %c0_i32, %c0_i32_0, %c0_i32_1 : i32, i32, i32
  }
  func.func @transform_8(%arg0: i32) -> (i32, i32, i32) {
    %c0_i32 = arith.constant 0 : i32
    %c0_i32_0 = arith.constant 0 : i32
    %c0_i32_1 = arith.constant 0 : i32
    %c0_i32_2 = arith.constant 0 : i32
    return %c0_i32, %c0_i32_0, %c0_i32_1 : i32, i32, i32
  }
  func.func @transform_9(%arg0: i32) -> (i32, i32, i32) {
    %c0_i32 = arith.constant 0 : i32
    %c0_i32_0 = arith.constant 0 : i32
    %c0_i32_1 = arith.constant 0 : i32
    %c0_i32_2 = arith.constant 0 : i32
    return %c0_i32, %c0_i32_0, %c0_i32_1 : i32, i32, i32
  }
  func.func @transform_10(%arg0: i32) -> (i32, i32, i32) {
    %c0_i32 = arith.constant 0 : i32
    %c0_i32_0 = arith.constant 0 : i32
    %c0_i32_1 = arith.constant 0 : i32
    %c0_i32_2 = arith.constant 0 : i32
    return %c0_i32, %c0_i32_0, %c0_i32_1 : i32, i32, i32
  }
  func.func @transform_11(%arg0: i32) -> (i32, i32, i32) {
    %c0_i32 = arith.constant 0 : i32
    %c0_i32_0 = arith.constant 0 : i32
    %c0_i32_1 = arith.constant 0 : i32
    %c0_i32_2 = arith.constant 0 : i32
    return %c0_i32, %c0_i32_0, %c0_i32_1 : i32, i32, i32
  }
  func.func @transform_12(%arg0: i32) -> (i32, i32, i32) {
    %c0_i32 = arith.constant 0 : i32
    %c0_i32_0 = arith.constant 0 : i32
    %c0_i32_1 = arith.constant 0 : i32
    %c0_i32_2 = arith.constant 0 : i32
    return %c0_i32, %c0_i32_0, %c0_i32_1 : i32, i32, i32
  }
  func.func @transform_13(%arg0: i32) -> (i32, i32, i32) {
    %c0_i32 = arith.constant 0 : i32
    %c0_i32_0 = arith.constant 0 : i32
    %c0_i32_1 = arith.constant 0 : i32
    %c0_i32_2 = arith.constant 0 : i32
    return %c0_i32, %c0_i32_0, %c0_i32_1 : i32, i32, i32
  }
  func.func @transform_14(%arg0: i32) -> (i32, i32, i32) {
    %c0_i32 = arith.constant 0 : i32
    %c0_i32_0 = arith.constant 0 : i32
    %c0_i32_1 = arith.constant 0 : i32
    %c0_i32_2 = arith.constant 0 : i32
    return %c0_i32, %c0_i32_0, %c0_i32_1 : i32, i32, i32
  }
  func.func @transform_15(%arg0: i32) -> (i32, i32, i32) {
    %c0_i32 = arith.constant 0 : i32
    %c0_i32_0 = arith.constant 0 : i32
    %c0_i32_1 = arith.constant 0 : i32
    %c0_i32_2 = arith.constant 0 : i32
    return %c0_i32, %c0_i32_0, %c0_i32_1 : i32, i32, i32
  }
  func.func @transform_16(%arg0: i32) -> (i32, i32) {
    %c0_i32 = arith.constant 0 : i32
    %c0_i32_0 = arith.constant 0 : i32
    %c0_i32_1 = arith.constant 0 : i32
    return %c0_i32, %c0_i32_0 : i32, i32
  }
  func.func @transform_17(%arg0: i32) -> (i32, i32) {
    %c0_i32 = arith.constant 0 : i32
    %c0_i32_0 = arith.constant 0 : i32
    %c0_i32_1 = arith.constant 0 : i32
    return %c0_i32, %c0_i32_0 : i32, i32
  }
  func.func @transform_18(%arg0: i32) -> (i32, i32) {
    %c0_i32 = arith.constant 0 : i32
    %c0_i32_0 = arith.constant 0 : i32
    %c0_i32_1 = arith.constant 0 : i32
    return %c0_i32, %c0_i32_0 : i32, i32
  }
  func.func @transform_19(%arg0: i32) -> (i32, i32) {
    %c0_i32 = arith.constant 0 : i32
    %c0_i32_0 = arith.constant 0 : i32
    %c0_i32_1 = arith.constant 0 : i32
    return %c0_i32, %c0_i32_0 : i32, i32
  }
  func.func @transform_20(%arg0: i32) -> (i32, i32, i32) {
    %c0_i32 = arith.constant 0 : i32
    %c0_i32_0 = arith.constant 0 : i32
    %c0_i32_1 = arith.constant 0 : i32
    %c0_i32_2 = arith.constant 0 : i32
    return %c0_i32, %c0_i32_0, %c0_i32_1 : i32, i32, i32
  }
  func.func @transform_21(%arg0: i32) -> (i32, i32, i32) {
    %c0_i32 = arith.constant 0 : i32
    %c0_i32_0 = arith.constant 0 : i32
    %c0_i32_1 = arith.constant 0 : i32
    %c0_i32_2 = arith.constant 0 : i32
    return %c0_i32, %c0_i32_0, %c0_i32_1 : i32, i32, i32
  }
  func.func @transform_22(%arg0: i32) -> (i32, i32) {
    %c0_i32 = arith.constant 0 : i32
    %c0_i32_0 = arith.constant 0 : i32
    %c0_i32_1 = arith.constant 0 : i32
    return %c0_i32, %c0_i32_0 : i32, i32
  }
  func.func @transform_23(%arg0: i32) -> (i32, i32, i32) {
    %c0_i32 = arith.constant 0 : i32
    %c0_i32_0 = arith.constant 0 : i32
    %c0_i32_1 = arith.constant 0 : i32
    %c0_i32_2 = arith.constant 0 : i32
    return %c0_i32, %c0_i32_0, %c0_i32_1 : i32, i32, i32
  }
  func.func @transform_24(%arg0: i32) -> (i32, i32, i32) {
    %c0_i32 = arith.constant 0 : i32
    %c0_i32_0 = arith.constant 0 : i32
    %c0_i32_1 = arith.constant 0 : i32
    %c0_i32_2 = arith.constant 0 : i32
    return %c0_i32, %c0_i32_0, %c0_i32_1 : i32, i32, i32
  }
  func.func @transform_25(%arg0: i32) -> (i32, i32) {
    %c0_i32 = arith.constant 0 : i32
    %c0_i32_0 = arith.constant 0 : i32
    %c0_i32_1 = arith.constant 0 : i32
    return %c0_i32, %c0_i32_0 : i32, i32
  }
  func.func @transform_26(%arg0: i32) -> (i32, i32, i32) {
    %c0_i32 = arith.constant 0 : i32
    %c0_i32_0 = arith.constant 0 : i32
    %c0_i32_1 = arith.constant 0 : i32
    %c0_i32_2 = arith.constant 0 : i32
    return %c0_i32, %c0_i32_0, %c0_i32_1 : i32, i32, i32
  }
  func.func @transform_27(%arg0: i32) -> (i32, i32, i32) {
    %c0_i32 = arith.constant 0 : i32
    %c0_i32_0 = arith.constant 0 : i32
    %c0_i32_1 = arith.constant 0 : i32
    %c0_i32_2 = arith.constant 0 : i32
    return %c0_i32, %c0_i32_0, %c0_i32_1 : i32, i32, i32
  }
  func.func @transform_28(%arg0: i32) -> (i32, i32, i32) {
    %c0_i32 = arith.constant 0 : i32
    %c0_i32_0 = arith.constant 0 : i32
    %c0_i32_1 = arith.constant 0 : i32
    %c0_i32_2 = arith.constant 0 : i32
    return %c0_i32, %c0_i32_0, %c0_i32_1 : i32, i32, i32
  }
  func.func @transform_29(%arg0: i32) -> (i32, i32) {
    %c0_i32 = arith.constant 0 : i32
    %c0_i32_0 = arith.constant 0 : i32
    %c0_i32_1 = arith.constant 0 : i32
    return %c0_i32, %c0_i32_0 : i32, i32
  }
  func.func @transform_30(%arg0: i32) -> (i32, i32) {
    %c0_i32 = arith.constant 0 : i32
    %c0_i32_0 = arith.constant 0 : i32
    %c0_i32_1 = arith.constant 0 : i32
    return %c0_i32, %c0_i32_0 : i32, i32
  }
  func.func @transform_31(%arg0: i32) -> (i32, i32) {
    %c0_i32 = arith.constant 0 : i32
    %c0_i32_0 = arith.constant 0 : i32
    %c0_i32_1 = arith.constant 0 : i32
    return %c0_i32, %c0_i32_0 : i32, i32
  }
  func.func @transform_32(%arg0: i32) -> (i32, i32, i32) {
    %c0_i32 = arith.constant 0 : i32
    %c0_i32_0 = arith.constant 0 : i32
    %c0_i32_1 = arith.constant 0 : i32
    return %arg0, %c0_i32, %c0_i32_0 : i32, i32, i32
  }
}

</mosaic_0001>

<llo_original>
// kernel: ktnet_forward.1
$region0: #{ktnet_forward.1}
  #allocation0 [shape = 'u32[]', space=smem, size = 0x4, offset = 0x4, fixed_abs, tag = 'smem constant byte address 0x4 - core index']
  #allocation1 [shape = 'u32[144,128]{1,0:T(1,128)}', space=vmem, size = 0x12000, scoped, tag = 'internal scratch']
  #allocation2 [shape = 'f32[1,1]{1,0:T(1,128)S(1)}', space=vmem, size = 0x200, scoped, tag = 'scoped memory for ktnet_forward.1']
  %s0 = inlined_call_operand.smem [shape: u32[33], index: -1, kind: input, shape index: {}]
  %s1 = sld [smem:[%s0]]
  %s2 = scalar_lea.smem %s0, 1
  %s3 = sld [smem:[%s2]]
  %s4 = scalar_lea.smem %s0, 2
  %s5 = sld [smem:[%s4]]
  %s6 = scalar_lea.smem %s0, 3
  %s7 = sld [smem:[%s6]]
  %s8 = scalar_lea.smem %s0, 4
  %s9 = sld [smem:[%s8]]
  %s10 = scalar_lea.smem %s0, 5
  %s11 = sld [smem:[%s10]]
  %s12 = scalar_lea.smem %s0, 6
  %s13 = sld [smem:[%s12]]
  %s14 = scalar_lea.smem %s0, 7
  %s15 = sld [smem:[%s14]]
  %s16 = scalar_lea.smem %s0, 8
  %s17 = sld [smem:[%s16]]
  %s18 = scalar_lea.smem %s0, 9
  %s19 = sld [smem:[%s18]]
  %s20 = scalar_lea.smem %s0, 10
  %s21 = sld [smem:[%s20]]
  %s22 = scalar_lea.smem %s0, 11
  %s23 = sld [smem:[%s22]]
  %s24 = scalar_lea.smem %s0, 12
  %s25 = sld [smem:[%s24]]
  %s26 = scalar_lea.smem %s0, 13
  %s27 = sld [smem:[%s26]]
  %s28 = scalar_lea.smem %s0, 14
  %s29 = sld [smem:[%s28]]
  %s30 = scalar_lea.smem %s0, 15
  %s31 = sld [smem:[%s30]]
  %s32 = scalar_lea.smem %s0, 16
  %s33 = sld [smem:[%s32]]
  %s34 = scalar_lea.smem %s0, 17
  %s35 = sld [smem:[%s34]]
  %s36 = scalar_lea.smem %s0, 18
  %s37 = sld [smem:[%s36]]
  %s38 = scalar_lea.smem %s0, 19
  %s39 = sld [smem:[%s38]]
  %s40 = scalar_lea.smem %s0, 20
  %s41 = sld [smem:[%s40]]
  %s42 = scalar_lea.smem %s0, 21
  %s43 = sld [smem:[%s42]]
  %s44 = scalar_lea.smem %s0, 22
  %s45 = sld [smem:[%s44]]
  %s46 = scalar_lea.smem %s0, 23
  %s47 = sld [smem:[%s46]]
  %s48 = scalar_lea.smem %s0, 24
  %s49 = sld [smem:[%s48]]
  %s50 = scalar_lea.smem %s0, 25
  %s51 = sld [smem:[%s50]]
  %s52 = scalar_lea.smem %s0, 26
  %s53 = sld [smem:[%s52]]
  %s54 = scalar_lea.smem %s0, 27
  %s55 = sld [smem:[%s54]]
  %s56 = scalar_lea.smem %s0, 28
  %s57 = sld [smem:[%s56]]
  %s58 = scalar_lea.smem %s0, 29
  %s59 = sld [smem:[%s58]]
  %s60 = scalar_lea.smem %s0, 30
  %s61 = sld [smem:[%s60]]
  %s62 = scalar_lea.smem %s0, 31
  %s63 = sld [smem:[%s62]]
  %s64 = scalar_lea.smem %s0, 32
  %s65 = sld [smem:[%s64]]
  %s66 = sld [smem:[#allocation0]]
  $region237: #{ktnet_forward.1} parent=0
    _
  %s68 = ssub.s32 1, %s66
  %s69 = scalar_select 0, %s68, %s66
  %v70 = vstv %s45
  %71 = vst [vmem:[#allocation2] sm:$0x1] %v70
  $region1: #{ktnet_forward.1} parent=0
    #allocation3 [shape = 'u8[24576]{0}', space=vmem, size = 0x6000, scoped, tag = 'input window, operand 2']
    #allocation4 [shape = 'u8[32768]{0}', space=vmem, size = 0x8000, scoped, tag = 'input window, operand 3']
    #allocation5 [shape = 'u8[8192]{0}', space=vmem, size = 0x2000, scoped, tag = 'output window, operand 0']
    #allocation6 [shape = 's32[2]{0}', space=sflag, size = 0x8, scoped, tag = 'scoped memory for ktnet_forward.1']
    %72 = vsyncpa [#allocation6], 0
    %s73 = scalar_lea.sflag [#allocation6], 1
    %74 = vsyncpa %s73, 0
    loop: start=0, step=1, limit=4
    $region2: #{ktnet_forward.1} parent=1 // loop_pre_header
      _
    $region3: #{ktnet_forward.1} parent=1 // loop_header
      %s76 = sphi 0, %s80
      %p77 = scmp.ge.s32.totalorder %s76, 4
      %s86 = sphi 0, %s88
      %s89 = sphi 0, %s86
      %s90 = sphi 0, %s89
      %s106 = sphi 0, %s90
      %s112 = sphi 0, %s114
      %s115 = sphi 0, %s112
      %s116 = sphi 0, %s115
      %s132 = sphi 0, %s116
      %s138 = sphi 0, %s140
      %s141 = sphi 0, %s138
      %s142 = sphi 0, %s141
      %s158 = sphi 0, %s142
      %s164 = sphi 0, %s166
      %s167 = sphi 0, %s164
      %s168 = sphi 0, %s167
      %s184 = sphi 0, %s168
      %s188 = sphi 0, %s188
      %s190 = sphi 0, %s188
      %s191 = sphi 0, %s190
      %s205 = sphi 0, %s191
      %s209 = sphi 0, %s209
      %s211 = sphi 0, %s209
      %s212 = sphi 0, %s211
      %s226 = sphi 0, %s212
      %s230 = sphi 0, %s230
      %s232 = sphi 0, %s230
      %s233 = sphi 0, %s232
      %s247 = sphi 0, %s233
      %s251 = sphi 0, %s251
      %s253 = sphi 0, %s251
      %s254 = sphi 0, %s253
      %s268 = sphi 0, %s254
      %s272 = sphi 0, %s272
      %s274 = sphi 0, %s272
      %s275 = sphi 0, %s274
      %s289 = sphi 0, %s275
      %s293 = sphi 0, %s293
      %s295 = sphi 0, %s293
      %s296 = sphi 0, %s295
      %s310 = sphi 0, %s296
      %s314 = sphi 0, %s314
      %s316 = sphi 0, %s314
      %s317 = sphi 0, %s316
      %s331 = sphi 0, %s317
      %s335 = sphi 0, %s335
      %s337 = sphi 0, %s335
      %s338 = sphi 0, %s337
      %s352 = sphi 0, %s338
      %s356 = sphi 0, %s356
      %s358 = sphi 0, %s356
      %s359 = sphi 0, %s358
      %s373 = sphi 0, %s359
      %s377 = sphi 0, %s377
      %s379 = sphi 0, %s377
      %s380 = sphi 0, %s379
      %s394 = sphi 0, %s380
      %s398 = sphi 0, %s398
      %s400 = sphi 0, %s398
      %s401 = sphi 0, %s400
      %s415 = sphi 0, %s401
      %s419 = sphi 0, %s419
      %s421 = sphi 0, %s419
      %s422 = sphi 0, %s421
      %s436 = sphi 0, %s422
      %s440 = sphi 0, %s440
      %s442 = sphi 0, %s440
      %s443 = sphi 0, %s442
      %s457 = sphi 0, %s443
      %s461 = sphi 0, %s461
      %s463 = sphi 0, %s461
      %s464 = sphi 0, %s463
      %s478 = sphi 0, %s464
      %s482 = sphi 0, %s482
      %s484 = sphi 0, %s482
      %s485 = sphi 0, %s484
      %s499 = sphi 0, %s485
      %s503 = sphi 0, %s503
      %s505 = sphi 0, %s503
      %s506 = sphi 0, %s505
      %s520 = sphi 0, %s506
      %s524 = sphi 0, %s524
      %s526 = sphi 0, %s524
      %s527 = sphi 0, %s526
      %s541 = sphi 0, %s527
      %s545 = sphi 0, %s545
      %s547 = sphi 0, %s545
      %s548 = sphi 0, %s547
      %s562 = sphi 0, %s548
      %s566 = sphi 0, %s566
      %s568 = sphi 0, %s566
      %s569 = sphi 0, %s568
      %s583 = sphi 0, %s569
      %s587 = sphi 0, %s587
      %s589 = sphi 0, %s587
      %s590 = sphi 0, %s589
      %s604 = sphi 0, %s590
      %s608 = sphi 0, %s608
      %s610 = sphi 0, %s608
      %s611 = sphi 0, %s610
      %s625 = sphi 0, %s611
      %s629 = sphi 0, %s629
      %s631 = sphi 0, %s629
      %s632 = sphi 0, %s631
      %s646 = sphi 0, %s632
      %s650 = sphi 0, %s650
      %s652 = sphi 0, %s650
      %s653 = sphi 0, %s652
      %s667 = sphi 0, %s653
      %s671 = sphi 0, %s671
      %s673 = sphi 0, %s671
      %s674 = sphi 0, %s673
      %s688 = sphi 0, %s674
      %s692 = sphi 0, %s692
      %s694 = sphi 0, %s692
      %s695 = sphi 0, %s694
      %s709 = sphi 0, %s695
      %s713 = sphi 0, %s713
      %s715 = sphi 0, %s713
      %s716 = sphi 0, %s715
      %s730 = sphi 0, %s716
      %s734 = sphi 0, %s734
      %s736 = sphi 0, %s734
      %s737 = sphi 0, %s736
      %s751 = sphi 0, %s737
      %s755 = sphi 0, %s755
      %s757 = sphi 0, %s755
      %s758 = sphi 0, %s757
      %s772 = sphi 0, %s758
      %s778 = sphi 0, %s780
      %s781 = sphi 0, %s778
      %s782 = sphi 0, %s781
      %s798 = sphi 0, %s782
    $region4: #{ktnet_forward.1} parent=1 // loop_header_branch
      %79 = sbr.rel (%p77) target = $region8
    $region5: #{ktnet_forward.1} parent=1 // loop_body
      %s81 = ssub.s32 %s76, 1
      %s82 = ssub.s32 %s76, 2
      %s83 = sadd.s32 %s76, 1
      %s84 = ssub.s32 %s76, %s83
      %p85 = scmp.eq.s32.totalorder %s84, 0
      %s87 = sadd.s32 %s86, 1
      %s88 = scalar_select %p85, %s86, %s87
      %p91 = pneg %p85
      %p92 = scmp.eq.s32.totalorder %s76, 1
      %p93 = por %p91, %p92
      %p94 = scmp.ne.s32.totalorder %s86, %s89
      %p95 = scmp.eq.s32.totalorder %s76, 0
      %p96 = por %p94, %p95
      %p97 = scmp.ne.s32.totalorder %s86, %s89
      %p98 = scmp.eq.s32.totalorder %s81, 1
      %p99 = por %p97, %p98
      %p100 = scmp.ne.s32.totalorder %s89, %s90
      %p101 = scmp.eq.s32.totalorder %s81, 0
      %p102 = por %p100, %p101
      %p103 = scmp.ne.s32.totalorder %s89, %s90
      %p104 = scmp.eq.s32.totalorder %s82, 1
      %p105 = por %p103, %p104
      %p107 = scmp.ne.s32.totalorder %s90, %s106
      %p108 = scmp.eq.s32.totalorder %s82, 0
      %p109 = por %p107, %p108
      %s110 = ssub.s32 %s76, %s83
      %p111 = scmp.eq.s32.totalorder %s110, 0
      %s113 = sadd.s32 %s112, 1
      %s114 = scalar_select %p111, %s112, %s113
      %p117 = pneg %p111
      %p118 = scmp.eq.s32.totalorder %s76, 1
      %p119 = por %p117, %p118
      %p120 = scmp.ne.s32.totalorder %s112, %s115
      %p121 = scmp.eq.s32.totalorder %s76, 0
      %p122 = por %p120, %p121
      %p123 = scmp.ne.s32.totalorder %s112, %s115
      %p124 = scmp.eq.s32.totalorder %s81, 1
      %p125 = por %p123, %p124
      %p126 = scmp.ne.s32.totalorder %s115, %s116
      %p127 = scmp.eq.s32.totalorder %s81, 0
      %p128 = por %p126, %p127
      %p129 = scmp.ne.s32.totalorder %s115, %s116
      %p130 = scmp.eq.s32.totalorder %s82, 1
      %p131 = por %p129, %p130
      %p133 = scmp.ne.s32.totalorder %s116, %s132
      %p134 = scmp.eq.s32.totalorder %s82, 0
      %p135 = por %p133, %p134
      %s136 = ssub.s32 %s76, %s83
      %p137 = scmp.eq.s32.totalorder %s136, 0
      %s139 = sadd.s32 %s138, 1
      %s140 = scalar_select %p137, %s138, %s139
      %p143 = pneg %p137
      %p144 = scmp.eq.s32.totalorder %s76, 1
      %p145 = por %p143, %p144
      %p146 = scmp.ne.s32.totalorder %s138, %s141
      %p147 = scmp.eq.s32.totalorder %s76, 0
      %p148 = por %p146, %p147
      %p149 = scmp.ne.s32.totalorder %s138, %s141
      %p150 = scmp.eq.s32.totalorder %s81, 1
      %p151 = por %p149, %p150
      %p152 = scmp.ne.s32.totalorder %s141, %s142
      %p153 = scmp.eq.s32.totalorder %s81, 0
      %p154 = por %p152, %p153
      %p155 = scmp.ne.s32.totalorder %s141, %s142
      %p156 = scmp.eq.s32.totalorder %s82, 1
      %p157 = por %p155, %p156
      %p159 = scmp.ne.s32.totalorder %s142, %s158
      %p160 = scmp.eq.s32.totalorder %s82, 0
      %p161 = por %p159, %p160
      %s162 = ssub.s32 %s76, %s83
      %p163 = scmp.eq.s32.totalorder %s162, 0
      %s165 = sadd.s32 %s164, 1
      %s166 = scalar_select %p163, %s164, %s165
      %p169 = pneg %p163
      %p170 = scmp.eq.s32.totalorder %s76, 1
      %p171 = por %p169, %p170
      %p172 = scmp.ne.s32.totalorder %s164, %s167
      %p173 = scmp.eq.s32.totalorder %s76, 0
      %p174 = por %p172, %p173
      %p175 = scmp.ne.s32.totalorder %s164, %s167
      %p176 = scmp.eq.s32.totalorder %s81, 1
      %p177 = por %p175, %p176
      %p178 = scmp.ne.s32.totalorder %s167, %s168
      %p179 = scmp.eq.s32.totalorder %s81, 0
      %p180 = por %p178, %p179
      %p181 = scmp.ne.s32.totalorder %s167, %s168
      %p182 = scmp.eq.s32.totalorder %s82, 1
      %p183 = por %p181, %p182
      %p185 = scmp.ne.s32.totalorder %s168, %s184
      %p186 = scmp.eq.s32.totalorder %s82, 0
      %p187 = por %p185, %p186
      %s189 = sadd.s32 %s188, 1
      %p192 = scmp.eq.s32.totalorder %s76, 1
      %p193 = scmp.ne.s32.totalorder %s188, %s190
      %p194 = scmp.eq.s32.totalorder %s76, 0
      %p195 = por %p193, %p194
      %p196 = scmp.ne.s32.totalorder %s188, %s190
      %p197 = scmp.eq.s32.totalorder %s81, 1
      %p198 = por %p196, %p197
      %p199 = scmp.ne.s32.totalorder %s190, %s191
      %p200 = scmp.eq.s32.totalorder %s81, 0
      %p201 = por %p199, %p200
      %p202 = scmp.ne.s32.totalorder %s190, %s191
      %p203 = scmp.eq.s32.totalorder %s82, 1
      %p204 = por %p202, %p203
      %p206 = scmp.ne.s32.totalorder %s191, %s205
      %p207 = scmp.eq.s32.totalorder %s82, 0
      %p208 = por %p206, %p207
      %s210 = sadd.s32 %s209, 1
      %p213 = scmp.eq.s32.totalorder %s76, 1
      %p214 = scmp.ne.s32.totalorder %s209, %s211
      %p215 = scmp.eq.s32.totalorder %s76, 0
      %p216 = por %p214, %p215
      %p217 = scmp.ne.s32.totalorder %s209, %s211
      %p218 = scmp.eq.s32.totalorder %s81, 1
      %p219 = por %p217, %p218
      %p220 = scmp.ne.s32.totalorder %s211, %s212
      %p221 = scmp.eq.s32.totalorder %s81, 0
      %p222 = por %p220, %p221
      %p223 = scmp.ne.s32.totalorder %s211, %s212
      %p224 = scmp.eq.s32.totalorder %s82, 1
      %p225 = por %p223, %p224
      %p227 = scmp.ne.s32.totalorder %s212, %s226
      %p228 = scmp.eq.s32.totalorder %s82, 0
      %p229 = por %p227, %p228
      %s231 = sadd.s32 %s230, 1
      %p234 = scmp.eq.s32.totalorder %s76, 1
      %p235 = scmp.ne.s32.totalorder %s230, %s232
      %p236 = scmp.eq.s32.totalorder %s76, 0
      %p237 = por %p235, %p236
      %p238 = scmp.ne.s32.totalorder %s230, %s232
      %p239 = scmp.eq.s32.totalorder %s81, 1
      %p240 = por %p238, %p239
      %p241 = scmp.ne.s32.totalorder %s232, %s233
      %p242 = scmp.eq.s32.totalorder %s81, 0
      %p243 = por %p241, %p242
      %p244 = scmp.ne.s32.totalorder %s232, %s233
      %p245 = scmp.eq.s32.totalorder %s82, 1
      %p246 = por %p244, %p245
      %p248 = scmp.ne.s32.totalorder %s233, %s247
      %p249 = scmp.eq.s32.totalorder %s82, 0
      %p250 = por %p248, %p249
      %s252 = sadd.s32 %s251, 1
      %p255 = scmp.eq.s32.totalorder %s76, 1
      %p256 = scmp.ne.s32.totalorder %s251, %s253
      %p257 = scmp.eq.s32.totalorder %s76, 0
      %p258 = por %p256, %p257
      %p259 = scmp.ne.s32.totalorder %s251, %s253
      %p260 = scmp.eq.s32.totalorder %s81, 1
      %p261 = por %p259, %p260
      %p262 = scmp.ne.s32.totalorder %s253, %s254
      %p263 = scmp.eq.s32.totalorder %s81, 0
      %p264 = por %p262, %p263
      %p265 = scmp.ne.s32.totalorder %s253, %s254
      %p266 = scmp.eq.s32.totalorder %s82, 1
      %p267 = por %p265, %p266
      %p269 = scmp.ne.s32.totalorder %s254, %s268
      %p270 = scmp.eq.s32.totalorder %s82, 0
      %p271 = por %p269, %p270
      %s273 = sadd.s32 %s272, 1
      %p276 = scmp.eq.s32.totalorder %s76, 1
      %p277 = scmp.ne.s32.totalorder %s272, %s274
      %p278 = scmp.eq.s32.totalorder %s76, 0
      %p279 = por %p277, %p278
      %p280 = scmp.ne.s32.totalorder %s272, %s274
      %p281 = scmp.eq.s32.totalorder %s81, 1
      %p282 = por %p280, %p281
      %p283 = scmp.ne.s32.totalorder %s274, %s275
      %p284 = scmp.eq.s32.totalorder %s81, 0
      %p285 = por %p283, %p284
      %p286 = scmp.ne.s32.totalorder %s274, %s275
      %p287 = scmp.eq.s32.totalorder %s82, 1
      %p288 = por %p286, %p287
      %p290 = scmp.ne.s32.totalorder %s275, %s289
      %p291 = scmp.eq.s32.totalorder %s82, 0
      %p292 = por %p290, %p291
      %s294 = sadd.s32 %s293, 1
      %p297 = scmp.eq.s32.totalorder %s76, 1
      %p298 = scmp.ne.s32.totalorder %s293, %s295
      %p299 = scmp.eq.s32.totalorder %s76, 0
      %p300 = por %p298, %p299
      %p301 = scmp.ne.s32.totalorder %s293, %s295
      %p302 = scmp.eq.s32.totalorder %s81, 1
      %p303 = por %p301, %p302
      %p304 = scmp.ne.s32.totalorder %s295, %s296
      %p305 = scmp.eq.s32.totalorder %s81, 0
      %p306 = por %p304, %p305
      %p307 = scmp.ne.s32.totalorder %s295, %s296
      %p308 = scmp.eq.s32.totalorder %s82, 1
      %p309 = por %p307, %p308
      %p311 = scmp.ne.s32.totalorder %s296, %s310
      %p312 = scmp.eq.s32.totalorder %s82, 0
      %p313 = por %p311, %p312
      %s315 = sadd.s32 %s314, 1
      %p318 = scmp.eq.s32.totalorder %s76, 1
      %p319 = scmp.ne.s32.totalorder %s314, %s316
      %p320 = scmp.eq.s32.totalorder %s76, 0
      %p321 = por %p319, %p320
      %p322 = scmp.ne.s32.totalorder %s314, %s316
      %p323 = scmp.eq.s32.totalorder %s81, 1
      %p324 = por %p322, %p323
      %p325 = scmp.ne.s32.totalorder %s316, %s317
      %p326 = scmp.eq.s32.totalorder %s81, 0
      %p327 = por %p325, %p326
      %p328 = scmp.ne.s32.totalorder %s316, %s317
      %p329 = scmp.eq.s32.totalorder %s82, 1
      %p330 = por %p328, %p329
      %p332 = scmp.ne.s32.totalorder %s317, %s331
      %p333 = scmp.eq.s32.totalorder %s82, 0
      %p334 = por %p332, %p333
      %s336 = sadd.s32 %s335, 1
      %p339 = scmp.eq.s32.totalorder %s76, 1
      %p340 = scmp.ne.s32.totalorder %s335, %s337
      %p341 = scmp.eq.s32.totalorder %s76, 0
      %p342 = por %p340, %p341
      %p343 = scmp.ne.s32.totalorder %s335, %s337
      %p344 = scmp.eq.s32.totalorder %s81, 1
      %p345 = por %p343, %p344
      %p346 = scmp.ne.s32.totalorder %s337, %s338
      %p347 = scmp.eq.s32.totalorder %s81, 0
      %p348 = por %p346, %p347
      %p349 = scmp.ne.s32.totalorder %s337, %s338
      %p350 = scmp.eq.s32.totalorder %s82, 1
      %p351 = por %p349, %p350
      %p353 = scmp.ne.s32.totalorder %s338, %s352
      %p354 = scmp.eq.s32.totalorder %s82, 0
      %p355 = por %p353, %p354
      %s357 = sadd.s32 %s356, 1
      %p360 = scmp.eq.s32.totalorder %s76, 1
      %p361 = scmp.ne.s32.totalorder %s356, %s358
      %p362 = scmp.eq.s32.totalorder %s76, 0
      %p363 = por %p361, %p362
      %p364 = scmp.ne.s32.totalorder %s356, %s358
      %p365 = scmp.eq.s32.totalorder %s81, 1
      %p366 = por %p364, %p365
      %p367 = scmp.ne.s32.totalorder %s358, %s359
      %p368 = scmp.eq.s32.totalorder %s81, 0
      %p369 = por %p367, %p368
      %p370 = scmp.ne.s32.totalorder %s358, %s359
      %p371 = scmp.eq.s32.totalorder %s82, 1
      %p372 = por %p370, %p371
      %p374 = scmp.ne.s32.totalorder %s359, %s373
      %p375 = scmp.eq.s32.totalorder %s82, 0
      %p376 = por %p374, %p375
      %s378 = sadd.s32 %s377, 1
      %p381 = scmp.eq.s32.totalorder %s76, 1
      %p382 = scmp.ne.s32.totalorder %s377, %s379
      %p383 = scmp.eq.s32.totalorder %s76, 0
      %p384 = por %p382, %p383
      %p385 = scmp.ne.s32.totalorder %s377, %s379
      %p386 = scmp.eq.s32.totalorder %s81, 1
      %p387 = por %p385, %p386
      %p388 = scmp.ne.s32.totalorder %s379, %s380
      %p389 = scmp.eq.s32.totalorder %s81, 0
      %p390 = por %p388, %p389
      %p391 = scmp.ne.s32.totalorder %s379, %s380
      %p392 = scmp.eq.s32.totalorder %s82, 1
      %p393 = por %p391, %p392
      %p395 = scmp.ne.s32.totalorder %s380, %s394
      %p396 = scmp.eq.s32.totalorder %s82, 0
      %p397 = por %p395, %p396
      %s399 = sadd.s32 %s398, 1
      %p402 = scmp.eq.s32.totalorder %s76, 1
      %p403 = scmp.ne.s32.totalorder %s398, %s400
      %p404 = scmp.eq.s32.totalorder %s76, 0
      %p405 = por %p403, %p404
      %p406 = scmp.ne.s32.totalorder %s398, %s400
      %p407 = scmp.eq.s32.totalorder %s81, 1
      %p408 = por %p406, %p407
      %p409 = scmp.ne.s32.totalorder %s400, %s401
      %p410 = scmp.eq.s32.totalorder %s81, 0
      %p411 = por %p409, %p410
      %p412 = scmp.ne.s32.totalorder %s400, %s401
      %p413 = scmp.eq.s32.totalorder %s82, 1
      %p414 = por %p412, %p413
      %p416 = scmp.ne.s32.totalorder %s401, %s415
      %p417 = scmp.eq.s32.totalorder %s82, 0
      %p418 = por %p416, %p417
      %s420 = sadd.s32 %s419, 1
      %p423 = scmp.eq.s32.totalorder %s76, 1
      %p424 = scmp.ne.s32.totalorder %s419, %s421
      %p425 = scmp.eq.s32.totalorder %s76, 0
      %p426 = por %p424, %p425
      %p427 = scmp.ne.s32.totalorder %s419, %s421
      %p428 = scmp.eq.s32.totalorder %s81, 1
      %p429 = por %p427, %p428
      %p430 = scmp.ne.s32.totalorder %s421, %s422
      %p431 = scmp.eq.s32.totalorder %s81, 0
      %p432 = por %p430, %p431
      %p433 = scmp.ne.s32.totalorder %s421, %s422
      %p434 = scmp.eq.s32.totalorder %s82, 1
      %p435 = por %p433, %p434
      %p437 = scmp.ne.s32.totalorder %s422, %s436
      %p438 = scmp.eq.s32.totalorder %s82, 0
      %p439 = por %p437, %p438
      %s441 = sadd.s32 %s440, 1
      %p444 = scmp.eq.s32.totalorder %s76, 1
      %p445 = scmp.ne.s32.totalorder %s440, %s442
      %p446 = scmp.eq.s32.totalorder %s76, 0
      %p447 = por %p445, %p446
      %p448 = scmp.ne.s32.totalorder %s440, %s442
      %p449 = scmp.eq.s32.totalorder %s81, 1
      %p450 = por %p448, %p449
      %p451 = scmp.ne.s32.totalorder %s442, %s443
      %p452 = scmp.eq.s32.totalorder %s81, 0
      %p453 = por %p451, %p452
      %p454 = scmp.ne.s32.totalorder %s442, %s443
      %p455 = scmp.eq.s32.totalorder %s82, 1
      %p456 = por %p454, %p455
      %p458 = scmp.ne.s32.totalorder %s443, %s457
      %p459 = scmp.eq.s32.totalorder %s82, 0
      %p460 = por %p458, %p459
      %s462 = sadd.s32 %s461, 1
      %p465 = scmp.eq.s32.totalorder %s76, 1
      %p466 = scmp.ne.s32.totalorder %s461, %s463
      %p467 = scmp.eq.s32.totalorder %s76, 0
      %p468 = por %p466, %p467
      %p469 = scmp.ne.s32.totalorder %s461, %s463
      %p470 = scmp.eq.s32.totalorder %s81, 1
      %p471 = por %p469, %p470
      %p472 = scmp.ne.s32.totalorder %s463, %s464
      %p473 = scmp.eq.s32.totalorder %s81, 0
      %p474 = por %p472, %p473
      %p475 = scmp.ne.s32.totalorder %s463, %s464
      %p476 = scmp.eq.s32.totalorder %s82, 1
      %p477 = por %p475, %p476
      %p479 = scmp.ne.s32.totalorder %s464, %s478
      %p480 = scmp.eq.s32.totalorder %s82, 0
      %p481 = por %p479, %p480
      %s483 = sadd.s32 %s482, 1
      %p486 = scmp.eq.s32.totalorder %s76, 1
      %p487 = scmp.ne.s32.totalorder %s482, %s484
      %p488 = scmp.eq.s32.totalorder %s76, 0
      %p489 = por %p487, %p488
      %p490 = scmp.ne.s32.totalorder %s482, %s484
      %p491 = scmp.eq.s32.totalorder %s81, 1
      %p492 = por %p490, %p491
      %p493 = scmp.ne.s32.totalorder %s484, %s485
      %p494 = scmp.eq.s32.totalorder %s81, 0
      %p495 = por %p493, %p494
      %p496 = scmp.ne.s32.totalorder %s484, %s485
      %p497 = scmp.eq.s32.totalorder %s82, 1
      %p498 = por %p496, %p497
      %p500 = scmp.ne.s32.totalorder %s485, %s499
      %p501 = scmp.eq.s32.totalorder %s82, 0
      %p502 = por %p500, %p501
      %s504 = sadd.s32 %s503, 1
      %p507 = scmp.eq.s32.totalorder %s76, 1
      %p508 = scmp.ne.s32.totalorder %s503, %s505
      %p509 = scmp.eq.s32.totalorder %s76, 0
      %p510 = por %p508, %p509
      %p511 = scmp.ne.s32.totalorder %s503, %s505
      %p512 = scmp.eq.s32.totalorder %s81, 1
      %p513 = por %p511, %p512
      %p514 = scmp.ne.s32.totalorder %s505, %s506
      %p515 = scmp.eq.s32.totalorder %s81, 0
      %p516 = por %p514, %p515
      %p517 = scmp.ne.s32.totalorder %s505, %s506
      %p518 = scmp.eq.s32.totalorder %s82, 1
      %p519 = por %p517, %p518
      %p521 = scmp.ne.s32.totalorder %s506, %s520
      %p522 = scmp.eq.s32.totalorder %s82, 0
      %p523 = por %p521, %p522
      %s525 = sadd.s32 %s524, 1
      %p528 = scmp.eq.s32.totalorder %s76, 1
      %p529 = scmp.ne.s32.totalorder %s524, %s526
      %p530 = scmp.eq.s32.totalorder %s76, 0
      %p531 = por %p529, %p530
      %p532 = scmp.ne.s32.totalorder %s524, %s526
      %p533 = scmp.eq.s32.totalorder %s81, 1
      %p534 = por %p532, %p533
      %p535 = scmp.ne.s32.totalorder %s526, %s527
      %p536 = scmp.eq.s32.totalorder %s81, 0
      %p537 = por %p535, %p536
      %p538 = scmp.ne.s32.totalorder %s526, %s527
      %p539 = scmp.eq.s32.totalorder %s82, 1
      %p540 = por %p538, %p539
      %p542 = scmp.ne.s32.totalorder %s527, %s541
      %p543 = scmp.eq.s32.totalorder %s82, 0
      %p544 = por %p542, %p543
      %s546 = sadd.s32 %s545, 1
      %p549 = scmp.eq.s32.totalorder %s76, 1
      %p550 = scmp.ne.s32.totalorder %s545, %s547
      %p551 = scmp.eq.s32.totalorder %s76, 0
      %p552 = por %p550, %p551
      %p553 = scmp.ne.s32.totalorder %s545, %s547
      %p554 = scmp.eq.s32.totalorder %s81, 1
      %p555 = por %p553, %p554
      %p556 = scmp.ne.s32.totalorder %s547, %s548
      %p557 = scmp.eq.s32.totalorder %s81, 0
      %p558 = por %p556, %p557
      %p559 = scmp.ne.s32.totalorder %s547, %s548
      %p560 = scmp.eq.s32.totalorder %s82, 1
      %p561 = por %p559, %p560
      %p563 = scmp.ne.s32.totalorder %s548, %s562
      %p564 = scmp.eq.s32.totalorder %s82, 0
      %p565 = por %p563, %p564
      %s567 = sadd.s32 %s566, 1
      %p570 = scmp.eq.s32.totalorder %s76, 1
      %p571 = scmp.ne.s32.totalorder %s566, %s568
      %p572 = scmp.eq.s32.totalorder %s76, 0
      %p573 = por %p571, %p572
      %p574 = scmp.ne.s32.totalorder %s566, %s568
      %p575 = scmp.eq.s32.totalorder %s81, 1
      %p576 = por %p574, %p575
      %p577 = scmp.ne.s32.totalorder %s568, %s569
      %p578 = scmp.eq.s32.totalorder %s81, 0
      %p579 = por %p577, %p578
      %p580 = scmp.ne.s32.totalorder %s568, %s569
      %p581 = scmp.eq.s32.totalorder %s82, 1
      %p582 = por %p580, %p581
      %p584 = scmp.ne.s32.totalorder %s569, %s583
      %p585 = scmp.eq.s32.totalorder %s82, 0
      %p586 = por %p584, %p585
      %s588 = sadd.s32 %s587, 1
      %p591 = scmp.eq.s32.totalorder %s76, 1
      %p592 = scmp.ne.s32.totalorder %s587, %s589
      %p593 = scmp.eq.s32.totalorder %s76, 0
      %p594 = por %p592, %p593
      %p595 = scmp.ne.s32.totalorder %s587, %s589
      %p596 = scmp.eq.s32.totalorder %s81, 1
      %p597 = por %p595, %p596
      %p598 = scmp.ne.s32.totalorder %s589, %s590
      %p599 = scmp.eq.s32.totalorder %s81, 0
      %p600 = por %p598, %p599
      %p601 = scmp.ne.s32.totalorder %s589, %s590
      %p602 = scmp.eq.s32.totalorder %s82, 1
      %p603 = por %p601, %p602
      %p605 = scmp.ne.s32.totalorder %s590, %s604
      %p606 = scmp.eq.s32.totalorder %s82, 0
      %p607 = por %p605, %p606
      %s609 = sadd.s32 %s608, 1
      %p612 = scmp.eq.s32.totalorder %s76, 1
      %p613 = scmp.ne.s32.totalorder %s608, %s610
      %p614 = scmp.eq.s32.totalorder %s76, 0
      %p615 = por %p613, %p614
      %p616 = scmp.ne.s32.totalorder %s608, %s610
      %p617 = scmp.eq.s32.totalorder %s81, 1
      %p618 = por %p616, %p617
      %p619 = scmp.ne.s32.totalorder %s610, %s611
      %p620 = scmp.eq.s32.totalorder %s81, 0
      %p621 = por %p619, %p620
      %p622 = scmp.ne.s32.totalorder %s610, %s611
      %p623 = scmp.eq.s32.totalorder %s82, 1
      %p624 = por %p622, %p623
      %p626 = scmp.ne.s32.totalorder %s611, %s625
      %p627 = scmp.eq.s32.totalorder %s82, 0
      %p628 = por %p626, %p627
      %s630 = sadd.s32 %s629, 1
      %p633 = scmp.eq.s32.totalorder %s76, 1
      %p634 = scmp.ne.s32.totalorder %s629, %s631
      %p635 = scmp.eq.s32.totalorder %s76, 0
      %p636 = por %p634, %p635
      %p637 = scmp.ne.s32.totalorder %s629, %s631
      %p638 = scmp.eq.s32.totalorder %s81, 1
      %p639 = por %p637, %p638
      %p640 = scmp.ne.s32.totalorder %s631, %s632
      %p641 = scmp.eq.s32.totalorder %s81, 0
      %p642 = por %p640, %p641
      %p643 = scmp.ne.s32.totalorder %s631, %s632
      %p644 = scmp.eq.s32.totalorder %s82, 1
      %p645 = por %p643, %p644
      %p647 = scmp.ne.s32.totalorder %s632, %s646
      %p648 = scmp.eq.s32.totalorder %s82, 0
      %p649 = por %p647, %p648
      %s651 = sadd.s32 %s650, 1
      %p654 = scmp.eq.s32.totalorder %s76, 1
      %p655 = scmp.ne.s32.totalorder %s650, %s652
      %p656 = scmp.eq.s32.totalorder %s76, 0
      %p657 = por %p655, %p656
      %p658 = scmp.ne.s32.totalorder %s650, %s652
      %p659 = scmp.eq.s32.totalorder %s81, 1
      %p660 = por %p658, %p659
      %p661 = scmp.ne.s32.totalorder %s652, %s653
      %p662 = scmp.eq.s32.totalorder %s81, 0
      %p663 = por %p661, %p662
      %p664 = scmp.ne.s32.totalorder %s652, %s653
      %p665 = scmp.eq.s32.totalorder %s82, 1
      %p666 = por %p664, %p665
      %p668 = scmp.ne.s32.totalorder %s653, %s667
      %p669 = scmp.eq.s32.totalorder %s82, 0
      %p670 = por %p668, %p669
      %s672 = sadd.s32 %s671, 1
      %p675 = scmp.eq.s32.totalorder %s76, 1
      %p676 = scmp.ne.s32.totalorder %s671, %s673
      %p677 = scmp.eq.s32.totalorder %s76, 0
      %p678 = por %p676, %p677
      %p679 = scmp.ne.s32.totalorder %s671, %s673
      %p680 = scmp.eq.s32.totalorder %s81, 1
      %p681 = por %p679, %p680
      %p682 = scmp.ne.s32.totalorder %s673, %s674
      %p683 = scmp.eq.s32.totalorder %s81, 0
      %p684 = por %p682, %p683
      %p685 = scmp.ne.s32.totalorder %s673, %s674
      %p686 = scmp.eq.s32.totalorder %s82, 1
      %p687 = por %p685, %p686
      %p689 = scmp.ne.s32.totalorder %s674, %s688
      %p690 = scmp.eq.s32.totalorder %s82, 0
      %p691 = por %p689, %p690
      %s693 = sadd.s32 %s692, 1
      %p696 = scmp.eq.s32.totalorder %s76, 1
      %p697 = scmp.ne.s32.totalorder %s692, %s694
      %p698 = scmp.eq.s32.totalorder %s76, 0
      %p699 = por %p697, %p698
      %p700 = scmp.ne.s32.totalorder %s692, %s694
      %p701 = scmp.eq.s32.totalorder %s81, 1
      %p702 = por %p700, %p701
      %p703 = scmp.ne.s32.totalorder %s694, %s695
      %p704 = scmp.eq.s32.totalorder %s81, 0
      %p705 = por %p703, %p704
      %p706 = scmp.ne.s32.totalorder %s694, %s695
      %p707 = scmp.eq.s32.totalorder %s82, 1
      %p708 = por %p706, %p707
      %p710 = scmp.ne.s32.totalorder %s695, %s709
      %p711 = scmp.eq.s32.totalorder %s82, 0
      %p712 = por %p710, %p711
      %s714 = sadd.s32 %s713, 1
      %p717 = scmp.eq.s32.totalorder %s76, 1
      %p718 = scmp.ne.s32.totalorder %s713, %s715
      %p719 = scmp.eq.s32.totalorder %s76, 0
      %p720 = por %p718, %p719
      %p721 = scmp.ne.s32.totalorder %s713, %s715
      %p722 = scmp.eq.s32.totalorder %s81, 1
      %p723 = por %p721, %p722
      %p724 = scmp.ne.s32.totalorder %s715, %s716
      %p725 = scmp.eq.s32.totalorder %s81, 0
      %p726 = por %p724, %p725
      %p727 = scmp.ne.s32.totalorder %s715, %s716
      %p728 = scmp.eq.s32.totalorder %s82, 1
      %p729 = por %p727, %p728
      %p731 = scmp.ne.s32.totalorder %s716, %s730
      %p732 = scmp.eq.s32.totalorder %s82, 0
      %p733 = por %p731, %p732
      %s735 = sadd.s32 %s734, 1
      %p738 = scmp.eq.s32.totalorder %s76, 1
      %p739 = scmp.ne.s32.totalorder %s734, %s736
      %p740 = scmp.eq.s32.totalorder %s76, 0
      %p741 = por %p739, %p740
      %p742 = scmp.ne.s32.totalorder %s734, %s736
      %p743 = scmp.eq.s32.totalorder %s81, 1
      %p744 = por %p742, %p743
      %p745 = scmp.ne.s32.totalorder %s736, %s737
      %p746 = scmp.eq.s32.totalorder %s81, 0
      %p747 = por %p745, %p746
      %p748 = scmp.ne.s32.totalorder %s736, %s737
      %p749 = scmp.eq.s32.totalorder %s82, 1
      %p750 = por %p748, %p749
      %p752 = scmp.ne.s32.totalorder %s737, %s751
      %p753 = scmp.eq.s32.totalorder %s82, 0
      %p754 = por %p752, %p753
      %s756 = sadd.s32 %s755, 1
      %p759 = scmp.eq.s32.totalorder %s76, 1
      %p760 = scmp.ne.s32.totalorder %s755, %s757
      %p761 = scmp.eq.s32.totalorder %s76, 0
      %p762 = por %p760, %p761
      %p763 = scmp.ne.s32.totalorder %s755, %s757
      %p764 = scmp.eq.s32.totalorder %s81, 1
      %p765 = por %p763, %p764
      %p766 = scmp.ne.s32.totalorder %s757, %s758
      %p767 = scmp.eq.s32.totalorder %s81, 0
      %p768 = por %p766, %p767
      %p769 = scmp.ne.s32.totalorder %s757, %s758
      %p770 = scmp.eq.s32.totalorder %s82, 1
      %p771 = por %p769, %p770
      %p773 = scmp.ne.s32.totalorder %s758, %s772
      %p774 = scmp.eq.s32.totalorder %s82, 0
      %p775 = por %p773, %p774
      %s776 = ssub.s32 %s76, %s83
      %p777 = scmp.eq.s32.totalorder %s776, 0
      %s779 = sadd.s32 %s778, 1
      %s780 = scalar_select %p777, %s778, %s779
      %p783 = pneg %p777
      %p784 = scmp.eq.s32.totalorder %s76, 1
      %p785 = por %p783, %p784
      %p786 = scmp.ne.s32.totalorder %s778, %s781
      %p787 = scmp.eq.s32.totalorder %s76, 0
      %p788 = por %p786, %p787
      %p789 = scmp.ne.s32.totalorder %s778, %s781
      %p790 = scmp.eq.s32.totalorder %s81, 1
      %p791 = por %p789, %p790
      %p792 = scmp.ne.s32.totalorder %s781, %s782
      %p793 = scmp.eq.s32.totalorder %s81, 0
      %p794 = por %p792, %p793
      %p795 = scmp.ne.s32.totalorder %s781, %s782
      %p796 = scmp.eq.s32.totalorder %s82, 1
      %p797 = por %p795, %p796
      %p799 = scmp.ne.s32.totalorder %s782, %s798
      %p800 = scmp.eq.s32.totalorder %s82, 0
      %p801 = por %p799, %p800
      %p802 = scmp.le.s32.totalorder 1, %s76
      %p803 = scmp.lt.s32.totalorder %s76, 3
      %p804 = pnand %p802, %p803
      %p805 = pneg %p804
      // Predicated region
      $region9: #{ktnet_forward.1} parent=5 // pred_check
        _
      $region10: #{ktnet_forward.1} parent=5 // pred_check_branch
        %807 = sbr.rel (%p804) target = $region12
      $region11: #{ktnet_forward.1} parent=5 // pred_region
        %s808 = ssub.s32 %s76, 1
        // Predicated region
        $region13: #{ktnet_forward.1} parent=11 // pred_check
          %p809 = pneg %p201
        $region14: #{ktnet_forward.1} parent=11 // pred_check_branch
          %811 = sbr.rel (%p809) target = $region16
        $region15: #{ktnet_forward.1} parent=11 // pred_region
          _
        $region16: #{ktnet_forward.1} parent=11 // pred_fallthru
          _
        // Predicated region
        $region17: #{ktnet_forward.1} parent=11 // pred_check
          %p812 = pneg %p222
        $region18: #{ktnet_forward.1} parent=11 // pred_check_branch
          %814 = sbr.rel (%p812) target = $region20
        $region19: #{ktnet_forward.1} parent=11 // pred_region
          _
        $region20: #{ktnet_forward.1} parent=11 // pred_fallthru
          _
        // Predicated region
        $region21: #{ktnet_forward.1} parent=11 // pred_check
          %p815 = pneg %p243
        $region22: #{ktnet_forward.1} parent=11 // pred_check_branch
          %817 = sbr.rel (%p815) target = $region24
        $region23: #{ktnet_forward.1} parent=11 // pred_region
          _
        $region24: #{ktnet_forward.1} parent=11 // pred_fallthru
          _
        // Predicated region
        $region25: #{ktnet_forward.1} parent=11 // pred_check
          %p818 = pneg %p264
        $region26: #{ktnet_forward.1} parent=11 // pred_check_branch
          %820 = sbr.rel (%p818) target = $region28
        $region27: #{ktnet_forward.1} parent=11 // pred_region
          _
        $region28: #{ktnet_forward.1} parent=11 // pred_fallthru
          _
        // Predicated region
        $region29: #{ktnet_forward.1} parent=11 // pred_check
          %p821 = pneg %p285
        $region30: #{ktnet_forward.1} parent=11 // pred_check_branch
          %823 = sbr.rel (%p821) target = $region32
        $region31: #{ktnet_forward.1} parent=11 // pred_region
          _
        $region32: #{ktnet_forward.1} parent=11 // pred_fallthru
          _
        // Predicated region
        $region33: #{ktnet_forward.1} parent=11 // pred_check
          %p824 = pneg %p306
        $region34: #{ktnet_forward.1} parent=11 // pred_check_branch
          %826 = sbr.rel (%p824) target = $region36
        $region35: #{ktnet_forward.1} parent=11 // pred_region
          _
        $region36: #{ktnet_forward.1} parent=11 // pred_fallthru
          _
        // Predicated region
        $region37: #{ktnet_forward.1} parent=11 // pred_check
          %p827 = pneg %p327
        $region38: #{ktnet_forward.1} parent=11 // pred_check_branch
          %829 = sbr.rel (%p827) target = $region40
        $region39: #{ktnet_forward.1} parent=11 // pred_region
          _
        $region40: #{ktnet_forward.1} parent=11 // pred_fallthru
          _
        // Predicated region
        $region41: #{ktnet_forward.1} parent=11 // pred_check
          %p830 = pneg %p348
        $region42: #{ktnet_forward.1} parent=11 // pred_check_branch
          %832 = sbr.rel (%p830) target = $region44
        $region43: #{ktnet_forward.1} parent=11 // pred_region
          _
        $region44: #{ktnet_forward.1} parent=11 // pred_fallthru
          _
        // Predicated region
        $region45: #{ktnet_forward.1} parent=11 // pred_check
          %p833 = pneg %p369
        $region46: #{ktnet_forward.1} parent=11 // pred_check_branch
          %835 = sbr.rel (%p833) target = $region48
        $region47: #{ktnet_forward.1} parent=11 // pred_region
          _
        $region48: #{ktnet_forward.1} parent=11 // pred_fallthru
          _
        // Predicated region
        $region49: #{ktnet_forward.1} parent=11 // pred_check
          %p836 = pneg %p390
        $region50: #{ktnet_forward.1} parent=11 // pred_check_branch
          %838 = sbr.rel (%p836) target = $region52
        $region51: #{ktnet_forward.1} parent=11 // pred_region
          _
        $region52: #{ktnet_forward.1} parent=11 // pred_fallthru
          _
        // Predicated region
        $region53: #{ktnet_forward.1} parent=11 // pred_check
          %p839 = pneg %p411
        $region54: #{ktnet_forward.1} parent=11 // pred_check_branch
          %841 = sbr.rel (%p839) target = $region56
        $region55: #{ktnet_forward.1} parent=11 // pred_region
          _
        $region56: #{ktnet_forward.1} parent=11 // pred_fallthru
          _
        // Predicated region
        $region57: #{ktnet_forward.1} parent=11 // pred_check
          %p842 = pneg %p432
        $region58: #{ktnet_forward.1} parent=11 // pred_check_branch
          %844 = sbr.rel (%p842) target = $region60
        $region59: #{ktnet_forward.1} parent=11 // pred_region
          _
        $region60: #{ktnet_forward.1} parent=11 // pred_fallthru
          _
        // Predicated region
        $region61: #{ktnet_forward.1} parent=11 // pred_check
          %p845 = pneg %p453
        $region62: #{ktnet_forward.1} parent=11 // pred_check_branch
          %847 = sbr.rel (%p845) target = $region64
        $region63: #{ktnet_forward.1} parent=11 // pred_region
          _
        $region64: #{ktnet_forward.1} parent=11 // pred_fallthru
          _
        // Predicated region
        $region65: #{ktnet_forward.1} parent=11 // pred_check
          %p848 = pneg %p474
        $region66: #{ktnet_forward.1} parent=11 // pred_check_branch
          %850 = sbr.rel (%p848) target = $region68
        $region67: #{ktnet_forward.1} parent=11 // pred_region
          _
        $region68: #{ktnet_forward.1} parent=11 // pred_fallthru
          _
        // Predicated region
        $region69: #{ktnet_forward.1} parent=11 // pred_check
          %p851 = pneg %p495
        $region70: #{ktnet_forward.1} parent=11 // pred_check_branch
          %853 = sbr.rel (%p851) target = $region72
        $region71: #{ktnet_forward.1} parent=11 // pred_region
          _
        $region72: #{ktnet_forward.1} parent=11 // pred_fallthru
          _
        // Predicated region
        $region73: #{ktnet_forward.1} parent=11 // pred_check
          %p854 = pneg %p516
        $region74: #{ktnet_forward.1} parent=11 // pred_check_branch
          %856 = sbr.rel (%p854) target = $region76
        $region75: #{ktnet_forward.1} parent=11 // pred_region
          _
        $region76: #{ktnet_forward.1} parent=11 // pred_fallthru
          _
        // Predicated region
        $region77: #{ktnet_forward.1} parent=11 // pred_check
          %p857 = pneg %p537
        $region78: #{ktnet_forward.1} parent=11 // pred_check_branch
          %859 = sbr.rel (%p857) target = $region80
        $region79: #{ktnet_forward.1} parent=11 // pred_region
          _
        $region80: #{ktnet_forward.1} parent=11 // pred_fallthru
          _
        // Predicated region
        $region81: #{ktnet_forward.1} parent=11 // pred_check
          %p860 = pneg %p558
        $region82: #{ktnet_forward.1} parent=11 // pred_check_branch
          %862 = sbr.rel (%p860) target = $region84
        $region83: #{ktnet_forward.1} parent=11 // pred_region
          _
        $region84: #{ktnet_forward.1} parent=11 // pred_fallthru
          _
        // Predicated region
        $region85: #{ktnet_forward.1} parent=11 // pred_check
          %p863 = pneg %p579
        $region86: #{ktnet_forward.1} parent=11 // pred_check_branch
          %865 = sbr.rel (%p863) target = $region88
        $region87: #{ktnet_forward.1} parent=11 // pred_region
          _
        $region88: #{ktnet_forward.1} parent=11 // pred_fallthru
          _
        // Predicated region
        $region89: #{ktnet_forward.1} parent=11 // pred_check
          %p866 = pneg %p600
        $region90: #{ktnet_forward.1} parent=11 // pred_check_branch
          %868 = sbr.rel (%p866) target = $region92
        $region91: #{ktnet_forward.1} parent=11 // pred_region
          _
        $region92: #{ktnet_forward.1} parent=11 // pred_fallthru
          _
        // Predicated region
        $region93: #{ktnet_forward.1} parent=11 // pred_check
          %p869 = pneg %p621
        $region94: #{ktnet_forward.1} parent=11 // pred_check_branch
          %871 = sbr.rel (%p869) target = $region96
        $region95: #{ktnet_forward.1} parent=11 // pred_region
          _
        $region96: #{ktnet_forward.1} parent=11 // pred_fallthru
          _
        // Predicated region
        $region97: #{ktnet_forward.1} parent=11 // pred_check
          %p872 = pneg %p642
        $region98: #{ktnet_forward.1} parent=11 // pred_check_branch
          %874 = sbr.rel (%p872) target = $region100
        $region99: #{ktnet_forward.1} parent=11 // pred_region
          _
        $region100: #{ktnet_forward.1} parent=11 // pred_fallthru
          _
        // Predicated region
        $region101: #{ktnet_forward.1} parent=11 // pred_check
          %p875 = pneg %p663
        $region102: #{ktnet_forward.1} parent=11 // pred_check_branch
          %877 = sbr.rel (%p875) target = $region104
        $region103: #{ktnet_forward.1} parent=11 // pred_region
          _
        $region104: #{ktnet_forward.1} parent=11 // pred_fallthru
          _
        // Predicated region
        $region105: #{ktnet_forward.1} parent=11 // pred_check
          %p878 = pneg %p684
        $region106: #{ktnet_forward.1} parent=11 // pred_check_branch
          %880 = sbr.rel (%p878) target = $region108
        $region107: #{ktnet_forward.1} parent=11 // pred_region
          _
        $region108: #{ktnet_forward.1} parent=11 // pred_fallthru
          _
        // Predicated region
        $region109: #{ktnet_forward.1} parent=11 // pred_check
          %p881 = pneg %p705
        $region110: #{ktnet_forward.1} parent=11 // pred_check_branch
          %883 = sbr.rel (%p881) target = $region112
        $region111: #{ktnet_forward.1} parent=11 // pred_region
          _
        $region112: #{ktnet_forward.1} parent=11 // pred_fallthru
          _
        // Predicated region
        $region113: #{ktnet_forward.1} parent=11 // pred_check
          %p884 = pneg %p726
        $region114: #{ktnet_forward.1} parent=11 // pred_check_branch
          %886 = sbr.rel (%p884) target = $region116
        $region115: #{ktnet_forward.1} parent=11 // pred_region
          _
        $region116: #{ktnet_forward.1} parent=11 // pred_fallthru
          _
        // Predicated region
        $region117: #{ktnet_forward.1} parent=11 // pred_check
          %p887 = pneg %p747
        $region118: #{ktnet_forward.1} parent=11 // pred_check_branch
          %889 = sbr.rel (%p887) target = $region120
        $region119: #{ktnet_forward.1} parent=11 // pred_region
          _
        $region120: #{ktnet_forward.1} parent=11 // pred_fallthru
          _
        // Predicated region
        $region121: #{ktnet_forward.1} parent=11 // pred_check
          %p890 = pneg %p768
        $region122: #{ktnet_forward.1} parent=11 // pred_check_branch
          %892 = sbr.rel (%p890) target = $region124
        $region123: #{ktnet_forward.1} parent=11 // pred_region
          _
        $region124: #{ktnet_forward.1} parent=11 // pred_fallthru
          _
      $region12: #{ktnet_forward.1} parent=5 // pred_fallthru
        _
      %p893 = scmp.lt.s32.totalorder %s76, 2
      // Predicated region
      $region125: #{ktnet_forward.1} parent=5 // pred_check
        %p894 = pneg %p893
      $region126: #{ktnet_forward.1} parent=5 // pred_check_branch
        %896 = sbr.rel (%p894) target = $region128
      $region127: #{ktnet_forward.1} parent=5 // pred_region
        // Predicated region
        $region129: #{ktnet_forward.1} parent=127 // pred_check
          %p897 = pneg %p96
        $region130: #{ktnet_forward.1} parent=127 // pred_check_branch
          %899 = sbr.rel (%p897) target = $region132
        $region131: #{ktnet_forward.1} parent=127 // pred_region
          %p900 = scmp.lt.s32.totalorder %s76, 1
          %s901 = scalar_select %p900, %s76, 1
          %s902 = smul.addr %s901, 8
          %s903 = scalar_lea.vmem %s1, %s902
        $region132: #{ktnet_forward.1} parent=127 // pred_fallthru
          _
        // Predicated region
        $region133: #{ktnet_forward.1} parent=127 // pred_check
          %p904 = pneg %p122
        $region134: #{ktnet_forward.1} parent=127 // pred_check_branch
          %906 = sbr.rel (%p904) target = $region136
        $region135: #{ktnet_forward.1} parent=127 // pred_region
          %p907 = scmp.lt.s32.totalorder %s76, 1
          %s908 = scalar_select %p907, %s76, 1
          %s909 = scalar_lea.vmem %s3, %s908
        $region136: #{ktnet_forward.1} parent=127 // pred_fallthru
          _
        // Predicated region
        $region137: #{ktnet_forward.1} parent=127 // pred_check
          %p910 = pneg %p148
        $region138: #{ktnet_forward.1} parent=127 // pred_check_branch
          %912 = sbr.rel (%p910) target = $region140
        $region139: #{ktnet_forward.1} parent=127 // pred_region
          %s913 = sand.u32 %s138, 1
          %s914 = sand.u32 %s138, 1
          %s915 = smul.addr %s914, 24
          %s916 = scalar_lea.vmem [#allocation3], %s915
          %s917 = smul.addr %s76, 8
          %s918 = scalar_lea.vmem %s5, %s917
          // Predicated region
          $region141: #{ktnet_forward.1} parent=139 // pred_check
            _
          $region142: #{ktnet_forward.1} parent=139 // pred_check_branch
            %920 = sbr.rel (0) target = $region144
          $region143: #{ktnet_forward.1} parent=139 // pred_region
            // Predicated region
            $region145: #{ktnet_forward.1} parent=143 // pred_check
              _
            $region146: #{ktnet_forward.1} parent=143 // pred_check_branch
              %922 = sbr.rel (0) target = $region148
            $region147: #{ktnet_forward.1} parent=143 // pred_region
              // Predicated region
              $region160: #{ktnet_forward.1} parent=147 // pred_check
                _
              $region161: #{ktnet_forward.1} parent=147 // pred_check_branch
                %942 = sbr.rel (0) target = $region163
              $region162: #{ktnet_forward.1} parent=147 // pred_region
                loop: start=0, step=1, limit=1
                $region164: #{ktnet_forward.1} parent=162 // loop_pre_header
                  _
                $region165: #{ktnet_forward.1} parent=162 // loop_header
                  %s944 = sphi 0, %s948
                  %p945 = scmp.ge.s32.totalorder %s944, 1
                  %s949 = sphi %s918, %s918
                  %s950 = sphi %s916, %s916
                $region166: #{ktnet_forward.1} parent=162 // loop_header_branch
                  %947 = sbr.rel (%p945) target = $region170
                $region167: #{ktnet_forward.1} parent=162 // loop_body
                  %v951 = vld [vmem:[%s949] sm:$0xff]
                  %952 = vst [vmem:[%s950] sm:$0xff] %v951
                  %v953 = vld [vmem:[%s949 + $0x10] sm:$0xff]
                  %954 = vst [vmem:[%s950 + $0x8] sm:$0xff] %v953
                  %v955 = vld [vmem:[%s949 + $0x20] sm:$0xff]
                  %956 = vst [vmem:[%s950 + $0x10] sm:$0xff] %v955
                $region168: #{ktnet_forward.1} parent=162 // loop_footer
                  %s948 = sadd.s32 1, %s944
                $region169: #{ktnet_forward.1} parent=162 // loop_footer_branch
                  %943 = sbr.rel target = $region165
                $region170: #{ktnet_forward.1} parent=162 // loop_exit
                  _
              $region163: #{ktnet_forward.1} parent=147 // pred_fallthru
                _
              // Predicated region
              $region171: #{ktnet_forward.1} parent=147 // pred_check
                _
              $region172: #{ktnet_forward.1} parent=147 // pred_check_branch
                %958 = sbr.rel target = $region174
              $region173: #{ktnet_forward.1} parent=147 // pred_region
                _
              $region174: #{ktnet_forward.1} parent=147 // pred_fallthru
                _
            $region148: #{ktnet_forward.1} parent=143 // pred_fallthru
              _
            // Predicated region
            $region149: #{ktnet_forward.1} parent=143 // pred_check
              _
            $region150: #{ktnet_forward.1} parent=143 // pred_check_branch
              %924 = sbr.rel target = $region152
            $region151: #{ktnet_forward.1} parent=143 // pred_region
              %s926 = ssub.s32 256, 1
              loop: start=0, step=1, limit=1
              $region153: #{ktnet_forward.1} parent=151 // loop_pre_header
                _
              $region154: #{ktnet_forward.1} parent=151 // loop_header
                %s928 = sphi 0, %s932
                %p929 = scmp.ge.s32.totalorder %s928, 1
                %s933 = sphi %s918, %s918
                %s934 = sphi %s916, %s916
              $region155: #{ktnet_forward.1} parent=151 // loop_header_branch
                %931 = sbr.rel (%p929) target = $region159
              $region156: #{ktnet_forward.1} parent=151 // loop_body
                %v935 = vld [vmem:[%s933] sm:%s926]
                %936 = vst [vmem:[%s934] sm:%s926] %v935
                %v937 = vld [vmem:[%s933 + $0x10] sm:%s926]
                %938 = vst [vmem:[%s934 + $0x8] sm:%s926] %v937
                %v939 = vld [vmem:[%s933 + $0x20] sm:%s926]
                %940 = vst [vmem:[%s934 + $0x10] sm:%s926] %v939
              $region157: #{ktnet_forward.1} parent=151 // loop_footer
                %s932 = sadd.s32 1, %s928
              $region158: #{ktnet_forward.1} parent=151 // loop_footer_branch
                %927 = sbr.rel target = $region154
              $region159: #{ktnet_forward.1} parent=151 // loop_exit
                _
            $region152: #{ktnet_forward.1} parent=143 // pred_fallthru
              _
          $region144: #{ktnet_forward.1} parent=139 // pred_fallthru
            _
          %959 = vnop
        $region140: #{ktnet_forward.1} parent=127 // pred_fallthru
          _
        // Predicated region
        $region175: #{ktnet_forward.1} parent=127 // pred_check
          %p960 = pneg %p174
        $region176: #{ktnet_forward.1} parent=127 // pred_check_branch
          %962 = sbr.rel (%p960) target = $region178
        $region177: #{ktnet_forward.1} parent=127 // pred_region
          %s963 = sand.u32 %s164, 1
          %s964 = sand.u32 %s164, 1
          %s965 = smul.addr %s964, 32
          %s966 = scalar_lea.vmem [#allocation4], %s965
          %s967 = smul.addr %s76, 8
          %s968 = scalar_lea.vmem %s7, %s967
          // Predicated region
          $region179: #{ktnet_forward.1} parent=177 // pred_check
            _
          $region180: #{ktnet_forward.1} parent=177 // pred_check_branch
            %970 = sbr.rel (0) target = $region182
          $region181: #{ktnet_forward.1} parent=177 // pred_region
            // Predicated region
            $region183: #{ktnet_forward.1} parent=181 // pred_check
              _
            $region184: #{ktnet_forward.1} parent=181 // pred_check_branch
              %972 = sbr.rel (0) target = $region186
            $region185: #{ktnet_forward.1} parent=181 // pred_region
              // Predicated region
              $region198: #{ktnet_forward.1} parent=185 // pred_check
                _
              $region199: #{ktnet_forward.1} parent=185 // pred_check_branch
                %994 = sbr.rel (0) target = $region201
              $region200: #{ktnet_forward.1} parent=185 // pred_region
                loop: start=0, step=1, limit=1
                $region202: #{ktnet_forward.1} parent=200 // loop_pre_header
                  _
                $region203: #{ktnet_forward.1} parent=200 // loop_header
                  %s996 = sphi 0, %s1000
                  %p997 = scmp.ge.s32.totalorder %s996, 1
                  %s1001 = sphi %s968, %s968
                  %s1002 = sphi %s966, %s966
                $region204: #{ktnet_forward.1} parent=200 // loop_header_branch
                  %999 = sbr.rel (%p997) target = $region208
                $region205: #{ktnet_forward.1} parent=200 // loop_body
                  %v1003 = vld [vmem:[%s1001] sm:$0xff]
                  %1004 = vst [vmem:[%s1002] sm:$0xff] %v1003
                  %v1005 = vld [vmem:[%s1001 + $0x10] sm:$0xff]
                  %1006 = vst [vmem:[%s1002 + $0x8] sm:$0xff] %v1005
                  %v1007 = vld [vmem:[%s1001 + $0x20] sm:$0xff]
                  %1008 = vst [vmem:[%s1002 + $0x10] sm:$0xff] %v1007
                  %v1009 = vld [vmem:[%s1001 + $0x30] sm:$0xff]
                  %1010 = vst [vmem:[%s1002 + $0x18] sm:$0xff] %v1009
                $region206: #{ktnet_forward.1} parent=200 // loop_footer
                  %s1000 = sadd.s32 1, %s996
                $region207: #{ktnet_forward.1} parent=200 // loop_footer_branch
                  %995 = sbr.rel target = $region203
                $region208: #{ktnet_forward.1} parent=200 // loop_exit
                  _
              $region201: #{ktnet_forward.1} parent=185 // pred_fallthru
                _
              // Predicated region
              $region209: #{ktnet_forward.1} parent=185 // pred_check
                _
              $region210: #{ktnet_forward.1} parent=185 // pred_check_branch
                %1012 = sbr.rel target = $region212
              $region211: #{ktnet_forward.1} parent=185 // pred_region
                _
              $region212: #{ktnet_forward.1} parent=185 // pred_fallthru
                _
            $region186: #{ktnet_forward.1} parent=181 // pred_fallthru
              _
            // Predicated region
            $region187: #{ktnet_forward.1} parent=181 // pred_check
              _
            $region188: #{ktnet_forward.1} parent=181 // pred_check_branch
              %974 = sbr.rel target = $region190
            $region189: #{ktnet_forward.1} parent=181 // pred_region
              %s976 = ssub.s32 256, 1
              loop: start=0, step=1, limit=1
              $region191: #{ktnet_forward.1} parent=189 // loop_pre_header
                _
              $region192: #{ktnet_forward.1} parent=189 // loop_header
                %s978 = sphi 0, %s982
                %p979 = scmp.ge.s32.totalorder %s978, 1
                %s983 = sphi %s968, %s968
                %s984 = sphi %s966, %s966
              $region193: #{ktnet_forward.1} parent=189 // loop_header_branch
                %981 = sbr.rel (%p979) target = $region197
              $region194: #{ktnet_forward.1} parent=189 // loop_body
                %v985 = vld [vmem:[%s983] sm:%s976]
                %986 = vst [vmem:[%s984] sm:%s976] %v985
                %v987 = vld [vmem:[%s983 + $0x10] sm:%s976]
                %988 = vst [vmem:[%s984 + $0x8] sm:%s976] %v987
                %v989 = vld [vmem:[%s983 + $0x20] sm:%s976]
                %990 = vst [vmem:[%s984 + $0x10] sm:%s976] %v989
                %v991 = vld [vmem:[%s983 + $0x30] sm:%s976]
                %992 = vst [vmem:[%s984 + $0x18] sm:%s976] %v991
              $region195: #{ktnet_forward.1} parent=189 // loop_footer
                %s982 = sadd.s32 1, %s978
              $region196: #{ktnet_forward.1} parent=189 // loop_footer_branch
                %977 = sbr.rel target = $region192
              $region197: #{ktnet_forward.1} parent=189 // loop_exit
                _
            $region190: #{ktnet_forward.1} parent=181 // pred_fallthru
              _
          $region182: #{ktnet_forward.1} parent=177 // pred_fallthru
            _
          %1013 = vnop
        $region178: #{ktnet_forward.1} parent=127 // pred_fallthru
          _
      $region128: #{ktnet_forward.1} parent=5 // pred_fallthru
        _
      %p1014 = scmp.le.s32.totalorder 1, %s76
      %p1015 = scmp.lt.s32.totalorder %s76, 3
      %p1016 = pnand %p1014, %p1015
      %p1017 = pneg %p1016
      // Predicated region
      $region213: #{ktnet_forward.1} parent=5 // pred_check
        _
      $region214: #{ktnet_forward.1} parent=5 // pred_check_branch
        %1019 = sbr.rel (%p1016) target = $region216
      $region215: #{ktnet_forward.1} parent=5 // pred_region
        %s1020 = ssub.s32 %s76, 1
        %s1021 = sand.u32 %s141, 1
        %s1022 = sand.u32 %s141, 1
        %s1023 = smul.addr %s1022, 24
        %s1024 = scalar_lea.vmem [#allocation3], %s1023
        // Predicated region
        $region217: #{ktnet_forward.1} parent=215 // pred_check
          %p1025 = pneg %p154
        $region218: #{ktnet_forward.1} parent=215 // pred_check_branch
          %1027 = sbr.rel (%p1025) target = $region220
        $region219: #{ktnet_forward.1} parent=215 // pred_region
          _
        $region220: #{ktnet_forward.1} parent=215 // pred_fallthru
          _
        %s1028 = sand.u32 %s167, 1
        %s1029 = sand.u32 %s167, 1
        %s1030 = smul.addr %s1029, 32
        %s1031 = scalar_lea.vmem [#allocation4], %s1030
        // Predicated region
        $region221: #{ktnet_forward.1} parent=215 // pred_check
          %p1032 = pneg %p180
        $region222: #{ktnet_forward.1} parent=215 // pred_check_branch
          %1034 = sbr.rel (%p1032) target = $region224
        $region223: #{ktnet_forward.1} parent=215 // pred_region
          _
        $region224: #{ktnet_forward.1} parent=215 // pred_fallthru
          _
        %p1035 = scmp.lt.s32.totalorder %s81, 1
        %s1036 = scalar_select %p1035, %s81, 1
        %s1037 = smul.addr %s1036, 8
        %s1038 = scalar_lea.vmem %s1, %s1037
        %p1039 = pneg %p102
        %p1040 = pneg %p99
        %p1041 = scmp.lt.s32.totalorder %s81, 1
        %s1042 = scalar_select %p1041, %s81, 1
        %s1043 = scalar_lea.vmem %s3, %s1042
        %p1044 = pneg %p128
        %p1045 = pneg %p125
        %s1046 = sand.u32 %s141, 1
        %s1047 = sand.u32 %s141, 1
        %s1048 = smul.addr %s1047, 24
        %s1049 = scalar_lea.vmem [#allocation3], %s1048
        %p1050 = pneg %p154
        %p1051 = pneg %p151
        %s1052 = sand.u32 %s167, 1
        %s1053 = sand.u32 %s167, 1
        %s1054 = smul.addr %s1053, 32
        %s1055 = scalar_lea.vmem [#allocation4], %s1054
        %p1056 = pneg %p180
        %p1057 = pneg %p177
        %p1058 = pneg %p201
        %p1059 = pneg %p198
        %p1060 = pneg %p222
        %p1061 = pneg %p219
        %p1062 = pneg %p243
        %p1063 = pneg %p240
        %p1064 = pneg %p264
        %p1065 = pneg %p261
        %p1066 = pneg %p285
        %p1067 = pneg %p282
        %p1068 = pneg %p306
        %p1069 = pneg %p303
        %p1070 = pneg %p327
        %p1071 = pneg %p324
        %p1072 = pneg %p348
        %p1073 = pneg %p345
        %p1074 = pneg %p369
        %p1075 = pneg %p366
        %p1076 = pneg %p390
        %p1077 = pneg %p387
        %p1078 = pneg %p411
        %p1079 = pneg %p408
        %p1080 = pneg %p432
        %p1081 = pneg %p429
        %p1082 = pneg %p453
        %p1083 = pneg %p450
        %p1084 = pneg %p474
        %p1085 = pneg %p471
        %p1086 = pneg %p495
        %p1087 = pneg %p492
        %p1088 = pneg %p516
        %p1089 = pneg %p513
        %p1090 = pneg %p537
        %p1091 = pneg %p534
        %p1092 = pneg %p558
        %p1093 = pneg %p555
        %p1094 = pneg %p579
        %p1095 = pneg %p576
        %p1096 = pneg %p600
        %p1097 = pneg %p597
        %p1098 = pneg %p621
        %p1099 = pneg %p618
        %p1100 = pneg %p642
        %p1101 = pneg %p639
        %p1102 = pneg %p663
        %p1103 = pneg %p660
        %p1104 = pneg %p684
        %p1105 = pneg %p681
        %p1106 = pneg %p705
        %p1107 = pneg %p702
        %p1108 = pneg %p726
        %p1109 = pneg %p723
        %p1110 = pneg %p747
        %p1111 = pneg %p744
        %p1112 = pneg %p768
        %p1113 = pneg %p765
        %p1114 = pneg %p794
        %p1115 = pneg %p791
        %s1116 = sand.u32 %s781, 1
        %s1117 = scalar_lea.sflag [#allocation6], %s1116
        %s1118 = sand.u32 %s781, 1
        %s1119 = smul.addr %s1118, 8
        %s1120 = scalar_lea.vmem [#allocation5], %s1119
        %p1121 = scmp.lt.s32.totalorder %s81, 1
        %s1122 = scalar_select %p1121, %s81, 1
        %s1123 = smul.addr %s1122, 8
        %s1124 = scalar_lea.vmem %s1, %s1123
        %p1125 = scmp.lt.s32.totalorder %s81, 1
        %s1126 = scalar_select %p1125, %s81, 1
        %s1127 = scalar_lea.vmem %s3, %s1126
        %v1129 = vld [vmem:[%s1127] sm:$0x1]
        %v1130 = vsub.f32 1.0, %v1129
        %v1131 = vmul.f32 %v1130, -10000.0
        %v1132 = vld [vmem:[%s1124] sm:$0xff]
        %v1133 = vld [vmem:[%s9] sm:$0xff]
        %v1134 = vld [vmem:[%s9 + $0x8] sm:$0xff]
        %v1135 = vld [vmem:[%s9 + $0x10] sm:$0xff]
        %v1136 = vld [vmem:[%s9 + $0x18] sm:$0xff]
        %v1137 = vld [vmem:[%s9 + $0x20] sm:$0xff]
        %v1138 = vld [vmem:[%s9 + $0x28] sm:$0xff]
        %v1139 = vld [vmem:[%s9 + $0x30] sm:$0xff]
        %v1140 = vld [vmem:[%s9 + $0x38] sm:$0xff]
        %v1141 = vld [vmem:[%s9 + $0x40] sm:$0xff]
        %v1142 = vld [vmem:[%s9 + $0x48] sm:$0xff]
        %v1143 = vld [vmem:[%s9 + $0x50] sm:$0xff]
        %v1144 = vld [vmem:[%s9 + $0x58] sm:$0xff]
        %v1145 = vld [vmem:[%s9 + $0x60] sm:$0xff]
        %v1146 = vld [vmem:[%s9 + $0x68] sm:$0xff]
        %v1147 = vld [vmem:[%s9 + $0x70] sm:$0xff]
        %v1148 = vld [vmem:[%s9 + $0x78] sm:$0xff]
        %v1149 = vld [vmem:[%s9 + $0x80] sm:$0xff]
        %v1150 = vld [vmem:[%s9 + $0x88] sm:$0xff]
        %v1151 = vld [vmem:[%s9 + $0x90] sm:$0xff]
        %v1152 = vld [vmem:[%s9 + $0x98] sm:$0xff]
        %v1153 = vld [vmem:[%s9 + $0xa0] sm:$0xff]
        %v1154 = vld [vmem:[%s9 + $0xa8] sm:$0xff]
        %v1155 = vld [vmem:[%s9 + $0xb0] sm:$0xff]
        %v1156 = vld [vmem:[%s9 + $0xb8] sm:$0xff]
        %v1157 = vld [vmem:[%s9 + $0xc0] sm:$0xff]
        %v1158 = vld [vmem:[%s9 + $0xc8] sm:$0xff]
        %v1159 = vld [vmem:[%s9 + $0xd0] sm:$0xff]
        %v1160 = vld [vmem:[%s9 + $0xd8] sm:$0xff]
        %v1161 = vld [vmem:[%s9 + $0xe0] sm:$0xff]
        %v1162 = vld [vmem:[%s9 + $0xe8] sm:$0xff]
        %v1163 = vld [vmem:[%s9 + $0xf0] sm:$0xff]
        %v1164 = vld [vmem:[%s9 + $0xf8] sm:$0xff]
        %v1165 = vld [vmem:[%s9 + $0x100] sm:$0xff]
        %v1166 = vld [vmem:[%s9 + $0x108] sm:$0xff]
        %v1167 = vld [vmem:[%s9 + $0x110] sm:$0xff]
        %v1168 = vld [vmem:[%s9 + $0x118] sm:$0xff]
        %v1169 = vld [vmem:[%s9 + $0x120] sm:$0xff]
        %v1170 = vld [vmem:[%s9 + $0x128] sm:$0xff]
        %v1171 = vld [vmem:[%s9 + $0x130] sm:$0xff]
        %v1172 = vld [vmem:[%s9 + $0x138] sm:$0xff]
        %v1173 = vld [vmem:[%s9 + $0x140] sm:$0xff]
        %v1174 = vld [vmem:[%s9 + $0x148] sm:$0xff]
        %v1175 = vld [vmem:[%s9 + $0x150] sm:$0xff]
        %v1176 = vld [vmem:[%s9 + $0x158] sm:$0xff]
        %v1177 = vld [vmem:[%s9 + $0x160] sm:$0xff]
        %v1178 = vld [vmem:[%s9 + $0x168] sm:$0xff]
        %v1179 = vld [vmem:[%s9 + $0x170] sm:$0xff]
        %v1180 = vld [vmem:[%s9 + $0x178] sm:$0xff]
        %v1181 = vld [vmem:[%s11] sm:$0x1]
        %v1182 = vld [vmem:[%s11 + $0x1] sm:$0x1]
        %v1183 = vld [vmem:[%s11 + $0x2] sm:$0x1]
        %v1184 = vld [vmem:[%s11 + $0x3] sm:$0x1]
        %v1185 = vld [vmem:[%s11 + $0x4] sm:$0x1]
        %v1186 = vld [vmem:[%s11 + $0x5] sm:$0x1]
        %v1187 = vld [vmem:[%s11 + $0x6] sm:$0x1]
        %v1188 = vld [vmem:[%s11 + $0x7] sm:$0x1]
        %v1189 = vld [vmem:[%s11 + $0x8] sm:$0x1]
        %v1190 = vld [vmem:[%s11 + $0x9] sm:$0x1]
        %v1191 = vld [vmem:[%s11 + $0xa] sm:$0x1]
        %v1192 = vld [vmem:[%s11 + $0xb] sm:$0x1]
        %v1193 = vld [vmem:[%s13] sm:$0xff]
        %v1194 = vld [vmem:[%s13 + $0x8] sm:$0xff]
        %v1195 = vld [vmem:[%s13 + $0x10] sm:$0xff]
        %v1196 = vld [vmem:[%s13 + $0x18] sm:$0xff]
        %v1197 = vld [vmem:[%s15] sm:$0x1]
        %v1198 = vpack.c.bf16 %v1132, %v1132
        %v1199 = vpack.c.bf16 %v1134, %v1133
        %v1200 = vpack.c.bf16 %v1136, %v1135
        %v1201 = vpack.c.bf16 %v1138, %v1137
        %v1202 = vpack.c.bf16 %v1140, %v1139
        %v1203 = vpack.c.bf16 %v1142, %v1141
        %v1204 = vpack.c.bf16 %v1144, %v1143
        %v1205 = vpack.c.bf16 %v1146, %v1145
        %v1206 = vpack.c.bf16 %v1148, %v1147
        %v1211 = vlaneseq
        %v1212 = vshrl.u32 %v1211, 7
        %v1213 = vsub.s32 0, %v1212
        %v1214 = vrot.slane %v1181, %v1213
        %v1215 = vlaneseq
        %v1216 = vshrl.u32 %v1215, 7
        %v1217 = vsub.s32 0, %v1216
        %v1218 = vrot.slane %v1182, %v1217
        %v1219 = vlaneseq
        %v1220 = vshrl.u32 %v1219, 7
        %v1221 = vsub.s32 0, %v1220
        %v1222 = vrot.slane %v1183, %v1221
        %v1223 = vlaneseq
        %v1224 = vshrl.u32 %v1223, 7
        %v1225 = vsub.s32 0, %v1224
        %v1226 = vrot.slane %v1184, %v1225
        %vm1231 = vcmask 261120
        %v1233 = vsel %vm1231, %v1198, 0
        %1235 = vmatprep.subr.bf16.mxu0 0
        %1236 = vmatpush1.bf16.msra.mxu0 0
        %1237 = vmatprep.subr.bf16.mxu0 0
        %1238 = vmatpush1.bf16.msra.mxu0 0
        %1239 = vmatprep.subr.bf16.mxu0 0
        %1240 = vmatpush1.bf16.msra.mxu0 0
        %1241 = vmatprep.subr.bf16.mxu0 0
        %1242 = vmatpush1.bf16.msra.mxu0 0
        %1243 = vmatprep.subr.bf16.mxu0 0
        %1244 = vmatpush1.bf16.msra.mxu0 0
        %1245 = vmatprep.subr.bf16.mxu0 0
        %1246 = vmatpush1.bf16.msra.mxu0 0
        %1247 = vmatprep.subr.bf16.mxu0 0
        %1248 = vmatpush1.bf16.msra.mxu0 %v1200
        %1249 = vmatprep.subr.bf16.mxu0 0
        %1250 = vmatpush1.bf16.msra.mxu0 %v1199
        %1251 = vmatprep.subr.bf16.mxu0 0
        %1252 = vmatpush2.bf16.msra.mxu0 0
        %1253 = vmatprep.subr.bf16.mxu0 0
        %1254 = vmatpush2.bf16.msra.mxu0 0
        %1255 = vmatprep.subr.bf16.mxu0 0
        %1256 = vmatpush2.bf16.msra.mxu0 0
        %1257 = vmatprep.subr.bf16.mxu0 0
        %1258 = vmatpush2.bf16.msra.mxu0 0
        %1259 = vmatprep.subr.bf16.mxu0 0
        %1260 = vmatpush2.bf16.msra.mxu0 0
        %1261 = vmatprep.subr.bf16.mxu0 0
        %1262 = vmatpush2.bf16.msra.mxu0 0
        %1263 = vmatprep.subr.bf16.mxu0 0
        %1264 = vmatpush2.bf16.msra.mxu0 0
        %1265 = vmatprep.subr.bf16.mxu0 0
        %1266 = vmatpush2.bf16.msra.mxu0 0
        %1267 = vmatprep.mubr.bf16.mxu0 0
        %1268 = vmatmul.mubr.bf16.gmra.mxu0 %v1233
        %v1269 = vpop.f32.mrf.mxu0
        %v1270 = vadd.f32 %v1214, %v1269
        %v1271 = vpop.f32.mrf.mxu0
        %v1272 = vpop.f32.mrf.mxu0
        %v1273 = vpop.f32.mrf.mxu0
        %1274 = vdwg.mxu0
        %1275 = vmatprep.subr.bf16.mxu0 0
        %1276 = vmatpush1.bf16.msra.mxu0 0
        %1277 = vmatprep.subr.bf16.mxu0 0
        %1278 = vmatpush1.bf16.msra.mxu0 0
        %1279 = vmatprep.subr.bf16.mxu0 0
        %1280 = vmatpush1.bf16.msra.mxu0 0
        %1281 = vmatprep.subr.bf16.mxu0 0
        %1282 = vmatpush1.bf16.msra.mxu0 0
        %1283 = vmatprep.subr.bf16.mxu0 0
        %1284 = vmatpush1.bf16.msra.mxu0 0
        %1285 = vmatprep.subr.bf16.mxu0 0
        %1286 = vmatpush1.bf16.msra.mxu0 0
        %1287 = vmatprep.subr.bf16.mxu0 0
        %1288 = vmatpush1.bf16.msra.mxu0 %v1202
        %1289 = vmatprep.subr.bf16.mxu0 0
        %1290 = vmatpush1.bf16.msra.mxu0 %v1201
        %1291 = vmatprep.subr.bf16.mxu0 0
        %1292 = vmatpush2.bf16.msra.mxu0 0
        %1293 = vmatprep.subr.bf16.mxu0 0
        %1294 = vmatpush2.bf16.msra.mxu0 0
        %1295 = vmatprep.subr.bf16.mxu0 0
        %1296 = vmatpush2.bf16.msra.mxu0 0
        %1297 = vmatprep.subr.bf16.mxu0 0
        %1298 = vmatpush2.bf16.msra.mxu0 0
        %1299 = vmatprep.subr.bf16.mxu0 0
        %1300 = vmatpush2.bf16.msra.mxu0 0
        %1301 = vmatprep.subr.bf16.mxu0 0
        %1302 = vmatpush2.bf16.msra.mxu0 0
        %1303 = vmatprep.subr.bf16.mxu0 0
        %1304 = vmatpush2.bf16.msra.mxu0 0
        %1305 = vmatprep.subr.bf16.mxu0 0
        %1306 = vmatpush2.bf16.msra.mxu0 0
        %1307 = vmatprep.mubr.bf16.mxu0 0
        %1308 = vmatmul.mubr.bf16.gmra.mxu0 %v1233
        %v1309 = vpop.f32.mrf.mxu0
        %v1310 = vadd.f32 %v1218, %v1309
        %v1311 = vpop.f32.mrf.mxu0
        %v1312 = vpop.f32.mrf.mxu0
        %v1313 = vpop.f32.mrf.mxu0
        %1314 = vdwg.mxu0
        %1315 = vmatprep.subr.bf16.mxu0 0
        %1316 = vmatpush1.bf16.msra.mxu0 0
        %1317 = vmatprep.subr.bf16.mxu0 0
        %1318 = vmatpush1.bf16.msra.mxu0 0
        %1319 = vmatprep.subr.bf16.mxu0 0
        %1320 = vmatpush1.bf16.msra.mxu0 0
        %1321 = vmatprep.subr.bf16.mxu0 0
        %1322 = vmatpush1.bf16.msra.mxu0 0
        %1323 = vmatprep.subr.bf16.mxu0 0
        %1324 = vmatpush1.bf16.msra.mxu0 0
        %1325 = vmatprep.subr.bf16.mxu0 0
        %1326 = vmatpush1.bf16.msra.mxu0 0
        %1327 = vmatprep.subr.bf16.mxu0 0
        %1328 = vmatpush1.bf16.msra.mxu0 %v1204
        %1329 = vmatprep.subr.bf16.mxu0 0
        %1330 = vmatpush1.bf16.msra.mxu0 %v1203
        %1331 = vmatprep.subr.bf16.mxu0 0
        %1332 = vmatpush2.bf16.msra.mxu0 0
        %1333 = vmatprep.subr.bf16.mxu0 0
        %1334 = vmatpush2.bf16.msra.mxu0 0
        %1335 = vmatprep.subr.bf16.mxu0 0
        %1336 = vmatpush2.bf16.msra.mxu0 0
        %1337 = vmatprep.subr.bf16.mxu0 0
        %1338 = vmatpush2.bf16.msra.mxu0 0
        %1339 = vmatprep.subr.bf16.mxu0 0
        %1340 = vmatpush2.bf16.msra.mxu0 0
        %1341 = vmatprep.subr.bf16.mxu0 0
        %1342 = vmatpush2.bf16.msra.mxu0 0
        %1343 = vmatprep.subr.bf16.mxu0 0
        %1344 = vmatpush2.bf16.msra.mxu0 0
        %1345 = vmatprep.subr.bf16.mxu0 0
        %1346 = vmatpush2.bf16.msra.mxu0 0
        %1347 = vmatprep.mubr.bf16.mxu0 0
        %1348 = vmatmul.mubr.bf16.gmra.mxu0 %v1233
        %v1349 = vpop.f32.mrf.mxu0
        %v1350 = vadd.f32 %v1222, %v1349
        %v1351 = vpop.f32.mrf.mxu0
        %v1352 = vpop.f32.mrf.mxu0
        %v1353 = vpop.f32.mrf.mxu0
        %1354 = vdwg.mxu0
        %1355 = vmatprep.subr.bf16.mxu0 0
        %1356 = vmatpush1.bf16.msra.mxu0 0
        %1357 = vmatprep.subr.bf16.mxu0 0
        %1358 = vmatpush1.bf16.msra.mxu0 0
        %1359 = vmatprep.subr.bf16.mxu0 0
        %1360 = vmatpush1.bf16.msra.mxu0 0
        %1361 = vmatprep.subr.bf16.mxu0 0
        %1362 = vmatpush1.bf16.msra.mxu0 0
        %1363 = vmatprep.subr.bf16.mxu0 0
        %1364 = vmatpush1.bf16.msra.mxu0 0
        %1365 = vmatprep.subr.bf16.mxu0 0
        %1366 = vmatpush1.bf16.msra.mxu0 0
        %1367 = vmatprep.subr.bf16.mxu0 0
        %1368 = vmatpush1.bf16.msra.mxu0 %v1206
        %1369 = vmatprep.subr.bf16.mxu0 0
        %1370 = vmatpush1.bf16.msra.mxu0 %v1205
        %1371 = vmatprep.subr.bf16.mxu0 0
        %1372 = vmatpush2.bf16.msra.mxu0 0
        %1373 = vmatprep.subr.bf16.mxu0 0
        %1374 = vmatpush2.bf16.msra.mxu0 0
        %1375 = vmatprep.subr.bf16.mxu0 0
        %1376 = vmatpush2.bf16.msra.mxu0 0
        %1377 = vmatprep.subr.bf16.mxu0 0
        %1378 = vmatpush2.bf16.msra.mxu0 0
        %1379 = vmatprep.subr.bf16.mxu0 0
        %1380 = vmatpush2.bf16.msra.mxu0 0
        %1381 = vmatprep.subr.bf16.mxu0 0
        %1382 = vmatpush2.bf16.msra.mxu0 0
        %1383 = vmatprep.subr.bf16.mxu0 0
        %1384 = vmatpush2.bf16.msra.mxu0 0
        %1385 = vmatprep.subr.bf16.mxu0 0
        %1386 = vmatpush2.bf16.msra.mxu0 0
        %1387 = vmatprep.mubr.bf16.mxu0 0
        %1388 = vmatmul.mubr.bf16.gmra.mxu0 %v1233
        %v1389 = vpop.f32.mrf.mxu0
        %v1390 = vadd.f32 %v1226, %v1389
        %v1391 = vpop.f32.mrf.mxu0
        %v1392 = vpop.f32.mrf.mxu0
        %v1393 = vpop.f32.mrf.mxu0
        %1394 = vdwg.mxu0
        %v1395 = vpack.c.bf16 %v1150, %v1149
        %v1396 = vpack.c.bf16 %v1152, %v1151
        %v1397 = vpack.c.bf16 %v1154, %v1153
        %v1398 = vpack.c.bf16 %v1156, %v1155
        %v1399 = vpack.c.bf16 %v1158, %v1157
        %v1400 = vpack.c.bf16 %v1160, %v1159
        %v1401 = vpack.c.bf16 %v1162, %v1161
        %v1402 = vpack.c.bf16 %v1164, %v1163
        %v1403 = vpack.c.bf16 %v1166, %v1165
        %v1404 = vpack.c.bf16 %v1168, %v1167
        %v1405 = vpack.c.bf16 %v1170, %v1169
        %v1406 = vpack.c.bf16 %v1172, %v1171
        %v1407 = vpack.c.bf16 %v1174, %v1173
        %v1408 = vpack.c.bf16 %v1176, %v1175
        %v1409 = vpack.c.bf16 %v1178, %v1177
        %v1410 = vpack.c.bf16 %v1180, %v1179
        %v1419 = vlaneseq
        %v1420 = vshrl.u32 %v1419, 7
        %v1421 = vsub.s32 0, %v1420
        %v1422 = vrot.slane %v1185, %v1421
        %v1423 = vlaneseq
        %v1424 = vshrl.u32 %v1423, 7
        %v1425 = vsub.s32 0, %v1424
        %v1426 = vrot.slane %v1186, %v1425
        %v1427 = vlaneseq
        %v1428 = vshrl.u32 %v1427, 7
        %v1429 = vsub.s32 0, %v1428
        %v1430 = vrot.slane %v1187, %v1429
        %v1431 = vlaneseq
        %v1432 = vshrl.u32 %v1431, 7
        %v1433 = vsub.s32 0, %v1432
        %v1434 = vrot.slane %v1188, %v1433
        %v1435 = vlaneseq
        %v1436 = vshrl.u32 %v1435, 7
        %v1437 = vsub.s32 0, %v1436
        %v1438 = vrot.slane %v1189, %v1437
        %v1439 = vlaneseq
        %v1440 = vshrl.u32 %v1439, 7
        %v1441 = vsub.s32 0, %v1440
        %v1442 = vrot.slane %v1190, %v1441
        %v1443 = vlaneseq
        %v1444 = vshrl.u32 %v1443, 7
        %v1445 = vsub.s32 0, %v1444
        %v1446 = vrot.slane %v1191, %v1445
        %v1447 = vlaneseq
        %v1448 = vshrl.u32 %v1447, 7
        %v1449 = vsub.s32 0, %v1448
        %v1450 = vrot.slane %v1192, %v1449
        %1459 = vmatprep.subr.bf16.mxu0 0
        %1460 = vmatpush1.bf16.msra.mxu0 0
        %1461 = vmatprep.subr.bf16.mxu0 0
        %1462 = vmatpush1.bf16.msra.mxu0 0
        %1463 = vmatprep.subr.bf16.mxu0 0
        %1464 = vmatpush1.bf16.msra.mxu0 0
        %1465 = vmatprep.subr.bf16.mxu0 0
        %1466 = vmatpush1.bf16.msra.mxu0 0
        %1467 = vmatprep.subr.bf16.mxu0 0
        %1468 = vmatpush1.bf16.msra.mxu0 0
        %1469 = vmatprep.subr.bf16.mxu0 0
        %1470 = vmatpush1.bf16.msra.mxu0 0
        %1471 = vmatprep.subr.bf16.mxu0 0
        %1472 = vmatpush1.bf16.msra.mxu0 %v1396
        %1473 = vmatprep.subr.bf16.mxu0 0
        %1474 = vmatpush1.bf16.msra.mxu0 %v1395
        %1475 = vmatprep.subr.bf16.mxu0 0
        %1476 = vmatpush2.bf16.msra.mxu0 0
        %1477 = vmatprep.subr.bf16.mxu0 0
        %1478 = vmatpush2.bf16.msra.mxu0 0
        %1479 = vmatprep.subr.bf16.mxu0 0
        %1480 = vmatpush2.bf16.msra.mxu0 0
        %1481 = vmatprep.subr.bf16.mxu0 0
        %1482 = vmatpush2.bf16.msra.mxu0 0
        %1483 = vmatprep.subr.bf16.mxu0 0
        %1484 = vmatpush2.bf16.msra.mxu0 0
        %1485 = vmatprep.subr.bf16.mxu0 0
        %1486 = vmatpush2.bf16.msra.mxu0 0
        %1487 = vmatprep.subr.bf16.mxu0 0
        %1488 = vmatpush2.bf16.msra.mxu0 0
        %1489 = vmatprep.subr.bf16.mxu0 0
        %1490 = vmatpush2.bf16.msra.mxu0 0
        %1491 = vmatprep.mubr.bf16.mxu0 0
        %1492 = vmatmul.mubr.bf16.gmra.mxu0 %v1233
        %v1493 = vpop.f32.mrf.mxu0
        %v1494 = vadd.f32 %v1422, %v1493
        %v1495 = vpop.f32.mrf.mxu0
        %v1496 = vpop.f32.mrf.mxu0
        %v1497 = vpop.f32.mrf.mxu0
        %1498 = vdwg.mxu0
        %1499 = vmatprep.subr.bf16.mxu0 0
        %1500 = vmatpush1.bf16.msra.mxu0 0
        %1501 = vmatprep.subr.bf16.mxu0 0
        %1502 = vmatpush1.bf16.msra.mxu0 0
        %1503 = vmatprep.subr.bf16.mxu0 0
        %1504 = vmatpush1.bf16.msra.mxu0 0
        %1505 = vmatprep.subr.bf16.mxu0 0
        %1506 = vmatpush1.bf16.msra.mxu0 0
        %1507 = vmatprep.subr.bf16.mxu0 0
        %1508 = vmatpush1.bf16.msra.mxu0 0
        %1509 = vmatprep.subr.bf16.mxu0 0
        %1510 = vmatpush1.bf16.msra.mxu0 0
        %1511 = vmatprep.subr.bf16.mxu0 0
        %1512 = vmatpush1.bf16.msra.mxu0 %v1398
        %1513 = vmatprep.subr.bf16.mxu0 0
        %1514 = vmatpush1.bf16.msra.mxu0 %v1397
        %1515 = vmatprep.subr.bf16.mxu0 0
        %1516 = vmatpush2.bf16.msra.mxu0 0
        %1517 = vmatprep.subr.bf16.mxu0 0
        %1518 = vmatpush2.bf16.msra.mxu0 0
        %1519 = vmatprep.subr.bf16.mxu0 0
        %1520 = vmatpush2.bf16.msra.mxu0 0
        %1521 = vmatprep.subr.bf16.mxu0 0
        %1522 = vmatpush2.bf16.msra.mxu0 0
        %1523 = vmatprep.subr.bf16.mxu0 0
        %1524 = vmatpush2.bf16.msra.mxu0 0
        %1525 = vmatprep.subr.bf16.mxu0 0
        %1526 = vmatpush2.bf16.msra.mxu0 0
        %1527 = vmatprep.subr.bf16.mxu0 0
        %1528 = vmatpush2.bf16.msra.mxu0 0
        %1529 = vmatprep.subr.bf16.mxu0 0
        %1530 = vmatpush2.bf16.msra.mxu0 0
        %1531 = vmatprep.mubr.bf16.mxu0 0
        %1532 = vmatmul.mubr.bf16.gmra.mxu0 %v1233
        %v1533 = vpop.f32.mrf.mxu0
        %v1534 = vadd.f32 %v1426, %v1533
        %v1535 = vpop.f32.mrf.mxu0
        %v1536 = vpop.f32.mrf.mxu0
        %v1537 = vpop.f32.mrf.mxu0
        %1538 = vdwg.mxu0
        %1539 = vmatprep.subr.bf16.mxu0 0
        %1540 = vmatpush1.bf16.msra.mxu0 0
        %1541 = vmatprep.subr.bf16.mxu0 0
        %1542 = vmatpush1.bf16.msra.mxu0 0
        %1543 = vmatprep.subr.bf16.mxu0 0
        %1544 = vmatpush1.bf16.msra.mxu0 0
        %1545 = vmatprep.subr.bf16.mxu0 0
        %1546 = vmatpush1.bf16.msra.mxu0 0
        %1547 = vmatprep.subr.bf16.mxu0 0
        %1548 = vmatpush1.bf16.msra.mxu0 0
        %1549 = vmatprep.subr.bf16.mxu0 0
        %1550 = vmatpush1.bf16.msra.mxu0 0
        %1551 = vmatprep.subr.bf16.mxu0 0
        %1552 = vmatpush1.bf16.msra.mxu0 %v1400
        %1553 = vmatprep.subr.bf16.mxu0 0
        %1554 = vmatpush1.bf16.msra.mxu0 %v1399
        %1555 = vmatprep.subr.bf16.mxu0 0
        %1556 = vmatpush2.bf16.msra.mxu0 0
        %1557 = vmatprep.subr.bf16.mxu0 0
        %1558 = vmatpush2.bf16.msra.mxu0 0
        %1559 = vmatprep.subr.bf16.mxu0 0
        %1560 = vmatpush2.bf16.msra.mxu0 0
        %1561 = vmatprep.subr.bf16.mxu0 0
        %1562 = vmatpush2.bf16.msra.mxu0 0
        %1563 = vmatprep.subr.bf16.mxu0 0
        %1564 = vmatpush2.bf16.msra.mxu0 0
        %1565 = vmatprep.subr.bf16.mxu0 0
        %1566 = vmatpush2.bf16.msra.mxu0 0
        %1567 = vmatprep.subr.bf16.mxu0 0
        %1568 = vmatpush2.bf16.msra.mxu0 0
        %1569 = vmatprep.subr.bf16.mxu0 0
        %1570 = vmatpush2.bf16.msra.mxu0 0
        %1571 = vmatprep.mubr.bf16.mxu0 0
        %1572 = vmatmul.mubr.bf16.gmra.mxu0 %v1233
        %v1573 = vpop.f32.mrf.mxu0
        %v1574 = vadd.f32 %v1430, %v1573
        %v1575 = vpop.f32.mrf.mxu0
        %v1576 = vpop.f32.mrf.mxu0
        %v1577 = vpop.f32.mrf.mxu0
        %1578 = vdwg.mxu0
        %1579 = vmatprep.subr.bf16.mxu0 0
        %1580 = vmatpush1.bf16.msra.mxu0 0
        %1581 = vmatprep.subr.bf16.mxu0 0
        %1582 = vmatpush1.bf16.msra.mxu0 0
        %1583 = vmatprep.subr.bf16.mxu0 0
        %1584 = vmatpush1.bf16.msra.mxu0 0
        %1585 = vmatprep.subr.bf16.mxu0 0
        %1586 = vmatpush1.bf16.msra.mxu0 0
        %1587 = vmatprep.subr.bf16.mxu0 0
        %1588 = vmatpush1.bf16.msra.mxu0 0
        %1589 = vmatprep.subr.bf16.mxu0 0
        %1590 = vmatpush1.bf16.msra.mxu0 0
        %1591 = vmatprep.subr.bf16.mxu0 0
        %1592 = vmatpush1.bf16.msra.mxu0 %v1402
        %1593 = vmatprep.subr.bf16.mxu0 0
        %1594 = vmatpush1.bf16.msra.mxu0 %v1401
        %1595 = vmatprep.subr.bf16.mxu0 0
        %1596 = vmatpush2.bf16.msra.mxu0 0
        %1597 = vmatprep.subr.bf16.mxu0 0
        %1598 = vmatpush2.bf16.msra.mxu0 0
        %1599 = vmatprep.subr.bf16.mxu0 0
        %1600 = vmatpush2.bf16.msra.mxu0 0
        %1601 = vmatprep.subr.bf16.mxu0 0
        %1602 = vmatpush2.bf16.msra.mxu0 0
        %1603 = vmatprep.subr.bf16.mxu0 0
        %1604 = vmatpush2.bf16.msra.mxu0 0
        %1605 = vmatprep.subr.bf16.mxu0 0
        %1606 = vmatpush2.bf16.msra.mxu0 0
        %1607 = vmatprep.subr.bf16.mxu0 0
        %1608 = vmatpush2.bf16.msra.mxu0 0
        %1609 = vmatprep.subr.bf16.mxu0 0
        %1610 = vmatpush2.bf16.msra.mxu0 0
        %1611 = vmatprep.mubr.bf16.mxu0 0
        %1612 = vmatmul.mubr.bf16.gmra.mxu0 %v1233
        %v1613 = vpop.f32.mrf.mxu0
        %v1614 = vadd.f32 %v1434, %v1613
        %v1615 = vpop.f32.mrf.mxu0
        %v1616 = vpop.f32.mrf.mxu0
        %v1617 = vpop.f32.mrf.mxu0
        %1618 = vdwg.mxu0
        %1619 = vmatprep.subr.bf16.mxu0 0
        %1620 = vmatpush1.bf16.msra.mxu0 0
        %1621 = vmatprep.subr.bf16.mxu0 0
        %1622 = vmatpush1.bf16.msra.mxu0 0
        %1623 = vmatprep.subr.bf16.mxu0 0
        %1624 = vmatpush1.bf16.msra.mxu0 0
        %1625 = vmatprep.subr.bf16.mxu0 0
        %1626 = vmatpush1.bf16.msra.mxu0 0
        %1627 = vmatprep.subr.bf16.mxu0 0
        %1628 = vmatpush1.bf16.msra.mxu0 0
        %1629 = vmatprep.subr.bf16.mxu0 0
        %1630 = vmatpush1.bf16.msra.mxu0 0
        %1631 = vmatprep.subr.bf16.mxu0 0
        %1632 = vmatpush1.bf16.msra.mxu0 %v1404
        %1633 = vmatprep.subr.bf16.mxu0 0
        %1634 = vmatpush1.bf16.msra.mxu0 %v1403
        %1635 = vmatprep.subr.bf16.mxu0 0
        %1636 = vmatpush2.bf16.msra.mxu0 0
        %1637 = vmatprep.subr.bf16.mxu0 0
        %1638 = vmatpush2.bf16.msra.mxu0 0
        %1639 = vmatprep.subr.bf16.mxu0 0
        %1640 = vmatpush2.bf16.msra.mxu0 0
        %1641 = vmatprep.subr.bf16.mxu0 0
        %1642 = vmatpush2.bf16.msra.mxu0 0
        %1643 = vmatprep.subr.bf16.mxu0 0
        %1644 = vmatpush2.bf16.msra.mxu0 0
        %1645 = vmatprep.subr.bf16.mxu0 0
        %1646 = vmatpush2.bf16.msra.mxu0 0
        %1647 = vmatprep.subr.bf16.mxu0 0
        %1648 = vmatpush2.bf16.msra.mxu0 0
        %1649 = vmatprep.subr.bf16.mxu0 0
        %1650 = vmatpush2.bf16.msra.mxu0 0
        %1651 = vmatprep.mubr.bf16.mxu0 0
        %1652 = vmatmul.mubr.bf16.gmra.mxu0 %v1233
        %v1653 = vpop.f32.mrf.mxu0
        %v1654 = vadd.f32 %v1438, %v1653
        %v1655 = vpop.f32.mrf.mxu0
        %v1656 = vpop.f32.mrf.mxu0
        %v1657 = vpop.f32.mrf.mxu0
        %1658 = vdwg.mxu0
        %1659 = vmatprep.subr.bf16.mxu0 0
        %1660 = vmatpush1.bf16.msra.mxu0 0
        %1661 = vmatprep.subr.bf16.mxu0 0
        %1662 = vmatpush1.bf16.msra.mxu0 0
        %1663 = vmatprep.subr.bf16.mxu0 0
        %1664 = vmatpush1.bf16.msra.mxu0 0
        %1665 = vmatprep.subr.bf16.mxu0 0
        %1666 = vmatpush1.bf16.msra.mxu0 0
        %1667 = vmatprep.subr.bf16.mxu0 0
        %1668 = vmatpush1.bf16.msra.mxu0 0
        %1669 = vmatprep.subr.bf16.mxu0 0
        %1670 = vmatpush1.bf16.msra.mxu0 0
        %1671 = vmatprep.subr.bf16.mxu0 0
        %1672 = vmatpush1.bf16.msra.mxu0 %v1406
        %1673 = vmatprep.subr.bf16.mxu0 0
        %1674 = vmatpush1.bf16.msra.mxu0 %v1405
        %1675 = vmatprep.subr.bf16.mxu0 0
        %1676 = vmatpush2.bf16.msra.mxu0 0
        %1677 = vmatprep.subr.bf16.mxu0 0
        %1678 = vmatpush2.bf16.msra.mxu0 0
        %1679 = vmatprep.subr.bf16.mxu0 0
        %1680 = vmatpush2.bf16.msra.mxu0 0
        %1681 = vmatprep.subr.bf16.mxu0 0
        %1682 = vmatpush2.bf16.msra.mxu0 0
        %1683 = vmatprep.subr.bf16.mxu0 0
        %1684 = vmatpush2.bf16.msra.mxu0 0
        %1685 = vmatprep.subr.bf16.mxu0 0
        %1686 = vmatpush2.bf16.msra.mxu0 0
        %1687 = vmatprep.subr.bf16.mxu0 0
        %1688 = vmatpush2.bf16.msra.mxu0 0
        %1689 = vmatprep.subr.bf16.mxu0 0
        %1690 = vmatpush2.bf16.msra.mxu0 0
        %1691 = vmatprep.mubr.bf16.mxu0 0
        %1692 = vmatmul.mubr.bf16.gmra.mxu0 %v1233
        %v1693 = vpop.f32.mrf.mxu0
        %v1694 = vadd.f32 %v1442, %v1693
        %v1695 = vpop.f32.mrf.mxu0
        %v1696 = vpop.f32.mrf.mxu0
        %v1697 = vpop.f32.mrf.mxu0
        %1698 = vdwg.mxu0
        %1699 = vmatprep.subr.bf16.mxu0 0
        %1700 = vmatpush1.bf16.msra.mxu0 0
        %1701 = vmatprep.subr.bf16.mxu0 0
        %1702 = vmatpush1.bf16.msra.mxu0 0
        %1703 = vmatprep.subr.bf16.mxu0 0
        %1704 = vmatpush1.bf16.msra.mxu0 0
        %1705 = vmatprep.subr.bf16.mxu0 0
        %1706 = vmatpush1.bf16.msra.mxu0 0
        %1707 = vmatprep.subr.bf16.mxu0 0
        %1708 = vmatpush1.bf16.msra.mxu0 0
        %1709 = vmatprep.subr.bf16.mxu0 0
        %1710 = vmatpush1.bf16.msra.mxu0 0
        %1711 = vmatprep.subr.bf16.mxu0 0
        %1712 = vmatpush1.bf16.msra.mxu0 %v1408
        %1713 = vmatprep.subr.bf16.mxu0 0
        %1714 = vmatpush1.bf16.msra.mxu0 %v1407
        %1715 = vmatprep.subr.bf16.mxu0 0
        %1716 = vmatpush2.bf16.msra.mxu0 0
        %1717 = vmatprep.subr.bf16.mxu0 0
        %1718 = vmatpush2.bf16.msra.mxu0 0
        %1719 = vmatprep.subr.bf16.mxu0 0
        %1720 = vmatpush2.bf16.msra.mxu0 0
        %1721 = vmatprep.subr.bf16.mxu0 0
        %1722 = vmatpush2.bf16.msra.mxu0 0
        %1723 = vmatprep.subr.bf16.mxu0 0
        %1724 = vmatpush2.bf16.msra.mxu0 0
        %1725 = vmatprep.subr.bf16.mxu0 0
        %1726 = vmatpush2.bf16.msra.mxu0 0
        %1727 = vmatprep.subr.bf16.mxu0 0
        %1728 = vmatpush2.bf16.msra.mxu0 0
        %1729 = vmatprep.subr.bf16.mxu0 0
        %1730 = vmatpush2.bf16.msra.mxu0 0
        %1731 = vmatprep.mubr.bf16.mxu0 0
        %1732 = vmatmul.mubr.bf16.gmra.mxu0 %v1233
        %v1733 = vpop.f32.mrf.mxu0
        %v1734 = vadd.f32 %v1446, %v1733
        %v1735 = vpop.f32.mrf.mxu0
        %v1736 = vpop.f32.mrf.mxu0
        %v1737 = vpop.f32.mrf.mxu0
        %1738 = vdwg.mxu0
        %1739 = vmatprep.subr.bf16.mxu0 0
        %1740 = vmatpush1.bf16.msra.mxu0 0
        %1741 = vmatprep.subr.bf16.mxu0 0
        %1742 = vmatpush1.bf16.msra.mxu0 0
        %1743 = vmatprep.subr.bf16.mxu0 0
        %1744 = vmatpush1.bf16.msra.mxu0 0
        %1745 = vmatprep.subr.bf16.mxu0 0
        %1746 = vmatpush1.bf16.msra.mxu0 0
        %1747 = vmatprep.subr.bf16.mxu0 0
        %1748 = vmatpush1.bf16.msra.mxu0 0
        %1749 = vmatprep.subr.bf16.mxu0 0
        %1750 = vmatpush1.bf16.msra.mxu0 0
        %1751 = vmatprep.subr.bf16.mxu0 0
        %1752 = vmatpush1.bf16.msra.mxu0 %v1410
        %1753 = vmatprep.subr.bf16.mxu0 0
        %1754 = vmatpush1.bf16.msra.mxu0 %v1409
        %1755 = vmatprep.subr.bf16.mxu0 0
        %1756 = vmatpush2.bf16.msra.mxu0 0
        %1757 = vmatprep.subr.bf16.mxu0 0
        %1758 = vmatpush2.bf16.msra.mxu0 0
        %1759 = vmatprep.subr.bf16.mxu0 0
        %1760 = vmatpush2.bf16.msra.mxu0 0
        %1761 = vmatprep.subr.bf16.mxu0 0
        %1762 = vmatpush2.bf16.msra.mxu0 0
        %1763 = vmatprep.subr.bf16.mxu0 0
        %1764 = vmatpush2.bf16.msra.mxu0 0
        %1765 = vmatprep.subr.bf16.mxu0 0
        %1766 = vmatpush2.bf16.msra.mxu0 0
        %1767 = vmatprep.subr.bf16.mxu0 0
        %1768 = vmatpush2.bf16.msra.mxu0 0
        %1769 = vmatprep.subr.bf16.mxu0 0
        %1770 = vmatpush2.bf16.msra.mxu0 0
        %1771 = vmatprep.mubr.bf16.mxu0 0
        %1772 = vmatmul.mubr.bf16.gmra.mxu0 %v1233
        %v1773 = vpop.f32.mrf.mxu0
        %v1774 = vadd.f32 %v1450, %v1773
        %v1775 = vpop.f32.mrf.mxu0
        %v1776 = vpop.f32.mrf.mxu0
        %v1777 = vpop.f32.mrf.mxu0
        %1778 = vdwg.mxu0
        %v1779 = vpack.c.bf16 %v1270, %v1270
        %v1780 = vpack.c.bf16 %v1310, %v1310
        %v1781 = vpack.c.bf16 %v1350, %v1350
        %v1782 = vpack.c.bf16 %v1390, %v1390
        %v1783 = vpack.c.bf16 %v1494, %v1494
        %v1784 = vpack.c.bf16 %v1534, %v1534
        %v1785 = vpack.c.bf16 %v1574, %v1574
        %v1786 = vpack.c.bf16 %v1614, %v1614
        %vm1787 = vcmask 64512
        %v1789 = vsel %vm1787, %v1779, 0
        %v1792 = vsel %vm1787, %v1783, 0
        %1794 = vmatprep.subr.bf16.mxu0 0
        %1795 = vmatpush1.bf16.xpose.msra.mxu0 0
        %1796 = vmatprep.subr.bf16.mxu0 0
        %1797 = vmatpush1.bf16.xpose.msra.mxu0 0
        %1798 = vmatprep.subr.bf16.mxu0 0
        %1799 = vmatpush1.bf16.xpose.msra.mxu0 0
        %1800 = vmatprep.subr.bf16.mxu0 0
        %1801 = vmatpush1.bf16.xpose.msra.mxu0 0
        %1802 = vmatprep.subr.bf16.mxu0 0
        %1803 = vmatpush1.bf16.xpose.msra.mxu0 0
        %1804 = vmatprep.subr.bf16.mxu0 0
        %1805 = vmatpush1.bf16.xpose.msra.mxu0 0
        %1806 = vmatprep.subr.bf16.mxu0 0
        %1807 = vmatpush1.bf16.xpose.msra.mxu0 0
        %1808 = vmatprep.subr.bf16.mxu0 0
        %1809 = vmatpush1.bf16.xpose.msra.mxu0 %v1792
        %1810 = vmatprep.subr.bf16.mxu0 0
        %1811 = vmatpush2.bf16.xpose.msra.mxu0 0
        %1812 = vmatprep.subr.bf16.mxu0 0
        %1813 = vmatpush2.bf16.xpose.msra.mxu0 0
        %1814 = vmatprep.subr.bf16.mxu0 0
        %1815 = vmatpush2.bf16.xpose.msra.mxu0 0
        %1816 = vmatprep.subr.bf16.mxu0 0
        %1817 = vmatpush2.bf16.xpose.msra.mxu0 0
        %1818 = vmatprep.subr.bf16.mxu0 0
        %1819 = vmatpush2.bf16.xpose.msra.mxu0 0
        %1820 = vmatprep.subr.bf16.mxu0 0
        %1821 = vmatpush2.bf16.xpose.msra.mxu0 0
        %1822 = vmatprep.subr.bf16.mxu0 0
        %1823 = vmatpush2.bf16.xpose.msra.mxu0 0
        %1824 = vmatprep.subr.bf16.mxu0 0
        %1825 = vmatpush2.bf16.xpose.msra.mxu0 0
        %1826 = vmatprep.mubr.bf16.mxu0 0
        %1827 = vmatmul.mubr.bf16.gmra.mxu0 %v1789
        %v1828 = vpop.f32.mrf.mxu0
        %v1829 = vadd.f32 0.0, %v1828
        %v1830 = vpop.f32.mrf.mxu0
        %v1831 = vpop.f32.mrf.mxu0
        %v1832 = vpop.f32.mrf.mxu0
        %1833 = vdwg.mxu0
        %v1835 = vsel %vm1787, %v1780, 0
        %v1838 = vsel %vm1787, %v1784, 0
        %1840 = vmatprep.subr.bf16.mxu0 0
        %1841 = vmatpush1.bf16.xpose.msra.mxu0 0
        %1842 = vmatprep.subr.bf16.mxu0 0
        %1843 = vmatpush1.bf16.xpose.msra.mxu0 0
        %1844 = vmatprep.subr.bf16.mxu0 0
        %1845 = vmatpush1.bf16.xpose.msra.mxu0 0
        %1846 = vmatprep.subr.bf16.mxu0 0
        %1847 = vmatpush1.bf16.xpose.msra.mxu0 0
        %1848 = vmatprep.subr.bf16.mxu0 0
        %1849 = vmatpush1.bf16.xpose.msra.mxu0 0
        %1850 = vmatprep.subr.bf16.mxu0 0
        %1851 = vmatpush1.bf16.xpose.msra.mxu0 0
        %1852 = vmatprep.subr.bf16.mxu0 0
        %1853 = vmatpush1.bf16.xpose.msra.mxu0 0
        %1854 = vmatprep.subr.bf16.mxu0 0
        %1855 = vmatpush1.bf16.xpose.msra.mxu0 %v1838
        %1856 = vmatprep.subr.bf16.mxu0 0
        %1857 = vmatpush2.bf16.xpose.msra.mxu0 0
        %1858 = vmatprep.subr.bf16.mxu0 0
        %1859 = vmatpush2.bf16.xpose.msra.mxu0 0
        %1860 = vmatprep.subr.bf16.mxu0 0
        %1861 = vmatpush2.bf16.xpose.msra.mxu0 0
        %1862 = vmatprep.subr.bf16.mxu0 0
        %1863 = vmatpush2.bf16.xpose.msra.mxu0 0
        %1864 = vmatprep.subr.bf16.mxu0 0
        %1865 = vmatpush2.bf16.xpose.msra.mxu0 0
        %1866 = vmatprep.subr.bf16.mxu0 0
        %1867 = vmatpush2.bf16.xpose.msra.mxu0 0
        %1868 = vmatprep.subr.bf16.mxu0 0
        %1869 = vmatpush2.bf16.xpose.msra.mxu0 0
        %1870 = vmatprep.subr.bf16.mxu0 0
        %1871 = vmatpush2.bf16.xpose.msra.mxu0 0
        %1872 = vmatprep.mubr.bf16.mxu0 0
        %1873 = vmatmul.mubr.bf16.gmra.mxu0 %v1835
        %v1874 = vpop.f32.mrf.mxu0
        %v1875 = vadd.f32 0.0, %v1874
        %v1876 = vpop.f32.mrf.mxu0
        %v1877 = vpop.f32.mrf.mxu0
        %v1878 = vpop.f32.mrf.mxu0
        %1879 = vdwg.mxu0
        %v1881 = vsel %vm1787, %v1781, 0
        %v1884 = vsel %vm1787, %v1785, 0
        %1886 = vmatprep.subr.bf16.mxu0 0
        %1887 = vmatpush1.bf16.xpose.msra.mxu0 0
        %1888 = vmatprep.subr.bf16.mxu0 0
        %1889 = vmatpush1.bf16.xpose.msra.mxu0 0
        %1890 = vmatprep.subr.bf16.mxu0 0
        %1891 = vmatpush1.bf16.xpose.msra.mxu0 0
        %1892 = vmatprep.subr.bf16.mxu0 0
        %1893 = vmatpush1.bf16.xpose.msra.mxu0 0
        %1894 = vmatprep.subr.bf16.mxu0 0
        %1895 = vmatpush1.bf16.xpose.msra.mxu0 0
        %1896 = vmatprep.subr.bf16.mxu0 0
        %1897 = vmatpush1.bf16.xpose.msra.mxu0 0
        %1898 = vmatprep.subr.bf16.mxu0 0
        %1899 = vmatpush1.bf16.xpose.msra.mxu0 0
        %1900 = vmatprep.subr.bf16.mxu0 0
        %1901 = vmatpush1.bf16.xpose.msra.mxu0 %v1884
        %1902 = vmatprep.subr.bf16.mxu0 0
        %1903 = vmatpush2.bf16.xpose.msra.mxu0 0
        %1904 = vmatprep.subr.bf16.mxu0 0
        %1905 = vmatpush2.bf16.xpose.msra.mxu0 0
        %1906 = vmatprep.subr.bf16.mxu0 0
        %1907 = vmatpush2.bf16.xpose.msra.mxu0 0
        %1908 = vmatprep.subr.bf16.mxu0 0
        %1909 = vmatpush2.bf16.xpose.msra.mxu0 0
        %1910 = vmatprep.subr.bf16.mxu0 0
        %1911 = vmatpush2.bf16.xpose.msra.mxu0 0
        %1912 = vmatprep.subr.bf16.mxu0 0
        %1913 = vmatpush2.bf16.xpose.msra.mxu0 0
        %1914 = vmatprep.subr.bf16.mxu0 0
        %1915 = vmatpush2.bf16.xpose.msra.mxu0 0
        %1916 = vmatprep.subr.bf16.mxu0 0
        %1917 = vmatpush2.bf16.xpose.msra.mxu0 0
        %1918 = vmatprep.mubr.bf16.mxu0 0
        %1919 = vmatmul.mubr.bf16.gmra.mxu0 %v1881
        %v1920 = vpop.f32.mrf.mxu0
        %v1921 = vadd.f32 0.0, %v1920
        %v1922 = vpop.f32.mrf.mxu0
        %v1923 = vpop.f32.mrf.mxu0
        %v1924 = vpop.f32.mrf.mxu0
        %1925 = vdwg.mxu0
        %v1927 = vsel %vm1787, %v1782, 0
        %v1930 = vsel %vm1787, %v1786, 0
        %1932 = vmatprep.subr.bf16.mxu0 0
        %1933 = vmatpush1.bf16.xpose.msra.mxu0 0
        %1934 = vmatprep.subr.bf16.mxu0 0
        %1935 = vmatpush1.bf16.xpose.msra.mxu0 0
        %1936 = vmatprep.subr.bf16.mxu0 0
        %1937 = vmatpush1.bf16.xpose.msra.mxu0 0
        %1938 = vmatprep.subr.bf16.mxu0 0
        %1939 = vmatpush1.bf16.xpose.msra.mxu0 0
        %1940 = vmatprep.subr.bf16.mxu0 0
        %1941 = vmatpush1.bf16.xpose.msra.mxu0 0
        %1942 = vmatprep.subr.bf16.mxu0 0
        %1943 = vmatpush1.bf16.xpose.msra.mxu0 0
        %1944 = vmatprep.subr.bf16.mxu0 0
        %1945 = vmatpush1.bf16.xpose.msra.mxu0 0
        %1946 = vmatprep.subr.bf16.mxu0 0
        %1947 = vmatpush1.bf16.xpose.msra.mxu0 %v1930
        %1948 = vmatprep.subr.bf16.mxu0 0
        %1949 = vmatpush2.bf16.xpose.msra.mxu0 0
        %1950 = vmatprep.subr.bf16.mxu0 0
        %1951 = vmatpush2.bf16.xpose.msra.mxu0 0
        %1952 = vmatprep.subr.bf16.mxu0 0
        %1953 = vmatpush2.bf16.xpose.msra.mxu0 0
        %1954 = vmatprep.subr.bf16.mxu0 0
        %1955 = vmatpush2.bf16.xpose.msra.mxu0 0
        %1956 = vmatprep.subr.bf16.mxu0 0
        %1957 = vmatpush2.bf16.xpose.msra.mxu0 0
        %1958 = vmatprep.subr.bf16.mxu0 0
        %1959 = vmatpush2.bf16.xpose.msra.mxu0 0
        %1960 = vmatprep.subr.bf16.mxu0 0
        %1961 = vmatpush2.bf16.xpose.msra.mxu0 0
        %1962 = vmatprep.subr.bf16.mxu0 0
        %1963 = vmatpush2.bf16.xpose.msra.mxu0 0
        %1964 = vmatprep.mubr.bf16.mxu0 0
        %1965 = vmatmul.mubr.bf16.gmra.mxu0 %v1927
        %v1966 = vpop.f32.mrf.mxu0
        %v1967 = vadd.f32 0.0, %v1966
        %v1968 = vpop.f32.mrf.mxu0
        %v1969 = vpop.f32.mrf.mxu0
        %v1970 = vpop.f32.mrf.mxu0
        %1971 = vdwg.mxu0
        %v1972 = vmul.f32 %v1829, 0.35355338
        %v1973 = vmul.f32 %v1875, 0.35355338
        %v1974 = vmul.f32 %v1921, 0.35355338
        %v1975 = vmul.f32 %v1967, 0.35355338
        %v1977 = vlaneseq
        %v1978 = vshrl.u32 %v1977, 7
        %v1979 = vsub.s32 0, %v1978
        %v1980 = vrot.slane %v1131, %v1979
        %v1982 = vadd.f32 %v1972, %v1980
        %v1983 = vadd.f32 %v1973, %v1980
        %v1984 = vadd.f32 %v1974, %v1980
        %v1985 = vadd.f32 %v1975, %v1980
        %v1986 = vsel %vm1787, %v1982, -inf
        %1987 = vmax.xlane.f32.xlu0 %v1986
        %v1988 = vpop.xlane.xlu0 %1987
        %v1989 = vsel %vm1787, %v1983, -inf
        %1990 = vmax.xlane.f32.xlu0 %v1989
        %v1991 = vpop.xlane.xlu0 %1990
        %v1992 = vsel %vm1787, %v1984, -inf
        %1993 = vmax.xlane.f32.xlu0 %v1992
        %v1994 = vpop.xlane.xlu0 %1993
        %v1995 = vsel %vm1787, %v1985, -inf
        %1996 = vmax.xlane.f32.xlu0 %v1995
        %v1997 = vpop.xlane.xlu0 %1996
        %v1998 = vsub.f32 %v1982, %v1988
        %v1999 = vsub.f32 %v1983, %v1991
        %v2000 = vsub.f32 %v1984, %v1994
        %v2001 = vsub.f32 %v1985, %v1997
        %v2002 = vmul.f32 %v1998, 1.442695
        %v2003 = vpow.pop %v2002
        %v2004 = vmul.f32 %v1999, 1.442695
        %v2005 = vpow.pop %v2004
        %v2006 = vmul.f32 %v2000, 1.442695
        %v2007 = vpow.pop %v2006
        %v2008 = vmul.f32 %v2001, 1.442695
        %v2009 = vpow.pop %v2008
        %v2010 = vsel %vm1787, %v2003, 0.0
        %2011 = vadd.xlane.f32.xlu0 %v2010
        %v2012 = vpop.xlane.xlu0 %2011
        %v2013 = vsel %vm1787, %v2005, 0.0
        %2014 = vadd.xlane.f32.xlu0 %v2013
        %v2015 = vpop.xlane.xlu0 %2014
        %v2016 = vsel %vm1787, %v2007, 0.0
        %2017 = vadd.xlane.f32.xlu0 %v2016
        %v2018 = vpop.xlane.xlu0 %2017
        %v2019 = vsel %vm1787, %v2009, 0.0
        %2020 = vadd.xlane.f32.xlu0 %v2019
        %v2021 = vpop.xlane.xlu0 %2020
        %v2022 = vrcp.pop %v2012
        %v2023 = vrcp.pop %v2015
        %v2024 = vrcp.pop %v2018
        %v2025 = vrcp.pop %v2021
        %v2026 = vmul.f32 %v2003, %v2022
        %v2027 = vmul.f32 %v2005, %v2023
        %v2028 = vmul.f32 %v2007, %v2024
        %v2029 = vmul.f32 %v2009, %v2025
        %v2030 = vpack.c.bf16 %v2026, %v2026
        %v2031 = vpack.c.bf16 %v2027, %v2027
        %v2032 = vpack.c.bf16 %v2028, %v2028
        %v2033 = vpack.c.bf16 %v2029, %v2029
        %v2034 = vpack.c.bf16 %v1654, %v1654
        %v2035 = vpack.c.bf16 %v1694, %v1694
        %v2036 = vpack.c.bf16 %v1734, %v1734
        %v2037 = vpack.c.bf16 %v1774, %v1774
        %v2039 = vsel %vm1787, %v2030, 0
        %vm2041 = vcmask 1043456
        %v2043 = vsel %vm2041, %v2034, 0
        %2045 = vmatprep.subr.bf16.mxu0 0
        %2046 = vmatpush1.bf16.msra.mxu0 0
        %2047 = vmatprep.subr.bf16.mxu0 0
        %2048 = vmatpush1.bf16.msra.mxu0 0
        %2049 = vmatprep.subr.bf16.mxu0 0
        %2050 = vmatpush1.bf16.msra.mxu0 0
        %2051 = vmatprep.subr.bf16.mxu0 0
        %2052 = vmatpush1.bf16.msra.mxu0 0
        %2053 = vmatprep.subr.bf16.mxu0 0
        %2054 = vmatpush1.bf16.msra.mxu0 0
        %2055 = vmatprep.subr.bf16.mxu0 0
        %2056 = vmatpush1.bf16.msra.mxu0 0
        %2057 = vmatprep.subr.bf16.mxu0 0
        %2058 = vmatpush1.bf16.msra.mxu0 0
        %2059 = vmatprep.subr.bf16.mxu0 0
        %2060 = vmatpush1.bf16.msra.mxu0 %v2043
        %2061 = vmatprep.subr.bf16.mxu0 0
        %2062 = vmatpush2.bf16.msra.mxu0 0
        %2063 = vmatprep.subr.bf16.mxu0 0
        %2064 = vmatpush2.bf16.msra.mxu0 0
        %2065 = vmatprep.subr.bf16.mxu0 0
        %2066 = vmatpush2.bf16.msra.mxu0 0
        %2067 = vmatprep.subr.bf16.mxu0 0
        %2068 = vmatpush2.bf16.msra.mxu0 0
        %2069 = vmatprep.subr.bf16.mxu0 0
        %2070 = vmatpush2.bf16.msra.mxu0 0
        %2071 = vmatprep.subr.bf16.mxu0 0
        %2072 = vmatpush2.bf16.msra.mxu0 0
        %2073 = vmatprep.subr.bf16.mxu0 0
        %2074 = vmatpush2.bf16.msra.mxu0 0
        %2075 = vmatprep.subr.bf16.mxu0 0
        %2076 = vmatpush2.bf16.msra.mxu0 0
        %2077 = vmatprep.mubr.bf16.mxu0 0
        %2078 = vmatmul.mubr.bf16.gmra.mxu0 %v2039
        %v2079 = vpop.f32.mrf.mxu0
        %v2080 = vadd.f32 0.0, %v2079
        %v2081 = vpop.f32.mrf.mxu0
        %v2082 = vpop.f32.mrf.mxu0
        %v2083 = vpop.f32.mrf.mxu0
        %2084 = vdwg.mxu0
        %v2086 = vsel %vm1787, %v2031, 0
        %v2089 = vsel %vm2041, %v2035, 0
        %2091 = vmatprep.subr.bf16.mxu0 0
        %2092 = vmatpush1.bf16.msra.mxu0 0
        %2093 = vmatprep.subr.bf16.mxu0 0
        %2094 = vmatpush1.bf16.msra.mxu0 0
        %2095 = vmatprep.subr.bf16.mxu0 0
        %2096 = vmatpush1.bf16.msra.mxu0 0
        %2097 = vmatprep.subr.bf16.mxu0 0
        %2098 = vmatpush1.bf16.msra.mxu0 0
        %2099 = vmatprep.subr.bf16.mxu0 0
        %2100 = vmatpush1.bf16.msra.mxu0 0
        %2101 = vmatprep.subr.bf16.mxu0 0
        %2102 = vmatpush1.bf16.msra.mxu0 0
        %2103 = vmatprep.subr.bf16.mxu0 0
        %2104 = vmatpush1.bf16.msra.mxu0 0
        %2105 = vmatprep.subr.bf16.mxu0 0
        %2106 = vmatpush1.bf16.msra.mxu0 %v2089
        %2107 = vmatprep.subr.bf16.mxu0 0
        %2108 = vmatpush2.bf16.msra.mxu0 0
        %2109 = vmatprep.subr.bf16.mxu0 0
        %2110 = vmatpush2.bf16.msra.mxu0 0
        %2111 = vmatprep.subr.bf16.mxu0 0
        %2112 = vmatpush2.bf16.msra.mxu0 0
        %2113 = vmatprep.subr.bf16.mxu0 0
        %2114 = vmatpush2.bf16.msra.mxu0 0
        %2115 = vmatprep.subr.bf16.mxu0 0
        %2116 = vmatpush2.bf16.msra.mxu0 0
        %2117 = vmatprep.subr.bf16.mxu0 0
        %2118 = vmatpush2.bf16.msra.mxu0 0
        %2119 = vmatprep.subr.bf16.mxu0 0
        %2120 = vmatpush2.bf16.msra.mxu0 0
        %2121 = vmatprep.subr.bf16.mxu0 0
        %2122 = vmatpush2.bf16.msra.mxu0 0
        %2123 = vmatprep.mubr.bf16.mxu0 0
        %2124 = vmatmul.mubr.bf16.gmra.mxu0 %v2086
        %v2125 = vpop.f32.mrf.mxu0
        %v2126 = vadd.f32 0.0, %v2125
        %v2127 = vpop.f32.mrf.mxu0
        %v2128 = vpop.f32.mrf.mxu0
        %v2129 = vpop.f32.mrf.mxu0
        %2130 = vdwg.mxu0
        %v2132 = vsel %vm1787, %v2032, 0
        %v2135 = vsel %vm2041, %v2036, 0
        %2137 = vmatprep.subr.bf16.mxu0 0
        %2138 = vmatpush1.bf16.msra.mxu0 0
        %2139 = vmatprep.subr.bf16.mxu0 0
        %2140 = vmatpush1.bf16.msra.mxu0 0
        %2141 = vmatprep.subr.bf16.mxu0 0
        %2142 = vmatpush1.bf16.msra.mxu0 0
        %2143 = vmatprep.subr.bf16.mxu0 0
        %2144 = vmatpush1.bf16.msra.mxu0 0
        %2145 = vmatprep.subr.bf16.mxu0 0
        %2146 = vmatpush1.bf16.msra.mxu0 0
        %2147 = vmatprep.subr.bf16.mxu0 0
        %2148 = vmatpush1.bf16.msra.mxu0 0
        %2149 = vmatprep.subr.bf16.mxu0 0
        %2150 = vmatpush1.bf16.msra.mxu0 0
        %2151 = vmatprep.subr.bf16.mxu0 0
        %2152 = vmatpush1.bf16.msra.mxu0 %v2135
        %2153 = vmatprep.subr.bf16.mxu0 0
        %2154 = vmatpush2.bf16.msra.mxu0 0
        %2155 = vmatprep.subr.bf16.mxu0 0
        %2156 = vmatpush2.bf16.msra.mxu0 0
        %2157 = vmatprep.subr.bf16.mxu0 0
        %2158 = vmatpush2.bf16.msra.mxu0 0
        %2159 = vmatprep.subr.bf16.mxu0 0
        %2160 = vmatpush2.bf16.msra.mxu0 0
        %2161 = vmatprep.subr.bf16.mxu0 0
        %2162 = vmatpush2.bf16.msra.mxu0 0
        %2163 = vmatprep.subr.bf16.mxu0 0
        %2164 = vmatpush2.bf16.msra.mxu0 0
        %2165 = vmatprep.subr.bf16.mxu0 0
        %2166 = vmatpush2.bf16.msra.mxu0 0
        %2167 = vmatprep.subr.bf16.mxu0 0
        %2168 = vmatpush2.bf16.msra.mxu0 0
        %2169 = vmatprep.mubr.bf16.mxu0 0
        %2170 = vmatmul.mubr.bf16.gmra.mxu0 %v2132
        %v2171 = vpop.f32.mrf.mxu0
        %v2172 = vadd.f32 0.0, %v2171
        %v2173 = vpop.f32.mrf.mxu0
        %v2174 = vpop.f32.mrf.mxu0
        %v2175 = vpop.f32.mrf.mxu0
        %2176 = vdwg.mxu0
        %v2178 = vsel %vm1787, %v2033, 0
        %v2181 = vsel %vm2041, %v2037, 0
        %2183 = vmatprep.subr.bf16.mxu0 0
        %2184 = vmatpush1.bf16.msra.mxu0 0
        %2185 = vmatprep.subr.bf16.mxu0 0
        %2186 = vmatpush1.bf16.msra.mxu0 0
        %2187 = vmatprep.subr.bf16.mxu0 0
        %2188 = vmatpush1.bf16.msra.mxu0 0
        %2189 = vmatprep.subr.bf16.mxu0 0
        %2190 = vmatpush1.bf16.msra.mxu0 0
        %2191 = vmatprep.subr.bf16.mxu0 0
        %2192 = vmatpush1.bf16.msra.mxu0 0
        %2193 = vmatprep.subr.bf16.mxu0 0
        %2194 = vmatpush1.bf16.msra.mxu0 0
        %2195 = vmatprep.subr.bf16.mxu0 0
        %2196 = vmatpush1.bf16.msra.mxu0 0
        %2197 = vmatprep.subr.bf16.mxu0 0
        %2198 = vmatpush1.bf16.msra.mxu0 %v2181
        %2199 = vmatprep.subr.bf16.mxu0 0
        %2200 = vmatpush2.bf16.msra.mxu0 0
        %2201 = vmatprep.subr.bf16.mxu0 0
        %2202 = vmatpush2.bf16.msra.mxu0 0
        %2203 = vmatprep.subr.bf16.mxu0 0
        %2204 = vmatpush2.bf16.msra.mxu0 0
        %2205 = vmatprep.subr.bf16.mxu0 0
        %2206 = vmatpush2.bf16.msra.mxu0 0
        %2207 = vmatprep.subr.bf16.mxu0 0
        %2208 = vmatpush2.bf16.msra.mxu0 0
        %2209 = vmatprep.subr.bf16.mxu0 0
        %2210 = vmatpush2.bf16.msra.mxu0 0
        %2211 = vmatprep.subr.bf16.mxu0 0
        %2212 = vmatpush2.bf16.msra.mxu0 0
        %2213 = vmatprep.subr.bf16.mxu0 0
        %2214 = vmatpush2.bf16.msra.mxu0 0
        %2215 = vmatprep.mubr.bf16.mxu0 0
        %2216 = vmatmul.mubr.bf16.gmra.mxu0 %v2178
        %v2217 = vpop.f32.mrf.mxu0
        %v2218 = vadd.f32 0.0, %v2217
        %v2219 = vpop.f32.mrf.mxu0
        %v2220 = vpop.f32.mrf.mxu0
        %v2221 = vpop.f32.mrf.mxu0
        %2222 = vdwg.mxu0
        %v2223 = vpack.c.bf16 %v2080, %v2080
        %v2224 = vpack.c.bf16 %v2126, %v2126
        %v2225 = vpack.c.bf16 %v2172, %v2172
        %v2226 = vpack.c.bf16 %v2218, %v2218
        %v2227 = vpack.c.bf16 %v1193, %v1193
        %v2228 = vpack.c.bf16 %v1194, %v1194
        %v2229 = vpack.c.bf16 %v1195, %v1195
        %v2230 = vpack.c.bf16 %v1196, %v1196
        %v2232 = vsel %vm1787, %v2223, 0
        %v2235 = vsel %vm2041, %v2227, 0
        %2237 = vmatprep.subr.bf16.mxu0 0
        %2238 = vmatpush1.bf16.msra.mxu0 0
        %2239 = vmatprep.subr.bf16.mxu0 0
        %2240 = vmatpush1.bf16.msra.mxu0 0
        %2241 = vmatprep.subr.bf16.mxu0 0
        %2242 = vmatpush1.bf16.msra.mxu0 0
        %2243 = vmatprep.subr.bf16.mxu0 0
        %2244 = vmatpush1.bf16.msra.mxu0 0
        %2245 = vmatprep.subr.bf16.mxu0 0
        %2246 = vmatpush1.bf16.msra.mxu0 0
        %2247 = vmatprep.subr.bf16.mxu0 0
        %2248 = vmatpush1.bf16.msra.mxu0 0
        %2249 = vmatprep.subr.bf16.mxu0 0
        %2250 = vmatpush1.bf16.msra.mxu0 0
        %2251 = vmatprep.subr.bf16.mxu0 0
        %2252 = vmatpush1.bf16.msra.mxu0 %v2235
        %2253 = vmatprep.subr.bf16.mxu0 0
        %2254 = vmatpush2.bf16.msra.mxu0 0
        %2255 = vmatprep.subr.bf16.mxu0 0
        %2256 = vmatpush2.bf16.msra.mxu0 0
        %2257 = vmatprep.subr.bf16.mxu0 0
        %2258 = vmatpush2.bf16.msra.mxu0 0
        %2259 = vmatprep.subr.bf16.mxu0 0
        %2260 = vmatpush2.bf16.msra.mxu0 0
        %2261 = vmatprep.subr.bf16.mxu0 0
        %2262 = vmatpush2.bf16.msra.mxu0 0
        %2263 = vmatprep.subr.bf16.mxu0 0
        %2264 = vmatpush2.bf16.msra.mxu0 0
        %2265 = vmatprep.subr.bf16.mxu0 0
        %2266 = vmatpush2.bf16.msra.mxu0 0
        %2267 = vmatprep.subr.bf16.mxu0 0
        %2268 = vmatpush2.bf16.msra.mxu0 0
        %2269 = vmatprep.mubr.bf16.mxu0 0
        %2270 = vmatmul.mubr.bf16.gmra.mxu0 %v2232
        %v2271 = vpop.f32.mrf.mxu0
        %v2272 = vadd.f32 0.0, %v2271
        %v2273 = vpop.f32.mrf.mxu0
        %v2274 = vpop.f32.mrf.mxu0
        %v2275 = vpop.f32.mrf.mxu0
        %2276 = vdwg.mxu0
        %v2278 = vsel %vm1787, %v2224, 0
        %v2281 = vsel %vm2041, %v2228, 0
        %2283 = vmatprep.subr.bf16.mxu0 0
        %2284 = vmatpush1.bf16.msra.mxu0 0
        %2285 = vmatprep.subr.bf16.mxu0 0
        %2286 = vmatpush1.bf16.msra.mxu0 0
        %2287 = vmatprep.subr.bf16.mxu0 0
        %2288 = vmatpush1.bf16.msra.mxu0 0
        %2289 = vmatprep.subr.bf16.mxu0 0
        %2290 = vmatpush1.bf16.msra.mxu0 0
        %2291 = vmatprep.subr.bf16.mxu0 0
        %2292 = vmatpush1.bf16.msra.mxu0 0
        %2293 = vmatprep.subr.bf16.mxu0 0
        %2294 = vmatpush1.bf16.msra.mxu0 0
        %2295 = vmatprep.subr.bf16.mxu0 0
        %2296 = vmatpush1.bf16.msra.mxu0 0
        %2297 = vmatprep.subr.bf16.mxu0 0
        %2298 = vmatpush1.bf16.msra.mxu0 %v2281
        %2299 = vmatprep.subr.bf16.mxu0 0
        %2300 = vmatpush2.bf16.msra.mxu0 0
        %2301 = vmatprep.subr.bf16.mxu0 0
        %2302 = vmatpush2.bf16.msra.mxu0 0
        %2303 = vmatprep.subr.bf16.mxu0 0
        %2304 = vmatpush2.bf16.msra.mxu0 0
        %2305 = vmatprep.subr.bf16.mxu0 0
        %2306 = vmatpush2.bf16.msra.mxu0 0
        %2307 = vmatprep.subr.bf16.mxu0 0
        %2308 = vmatpush2.bf16.msra.mxu0 0
        %2309 = vmatprep.subr.bf16.mxu0 0
        %2310 = vmatpush2.bf16.msra.mxu0 0
        %2311 = vmatprep.subr.bf16.mxu0 0
        %2312 = vmatpush2.bf16.msra.mxu0 0
        %2313 = vmatprep.subr.bf16.mxu0 0
        %2314 = vmatpush2.bf16.msra.mxu0 0
        %2315 = vmatprep.mubr.bf16.mxu0 0
        %2316 = vmatmul.mubr.bf16.gmra.mxu0 %v2278
        %v2317 = vpop.f32.mrf.mxu0
        %v2318 = vadd.f32 0.0, %v2317
        %v2319 = vpop.f32.mrf.mxu0
        %v2320 = vpop.f32.mrf.mxu0
        %v2321 = vpop.f32.mrf.mxu0
        %2322 = vdwg.mxu0
        %v2324 = vsel %vm1787, %v2225, 0
        %v2327 = vsel %vm2041, %v2229, 0
        %2329 = vmatprep.subr.bf16.mxu0 0
        %2330 = vmatpush1.bf16.msra.mxu0 0
        %2331 = vmatprep.subr.bf16.mxu0 0
        %2332 = vmatpush1.bf16.msra.mxu0 0
        %2333 = vmatprep.subr.bf16.mxu0 0
        %2334 = vmatpush1.bf16.msra.mxu0 0
        %2335 = vmatprep.subr.bf16.mxu0 0
        %2336 = vmatpush1.bf16.msra.mxu0 0
        %2337 = vmatprep.subr.bf16.mxu0 0
        %2338 = vmatpush1.bf16.msra.mxu0 0
        %2339 = vmatprep.subr.bf16.mxu0 0
        %2340 = vmatpush1.bf16.msra.mxu0 0
        %2341 = vmatprep.subr.bf16.mxu0 0
        %2342 = vmatpush1.bf16.msra.mxu0 0
        %2343 = vmatprep.subr.bf16.mxu0 0
        %2344 = vmatpush1.bf16.msra.mxu0 %v2327
        %2345 = vmatprep.subr.bf16.mxu0 0
        %2346 = vmatpush2.bf16.msra.mxu0 0
        %2347 = vmatprep.subr.bf16.mxu0 0
        %2348 = vmatpush2.bf16.msra.mxu0 0
        %2349 = vmatprep.subr.bf16.mxu0 0
        %2350 = vmatpush2.bf16.msra.mxu0 0
        %2351 = vmatprep.subr.bf16.mxu0 0
        %2352 = vmatpush2.bf16.msra.mxu0 0
        %2353 = vmatprep.subr.bf16.mxu0 0
        %2354 = vmatpush2.bf16.msra.mxu0 0
        %2355 = vmatprep.subr.bf16.mxu0 0
        %2356 = vmatpush2.bf16.msra.mxu0 0
        %2357 = vmatprep.subr.bf16.mxu0 0
        %2358 = vmatpush2.bf16.msra.mxu0 0
        %2359 = vmatprep.subr.bf16.mxu0 0
        %2360 = vmatpush2.bf16.msra.mxu0 0
        %2361 = vmatprep.mubr.bf16.mxu0 0
        %2362 = vmatmul.mubr.bf16.gmra.mxu0 %v2324
        %v2363 = vpop.f32.mrf.mxu0
        %v2364 = vadd.f32 0.0, %v2363
        %v2365 = vpop.f32.mrf.mxu0
        %v2366 = vpop.f32.mrf.mxu0
        %v2367 = vpop.f32.mrf.mxu0
        %2368 = vdwg.mxu0
        %v2370 = vsel %vm1787, %v2226, 0
        %v2373 = vsel %vm2041, %v2230, 0
        %2375 = vmatprep.subr.bf16.mxu0 0
        %2376 = vmatpush1.bf16.msra.mxu0 0
        %2377 = vmatprep.subr.bf16.mxu0 0
        %2378 = vmatpush1.bf16.msra.mxu0 0
        %2379 = vmatprep.subr.bf16.mxu0 0
        %2380 = vmatpush1.bf16.msra.mxu0 0
        %2381 = vmatprep.subr.bf16.mxu0 0
        %2382 = vmatpush1.bf16.msra.mxu0 0
        %2383 = vmatprep.subr.bf16.mxu0 0
        %2384 = vmatpush1.bf16.msra.mxu0 0
        %2385 = vmatprep.subr.bf16.mxu0 0
        %2386 = vmatpush1.bf16.msra.mxu0 0
        %2387 = vmatprep.subr.bf16.mxu0 0
        %2388 = vmatpush1.bf16.msra.mxu0 0
        %2389 = vmatprep.subr.bf16.mxu0 0
        %2390 = vmatpush1.bf16.msra.mxu0 %v2373
        %2391 = vmatprep.subr.bf16.mxu0 0
        %2392 = vmatpush2.bf16.msra.mxu0 0
        %2393 = vmatprep.subr.bf16.mxu0 0
        %2394 = vmatpush2.bf16.msra.mxu0 0
        %2395 = vmatprep.subr.bf16.mxu0 0
        %2396 = vmatpush2.bf16.msra.mxu0 0
        %2397 = vmatprep.subr.bf16.mxu0 0
        %2398 = vmatpush2.bf16.msra.mxu0 0
        %2399 = vmatprep.subr.bf16.mxu0 0
        %2400 = vmatpush2.bf16.msra.mxu0 0
        %2401 = vmatprep.subr.bf16.mxu0 0
        %2402 = vmatpush2.bf16.msra.mxu0 0
        %2403 = vmatprep.subr.bf16.mxu0 0
        %2404 = vmatpush2.bf16.msra.mxu0 0
        %2405 = vmatprep.subr.bf16.mxu0 0
        %2406 = vmatpush2.bf16.msra.mxu0 0
        %2407 = vmatprep.mubr.bf16.mxu0 0
        %2408 = vmatmul.mubr.bf16.gmra.mxu0 %v2370
        %v2409 = vpop.f32.mrf.mxu0
        %v2410 = vadd.f32 0.0, %v2409
        %v2411 = vpop.f32.mrf.mxu0
        %v2412 = vpop.f32.mrf.mxu0
        %v2413 = vpop.f32.mrf.mxu0
        %2414 = vdwg.mxu0
        %v2415 = vsel %vm1231, %v2272, 0.0
        %v2416 = vsel %vm1231, %v2318, 0.0
        %v2417 = vadd.f32 %v2415, %v2416
        %v2418 = vsel %vm1231, %v2364, 0.0
        %v2419 = vadd.f32 %v2417, %v2418
        %v2420 = vsel %vm1231, %v2410, 0.0
        %v2421 = vadd.f32 %v2419, %v2420
        %v2423 = vlaneseq
        %v2424 = vshrl.u32 %v2423, 7
        %v2425 = vsub.s32 0, %v2424
        %v2426 = vrot.slane %v1197, %v2425
        %v2428 = vadd.f32 %v2421, %v2426
        %v2429 = vadd.f32 %v2428, %v1132
        %v2430 = vld [vmem:[%s17] sm:$0x1]
        %v2431 = vld [vmem:[%s19] sm:$0x1]
        %v2432 = vsel %vm1231, %v2429, 0.0
        %2433 = vadd.xlane.f32.xlu0 %v2432
        %v2434 = vpop.xlane.xlu0 %2433
        %v2435 = vrcp.pop 32.0
        %v2436 = vmul.f32 %v2434, %v2435
        %v2437 = vsub.f32 %v2429, %v2436
        %v2438 = vmul.f32 %v2437, %v2437
        %v2439 = vsel %vm1231, %v2438, 0.0
        %2440 = vadd.xlane.f32.xlu0 %v2439
        %v2441 = vpop.xlane.xlu0 %2440
        %v2442 = vmul.f32 %v2441, %v2435
        %v2443 = vadd.f32 %v2442, 1e-05
        %v2444 = vrsqrt.pop %v2443
        %v2445 = vmul.f32 %v2437, %v2444
        %v2447 = vlaneseq
        %v2448 = vshrl.u32 %v2447, 7
        %v2449 = vsub.s32 0, %v2448
        %v2450 = vrot.slane %v2430, %v2449
        %v2452 = vmul.f32 %v2445, %v2450
        %v2454 = vlaneseq
        %v2455 = vshrl.u32 %v2454, 7
        %v2456 = vsub.s32 0, %v2455
        %v2457 = vrot.slane %v2431, %v2456
        %v2459 = vadd.f32 %v2452, %v2457
        %v2460 = vld [vmem:[%s21] sm:$0xff]
        %v2461 = vld [vmem:[%s21 + $0x8] sm:$0xff]
        %v2462 = vld [vmem:[%s21 + $0x10] sm:$0xff]
        %v2463 = vld [vmem:[%s21 + $0x18] sm:$0xff]
        %v2464 = vpack.c.bf16 %v2459, %v2459
        %v2465 = vpack.c.bf16 %v2461, %v2460
        %v2466 = vpack.c.bf16 %v2463, %v2462
        %v2467 = vld [vmem:[%s23] sm:$0x1]
        %v2469 = vlaneseq
        %v2470 = vshrl.u32 %v2469, 7
        %v2471 = vsub.s32 0, %v2470
        %v2472 = vrot.slane %v2467, %v2471
        %v2475 = vsel %vm1231, %v2464, 0
        %2477 = vmatprep.subr.bf16.mxu0 0
        %2478 = vmatpush1.bf16.msra.mxu0 0
        %2479 = vmatprep.subr.bf16.mxu0 0
        %2480 = vmatpush1.bf16.msra.mxu0 0
        %2481 = vmatprep.subr.bf16.mxu0 0
        %2482 = vmatpush1.bf16.msra.mxu0 0
        %2483 = vmatprep.subr.bf16.mxu0 0
        %2484 = vmatpush1.bf16.msra.mxu0 0
        %2485 = vmatprep.subr.bf16.mxu0 0
        %2486 = vmatpush1.bf16.msra.mxu0 0
        %2487 = vmatprep.subr.bf16.mxu0 0
        %2488 = vmatpush1.bf16.msra.mxu0 0
        %2489 = vmatprep.subr.bf16.mxu0 0
        %2490 = vmatpush1.bf16.msra.mxu0 %v2466
        %2491 = vmatprep.subr.bf16.mxu0 0
        %2492 = vmatpush1.bf16.msra.mxu0 %v2465
        %2493 = vmatprep.subr.bf16.mxu0 0
        %2494 = vmatpush2.bf16.msra.mxu0 0
        %2495 = vmatprep.subr.bf16.mxu0 0
        %2496 = vmatpush2.bf16.msra.mxu0 0
        %2497 = vmatprep.subr.bf16.mxu0 0
        %2498 = vmatpush2.bf16.msra.mxu0 0
        %2499 = vmatprep.subr.bf16.mxu0 0
        %2500 = vmatpush2.bf16.msra.mxu0 0
        %2501 = vmatprep.subr.bf16.mxu0 0
        %2502 = vmatpush2.bf16.msra.mxu0 0
        %2503 = vmatprep.subr.bf16.mxu0 0
        %2504 = vmatpush2.bf16.msra.mxu0 0
        %2505 = vmatprep.subr.bf16.mxu0 0
        %2506 = vmatpush2.bf16.msra.mxu0 0
        %2507 = vmatprep.subr.bf16.mxu0 0
        %2508 = vmatpush2.bf16.msra.mxu0 0
        %2509 = vmatprep.mubr.bf16.mxu0 0
        %2510 = vmatmul.mubr.bf16.gmra.mxu0 %v2475
        %v2511 = vpop.f32.mrf.mxu0
        %v2512 = vadd.f32 %v2472, %v2511
        %v2513 = vpop.f32.mrf.mxu0
        %v2514 = vpop.f32.mrf.mxu0
        %v2515 = vpop.f32.mrf.mxu0
        %2516 = vdwg.mxu0
        %v2517 = vmul.f32 %v2512, %v2512
        %v2518 = vmul.f32 %v2512, %v2517
        %v2519 = vmul.f32 %v2518, 0.044715
        %v2520 = vadd.f32 %v2512, %v2519
        %v2521 = vmul.f32 %v2520, 0.7978846
        %v2522 = vtanh.pop %v2521
        %v2523 = vadd.f32 %v2522, 1.0
        %v2524 = vmul.f32 %v2523, 0.5
        %v2525 = vmul.f32 %v2512, %v2524
        %v2526 = vld [vmem:[%s25] sm:$0xff]
        %v2527 = vld [vmem:[%s25 + $0x8] sm:$0xff]
        %v2528 = vld [vmem:[%s25 + $0x10] sm:$0xff]
        %v2529 = vld [vmem:[%s25 + $0x18] sm:$0xff]
        %v2530 = vld [vmem:[%s25 + $0x20] sm:$0xff]
        %v2531 = vld [vmem:[%s25 + $0x28] sm:$0xff]
        %v2532 = vld [vmem:[%s25 + $0x30] sm:$0xff]
        %v2533 = vld [vmem:[%s25 + $0x38] sm:$0xff]
        %v2534 = vpack.c.bf16 %v2525, %v2525
        %v2535 = vpack.c.bf16 %v2527, %v2526
        %v2536 = vpack.c.bf16 %v2529, %v2528
        %v2537 = vpack.c.bf16 %v2531, %v2530
        %v2538 = vpack.c.bf16 %v2533, %v2532
        %v2539 = vld [vmem:[%s27] sm:$0x1]
        %v2541 = vlaneseq
        %v2542 = vshrl.u32 %v2541, 7
        %v2543 = vsub.s32 0, %v2542
        %v2544 = vrot.slane %v2539, %v2543
        %vm2546 = vcmask 523264
        %v2548 = vsel %vm2546, %v2534, 0
        %2550 = vmatprep.subr.bf16.mxu0 0
        %2551 = vmatpush1.bf16.msra.mxu0 0
        %2552 = vmatprep.subr.bf16.mxu0 0
        %2553 = vmatpush1.bf16.msra.mxu0 0
        %2554 = vmatprep.subr.bf16.mxu0 0
        %2555 = vmatpush1.bf16.msra.mxu0 0
        %2556 = vmatprep.subr.bf16.mxu0 0
        %2557 = vmatpush1.bf16.msra.mxu0 0
        %2558 = vmatprep.subr.bf16.mxu0 0
        %2559 = vmatpush1.bf16.msra.mxu0 %v2538
        %2560 = vmatprep.subr.bf16.mxu0 0
        %2561 = vmatpush1.bf16.msra.mxu0 %v2537
        %2562 = vmatprep.subr.bf16.mxu0 0
        %2563 = vmatpush1.bf16.msra.mxu0 %v2536
        %2564 = vmatprep.subr.bf16.mxu0 0
        %2565 = vmatpush1.bf16.msra.mxu0 %v2535
        %2566 = vmatprep.subr.bf16.mxu0 0
        %2567 = vmatpush2.bf16.msra.mxu0 0
        %2568 = vmatprep.subr.bf16.mxu0 0
        %2569 = vmatpush2.bf16.msra.mxu0 0
        %2570 = vmatprep.subr.bf16.mxu0 0
        %2571 = vmatpush2.bf16.msra.mxu0 0
        %2572 = vmatprep.subr.bf16.mxu0 0
        %2573 = vmatpush2.bf16.msra.mxu0 0
        %2574 = vmatprep.subr.bf16.mxu0 0
        %2575 = vmatpush2.bf16.msra.mxu0 0
        %2576 = vmatprep.subr.bf16.mxu0 0
        %2577 = vmatpush2.bf16.msra.mxu0 0
        %2578 = vmatprep.subr.bf16.mxu0 0
        %2579 = vmatpush2.bf16.msra.mxu0 0
        %2580 = vmatprep.subr.bf16.mxu0 0
        %2581 = vmatpush2.bf16.msra.mxu0 0
        %2582 = vmatprep.mubr.bf16.mxu0 0
        %2583 = vmatmul.mubr.bf16.gmra.mxu0 %v2548
        %v2584 = vpop.f32.mrf.mxu0
        %v2585 = vadd.f32 %v2544, %v2584
        %v2586 = vpop.f32.mrf.mxu0
        %v2587 = vpop.f32.mrf.mxu0
        %v2588 = vpop.f32.mrf.mxu0
        %2589 = vdwg.mxu0
        %v2590 = vadd.f32 %v2585, %v2459
        %v2591 = vld [vmem:[%s29] sm:$0x1]
        %v2592 = vld [vmem:[%s31] sm:$0x1]
        %v2593 = vsel %vm1231, %v2590, 0.0
        %2594 = vadd.xlane.f32.xlu0 %v2593
        %v2595 = vpop.xlane.xlu0 %2594
        %v2596 = vmul.f32 %v2595, %v2435
        %v2597 = vsub.f32 %v2590, %v2596
        %v2598 = vmul.f32 %v2597, %v2597
        %v2599 = vsel %vm1231, %v2598, 0.0
        %2600 = vadd.xlane.f32.xlu0 %v2599
        %v2601 = vpop.xlane.xlu0 %2600
        %v2602 = vmul.f32 %v2601, %v2435
        %v2603 = vadd.f32 %v2602, 1e-05
        %v2604 = vrsqrt.pop %v2603
        %v2605 = vmul.f32 %v2597, %v2604
        %v2607 = vlaneseq
        %v2608 = vshrl.u32 %v2607, 7
        %v2609 = vsub.s32 0, %v2608
        %v2610 = vrot.slane %v2591, %v2609
        %v2612 = vmul.f32 %v2605, %v2610
        %v2614 = vlaneseq
        %v2615 = vshrl.u32 %v2614, 7
        %v2616 = vsub.s32 0, %v2615
        %v2617 = vrot.slane %v2592, %v2616
        %v2619 = vadd.f32 %v2612, %v2617
        %s2620 = scalar_lea.vmem %s9, 384
        %v2621 = vld [vmem:[%s2620] sm:$0xff]
        %v2622 = vld [vmem:[%s2620 + $0x8] sm:$0xff]
        %v2623 = vld [vmem:[%s2620 + $0x10] sm:$0xff]
        %v2624 = vld [vmem:[%s2620 + $0x18] sm:$0xff]
        %v2625 = vld [vmem:[%s2620 + $0x20] sm:$0xff]
        %v2626 = vld [vmem:[%s2620 + $0x28] sm:$0xff]
        %v2627 = vld [vmem:[%s2620 + $0x30] sm:$0xff]
        %v2628 = vld [vmem:[%s2620 + $0x38] sm:$0xff]
        %v2629 = vld [vmem:[%s2620 + $0x40] sm:$0xff]
        %v2630 = vld [vmem:[%s2620 + $0x48] sm:$0xff]
        %v2631 = vld [vmem:[%s2620 + $0x50] sm:$0xff]
        %v2632 = vld [vmem:[%s2620 + $0x58] sm:$0xff]
        %v2633 = vld [vmem:[%s2620 + $0x60] sm:$0xff]
        %v2634 = vld [vmem:[%s2620 + $0x68] sm:$0xff]
        %v2635 = vld [vmem:[%s2620 + $0x70] sm:$0xff]
        %v2636 = vld [vmem:[%s2620 + $0x78] sm:$0xff]
        %v2637 = vld [vmem:[%s2620 + $0x80] sm:$0xff]
        %v2638 = vld [vmem:[%s2620 + $0x88] sm:$0xff]
        %v2639 = vld [vmem:[%s2620 + $0x90] sm:$0xff]
        %v2640 = vld [vmem:[%s2620 + $0x98] sm:$0xff]
        %v2641 = vld [vmem:[%s2620 + $0xa0] sm:$0xff]
        %v2642 = vld [vmem:[%s2620 + $0xa8] sm:$0xff]
        %v2643 = vld [vmem:[%s2620 + $0xb0] sm:$0xff]
        %v2644 = vld [vmem:[%s2620 + $0xb8] sm:$0xff]
        %v2645 = vld [vmem:[%s2620 + $0xc0] sm:$0xff]
        %v2646 = vld [vmem:[%s2620 + $0xc8] sm:$0xff]
        %v2647 = vld [vmem:[%s2620 + $0xd0] sm:$0xff]
        %v2648 = vld [vmem:[%s2620 + $0xd8] sm:$0xff]
        %v2649 = vld [vmem:[%s2620 + $0xe0] sm:$0xff]
        %v2650 = vld [vmem:[%s2620 + $0xe8] sm:$0xff]
        %v2651 = vld [vmem:[%s2620 + $0xf0] sm:$0xff]
        %v2652 = vld [vmem:[%s2620 + $0xf8] sm:$0xff]
        %v2653 = vld [vmem:[%s2620 + $0x100] sm:$0xff]
        %v2654 = vld [vmem:[%s2620 + $0x108] sm:$0xff]
        %v2655 = vld [vmem:[%s2620 + $0x110] sm:$0xff]
        %v2656 = vld [vmem:[%s2620 + $0x118] sm:$0xff]
        %v2657 = vld [vmem:[%s2620 + $0x120] sm:$0xff]
        %v2658 = vld [vmem:[%s2620 + $0x128] sm:$0xff]
        %v2659 = vld [vmem:[%s2620 + $0x130] sm:$0xff]
        %v2660 = vld [vmem:[%s2620 + $0x138] sm:$0xff]
        %v2661 = vld [vmem:[%s2620 + $0x140] sm:$0xff]
        %v2662 = vld [vmem:[%s2620 + $0x148] sm:$0xff]
        %v2663 = vld [vmem:[%s2620 + $0x150] sm:$0xff]
        %v2664 = vld [vmem:[%s2620 + $0x158] sm:$0xff]
        %v2665 = vld [vmem:[%s2620 + $0x160] sm:$0xff]
        %v2666 = vld [vmem:[%s2620 + $0x168] sm:$0xff]
        %v2667 = vld [vmem:[%s2620 + $0x170] sm:$0xff]
        %v2668 = vld [vmem:[%s2620 + $0x178] sm:$0xff]
        %s2669 = scalar_lea.vmem %s11, 12
        %v2670 = vld [vmem:[%s2669] sm:$0x1]
        %v2671 = vld [vmem:[%s2669 + $0x1] sm:$0x1]
        %v2672 = vld [vmem:[%s2669 + $0x2] sm:$0x1]
        %v2673 = vld [vmem:[%s2669 + $0x3] sm:$0x1]
        %v2674 = vld [vmem:[%s2669 + $0x4] sm:$0x1]
        %v2675 = vld [vmem:[%s2669 + $0x5] sm:$0x1]
        %v2676 = vld [vmem:[%s2669 + $0x6] sm:$0x1]
        %v2677 = vld [vmem:[%s2669 + $0x7] sm:$0x1]
        %v2678 = vld [vmem:[%s2669 + $0x8] sm:$0x1]
        %v2679 = vld [vmem:[%s2669 + $0x9] sm:$0x1]
        %v2680 = vld [vmem:[%s2669 + $0xa] sm:$0x1]
        %v2681 = vld [vmem:[%s2669 + $0xb] sm:$0x1]
        %s2682 = scalar_lea.vmem %s13, 32
        %v2683 = vld [vmem:[%s2682] sm:$0xff]
        %v2684 = vld [vmem:[%s2682 + $0x8] sm:$0xff]
        %v2685 = vld [vmem:[%s2682 + $0x10] sm:$0xff]
        %v2686 = vld [vmem:[%s2682 + $0x18] sm:$0xff]
        %s2687 = scalar_lea.vmem %s15, 1
        %v2688 = vld [vmem:[%s2687] sm:$0x1]
        %v2689 = vpack.c.bf16 %v2619, %v2619
        %v2690 = vpack.c.bf16 %v2622, %v2621
        %v2691 = vpack.c.bf16 %v2624, %v2623
        %v2692 = vpack.c.bf16 %v2626, %v2625
        %v2693 = vpack.c.bf16 %v2628, %v2627
        %v2694 = vpack.c.bf16 %v2630, %v2629
        %v2695 = vpack.c.bf16 %v2632, %v2631
        %v2696 = vpack.c.bf16 %v2634, %v2633
        %v2697 = vpack.c.bf16 %v2636, %v2635
        %v2702 = vlaneseq
        %v2703 = vshrl.u32 %v2702, 7
        %v2704 = vsub.s32 0, %v2703
        %v2705 = vrot.slane %v2670, %v2704
        %v2706 = vlaneseq
        %v2707 = vshrl.u32 %v2706, 7
        %v2708 = vsub.s32 0, %v2707
        %v2709 = vrot.slane %v2671, %v2708
        %v2710 = vlaneseq
        %v2711 = vshrl.u32 %v2710, 7
        %v2712 = vsub.s32 0, %v2711
        %v2713 = vrot.slane %v2672, %v2712
        %v2714 = vlaneseq
        %v2715 = vshrl.u32 %v2714, 7
        %v2716 = vsub.s32 0, %v2715
        %v2717 = vrot.slane %v2673, %v2716
        %v2723 = vsel %vm1231, %v2689, 0
        %2725 = vmatprep.subr.bf16.mxu0 0
        %2726 = vmatpush1.bf16.msra.mxu0 0
        %2727 = vmatprep.subr.bf16.mxu0 0
        %2728 = vmatpush1.bf16.msra.mxu0 0
        %2729 = vmatprep.subr.bf16.mxu0 0
        %2730 = vmatpush1.bf16.msra.mxu0 0
        %2731 = vmatprep.subr.bf16.mxu0 0
        %2732 = vmatpush1.bf16.msra.mxu0 0
        %2733 = vmatprep.subr.bf16.mxu0 0
        %2734 = vmatpush1.bf16.msra.mxu0 0
        %2735 = vmatprep.subr.bf16.mxu0 0
        %2736 = vmatpush1.bf16.msra.mxu0 0
        %2737 = vmatprep.subr.bf16.mxu0 0
        %2738 = vmatpush1.bf16.msra.mxu0 %v2691
        %2739 = vmatprep.subr.bf16.mxu0 0
        %2740 = vmatpush1.bf16.msra.mxu0 %v2690
        %2741 = vmatprep.subr.bf16.mxu0 0
        %2742 = vmatpush2.bf16.msra.mxu0 0
        %2743 = vmatprep.subr.bf16.mxu0 0
        %2744 = vmatpush2.bf16.msra.mxu0 0
        %2745 = vmatprep.subr.bf16.mxu0 0
        %2746 = vmatpush2.bf16.msra.mxu0 0
        %2747 = vmatprep.subr.bf16.mxu0 0
        %2748 = vmatpush2.bf16.msra.mxu0 0
        %2749 = vmatprep.subr.bf16.mxu0 0
        %2750 = vmatpush2.bf16.msra.mxu0 0
        %2751 = vmatprep.subr.bf16.mxu0 0
        %2752 = vmatpush2.bf16.msra.mxu0 0
        %2753 = vmatprep.subr.bf16.mxu0 0
        %2754 = vmatpush2.bf16.msra.mxu0 0
        %2755 = vmatprep.subr.bf16.mxu0 0
        %2756 = vmatpush2.bf16.msra.mxu0 0
        %2757 = vmatprep.mubr.bf16.mxu0 0
        %2758 = vmatmul.mubr.bf16.gmra.mxu0 %v2723
        %v2759 = vpop.f32.mrf.mxu0
        %v2760 = vadd.f32 %v2705, %v2759
        %v2761 = vpop.f32.mrf.mxu0
        %v2762 = vpop.f32.mrf.mxu0
        %v2763 = vpop.f32.mrf.mxu0
        %2764 = vdwg.mxu0
        %2765 = vmatprep.subr.bf16.mxu0 0
        %2766 = vmatpush1.bf16.msra.mxu0 0
        %2767 = vmatprep.subr.bf16.mxu0 0
        %2768 = vmatpush1.bf16.msra.mxu0 0
        %2769 = vmatprep.subr.bf16.mxu0 0
        %2770 = vmatpush1.bf16.msra.mxu0 0
        %2771 = vmatprep.subr.bf16.mxu0 0
        %2772 = vmatpush1.bf16.msra.mxu0 0
        %2773 = vmatprep.subr.bf16.mxu0 0
        %2774 = vmatpush1.bf16.msra.mxu0 0
        %2775 = vmatprep.subr.bf16.mxu0 0
        %2776 = vmatpush1.bf16.msra.mxu0 0
        %2777 = vmatprep.subr.bf16.mxu0 0
        %2778 = vmatpush1.bf16.msra.mxu0 %v2693
        %2779 = vmatprep.subr.bf16.mxu0 0
        %2780 = vmatpush1.bf16.msra.mxu0 %v2692
        %2781 = vmatprep.subr.bf16.mxu0 0
        %2782 = vmatpush2.bf16.msra.mxu0 0
        %2783 = vmatprep.subr.bf16.mxu0 0
        %2784 = vmatpush2.bf16.msra.mxu0 0
        %2785 = vmatprep.subr.bf16.mxu0 0
        %2786 = vmatpush2.bf16.msra.mxu0 0
        %2787 = vmatprep.subr.bf16.mxu0 0
        %2788 = vmatpush2.bf16.msra.mxu0 0
        %2789 = vmatprep.subr.bf16.mxu0 0
        %2790 = vmatpush2.bf16.msra.mxu0 0
        %2791 = vmatprep.subr.bf16.mxu0 0
        %2792 = vmatpush2.bf16.msra.mxu0 0
        %2793 = vmatprep.subr.bf16.mxu0 0
        %2794 = vmatpush2.bf16.msra.mxu0 0
        %2795 = vmatprep.subr.bf16.mxu0 0
        %2796 = vmatpush2.bf16.msra.mxu0 0
        %2797 = vmatprep.mubr.bf16.mxu0 0
        %2798 = vmatmul.mubr.bf16.gmra.mxu0 %v2723
        %v2799 = vpop.f32.mrf.mxu0
        %v2800 = vadd.f32 %v2709, %v2799
        %v2801 = vpop.f32.mrf.mxu0
        %v2802 = vpop.f32.mrf.mxu0
        %v2803 = vpop.f32.mrf.mxu0
        %2804 = vdwg.mxu0
        %2805 = vmatprep.subr.bf16.mxu0 0
        %2806 = vmatpush1.bf16.msra.mxu0 0
        %2807 = vmatprep.subr.bf16.mxu0 0
        %2808 = vmatpush1.bf16.msra.mxu0 0
        %2809 = vmatprep.subr.bf16.mxu0 0
        %2810 = vmatpush1.bf16.msra.mxu0 0
        %2811 = vmatprep.subr.bf16.mxu0 0
        %2812 = vmatpush1.bf16.msra.mxu0 0
        %2813 = vmatprep.subr.bf16.mxu0 0
        %2814 = vmatpush1.bf16.msra.mxu0 0
        %2815 = vmatprep.subr.bf16.mxu0 0
        %2816 = vmatpush1.bf16.msra.mxu0 0
        %2817 = vmatprep.subr.bf16.mxu0 0
        %2818 = vmatpush1.bf16.msra.mxu0 %v2695
        %2819 = vmatprep.subr.bf16.mxu0 0
        %2820 = vmatpush1.bf16.msra.mxu0 %v2694
        %2821 = vmatprep.subr.bf16.mxu0 0
        %2822 = vmatpush2.bf16.msra.mxu0 0
        %2823 = vmatprep.subr.bf16.mxu0 0
        %2824 = vmatpush2.bf16.msra.mxu0 0
        %2825 = vmatprep.subr.bf16.mxu0 0
        %2826 = vmatpush2.bf16.msra.mxu0 0
        %2827 = vmatprep.subr.bf16.mxu0 0
        %2828 = vmatpush2.bf16.msra.mxu0 0
        %2829 = vmatprep.subr.bf16.mxu0 0
        %2830 = vmatpush2.bf16.msra.mxu0 0
        %2831 = vmatprep.subr.bf16.mxu0 0
        %2832 = vmatpush2.bf16.msra.mxu0 0
        %2833 = vmatprep.subr.bf16.mxu0 0
        %2834 = vmatpush2.bf16.msra.mxu0 0
        %2835 = vmatprep.subr.bf16.mxu0 0
        %2836 = vmatpush2.bf16.msra.mxu0 0
        %2837 = vmatprep.mubr.bf16.mxu0 0
        %2838 = vmatmul.mubr.bf16.gmra.mxu0 %v2723
        %v2839 = vpop.f32.mrf.mxu0
        %v2840 = vadd.f32 %v2713, %v2839
        %v2841 = vpop.f32.mrf.mxu0
        %v2842 = vpop.f32.mrf.mxu0
        %v2843 = vpop.f32.mrf.mxu0
        %2844 = vdwg.mxu0
        %2845 = vmatprep.subr.bf16.mxu0 0
        %2846 = vmatpush1.bf16.msra.mxu0 0
        %2847 = vmatprep.subr.bf16.mxu0 0
        %2848 = vmatpush1.bf16.msra.mxu0 0
        %2849 = vmatprep.subr.bf16.mxu0 0
        %2850 = vmatpush1.bf16.msra.mxu0 0
        %2851 = vmatprep.subr.bf16.mxu0 0
        %2852 = vmatpush1.bf16.msra.mxu0 0
        %2853 = vmatprep.subr.bf16.mxu0 0
        %2854 = vmatpush1.bf16.msra.mxu0 0
        %2855 = vmatprep.subr.bf16.mxu0 0
        %2856 = vmatpush1.bf16.msra.mxu0 0
        %2857 = vmatprep.subr.bf16.mxu0 0
        %2858 = vmatpush1.bf16.msra.mxu0 %v2697
        %2859 = vmatprep.subr.bf16.mxu0 0
        %2860 = vmatpush1.bf16.msra.mxu0 %v2696
        %2861 = vmatprep.subr.bf16.mxu0 0
        %2862 = vmatpush2.bf16.msra.mxu0 0
        %2863 = vmatprep.subr.bf16.mxu0 0
        %2864 = vmatpush2.bf16.msra.mxu0 0
        %2865 = vmatprep.subr.bf16.mxu0 0
        %2866 = vmatpush2.bf16.msra.mxu0 0
        %2867 = vmatprep.subr.bf16.mxu0 0
        %2868 = vmatpush2.bf16.msra.mxu0 0
        %2869 = vmatprep.subr.bf16.mxu0 0
        %2870 = vmatpush2.bf16.msra.mxu0 0
        %2871 = vmatprep.subr.bf16.mxu0 0
        %2872 = vmatpush2.bf16.msra.mxu0 0
        %2873 = vmatprep.subr.bf16.mxu0 0
        %2874 = vmatpush2.bf16.msra.mxu0 0
        %2875 = vmatprep.subr.bf16.mxu0 0
        %2876 = vmatpush2.bf16.msra.mxu0 0
        %2877 = vmatprep.mubr.bf16.mxu0 0
        %2878 = vmatmul.mubr.bf16.gmra.mxu0 %v2723
        %v2879 = vpop.f32.mrf.mxu0
        %v2880 = vadd.f32 %v2717, %v2879
        %v2881 = vpop.f32.mrf.mxu0
        %v2882 = vpop.f32.mrf.mxu0
        %v2883 = vpop.f32.mrf.mxu0
        %2884 = vdwg.mxu0
        %v2885 = vpack.c.bf16 %v2638, %v2637
        %v2886 = vpack.c.bf16 %v2640, %v2639
        %v2887 = vpack.c.bf16 %v2642, %v2641
        %v2888 = vpack.c.bf16 %v2644, %v2643
        %v2889 = vpack.c.bf16 %v2646, %v2645
        %v2890 = vpack.c.bf16 %v2648, %v2647
        %v2891 = vpack.c.bf16 %v2650, %v2649
        %v2892 = vpack.c.bf16 %v2652, %v2651
        %v2893 = vpack.c.bf16 %v2654, %v2653
        %v2894 = vpack.c.bf16 %v2656, %v2655
        %v2895 = vpack.c.bf16 %v2658, %v2657
        %v2896 = vpack.c.bf16 %v2660, %v2659
        %v2897 = vpack.c.bf16 %v2662, %v2661
        %v2898 = vpack.c.bf16 %v2664, %v2663
        %v2899 = vpack.c.bf16 %v2666, %v2665
        %v2900 = vpack.c.bf16 %v2668, %v2667
        %v2909 = vlaneseq
        %v2910 = vshrl.u32 %v2909, 7
        %v2911 = vsub.s32 0, %v2910
        %v2912 = vrot.slane %v2674, %v2911
        %v2913 = vlaneseq
        %v2914 = vshrl.u32 %v2913, 7
        %v2915 = vsub.s32 0, %v2914
        %v2916 = vrot.slane %v2675, %v2915
        %v2917 = vlaneseq
        %v2918 = vshrl.u32 %v2917, 7
        %v2919 = vsub.s32 0, %v2918
        %v2920 = vrot.slane %v2676, %v2919
        %v2921 = vlaneseq
        %v2922 = vshrl.u32 %v2921, 7
        %v2923 = vsub.s32 0, %v2922
        %v2924 = vrot.slane %v2677, %v2923
        %v2925 = vlaneseq
        %v2926 = vshrl.u32 %v2925, 7
        %v2927 = vsub.s32 0, %v2926
        %v2928 = vrot.slane %v2678, %v2927
        %v2929 = vlaneseq
        %v2930 = vshrl.u32 %v2929, 7
        %v2931 = vsub.s32 0, %v2930
        %v2932 = vrot.slane %v2679, %v2931
        %v2933 = vlaneseq
        %v2934 = vshrl.u32 %v2933, 7
        %v2935 = vsub.s32 0, %v2934
        %v2936 = vrot.slane %v2680, %v2935
        %v2937 = vlaneseq
        %v2938 = vshrl.u32 %v2937, 7
        %v2939 = vsub.s32 0, %v2938
        %v2940 = vrot.slane %v2681, %v2939
        %2949 = vmatprep.subr.bf16.mxu0 0
        %2950 = vmatpush1.bf16.msra.mxu0 0
        %2951 = vmatprep.subr.bf16.mxu0 0
        %2952 = vmatpush1.bf16.msra.mxu0 0
        %2953 = vmatprep.subr.bf16.mxu0 0
        %2954 = vmatpush1.bf16.msra.mxu0 0
        %2955 = vmatprep.subr.bf16.mxu0 0
        %2956 = vmatpush1.bf16.msra.mxu0 0
        %2957 = vmatprep.subr.bf16.mxu0 0
        %2958 = vmatpush1.bf16.msra.mxu0 0
        %2959 = vmatprep.subr.bf16.mxu0 0
        %2960 = vmatpush1.bf16.msra.mxu0 0
        %2961 = vmatprep.subr.bf16.mxu0 0
        %2962 = vmatpush1.bf16.msra.mxu0 %v2886
        %2963 = vmatprep.subr.bf16.mxu0 0
        %2964 = vmatpush1.bf16.msra.mxu0 %v2885
        %2965 = vmatprep.subr.bf16.mxu0 0
        %2966 = vmatpush2.bf16.msra.mxu0 0
        %2967 = vmatprep.subr.bf16.mxu0 0
        %2968 = vmatpush2.bf16.msra.mxu0 0
        %2969 = vmatprep.subr.bf16.mxu0 0
        %2970 = vmatpush2.bf16.msra.mxu0 0
        %2971 = vmatprep.subr.bf16.mxu0 0
        %2972 = vmatpush2.bf16.msra.mxu0 0
        %2973 = vmatprep.subr.bf16.mxu0 0
        %2974 = vmatpush2.bf16.msra.mxu0 0
        %2975 = vmatprep.subr.bf16.mxu0 0
        %2976 = vmatpush2.bf16.msra.mxu0 0
        %2977 = vmatprep.subr.bf16.mxu0 0
        %2978 = vmatpush2.bf16.msra.mxu0 0
        %2979 = vmatprep.subr.bf16.mxu0 0
        %2980 = vmatpush2.bf16.msra.mxu0 0
        %2981 = vmatprep.mubr.bf16.mxu0 0
        %2982 = vmatmul.mubr.bf16.gmra.mxu0 %v2723
        %v2983 = vpop.f32.mrf.mxu0
        %v2984 = vadd.f32 %v2912, %v2983
        %v2985 = vpop.f32.mrf.mxu0
        %v2986 = vpop.f32.mrf.mxu0
        %v2987 = vpop.f32.mrf.mxu0
        %2988 = vdwg.mxu0
        %2989 = vmatprep.subr.bf16.mxu0 0
        %2990 = vmatpush1.bf16.msra.mxu0 0
        %2991 = vmatprep.subr.bf16.mxu0 0
        %2992 = vmatpush1.bf16.msra.mxu0 0
        %2993 = vmatprep.subr.bf16.mxu0 0
        %2994 = vmatpush1.bf16.msra.mxu0 0
        %2995 = vmatprep.subr.bf16.mxu0 0
        %2996 = vmatpush1.bf16.msra.mxu0 0
        %2997 = vmatprep.subr.bf16.mxu0 0
        %2998 = vmatpush1.bf16.msra.mxu0 0
        %2999 = vmatprep.subr.bf16.mxu0 0
        %3000 = vmatpush1.bf16.msra.mxu0 0
        %3001 = vmatprep.subr.bf16.mxu0 0
        %3002 = vmatpush1.bf16.msra.mxu0 %v2888
        %3003 = vmatprep.subr.bf16.mxu0 0
        %3004 = vmatpush1.bf16.msra.mxu0 %v2887
        %3005 = vmatprep.subr.bf16.mxu0 0
        %3006 = vmatpush2.bf16.msra.mxu0 0
        %3007 = vmatprep.subr.bf16.mxu0 0
        %3008 = vmatpush2.bf16.msra.mxu0 0
        %3009 = vmatprep.subr.bf16.mxu0 0
        %3010 = vmatpush2.bf16.msra.mxu0 0
        %3011 = vmatprep.subr.bf16.mxu0 0
        %3012 = vmatpush2.bf16.msra.mxu0 0
        %3013 = vmatprep.subr.bf16.mxu0 0
        %3014 = vmatpush2.bf16.msra.mxu0 0
        %3015 = vmatprep.subr.bf16.mxu0 0
        %3016 = vmatpush2.bf16.msra.mxu0 0
        %3017 = vmatprep.subr.bf16.mxu0 0
        %3018 = vmatpush2.bf16.msra.mxu0 0
        %3019 = vmatprep.subr.bf16.mxu0 0
        %3020 = vmatpush2.bf16.msra.mxu0 0
        %3021 = vmatprep.mubr.bf16.mxu0 0
        %3022 = vmatmul.mubr.bf16.gmra.mxu0 %v2723
        %v3023 = vpop.f32.mrf.mxu0
        %v3024 = vadd.f32 %v2916, %v3023
        %v3025 = vpop.f32.mrf.mxu0
        %v3026 = vpop.f32.mrf.mxu0
        %v3027 = vpop.f32.mrf.mxu0
        %3028 = vdwg.mxu0
        %3029 = vmatprep.subr.bf16.mxu0 0
        %3030 = vmatpush1.bf16.msra.mxu0 0
        %3031 = vmatprep.subr.bf16.mxu0 0
        %3032 = vmatpush1.bf16.msra.mxu0 0
        %3033 = vmatprep.subr.bf16.mxu0 0
        %3034 = vmatpush1.bf16.msra.mxu0 0
        %3035 = vmatprep.subr.bf16.mxu0 0
        %3036 = vmatpush1.bf16.msra.mxu0 0
        %3037 = vmatprep.subr.bf16.mxu0 0
        %3038 = vmatpush1.bf16.msra.mxu0 0
        %3039 = vmatprep.subr.bf16.mxu0 0
        %3040 = vmatpush1.bf16.msra.mxu0 0
        %3041 = vmatprep.subr.bf16.mxu0 0
        %3042 = vmatpush1.bf16.msra.mxu0 %v2890
        %3043 = vmatprep.subr.bf16.mxu0 0
        %3044 = vmatpush1.bf16.msra.mxu0 %v2889
        %3045 = vmatprep.subr.bf16.mxu0 0
        %3046 = vmatpush2.bf16.msra.mxu0 0
        %3047 = vmatprep.subr.bf16.mxu0 0
        %3048 = vmatpush2.bf16.msra.mxu0 0
        %3049 = vmatprep.subr.bf16.mxu0 0
        %3050 = vmatpush2.bf16.msra.mxu0 0
        %3051 = vmatprep.subr.bf16.mxu0 0
        %3052 = vmatpush2.bf16.msra.mxu0 0
        %3053 = vmatprep.subr.bf16.mxu0 0
        %3054 = vmatpush2.bf16.msra.mxu0 0
        %3055 = vmatprep.subr.bf16.mxu0 0
        %3056 = vmatpush2.bf16.msra.mxu0 0
        %3057 = vmatprep.subr.bf16.mxu0 0
        %3058 = vmatpush2.bf16.msra.mxu0 0
        %3059 = vmatprep.subr.bf16.mxu0 0
        %3060 = vmatpush2.bf16.msra.mxu0 0
        %3061 = vmatprep.mubr.bf16.mxu0 0
        %3062 = vmatmul.mubr.bf16.gmra.mxu0 %v2723
        %v3063 = vpop.f32.mrf.mxu0
        %v3064 = vadd.f32 %v2920, %v3063
        %v3065 = vpop.f32.mrf.mxu0
        %v3066 = vpop.f32.mrf.mxu0
        %v3067 = vpop.f32.mrf.mxu0
        %3068 = vdwg.mxu0
        %3069 = vmatprep.subr.bf16.mxu0 0
        %3070 = vmatpush1.bf16.msra.mxu0 0
        %3071 = vmatprep.subr.bf16.mxu0 0
        %3072 = vmatpush1.bf16.msra.mxu0 0
        %3073 = vmatprep.subr.bf16.mxu0 0
        %3074 = vmatpush1.bf16.msra.mxu0 0
        %3075 = vmatprep.subr.bf16.mxu0 0
        %3076 = vmatpush1.bf16.msra.mxu0 0
        %3077 = vmatprep.subr.bf16.mxu0 0
        %3078 = vmatpush1.bf16.msra.mxu0 0
        %3079 = vmatprep.subr.bf16.mxu0 0
        %3080 = vmatpush1.bf16.msra.mxu0 0
        %3081 = vmatprep.subr.bf16.mxu0 0
        %3082 = vmatpush1.bf16.msra.mxu0 %v2892
        %3083 = vmatprep.subr.bf16.mxu0 0
        %3084 = vmatpush1.bf16.msra.mxu0 %v2891
        %3085 = vmatprep.subr.bf16.mxu0 0
        %3086 = vmatpush2.bf16.msra.mxu0 0
        %3087 = vmatprep.subr.bf16.mxu0 0
        %3088 = vmatpush2.bf16.msra.mxu0 0
        %3089 = vmatprep.subr.bf16.mxu0 0
        %3090 = vmatpush2.bf16.msra.mxu0 0
        %3091 = vmatprep.subr.bf16.mxu0 0
        %3092 = vmatpush2.bf16.msra.mxu0 0
        %3093 = vmatprep.subr.bf16.mxu0 0
        %3094 = vmatpush2.bf16.msra.mxu0 0
        %3095 = vmatprep.subr.bf16.mxu0 0
        %3096 = vmatpush2.bf16.msra.mxu0 0
        %3097 = vmatprep.subr.bf16.mxu0 0
        %3098 = vmatpush2.bf16.msra.mxu0 0
        %3099 = vmatprep.subr.bf16.mxu0 0
        %3100 = vmatpush2.bf16.msra.mxu0 0
        %3101 = vmatprep.mubr.bf16.mxu0 0
        %3102 = vmatmul.mubr.bf16.gmra.mxu0 %v2723
        %v3103 = vpop.f32.mrf.mxu0
        %v3104 = vadd.f32 %v2924, %v3103
        %v3105 = vpop.f32.mrf.mxu0
        %v3106 = vpop.f32.mrf.mxu0
        %v3107 = vpop.f32.mrf.mxu0
        %3108 = vdwg.mxu0
        %3109 = vmatprep.subr.bf16.mxu0 0
        %3110 = vmatpush1.bf16.msra.mxu0 0
        %3111 = vmatprep.subr.bf16.mxu0 0
        %3112 = vmatpush1.bf16.msra.mxu0 0
        %3113 = vmatprep.subr.bf16.mxu0 0
        %3114 = vmatpush1.bf16.msra.mxu0 0
        %3115 = vmatprep.subr.bf16.mxu0 0
        %3116 = vmatpush1.bf16.msra.mxu0 0
        %3117 = vmatprep.subr.bf16.mxu0 0
        %3118 = vmatpush1.bf16.msra.mxu0 0
        %3119 = vmatprep.subr.bf16.mxu0 0
        %3120 = vmatpush1.bf16.msra.mxu0 0
        %3121 = vmatprep.subr.bf16.mxu0 0
        %3122 = vmatpush1.bf16.msra.mxu0 %v2894
        %3123 = vmatprep.subr.bf16.mxu0 0
        %3124 = vmatpush1.bf16.msra.mxu0 %v2893
        %3125 = vmatprep.subr.bf16.mxu0 0
        %3126 = vmatpush2.bf16.msra.mxu0 0
        %3127 = vmatprep.subr.bf16.mxu0 0
        %3128 = vmatpush2.bf16.msra.mxu0 0
        %3129 = vmatprep.subr.bf16.mxu0 0
        %3130 = vmatpush2.bf16.msra.mxu0 0
        %3131 = vmatprep.subr.bf16.mxu0 0
        %3132 = vmatpush2.bf16.msra.mxu0 0
        %3133 = vmatprep.subr.bf16.mxu0 0
        %3134 = vmatpush2.bf16.msra.mxu0 0
        %3135 = vmatprep.subr.bf16.mxu0 0
        %3136 = vmatpush2.bf16.msra.mxu0 0
        %3137 = vmatprep.subr.bf16.mxu0 0
        %3138 = vmatpush2.bf16.msra.mxu0 0
        %3139 = vmatprep.subr.bf16.mxu0 0
        %3140 = vmatpush2.bf16.msra.mxu0 0
        %3141 = vmatprep.mubr.bf16.mxu0 0
        %3142 = vmatmul.mubr.bf16.gmra.mxu0 %v2723
        %v3143 = vpop.f32.mrf.mxu0
        %v3144 = vadd.f32 %v2928, %v3143
        %v3145 = vpop.f32.mrf.mxu0
        %v3146 = vpop.f32.mrf.mxu0
        %v3147 = vpop.f32.mrf.mxu0
        %3148 = vdwg.mxu0
        %3149 = vmatprep.subr.bf16.mxu0 0
        %3150 = vmatpush1.bf16.msra.mxu0 0
        %3151 = vmatprep.subr.bf16.mxu0 0
        %3152 = vmatpush1.bf16.msra.mxu0 0
        %3153 = vmatprep.subr.bf16.mxu0 0
        %3154 = vmatpush1.bf16.msra.mxu0 0
        %3155 = vmatprep.subr.bf16.mxu0 0
        %3156 = vmatpush1.bf16.msra.mxu0 0
        %3157 = vmatprep.subr.bf16.mxu0 0
        %3158 = vmatpush1.bf16.msra.mxu0 0
        %3159 = vmatprep.subr.bf16.mxu0 0
        %3160 = vmatpush1.bf16.msra.mxu0 0
        %3161 = vmatprep.subr.bf16.mxu0 0
        %3162 = vmatpush1.bf16.msra.mxu0 %v2896
        %3163 = vmatprep.subr.bf16.mxu0 0
        %3164 = vmatpush1.bf16.msra.mxu0 %v2895
        %3165 = vmatprep.subr.bf16.mxu0 0
        %3166 = vmatpush2.bf16.msra.mxu0 0
        %3167 = vmatprep.subr.bf16.mxu0 0
        %3168 = vmatpush2.bf16.msra.mxu0 0
        %3169 = vmatprep.subr.bf16.mxu0 0
        %3170 = vmatpush2.bf16.msra.mxu0 0
        %3171 = vmatprep.subr.bf16.mxu0 0
        %3172 = vmatpush2.bf16.msra.mxu0 0
        %3173 = vmatprep.subr.bf16.mxu0 0
        %3174 = vmatpush2.bf16.msra.mxu0 0
        %3175 = vmatprep.subr.bf16.mxu0 0
        %3176 = vmatpush2.bf16.msra.mxu0 0
        %3177 = vmatprep.subr.bf16.mxu0 0
        %3178 = vmatpush2.bf16.msra.mxu0 0
        %3179 = vmatprep.subr.bf16.mxu0 0
        %3180 = vmatpush2.bf16.msra.mxu0 0
        %3181 = vmatprep.mubr.bf16.mxu0 0
        %3182 = vmatmul.mubr.bf16.gmra.mxu0 %v2723
        %v3183 = vpop.f32.mrf.mxu0
        %v3184 = vadd.f32 %v2932, %v3183
        %v3185 = vpop.f32.mrf.mxu0
        %v3186 = vpop.f32.mrf.mxu0
        %v3187 = vpop.f32.mrf.mxu0
        %3188 = vdwg.mxu0
        %3189 = vmatprep.subr.bf16.mxu0 0
        %3190 = vmatpush1.bf16.msra.mxu0 0
        %3191 = vmatprep.subr.bf16.mxu0 0
        %3192 = vmatpush1.bf16.msra.mxu0 0
        %3193 = vmatprep.subr.bf16.mxu0 0
        %3194 = vmatpush1.bf16.msra.mxu0 0
        %3195 = vmatprep.subr.bf16.mxu0 0
        %3196 = vmatpush1.bf16.msra.mxu0 0
        %3197 = vmatprep.subr.bf16.mxu0 0
        %3198 = vmatpush1.bf16.msra.mxu0 0
        %3199 = vmatprep.subr.bf16.mxu0 0
        %3200 = vmatpush1.bf16.msra.mxu0 0
        %3201 = vmatprep.subr.bf16.mxu0 0
        %3202 = vmatpush1.bf16.msra.mxu0 %v2898
        %3203 = vmatprep.subr.bf16.mxu0 0
        %3204 = vmatpush1.bf16.msra.mxu0 %v2897
        %3205 = vmatprep.subr.bf16.mxu0 0
        %3206 = vmatpush2.bf16.msra.mxu0 0
        %3207 = vmatprep.subr.bf16.mxu0 0
        %3208 = vmatpush2.bf16.msra.mxu0 0
        %3209 = vmatprep.subr.bf16.mxu0 0
        %3210 = vmatpush2.bf16.msra.mxu0 0
        %3211 = vmatprep.subr.bf16.mxu0 0
        %3212 = vmatpush2.bf16.msra.mxu0 0
        %3213 = vmatprep.subr.bf16.mxu0 0
        %3214 = vmatpush2.bf16.msra.mxu0 0
        %3215 = vmatprep.subr.bf16.mxu0 0
        %3216 = vmatpush2.bf16.msra.mxu0 0
        %3217 = vmatprep.subr.bf16.mxu0 0
        %3218 = vmatpush2.bf16.msra.mxu0 0
        %3219 = vmatprep.subr.bf16.mxu0 0
        %3220 = vmatpush2.bf16.msra.mxu0 0
        %3221 = vmatprep.mubr.bf16.mxu0 0
        %3222 = vmatmul.mubr.bf16.gmra.mxu0 %v2723
        %v3223 = vpop.f32.mrf.mxu0
        %v3224 = vadd.f32 %v2936, %v3223
        %v3225 = vpop.f32.mrf.mxu0
        %v3226 = vpop.f32.mrf.mxu0
        %v3227 = vpop.f32.mrf.mxu0
        %3228 = vdwg.mxu0
        %3229 = vmatprep.subr.bf16.mxu0 0
        %3230 = vmatpush1.bf16.msra.mxu0 0
        %3231 = vmatprep.subr.bf16.mxu0 0
        %3232 = vmatpush1.bf16.msra.mxu0 0
        %3233 = vmatprep.subr.bf16.mxu0 0
        %3234 = vmatpush1.bf16.msra.mxu0 0
        %3235 = vmatprep.subr.bf16.mxu0 0
        %3236 = vmatpush1.bf16.msra.mxu0 0
        %3237 = vmatprep.subr.bf16.mxu0 0
        %3238 = vmatpush1.bf16.msra.mxu0 0
        %3239 = vmatprep.subr.bf16.mxu0 0
        %3240 = vmatpush1.bf16.msra.mxu0 0
        %3241 = vmatprep.subr.bf16.mxu0 0
        %3242 = vmatpush1.bf16.msra.mxu0 %v2900
        %3243 = vmatprep.subr.bf16.mxu0 0
        %3244 = vmatpush1.bf16.msra.mxu0 %v2899
        %3245 = vmatprep.subr.bf16.mxu0 0
        %3246 = vmatpush2.bf16.msra.mxu0 0
        %3247 = vmatprep.subr.bf16.mxu0 0
        %3248 = vmatpush2.bf16.msra.mxu0 0
        %3249 = vmatprep.subr.bf16.mxu0 0
        %3250 = vmatpush2.bf16.msra.mxu0 0
        %3251 = vmatprep.subr.bf16.mxu0 0
        %3252 = vmatpush2.bf16.msra.mxu0 0
        %3253 = vmatprep.subr.bf16.mxu0 0
        %3254 = vmatpush2.bf16.msra.mxu0 0
        %3255 = vmatprep.subr.bf16.mxu0 0
        %3256 = vmatpush2.bf16.msra.mxu0 0
        %3257 = vmatprep.subr.bf16.mxu0 0
        %3258 = vmatpush2.bf16.msra.mxu0 0
        %3259 = vmatprep.subr.bf16.mxu0 0
        %3260 = vmatpush2.bf16.msra.mxu0 0
        %3261 = vmatprep.mubr.bf16.mxu0 0
        %3262 = vmatmul.mubr.bf16.gmra.mxu0 %v2723
        %v3263 = vpop.f32.mrf.mxu0
        %v3264 = vadd.f32 %v2940, %v3263
        %v3265 = vpop.f32.mrf.mxu0
        %v3266 = vpop.f32.mrf.mxu0
        %v3267 = vpop.f32.mrf.mxu0
        %3268 = vdwg.mxu0
        %v3269 = vpack.c.bf16 %v2760, %v2760
        %v3270 = vpack.c.bf16 %v2800, %v2800
        %v3271 = vpack.c.bf16 %v2840, %v2840
        %v3272 = vpack.c.bf16 %v2880, %v2880
        %v3273 = vpack.c.bf16 %v2984, %v2984
        %v3274 = vpack.c.bf16 %v3024, %v3024
        %v3275 = vpack.c.bf16 %v3064, %v3064
        %v3276 = vpack.c.bf16 %v3104, %v3104
        %v3278 = vsel %vm1787, %v3269, 0
        %v3281 = vsel %vm1787, %v3273, 0
        %3283 = vmatprep.subr.bf16.mxu0 0
        %3284 = vmatpush1.bf16.xpose.msra.mxu0 0
        %3285 = vmatprep.subr.bf16.mxu0 0
        %3286 = vmatpush1.bf16.xpose.msra.mxu0 0
        %3287 = vmatprep.subr.bf16.mxu0 0
        %3288 = vmatpush1.bf16.xpose.msra.mxu0 0
        %3289 = vmatprep.subr.bf16.mxu0 0
        %3290 = vmatpush1.bf16.xpose.msra.mxu0 0
        %3291 = vmatprep.subr.bf16.mxu0 0
        %3292 = vmatpush1.bf16.xpose.msra.mxu0 0
        %3293 = vmatprep.subr.bf16.mxu0 0
        %3294 = vmatpush1.bf16.xpose.msra.mxu0 0
        %3295 = vmatprep.subr.bf16.mxu0 0
        %3296 = vmatpush1.bf16.xpose.msra.mxu0 0
        %3297 = vmatprep.subr.bf16.mxu0 0
        %3298 = vmatpush1.bf16.xpose.msra.mxu0 %v3281
        %3299 = vmatprep.subr.bf16.mxu0 0
        %3300 = vmatpush2.bf16.xpose.msra.mxu0 0
        %3301 = vmatprep.subr.bf16.mxu0 0
        %3302 = vmatpush2.bf16.xpose.msra.mxu0 0
        %3303 = vmatprep.subr.bf16.mxu0 0
        %3304 = vmatpush2.bf16.xpose.msra.mxu0 0
        %3305 = vmatprep.subr.bf16.mxu0 0
        %3306 = vmatpush2.bf16.xpose.msra.mxu0 0
        %3307 = vmatprep.subr.bf16.mxu0 0
        %3308 = vmatpush2.bf16.xpose.msra.mxu0 0
        %3309 = vmatprep.subr.bf16.mxu0 0
        %3310 = vmatpush2.bf16.xpose.msra.mxu0 0
        %3311 = vmatprep.subr.bf16.mxu0 0
        %3312 = vmatpush2.bf16.xpose.msra.mxu0 0
        %3313 = vmatprep.subr.bf16.mxu0 0
        %3314 = vmatpush2.bf16.xpose.msra.mxu0 0
        %3315 = vmatprep.mubr.bf16.mxu0 0
        %3316 = vmatmul.mubr.bf16.gmra.mxu0 %v3278
        %v3317 = vpop.f32.mrf.mxu0
        %v3318 = vadd.f32 0.0, %v3317
        %v3319 = vpop.f32.mrf.mxu0
        %v3320 = vpop.f32.mrf.mxu0
        %v3321 = vpop.f32.mrf.mxu0
        %3322 = vdwg.mxu0
        %v3324 = vsel %vm1787, %v3270, 0
        %v3327 = vsel %vm1787, %v3274, 0
        %3329 = vmatprep.subr.bf16.mxu0 0
        %3330 = vmatpush1.bf16.xpose.msra.mxu0 0
        %3331 = vmatprep.subr.bf16.mxu0 0
        %3332 = vmatpush1.bf16.xpose.msra.mxu0 0
        %3333 = vmatprep.subr.bf16.mxu0 0
        %3334 = vmatpush1.bf16.xpose.msra.mxu0 0
        %3335 = vmatprep.subr.bf16.mxu0 0
        %3336 = vmatpush1.bf16.xpose.msra.mxu0 0
        %3337 = vmatprep.subr.bf16.mxu0 0
        %3338 = vmatpush1.bf16.xpose.msra.mxu0 0
        %3339 = vmatprep.subr.bf16.mxu0 0
        %3340 = vmatpush1.bf16.xpose.msra.mxu0 0
        %3341 = vmatprep.subr.bf16.mxu0 0
        %3342 = vmatpush1.bf16.xpose.msra.mxu0 0
        %3343 = vmatprep.subr.bf16.mxu0 0
        %3344 = vmatpush1.bf16.xpose.msra.mxu0 %v3327
        %3345 = vmatprep.subr.bf16.mxu0 0
        %3346 = vmatpush2.bf16.xpose.msra.mxu0 0
        %3347 = vmatprep.subr.bf16.mxu0 0
        %3348 = vmatpush2.bf16.xpose.msra.mxu0 0
        %3349 = vmatprep.subr.bf16.mxu0 0
        %3350 = vmatpush2.bf16.xpose.msra.mxu0 0
        %3351 = vmatprep.subr.bf16.mxu0 0
        %3352 = vmatpush2.bf16.xpose.msra.mxu0 0
        %3353 = vmatprep.subr.bf16.mxu0 0
        %3354 = vmatpush2.bf16.xpose.msra.mxu0 0
        %3355 = vmatprep.subr.bf16.mxu0 0
        %3356 = vmatpush2.bf16.xpose.msra.mxu0 0
        %3357 = vmatprep.subr.bf16.mxu0 0
        %3358 = vmatpush2.bf16.xpose.msra.mxu0 0
        %3359 = vmatprep.subr.bf16.mxu0 0
        %3360 = vmatpush2.bf16.xpose.msra.mxu0 0
        %3361 = vmatprep.mubr.bf16.mxu0 0
        %3362 = vmatmul.mubr.bf16.gmra.mxu0 %v3324
        %v3363 = vpop.f32.mrf.mxu0
        %v3364 = vadd.f32 0.0, %v3363
        %v3365 = vpop.f32.mrf.mxu0
        %v3366 = vpop.f32.mrf.mxu0
        %v3367 = vpop.f32.mrf.mxu0
        %3368 = vdwg.mxu0
        %v3370 = vsel %vm1787, %v3271, 0
        %v3373 = vsel %vm1787, %v3275, 0
        %3375 = vmatprep.subr.bf16.mxu0 0
        %3376 = vmatpush1.bf16.xpose.msra.mxu0 0
        %3377 = vmatprep.subr.bf16.mxu0 0
        %3378 = vmatpush1.bf16.xpose.msra.mxu0 0
        %3379 = vmatprep.subr.bf16.mxu0 0
        %3380 = vmatpush1.bf16.xpose.msra.mxu0 0
        %3381 = vmatprep.subr.bf16.mxu0 0
        %3382 = vmatpush1.bf16.xpose.msra.mxu0 0
        %3383 = vmatprep.subr.bf16.mxu0 0
        %3384 = vmatpush1.bf16.xpose.msra.mxu0 0
        %3385 = vmatprep.subr.bf16.mxu0 0
        %3386 = vmatpush1.bf16.xpose.msra.mxu0 0
        %3387 = vmatprep.subr.bf16.mxu0 0
        %3388 = vmatpush1.bf16.xpose.msra.mxu0 0
        %3389 = vmatprep.subr.bf16.mxu0 0
        %3390 = vmatpush1.bf16.xpose.msra.mxu0 %v3373
        %3391 = vmatprep.subr.bf16.mxu0 0
        %3392 = vmatpush2.bf16.xpose.msra.mxu0 0
        %3393 = vmatprep.subr.bf16.mxu0 0
        %3394 = vmatpush2.bf16.xpose.msra.mxu0 0
        %3395 = vmatprep.subr.bf16.mxu0 0
        %3396 = vmatpush2.bf16.xpose.msra.mxu0 0
        %3397 = vmatprep.subr.bf16.mxu0 0
        %3398 = vmatpush2.bf16.xpose.msra.mxu0 0
        %3399 = vmatprep.subr.bf16.mxu0 0
        %3400 = vmatpush2.bf16.xpose.msra.mxu0 0
        %3401 = vmatprep.subr.bf16.mxu0 0
        %3402 = vmatpush2.bf16.xpose.msra.mxu0 0
        %3403 = vmatprep.subr.bf16.mxu0 0
        %3404 = vmatpush2.bf16.xpose.msra.mxu0 0
        %3405 = vmatprep.subr.bf16.mxu0 0
        %3406 = vmatpush2.bf16.xpose.msra.mxu0 0
        %3407 = vmatprep.mubr.bf16.mxu0 0
        %3408 = vmatmul.mubr.bf16.gmra.mxu0 %v3370
        %v3409 = vpop.f32.mrf.mxu0
        %v3410 = vadd.f32 0.0, %v3409
        %v3411 = vpop.f32.mrf.mxu0
        %v3412 = vpop.f32.mrf.mxu0
        %v3413 = vpop.f32.mrf.mxu0
        %3414 = vdwg.mxu0
        %v3416 = vsel %vm1787, %v3272, 0
        %v3419 = vsel %vm1787, %v3276, 0
        %3421 = vmatprep.subr.bf16.mxu0 0
        %3422 = vmatpush1.bf16.xpose.msra.mxu0 0
        %3423 = vmatprep.subr.bf16.mxu0 0
        %3424 = vmatpush1.bf16.xpose.msra.mxu0 0
        %3425 = vmatprep.subr.bf16.mxu0 0
        %3426 = vmatpush1.bf16.xpose.msra.mxu0 0
        %3427 = vmatprep.subr.bf16.mxu0 0
        %3428 = vmatpush1.bf16.xpose.msra.mxu0 0
        %3429 = vmatprep.subr.bf16.mxu0 0
        %3430 = vmatpush1.bf16.xpose.msra.mxu0 0
        %3431 = vmatprep.subr.bf16.mxu0 0
        %3432 = vmatpush1.bf16.xpose.msra.mxu0 0
        %3433 = vmatprep.subr.bf16.mxu0 0
        %3434 = vmatpush1.bf16.xpose.msra.mxu0 0
        %3435 = vmatprep.subr.bf16.mxu0 0
        %3436 = vmatpush1.bf16.xpose.msra.mxu0 %v3419
        %3437 = vmatprep.subr.bf16.mxu0 0
        %3438 = vmatpush2.bf16.xpose.msra.mxu0 0
        %3439 = vmatprep.subr.bf16.mxu0 0
        %3440 = vmatpush2.bf16.xpose.msra.mxu0 0
        %3441 = vmatprep.subr.bf16.mxu0 0
        %3442 = vmatpush2.bf16.xpose.msra.mxu0 0
        %3443 = vmatprep.subr.bf16.mxu0 0
        %3444 = vmatpush2.bf16.xpose.msra.mxu0 0
        %3445 = vmatprep.subr.bf16.mxu0 0
        %3446 = vmatpush2.bf16.xpose.msra.mxu0 0
        %3447 = vmatprep.subr.bf16.mxu0 0
        %3448 = vmatpush2.bf16.xpose.msra.mxu0 0
        %3449 = vmatprep.subr.bf16.mxu0 0
        %3450 = vmatpush2.bf16.xpose.msra.mxu0 0
        %3451 = vmatprep.subr.bf16.mxu0 0
        %3452 = vmatpush2.bf16.xpose.msra.mxu0 0
        %3453 = vmatprep.mubr.bf16.mxu0 0
        %3454 = vmatmul.mubr.bf16.gmra.mxu0 %v3416
        %v3455 = vpop.f32.mrf.mxu0
        %v3456 = vadd.f32 0.0, %v3455
        %v3457 = vpop.f32.mrf.mxu0
        %v3458 = vpop.f32.mrf.mxu0
        %v3459 = vpop.f32.mrf.mxu0
        %3460 = vdwg.mxu0
        %v3461 = vmul.f32 %v3318, 0.35355338
        %v3462 = vmul.f32 %v3364, 0.35355338
        %v3463 = vmul.f32 %v3410, 0.35355338
        %v3464 = vmul.f32 %v3456, 0.35355338
        %v3465 = vadd.f32 %v3461, %v1980
        %v3466 = vadd.f32 %v3462, %v1980
        %v3467 = vadd.f32 %v3463, %v1980
        %v3468 = vadd.f32 %v3464, %v1980
        %v3469 = vsel %vm1787, %v3465, -inf
        %3470 = vmax.xlane.f32.xlu0 %v3469
        %v3471 = vpop.xlane.xlu0 %3470
        %v3472 = vsel %vm1787, %v3466, -inf
        %3473 = vmax.xlane.f32.xlu0 %v3472
        %v3474 = vpop.xlane.xlu0 %3473
        %v3475 = vsel %vm1787, %v3467, -inf
        %3476 = vmax.xlane.f32.xlu0 %v3475
        %v3477 = vpop.xlane.xlu0 %3476
        %v3478 = vsel %vm1787, %v3468, -inf
        %3479 = vmax.xlane.f32.xlu0 %v3478
        %v3480 = vpop.xlane.xlu0 %3479
        %v3481 = vsub.f32 %v3465, %v3471
        %v3482 = vsub.f32 %v3466, %v3474
        %v3483 = vsub.f32 %v3467, %v3477
        %v3484 = vsub.f32 %v3468, %v3480
        %v3485 = vmul.f32 %v3481, 1.442695
        %v3486 = vpow.pop %v3485
        %v3487 = vmul.f32 %v3482, 1.442695
        %v3488 = vpow.pop %v3487
        %v3489 = vmul.f32 %v3483, 1.442695
        %v3490 = vpow.pop %v3489
        %v3491 = vmul.f32 %v3484, 1.442695
        %v3492 = vpow.pop %v3491
        %v3493 = vsel %vm1787, %v3486, 0.0
        %3494 = vadd.xlane.f32.xlu0 %v3493
        %v3495 = vpop.xlane.xlu0 %3494
        %v3496 = vsel %vm1787, %v3488, 0.0
        %3497 = vadd.xlane.f32.xlu0 %v3496
        %v3498 = vpop.xlane.xlu0 %3497
        %v3499 = vsel %vm1787, %v3490, 0.0
        %3500 = vadd.xlane.f32.xlu0 %v3499
        %v3501 = vpop.xlane.xlu0 %3500
        %v3502 = vsel %vm1787, %v3492, 0.0
        %3503 = vadd.xlane.f32.xlu0 %v3502
        %v3504 = vpop.xlane.xlu0 %3503
        %v3505 = vrcp.pop %v3495
        %v3506 = vrcp.pop %v3498
        %v3507 = vrcp.pop %v3501
        %v3508 = vrcp.pop %v3504
        %v3509 = vmul.f32 %v3486, %v3505
        %v3510 = vmul.f32 %v3488, %v3506
        %v3511 = vmul.f32 %v3490, %v3507
        %v3512 = vmul.f32 %v3492, %v3508
        %v3513 = vpack.c.bf16 %v3509, %v3509
        %v3514 = vpack.c.bf16 %v3510, %v3510
        %v3515 = vpack.c.bf16 %v3511, %v3511
        %v3516 = vpack.c.bf16 %v3512, %v3512
        %v3517 = vpack.c.bf16 %v3144, %v3144
        %v3518 = vpack.c.bf16 %v3184, %v3184
        %v3519 = vpack.c.bf16 %v3224, %v3224
        %v3520 = vpack.c.bf16 %v3264, %v3264
        %v3522 = vsel %vm1787, %v3513, 0
        %v3525 = vsel %vm2041, %v3517, 0
        %3527 = vmatprep.subr.bf16.mxu0 0
        %3528 = vmatpush1.bf16.msra.mxu0 0
        %3529 = vmatprep.subr.bf16.mxu0 0
        %3530 = vmatpush1.bf16.msra.mxu0 0
        %3531 = vmatprep.subr.bf16.mxu0 0
        %3532 = vmatpush1.bf16.msra.mxu0 0
        %3533 = vmatprep.subr.bf16.mxu0 0
        %3534 = vmatpush1.bf16.msra.mxu0 0
        %3535 = vmatprep.subr.bf16.mxu0 0
        %3536 = vmatpush1.bf16.msra.mxu0 0
        %3537 = vmatprep.subr.bf16.mxu0 0
        %3538 = vmatpush1.bf16.msra.mxu0 0
        %3539 = vmatprep.subr.bf16.mxu0 0
        %3540 = vmatpush1.bf16.msra.mxu0 0
        %3541 = vmatprep.subr.bf16.mxu0 0
        %3542 = vmatpush1.bf16.msra.mxu0 %v3525
        %3543 = vmatprep.subr.bf16.mxu0 0
        %3544 = vmatpush2.bf16.msra.mxu0 0
        %3545 = vmatprep.subr.bf16.mxu0 0
        %3546 = vmatpush2.bf16.msra.mxu0 0
        %3547 = vmatprep.subr.bf16.mxu0 0
        %3548 = vmatpush2.bf16.msra.mxu0 0
        %3549 = vmatprep.subr.bf16.mxu0 0
        %3550 = vmatpush2.bf16.msra.mxu0 0
        %3551 = vmatprep.subr.bf16.mxu0 0
        %3552 = vmatpush2.bf16.msra.mxu0 0
        %3553 = vmatprep.subr.bf16.mxu0 0
        %3554 = vmatpush2.bf16.msra.mxu0 0
        %3555 = vmatprep.subr.bf16.mxu0 0
        %3556 = vmatpush2.bf16.msra.mxu0 0
        %3557 = vmatprep.subr.bf16.mxu0 0
        %3558 = vmatpush2.bf16.msra.mxu0 0
        %3559 = vmatprep.mubr.bf16.mxu0 0
        %3560 = vmatmul.mubr.bf16.gmra.mxu0 %v3522
        %v3561 = vpop.f32.mrf.mxu0
        %v3562 = vadd.f32 0.0, %v3561
        %v3563 = vpop.f32.mrf.mxu0
        %v3564 = vpop.f32.mrf.mxu0
        %v3565 = vpop.f32.mrf.mxu0
        %3566 = vdwg.mxu0
        %v3568 = vsel %vm1787, %v3514, 0
        %v3571 = vsel %vm2041, %v3518, 0
        %3573 = vmatprep.subr.bf16.mxu0 0
        %3574 = vmatpush1.bf16.msra.mxu0 0
        %3575 = vmatprep.subr.bf16.mxu0 0
        %3576 = vmatpush1.bf16.msra.mxu0 0
        %3577 = vmatprep.subr.bf16.mxu0 0
        %3578 = vmatpush1.bf16.msra.mxu0 0
        %3579 = vmatprep.subr.bf16.mxu0 0
        %3580 = vmatpush1.bf16.msra.mxu0 0
        %3581 = vmatprep.subr.bf16.mxu0 0
        %3582 = vmatpush1.bf16.msra.mxu0 0
        %3583 = vmatprep.subr.bf16.mxu0 0
        %3584 = vmatpush1.bf16.msra.mxu0 0
        %3585 = vmatprep.subr.bf16.mxu0 0
        %3586 = vmatpush1.bf16.msra.mxu0 0
        %3587 = vmatprep.subr.bf16.mxu0 0
        %3588 = vmatpush1.bf16.msra.mxu0 %v3571
        %3589 = vmatprep.subr.bf16.mxu0 0
        %3590 = vmatpush2.bf16.msra.mxu0 0
        %3591 = vmatprep.subr.bf16.mxu0 0
        %3592 = vmatpush2.bf16.msra.mxu0 0
        %3593 = vmatprep.subr.bf16.mxu0 0
        %3594 = vmatpush2.bf16.msra.mxu0 0
        %3595 = vmatprep.subr.bf16.mxu0 0
        %3596 = vmatpush2.bf16.msra.mxu0 0
        %3597 = vmatprep.subr.bf16.mxu0 0
        %3598 = vmatpush2.bf16.msra.mxu0 0
        %3599 = vmatprep.subr.bf16.mxu0 0
        %3600 = vmatpush2.bf16.msra.mxu0 0
        %3601 = vmatprep.subr.bf16.mxu0 0
        %3602 = vmatpush2.bf16.msra.mxu0 0
        %3603 = vmatprep.subr.bf16.mxu0 0
        %3604 = vmatpush2.bf16.msra.mxu0 0
        %3605 = vmatprep.mubr.bf16.mxu0 0
        %3606 = vmatmul.mubr.bf16.gmra.mxu0 %v3568
        %v3607 = vpop.f32.mrf.mxu0
        %v3608 = vadd.f32 0.0, %v3607
        %v3609 = vpop.f32.mrf.mxu0
        %v3610 = vpop.f32.mrf.mxu0
        %v3611 = vpop.f32.mrf.mxu0
        %3612 = vdwg.mxu0
        %v3614 = vsel %vm1787, %v3515, 0
        %v3617 = vsel %vm2041, %v3519, 0
        %3619 = vmatprep.subr.bf16.mxu0 0
        %3620 = vmatpush1.bf16.msra.mxu0 0
        %3621 = vmatprep.subr.bf16.mxu0 0
        %3622 = vmatpush1.bf16.msra.mxu0 0
        %3623 = vmatprep.subr.bf16.mxu0 0
        %3624 = vmatpush1.bf16.msra.mxu0 0
        %3625 = vmatprep.subr.bf16.mxu0 0
        %3626 = vmatpush1.bf16.msra.mxu0 0
        %3627 = vmatprep.subr.bf16.mxu0 0
        %3628 = vmatpush1.bf16.msra.mxu0 0
        %3629 = vmatprep.subr.bf16.mxu0 0
        %3630 = vmatpush1.bf16.msra.mxu0 0
        %3631 = vmatprep.subr.bf16.mxu0 0
        %3632 = vmatpush1.bf16.msra.mxu0 0
        %3633 = vmatprep.subr.bf16.mxu0 0
        %3634 = vmatpush1.bf16.msra.mxu0 %v3617
        %3635 = vmatprep.subr.bf16.mxu0 0
        %3636 = vmatpush2.bf16.msra.mxu0 0
        %3637 = vmatprep.subr.bf16.mxu0 0
        %3638 = vmatpush2.bf16.msra.mxu0 0
        %3639 = vmatprep.subr.bf16.mxu0 0
        %3640 = vmatpush2.bf16.msra.mxu0 0
        %3641 = vmatprep.subr.bf16.mxu0 0
        %3642 = vmatpush2.bf16.msra.mxu0 0
        %3643 = vmatprep.subr.bf16.mxu0 0
        %3644 = vmatpush2.bf16.msra.mxu0 0
        %3645 = vmatprep.subr.bf16.mxu0 0
        %3646 = vmatpush2.bf16.msra.mxu0 0
        %3647 = vmatprep.subr.bf16.mxu0 0
        %3648 = vmatpush2.bf16.msra.mxu0 0
        %3649 = vmatprep.subr.bf16.mxu0 0
        %3650 = vmatpush2.bf16.msra.mxu0 0
        %3651 = vmatprep.mubr.bf16.mxu0 0
        %3652 = vmatmul.mubr.bf16.gmra.mxu0 %v3614
        %v3653 = vpop.f32.mrf.mxu0
        %v3654 = vadd.f32 0.0, %v3653
        %v3655 = vpop.f32.mrf.mxu0
        %v3656 = vpop.f32.mrf.mxu0
        %v3657 = vpop.f32.mrf.mxu0
        %3658 = vdwg.mxu0
        %v3660 = vsel %vm1787, %v3516, 0
        %v3663 = vsel %vm2041, %v3520, 0
        %3665 = vmatprep.subr.bf16.mxu0 0
        %3666 = vmatpush1.bf16.msra.mxu0 0
        %3667 = vmatprep.subr.bf16.mxu0 0
        %3668 = vmatpush1.bf16.msra.mxu0 0
        %3669 = vmatprep.subr.bf16.mxu0 0
        %3670 = vmatpush1.bf16.msra.mxu0 0
        %3671 = vmatprep.subr.bf16.mxu0 0
        %3672 = vmatpush1.bf16.msra.mxu0 0
        %3673 = vmatprep.subr.bf16.mxu0 0
        %3674 = vmatpush1.bf16.msra.mxu0 0
        %3675 = vmatprep.subr.bf16.mxu0 0
        %3676 = vmatpush1.bf16.msra.mxu0 0
        %3677 = vmatprep.subr.bf16.mxu0 0
        %3678 = vmatpush1.bf16.msra.mxu0 0
        %3679 = vmatprep.subr.bf16.mxu0 0
        %3680 = vmatpush1.bf16.msra.mxu0 %v3663
        %3681 = vmatprep.subr.bf16.mxu0 0
        %3682 = vmatpush2.bf16.msra.mxu0 0
        %3683 = vmatprep.subr.bf16.mxu0 0
        %3684 = vmatpush2.bf16.msra.mxu0 0
        %3685 = vmatprep.subr.bf16.mxu0 0
        %3686 = vmatpush2.bf16.msra.mxu0 0
        %3687 = vmatprep.subr.bf16.mxu0 0
        %3688 = vmatpush2.bf16.msra.mxu0 0
        %3689 = vmatprep.subr.bf16.mxu0 0
        %3690 = vmatpush2.bf16.msra.mxu0 0
        %3691 = vmatprep.subr.bf16.mxu0 0
        %3692 = vmatpush2.bf16.msra.mxu0 0
        %3693 = vmatprep.subr.bf16.mxu0 0
        %3694 = vmatpush2.bf16.msra.mxu0 0
        %3695 = vmatprep.subr.bf16.mxu0 0
        %3696 = vmatpush2.bf16.msra.mxu0 0
        %3697 = vmatprep.mubr.bf16.mxu0 0
        %3698 = vmatmul.mubr.bf16.gmra.mxu0 %v3660
        %v3699 = vpop.f32.mrf.mxu0
        %v3700 = vadd.f32 0.0, %v3699
        %v3701 = vpop.f32.mrf.mxu0
        %v3702 = vpop.f32.mrf.mxu0
        %v3703 = vpop.f32.mrf.mxu0
        %3704 = vdwg.mxu0
        %v3705 = vpack.c.bf16 %v3562, %v3562
        %v3706 = vpack.c.bf16 %v3608, %v3608
        %v3707 = vpack.c.bf16 %v3654, %v3654
        %v3708 = vpack.c.bf16 %v3700, %v3700
        %v3709 = vpack.c.bf16 %v2683, %v2683
        %v3710 = vpack.c.bf16 %v2684, %v2684
        %v3711 = vpack.c.bf16 %v2685, %v2685
        %v3712 = vpack.c.bf16 %v2686, %v2686
        %v3714 = vsel %vm1787, %v3705, 0
        %v3717 = vsel %vm2041, %v3709, 0
        %3719 = vmatprep.subr.bf16.mxu0 0
        %3720 = vmatpush1.bf16.msra.mxu0 0
        %3721 = vmatprep.subr.bf16.mxu0 0
        %3722 = vmatpush1.bf16.msra.mxu0 0
        %3723 = vmatprep.subr.bf16.mxu0 0
        %3724 = vmatpush1.bf16.msra.mxu0 0
        %3725 = vmatprep.subr.bf16.mxu0 0
        %3726 = vmatpush1.bf16.msra.mxu0 0
        %3727 = vmatprep.subr.bf16.mxu0 0
        %3728 = vmatpush1.bf16.msra.mxu0 0
        %3729 = vmatprep.subr.bf16.mxu0 0
        %3730 = vmatpush1.bf16.msra.mxu0 0
        %3731 = vmatprep.subr.bf16.mxu0 0
        %3732 = vmatpush1.bf16.msra.mxu0 0
        %3733 = vmatprep.subr.bf16.mxu0 0
        %3734 = vmatpush1.bf16.msra.mxu0 %v3717
        %3735 = vmatprep.subr.bf16.mxu0 0
        %3736 = vmatpush2.bf16.msra.mxu0 0
        %3737 = vmatprep.subr.bf16.mxu0 0
        %3738 = vmatpush2.bf16.msra.mxu0 0
        %3739 = vmatprep.subr.bf16.mxu0 0
        %3740 = vmatpush2.bf16.msra.mxu0 0
        %3741 = vmatprep.subr.bf16.mxu0 0
        %3742 = vmatpush2.bf16.msra.mxu0 0
        %3743 = vmatprep.subr.bf16.mxu0 0
        %3744 = vmatpush2.bf16.msra.mxu0 0
        %3745 = vmatprep.subr.bf16.mxu0 0
        %3746 = vmatpush2.bf16.msra.mxu0 0
        %3747 = vmatprep.subr.bf16.mxu0 0
        %3748 = vmatpush2.bf16.msra.mxu0 0
        %3749 = vmatprep.subr.bf16.mxu0 0
        %3750 = vmatpush2.bf16.msra.mxu0 0
        %3751 = vmatprep.mubr.bf16.mxu0 0
        %3752 = vmatmul.mubr.bf16.gmra.mxu0 %v3714
        %v3753 = vpop.f32.mrf.mxu0
        %v3754 = vadd.f32 0.0, %v3753
        %v3755 = vpop.f32.mrf.mxu0
        %v3756 = vpop.f32.mrf.mxu0
        %v3757 = vpop.f32.mrf.mxu0
        %3758 = vdwg.mxu0
        %v3760 = vsel %vm1787, %v3706, 0
        %v3763 = vsel %vm2041, %v3710, 0
        %3765 = vmatprep.subr.bf16.mxu0 0
        %3766 = vmatpush1.bf16.msra.mxu0 0
        %3767 = vmatprep.subr.bf16.mxu0 0
        %3768 = vmatpush1.bf16.msra.mxu0 0
        %3769 = vmatprep.subr.bf16.mxu0 0
        %3770 = vmatpush1.bf16.msra.mxu0 0
        %3771 = vmatprep.subr.bf16.mxu0 0
        %3772 = vmatpush1.bf16.msra.mxu0 0
        %3773 = vmatprep.subr.bf16.mxu0 0
        %3774 = vmatpush1.bf16.msra.mxu0 0
        %3775 = vmatprep.subr.bf16.mxu0 0
        %3776 = vmatpush1.bf16.msra.mxu0 0
        %3777 = vmatprep.subr.bf16.mxu0 0
        %3778 = vmatpush1.bf16.msra.mxu0 0
        %3779 = vmatprep.subr.bf16.mxu0 0
        %3780 = vmatpush1.bf16.msra.mxu0 %v3763
        %3781 = vmatprep.subr.bf16.mxu0 0
        %3782 = vmatpush2.bf16.msra.mxu0 0
        %3783 = vmatprep.subr.bf16.mxu0 0
        %3784 = vmatpush2.bf16.msra.mxu0 0
        %3785 = vmatprep.subr.bf16.mxu0 0
        %3786 = vmatpush2.bf16.msra.mxu0 0
        %3787 = vmatprep.subr.bf16.mxu0 0
        %3788 = vmatpush2.bf16.msra.mxu0 0
        %3789 = vmatprep.subr.bf16.mxu0 0
        %3790 = vmatpush2.bf16.msra.mxu0 0
        %3791 = vmatprep.subr.bf16.mxu0 0
        %3792 = vmatpush2.bf16.msra.mxu0 0
        %3793 = vmatprep.subr.bf16.mxu0 0
        %3794 = vmatpush2.bf16.msra.mxu0 0
        %3795 = vmatprep.subr.bf16.mxu0 0
        %3796 = vmatpush2.bf16.msra.mxu0 0
        %3797 = vmatprep.mubr.bf16.mxu0 0
        %3798 = vmatmul.mubr.bf16.gmra.mxu0 %v3760
        %v3799 = vpop.f32.mrf.mxu0
        %v3800 = vadd.f32 0.0, %v3799
        %v3801 = vpop.f32.mrf.mxu0
        %v3802 = vpop.f32.mrf.mxu0
        %v3803 = vpop.f32.mrf.mxu0
        %3804 = vdwg.mxu0
        %v3806 = vsel %vm1787, %v3707, 0
        %v3809 = vsel %vm2041, %v3711, 0
        %3811 = vmatprep.subr.bf16.mxu0 0
        %3812 = vmatpush1.bf16.msra.mxu0 0
        %3813 = vmatprep.subr.bf16.mxu0 0
        %3814 = vmatpush1.bf16.msra.mxu0 0
        %3815 = vmatprep.subr.bf16.mxu0 0
        %3816 = vmatpush1.bf16.msra.mxu0 0
        %3817 = vmatprep.subr.bf16.mxu0 0
        %3818 = vmatpush1.bf16.msra.mxu0 0
        %3819 = vmatprep.subr.bf16.mxu0 0
        %3820 = vmatpush1.bf16.msra.mxu0 0
        %3821 = vmatprep.subr.bf16.mxu0 0
        %3822 = vmatpush1.bf16.msra.mxu0 0
        %3823 = vmatprep.subr.bf16.mxu0 0
        %3824 = vmatpush1.bf16.msra.mxu0 0
        %3825 = vmatprep.subr.bf16.mxu0 0
        %3826 = vmatpush1.bf16.msra.mxu0 %v3809
        %3827 = vmatprep.subr.bf16.mxu0 0
        %3828 = vmatpush2.bf16.msra.mxu0 0
        %3829 = vmatprep.subr.bf16.mxu0 0
        %3830 = vmatpush2.bf16.msra.mxu0 0
        %3831 = vmatprep.subr.bf16.mxu0 0
        %3832 = vmatpush2.bf16.msra.mxu0 0
        %3833 = vmatprep.subr.bf16.mxu0 0
        %3834 = vmatpush2.bf16.msra.mxu0 0
        %3835 = vmatprep.subr.bf16.mxu0 0
        %3836 = vmatpush2.bf16.msra.mxu0 0
        %3837 = vmatprep.subr.bf16.mxu0 0
        %3838 = vmatpush2.bf16.msra.mxu0 0
        %3839 = vmatprep.subr.bf16.mxu0 0
        %3840 = vmatpush2.bf16.msra.mxu0 0
        %3841 = vmatprep.subr.bf16.mxu0 0
        %3842 = vmatpush2.bf16.msra.mxu0 0
        %3843 = vmatprep.mubr.bf16.mxu0 0
        %3844 = vmatmul.mubr.bf16.gmra.mxu0 %v3806
        %v3845 = vpop.f32.mrf.mxu0
        %v3846 = vadd.f32 0.0, %v3845
        %v3847 = vpop.f32.mrf.mxu0
        %v3848 = vpop.f32.mrf.mxu0
        %v3849 = vpop.f32.mrf.mxu0
        %3850 = vdwg.mxu0
        %v3852 = vsel %vm1787, %v3708, 0
        %v3855 = vsel %vm2041, %v3712, 0
        %3857 = vmatprep.subr.bf16.mxu0 0
        %3858 = vmatpush1.bf16.msra.mxu0 0
        %3859 = vmatprep.subr.bf16.mxu0 0
        %3860 = vmatpush1.bf16.msra.mxu0 0
        %3861 = vmatprep.subr.bf16.mxu0 0
        %3862 = vmatpush1.bf16.msra.mxu0 0
        %3863 = vmatprep.subr.bf16.mxu0 0
        %3864 = vmatpush1.bf16.msra.mxu0 0
        %3865 = vmatprep.subr.bf16.mxu0 0
        %3866 = vmatpush1.bf16.msra.mxu0 0
        %3867 = vmatprep.subr.bf16.mxu0 0
        %3868 = vmatpush1.bf16.msra.mxu0 0
        %3869 = vmatprep.subr.bf16.mxu0 0
        %3870 = vmatpush1.bf16.msra.mxu0 0
        %3871 = vmatprep.subr.bf16.mxu0 0
        %3872 = vmatpush1.bf16.msra.mxu0 %v3855
        %3873 = vmatprep.subr.bf16.mxu0 0
        %3874 = vmatpush2.bf16.msra.mxu0 0
        %3875 = vmatprep.subr.bf16.mxu0 0
        %3876 = vmatpush2.bf16.msra.mxu0 0
        %3877 = vmatprep.subr.bf16.mxu0 0
        %3878 = vmatpush2.bf16.msra.mxu0 0
        %3879 = vmatprep.subr.bf16.mxu0 0
        %3880 = vmatpush2.bf16.msra.mxu0 0
        %3881 = vmatprep.subr.bf16.mxu0 0
        %3882 = vmatpush2.bf16.msra.mxu0 0
        %3883 = vmatprep.subr.bf16.mxu0 0
        %3884 = vmatpush2.bf16.msra.mxu0 0
        %3885 = vmatprep.subr.bf16.mxu0 0
        %3886 = vmatpush2.bf16.msra.mxu0 0
        %3887 = vmatprep.subr.bf16.mxu0 0
        %3888 = vmatpush2.bf16.msra.mxu0 0
        %3889 = vmatprep.mubr.bf16.mxu0 0
        %3890 = vmatmul.mubr.bf16.gmra.mxu0 %v3852
        %v3891 = vpop.f32.mrf.mxu0
        %v3892 = vadd.f32 0.0, %v3891
        %v3893 = vpop.f32.mrf.mxu0
        %v3894 = vpop.f32.mrf.mxu0
        %v3895 = vpop.f32.mrf.mxu0
        %3896 = vdwg.mxu0
        %v3897 = vsel %vm1231, %v3754, 0.0
        %v3898 = vsel %vm1231, %v3800, 0.0
        %v3899 = vadd.f32 %v3897, %v3898
        %v3900 = vsel %vm1231, %v3846, 0.0
        %v3901 = vadd.f32 %v3899, %v3900
        %v3902 = vsel %vm1231, %v3892, 0.0
        %v3903 = vadd.f32 %v3901, %v3902
        %v3905 = vlaneseq
        %v3906 = vshrl.u32 %v3905, 7
        %v3907 = vsub.s32 0, %v3906
        %v3908 = vrot.slane %v2688, %v3907
        %v3910 = vadd.f32 %v3903, %v3908
        %v3911 = vadd.f32 %v3910, %v2619
        %s3912 = scalar_lea.vmem %s17, 1
        %v3913 = vld [vmem:[%s3912] sm:$0x1]
        %s3914 = scalar_lea.vmem %s19, 1
        %v3915 = vld [vmem:[%s3914] sm:$0x1]
        %v3916 = vsel %vm1231, %v3911, 0.0
        %3917 = vadd.xlane.f32.xlu0 %v3916
        %v3918 = vpop.xlane.xlu0 %3917
        %v3919 = vmul.f32 %v3918, %v2435
        %v3920 = vsub.f32 %v3911, %v3919
        %v3921 = vmul.f32 %v3920, %v3920
        %v3922 = vsel %vm1231, %v3921, 0.0
        %3923 = vadd.xlane.f32.xlu0 %v3922
        %v3924 = vpop.xlane.xlu0 %3923
        %v3925 = vmul.f32 %v3924, %v2435
        %v3926 = vadd.f32 %v3925, 1e-05
        %v3927 = vrsqrt.pop %v3926
        %v3928 = vmul.f32 %v3920, %v3927
        %v3930 = vlaneseq
        %v3931 = vshrl.u32 %v3930, 7
        %v3932 = vsub.s32 0, %v3931
        %v3933 = vrot.slane %v3913, %v3932
        %v3935 = vmul.f32 %v3928, %v3933
        %v3937 = vlaneseq
        %v3938 = vshrl.u32 %v3937, 7
        %v3939 = vsub.s32 0, %v3938
        %v3940 = vrot.slane %v3915, %v3939
        %v3942 = vadd.f32 %v3935, %v3940
        %s3943 = scalar_lea.vmem %s21, 32
        %v3944 = vld [vmem:[%s3943] sm:$0xff]
        %v3945 = vld [vmem:[%s3943 + $0x8] sm:$0xff]
        %v3946 = vld [vmem:[%s3943 + $0x10] sm:$0xff]
        %v3947 = vld [vmem:[%s3943 + $0x18] sm:$0xff]
        %v3948 = vpack.c.bf16 %v3942, %v3942
        %v3949 = vpack.c.bf16 %v3945, %v3944
        %v3950 = vpack.c.bf16 %v3947, %v3946
        %s3951 = scalar_lea.vmem %s23, 1
        %v3952 = vld [vmem:[%s3951] sm:$0x1]
        %v3954 = vlaneseq
        %v3955 = vshrl.u32 %v3954, 7
        %v3956 = vsub.s32 0, %v3955
        %v3957 = vrot.slane %v3952, %v3956
        %v3960 = vsel %vm1231, %v3948, 0
        %3962 = vmatprep.subr.bf16.mxu0 0
        %3963 = vmatpush1.bf16.msra.mxu0 0
        %3964 = vmatprep.subr.bf16.mxu0 0
        %3965 = vmatpush1.bf16.msra.mxu0 0
        %3966 = vmatprep.subr.bf16.mxu0 0
        %3967 = vmatpush1.bf16.msra.mxu0 0
        %3968 = vmatprep.subr.bf16.mxu0 0
        %3969 = vmatpush1.bf16.msra.mxu0 0
        %3970 = vmatprep.subr.bf16.mxu0 0
        %3971 = vmatpush1.bf16.msra.mxu0 0
        %3972 = vmatprep.subr.bf16.mxu0 0
        %3973 = vmatpush1.bf16.msra.mxu0 0
        %3974 = vmatprep.subr.bf16.mxu0 0
        %3975 = vmatpush1.bf16.msra.mxu0 %v3950
        %3976 = vmatprep.subr.bf16.mxu0 0
        %3977 = vmatpush1.bf16.msra.mxu0 %v3949
        %3978 = vmatprep.subr.bf16.mxu0 0
        %3979 = vmatpush2.bf16.msra.mxu0 0
        %3980 = vmatprep.subr.bf16.mxu0 0
        %3981 = vmatpush2.bf16.msra.mxu0 0
        %3982 = vmatprep.subr.bf16.mxu0 0
        %3983 = vmatpush2.bf16.msra.mxu0 0
        %3984 = vmatprep.subr.bf16.mxu0 0
        %3985 = vmatpush2.bf16.msra.mxu0 0
        %3986 = vmatprep.subr.bf16.mxu0 0
        %3987 = vmatpush2.bf16.msra.mxu0 0
        %3988 = vmatprep.subr.bf16.mxu0 0
        %3989 = vmatpush2.bf16.msra.mxu0 0
        %3990 = vmatprep.subr.bf16.mxu0 0
        %3991 = vmatpush2.bf16.msra.mxu0 0
        %3992 = vmatprep.subr.bf16.mxu0 0
        %3993 = vmatpush2.bf16.msra.mxu0 0
        %3994 = vmatprep.mubr.bf16.mxu0 0
        %3995 = vmatmul.mubr.bf16.gmra.mxu0 %v3960
        %v3996 = vpop.f32.mrf.mxu0
        %v3997 = vadd.f32 %v3957, %v3996
        %v3998 = vpop.f32.mrf.mxu0
        %v3999 = vpop.f32.mrf.mxu0
        %v4000 = vpop.f32.mrf.mxu0
        %4001 = vdwg.mxu0
        %v4002 = vmul.f32 %v3997, %v3997
        %v4003 = vmul.f32 %v3997, %v4002
        %v4004 = vmul.f32 %v4003, 0.044715
        %v4005 = vadd.f32 %v3997, %v4004
        %v4006 = vmul.f32 %v4005, 0.7978846
        %v4007 = vtanh.pop %v4006
        %v4008 = vadd.f32 %v4007, 1.0
        %v4009 = vmul.f32 %v4008, 0.5
        %v4010 = vmul.f32 %v3997, %v4009
        %s4011 = scalar_lea.vmem %s25, 64
        %v4012 = vld [vmem:[%s4011] sm:$0xff]
        %v4013 = vld [vmem:[%s4011 + $0x8] sm:$0xff]
        %v4014 = vld [vmem:[%s4011 + $0x10] sm:$0xff]
        %v4015 = vld [vmem:[%s4011 + $0x18] sm:$0xff]
        %v4016 = vld [vmem:[%s4011 + $0x20] sm:$0xff]
        %v4017 = vld [vmem:[%s4011 + $0x28] sm:$0xff]
        %v4018 = vld [vmem:[%s4011 + $0x30] sm:$0xff]
        %v4019 = vld [vmem:[%s4011 + $0x38] sm:$0xff]
        %v4020 = vpack.c.bf16 %v4010, %v4010
        %v4021 = vpack.c.bf16 %v4013, %v4012
        %v4022 = vpack.c.bf16 %v4015, %v4014
        %v4023 = vpack.c.bf16 %v4017, %v4016
        %v4024 = vpack.c.bf16 %v4019, %v4018
        %s4025 = scalar_lea.vmem %s27, 1
        %v4026 = vld [vmem:[%s4025] sm:$0x1]
        %v4028 = vlaneseq
        %v4029 = vshrl.u32 %v4028, 7
        %v4030 = vsub.s32 0, %v4029
        %v4031 = vrot.slane %v4026, %v4030
        %v4034 = vsel %vm2546, %v4020, 0
        %4036 = vmatprep.subr.bf16.mxu0 0
        %4037 = vmatpush1.bf16.msra.mxu0 0
        %4038 = vmatprep.subr.bf16.mxu0 0
        %4039 = vmatpush1.bf16.msra.mxu0 0
        %4040 = vmatprep.subr.bf16.mxu0 0
        %4041 = vmatpush1.bf16.msra.mxu0 0
        %4042 = vmatprep.subr.bf16.mxu0 0
        %4043 = vmatpush1.bf16.msra.mxu0 0
        %4044 = vmatprep.subr.bf16.mxu0 0
        %4045 = vmatpush1.bf16.msra.mxu0 %v4024
        %4046 = vmatprep.subr.bf16.mxu0 0
        %4047 = vmatpush1.bf16.msra.mxu0 %v4023
        %4048 = vmatprep.subr.bf16.mxu0 0
        %4049 = vmatpush1.bf16.msra.mxu0 %v4022
        %4050 = vmatprep.subr.bf16.mxu0 0
        %4051 = vmatpush1.bf16.msra.mxu0 %v4021
        %4052 = vmatprep.subr.bf16.mxu0 0
        %4053 = vmatpush2.bf16.msra.mxu0 0
        %4054 = vmatprep.subr.bf16.mxu0 0
        %4055 = vmatpush2.bf16.msra.mxu0 0
        %4056 = vmatprep.subr.bf16.mxu0 0
        %4057 = vmatpush2.bf16.msra.mxu0 0
        %4058 = vmatprep.subr.bf16.mxu0 0
        %4059 = vmatpush2.bf16.msra.mxu0 0
        %4060 = vmatprep.subr.bf16.mxu0 0
        %4061 = vmatpush2.bf16.msra.mxu0 0
        %4062 = vmatprep.subr.bf16.mxu0 0
        %4063 = vmatpush2.bf16.msra.mxu0 0
        %4064 = vmatprep.subr.bf16.mxu0 0
        %4065 = vmatpush2.bf16.msra.mxu0 0
        %4066 = vmatprep.subr.bf16.mxu0 0
        %4067 = vmatpush2.bf16.msra.mxu0 0
        %4068 = vmatprep.mubr.bf16.mxu0 0
        %4069 = vmatmul.mubr.bf16.gmra.mxu0 %v4034
        %v4070 = vpop.f32.mrf.mxu0
        %v4071 = vadd.f32 %v4031, %v4070
        %v4072 = vpop.f32.mrf.mxu0
        %v4073 = vpop.f32.mrf.mxu0
        %v4074 = vpop.f32.mrf.mxu0
        %4075 = vdwg.mxu0
        %v4076 = vadd.f32 %v4071, %v3942
        %s4077 = scalar_lea.vmem %s29, 1
        %v4078 = vld [vmem:[%s4077] sm:$0x1]
        %s4079 = scalar_lea.vmem %s31, 1
        %v4080 = vld [vmem:[%s4079] sm:$0x1]
        %v4081 = vsel %vm1231, %v4076, 0.0
        %4082 = vadd.xlane.f32.xlu0 %v4081
        %v4083 = vpop.xlane.xlu0 %4082
        %v4084 = vmul.f32 %v4083, %v2435
        %v4085 = vsub.f32 %v4076, %v4084
        %v4086 = vmul.f32 %v4085, %v4085
        %v4087 = vsel %vm1231, %v4086, 0.0
        %4088 = vadd.xlane.f32.xlu0 %v4087
        %v4089 = vpop.xlane.xlu0 %4088
        %v4090 = vmul.f32 %v4089, %v2435
        %v4091 = vadd.f32 %v4090, 1e-05
        %v4092 = vrsqrt.pop %v4091
        %v4093 = vmul.f32 %v4085, %v4092
        %v4095 = vlaneseq
        %v4096 = vshrl.u32 %v4095, 7
        %v4097 = vsub.s32 0, %v4096
        %v4098 = vrot.slane %v4078, %v4097
        %v4100 = vmul.f32 %v4093, %v4098
        %v4102 = vlaneseq
        %v4103 = vshrl.u32 %v4102, 7
        %v4104 = vsub.s32 0, %v4103
        %v4105 = vrot.slane %v4080, %v4104
        %v4107 = vadd.f32 %v4100, %v4105
        %v4108 = vld [vmem:[%s33] sm:$0xff]
        %v4109 = vld [vmem:[%s33 + $0x8] sm:$0xff]
        %v4110 = vld [vmem:[%s33 + $0x10] sm:$0xff]
        %v4111 = vld [vmem:[%s33 + $0x18] sm:$0xff]
        %v4112 = vpack.c.bf16 %v4107, %v4107
        %v4113 = vpack.c.bf16 %v4109, %v4108
        %v4114 = vpack.c.bf16 %v4111, %v4110
        %v4116 = vsel %vm1231, %v4112, 0
        %4118 = vmatprep.subr.bf16.mxu0 0
        %4119 = vmatpush1.bf16.msra.mxu0 0
        %4120 = vmatprep.subr.bf16.mxu0 0
        %4121 = vmatpush1.bf16.msra.mxu0 0
        %4122 = vmatprep.subr.bf16.mxu0 0
        %4123 = vmatpush1.bf16.msra.mxu0 0
        %4124 = vmatprep.subr.bf16.mxu0 0
        %4125 = vmatpush1.bf16.msra.mxu0 0
        %4126 = vmatprep.subr.bf16.mxu0 0
        %4127 = vmatpush1.bf16.msra.mxu0 0
        %4128 = vmatprep.subr.bf16.mxu0 0
        %4129 = vmatpush1.bf16.msra.mxu0 0
        %4130 = vmatprep.subr.bf16.mxu0 0
        %4131 = vmatpush1.bf16.msra.mxu0 %v4114
        %4132 = vmatprep.subr.bf16.mxu0 0
        %4133 = vmatpush1.bf16.msra.mxu0 %v4113
        %4134 = vmatprep.subr.bf16.mxu0 0
        %4135 = vmatpush2.bf16.msra.mxu0 0
        %4136 = vmatprep.subr.bf16.mxu0 0
        %4137 = vmatpush2.bf16.msra.mxu0 0
        %4138 = vmatprep.subr.bf16.mxu0 0
        %4139 = vmatpush2.bf16.msra.mxu0 0
        %4140 = vmatprep.subr.bf16.mxu0 0
        %4141 = vmatpush2.bf16.msra.mxu0 0
        %4142 = vmatprep.subr.bf16.mxu0 0
        %4143 = vmatpush2.bf16.msra.mxu0 0
        %4144 = vmatprep.subr.bf16.mxu0 0
        %4145 = vmatpush2.bf16.msra.mxu0 0
        %4146 = vmatprep.subr.bf16.mxu0 0
        %4147 = vmatpush2.bf16.msra.mxu0 0
        %4148 = vmatprep.subr.bf16.mxu0 0
        %4149 = vmatpush2.bf16.msra.mxu0 0
        %4150 = vmatprep.mubr.bf16.mxu0 0
        %4151 = vmatmul.mubr.bf16.gmra.mxu0 %v4116
        %v4152 = vpop.f32.mrf.mxu0
        %v4153 = vadd.f32 0.0, %v4152
        %v4154 = vpop.f32.mrf.mxu0
        %v4155 = vpop.f32.mrf.mxu0
        %v4156 = vpop.f32.mrf.mxu0
        %4157 = vdwg.mxu0
        %v4158 = vld [vmem:[%s35] sm:$0x1]
        %v4160 = vlaneseq
        %v4161 = vshrl.u32 %v4160, 7
        %v4162 = vsub.s32 0, %v4161
        %v4163 = vrot.slane %v4158, %v4162
        %v4165 = vmul.f32 %v4107, %v4163
        %v4166 = vsel %vm1231, %v4165, 0.0
        %4167 = vadd.xlane.f32.xlu0 %v4166
        %v4168 = vpop.xlane.xlu0 %4167
        %v4169 = vld [vmem:[%s37] sm:$0xff]
        %v4170 = vld [vmem:[%s37 + $0x8] sm:$0xff]
        %v4171 = vld [vmem:[%s37 + $0x10] sm:$0xff]
        %v4172 = vld [vmem:[%s37 + $0x18] sm:$0xff]
        %v4173 = vpack.c.bf16 %v4170, %v4169
        %v4174 = vpack.c.bf16 %v4172, %v4171
        %v4175 = vld [vmem:[%s39] sm:$0x1]
        %4176 = vmatprep.subr.bf16.mxu0 0
        %4177 = vmatpush1.bf16.msra.mxu0 0
        %4178 = vmatprep.subr.bf16.mxu0 0
        %4179 = vmatpush1.bf16.msra.mxu0 0
        %4180 = vmatprep.subr.bf16.mxu0 0
        %4181 = vmatpush1.bf16.msra.mxu0 0
        %4182 = vmatprep.subr.bf16.mxu0 0
        %4183 = vmatpush1.bf16.msra.mxu0 0
        %4184 = vmatprep.subr.bf16.mxu0 0
        %4185 = vmatpush1.bf16.msra.mxu0 0
        %4186 = vmatprep.subr.bf16.mxu0 0
        %4187 = vmatpush1.bf16.msra.mxu0 0
        %4188 = vmatprep.subr.bf16.mxu0 0
        %4189 = vmatpush1.bf16.msra.mxu0 %v4174
        %4190 = vmatprep.subr.bf16.mxu0 0
        %4191 = vmatpush1.bf16.msra.mxu0 %v4173
        %4192 = vmatprep.subr.bf16.mxu0 0
        %4193 = vmatpush2.bf16.msra.mxu0 0
        %4194 = vmatprep.subr.bf16.mxu0 0
        %4195 = vmatpush2.bf16.msra.mxu0 0
        %4196 = vmatprep.subr.bf16.mxu0 0
        %4197 = vmatpush2.bf16.msra.mxu0 0
        %4198 = vmatprep.subr.bf16.mxu0 0
        %4199 = vmatpush2.bf16.msra.mxu0 0
        %4200 = vmatprep.subr.bf16.mxu0 0
        %4201 = vmatpush2.bf16.msra.mxu0 0
        %4202 = vmatprep.subr.bf16.mxu0 0
        %4203 = vmatpush2.bf16.msra.mxu0 0
        %4204 = vmatprep.subr.bf16.mxu0 0
        %4205 = vmatpush2.bf16.msra.mxu0 0
        %4206 = vmatprep.subr.bf16.mxu0 0
        %4207 = vmatpush2.bf16.msra.mxu0 0
        %4208 = vmatprep.mubr.bf16.mxu0 0
        %4209 = vmatmul.mubr.bf16.gmra.mxu0 %v4116
        %v4210 = vpop.f32.mrf.mxu0
        %v4211 = vadd.f32 %v4175, %v4210
        %v4212 = vpop.f32.mrf.mxu0
        %v4213 = vpop.f32.mrf.mxu0
        %v4214 = vpop.f32.mrf.mxu0
        %4215 = vdwg.mxu0
        %v4216 = vld [vmem:[%s1024] sm:$0xff]
        %v4217 = vmul.f32 %v4216, %v4153
        %vm4218 = vcmask 130048
        %v4219 = vsel %vm4218, %v4217, 0.0
        %4220 = vadd.xlane.f32.xlu0 %v4219
        %v4221 = vpop.xlane.xlu0 %4220
        %v4222 = vadd.f32 %v4221, %v4168
        %s4223 = scalar_lea.vmem %s1024, 8 [#allocation3]
        %v4224 = vld [vmem:[%s4223] sm:$0xff]
        %v4225 = vmul.f32 %v4224, %v4153
        %v4226 = vsel %vm4218, %v4225, 0.0
        %4227 = vadd.xlane.f32.xlu0 %v4226
        %v4228 = vpop.xlane.xlu0 %4227
        %v4229 = vadd.f32 %v4228, %v4168
        %s4230 = scalar_lea.vmem %s1024, 16 [#allocation3]
        %v4231 = vld [vmem:[%s4230] sm:$0xff]
        %v4232 = vmul.f32 %v4231, %v4153
        %v4233 = vsel %vm4218, %v4232, 0.0
        %4234 = vadd.xlane.f32.xlu0 %v4233
        %v4235 = vpop.xlane.xlu0 %4234
        %v4236 = vadd.f32 %v4235, %v4168
        %v4237 = vlaneseq
        %v4238 = vshrl.u32 %v4237, 7
        %v4239 = vsub.s32 0, %v4238
        %v4240 = vrot.slane %v4211, %v4239
        %v4241 = vmul.f32 %v4240, %v4153
        %v4242 = vsel %vm4218, %v4241, 0.0
        %4243 = vadd.xlane.f32.xlu0 %v4242
        %v4244 = vpop.xlane.xlu0 %4243
        %v4245 = vadd.f32 %v4244, %v4168
        %v4246 = vld [vmem:[%s1031] sm:$0xff]
        %v4247 = vsub.f32 1.0, %v4246
        %v4248 = vmul.f32 %v4247, -10000.0
        %v4249 = vadd.f32 %v4222, %v4248
        %s4250 = scalar_lea.vmem %s1031, 8 [#allocation4]
        %v4251 = vld [vmem:[%s4250] sm:$0xff]
        %v4252 = vsub.f32 1.0, %v4251
        %v4253 = vmul.f32 %v4252, -10000.0
        %v4254 = vadd.f32 %v4229, %v4253
        %s4255 = scalar_lea.vmem %s1031, 16 [#allocation4]
        %v4256 = vld [vmem:[%s4255] sm:$0xff]
        %v4257 = vsub.f32 1.0, %v4256
        %v4258 = vmul.f32 %v4257, -10000.0
        %v4259 = vadd.f32 %v4236, %v4258
        %s4260 = scalar_lea.vmem %s1031, 24 [#allocation4]
        %v4261 = vld [vmem:[%s4260] sm:$0xff]
        %v4262 = vsub.f32 1.0, %v4261
        %v4263 = vmul.f32 %v4262, -10000.0
        %v4264 = vadd.f32 %v4245, %v4263
        %v4265 = vmax.f32 %v4249, %v4254
        %v4266 = vmax.f32 %v4265, %v4259
        %v4267 = vmax.f32 %v4266, %v4264
        %v4268 = vsub.f32 %v4249, %v4267
        %v4269 = vmul.f32 %v4268, 1.442695
        %v4270 = vpow.pop %v4269
        %v4271 = vsub.f32 %v4254, %v4267
        %v4272 = vmul.f32 %v4271, 1.442695
        %v4273 = vpow.pop %v4272
        %v4274 = vsub.f32 %v4259, %v4267
        %v4275 = vmul.f32 %v4274, 1.442695
        %v4276 = vpow.pop %v4275
        %v4277 = vsub.f32 %v4264, %v4267
        %v4278 = vmul.f32 %v4277, 1.442695
        %v4279 = vpow.pop %v4278
        %v4280 = vadd.f32 %v4270, %v4273
        %v4281 = vadd.f32 %v4280, %v4276
        %v4282 = vadd.f32 %v4281, %v4279
        %v4283 = vrcp.pop %v4282
        %v4284 = vmul.f32 %v4279, %v4283
        %v4285 = vmul.f32 %v4284, %v4261
        %4287 = vset.pattern.permute.xlu0 0
        %4288 = vperm.xlu0 %4287, %v4285
        %v4289 = vpop.permute.xlu0 %4288
        %v4291 = vmul.f32 %v4289, %v4240
        %v4292 = vmul.f32 %v4270, %v4283
        %v4293 = vmul.f32 %v4292, %v4246
        %4295 = vset.pattern.permute.xlu0 0
        %4296 = vperm.xlu0 %4295, %v4293
        %v4297 = vpop.permute.xlu0 %4296
        %v4299 = vmul.f32 %v4297, %v4216
        %v4300 = vadd.f32 %v4291, %v4299
        %v4301 = vmul.f32 %v4273, %v4283
        %v4302 = vmul.f32 %v4301, %v4251
        %4304 = vset.pattern.permute.xlu0 0
        %4305 = vperm.xlu0 %4304, %v4302
        %v4306 = vpop.permute.xlu0 %4305
        %v4308 = vmul.f32 %v4306, %v4224
        %v4309 = vadd.f32 %v4300, %v4308
        %v4310 = vmul.f32 %v4276, %v4283
        %v4311 = vmul.f32 %v4310, %v4256
        %4313 = vset.pattern.permute.xlu0 0
        %4314 = vperm.xlu0 %4313, %v4311
        %v4315 = vpop.permute.xlu0 %4314
        %v4317 = vmul.f32 %v4315, %v4231
        %v4318 = vadd.f32 %v4309, %v4317
        %v4319 = vld [vmem:[%s41] sm:$0x1]
        %s4320 = scalar_lea.vmem %s41, 1
        %v4321 = vld [vmem:[%s4320] sm:$0x1]
        %s4322 = scalar_lea.vmem %s41, 2
        %v4323 = vld [vmem:[%s4322] sm:$0x1]
        %v4324 = vld [vmem:[%s43] sm:$0x1]
        %s4325 = scalar_lea.vmem %s43, 1
        %v4326 = vld [vmem:[%s4325] sm:$0x1]
        %s4327 = scalar_lea.vmem %s43, 2
        %v4328 = vld [vmem:[%s4327] sm:$0x1]
        %v4330 = vlaneseq
        %v4331 = vshrl.u32 %v4330, 7
        %v4332 = vsub.s32 0, %v4331
        %v4333 = vrot.slane %v4319, %v4332
        %v4335 = vmul.f32 %v4107, %v4333
        %v4336 = vsel %vm1231, %v4335, 0.0
        %4337 = vadd.xlane.f32.xlu0 %v4336
        %v4338 = vpop.xlane.xlu0 %4337
        %v4340 = vlaneseq
        %v4341 = vshrl.u32 %v4340, 7
        %v4342 = vsub.s32 0, %v4341
        %v4343 = vrot.slane %v4324, %v4342
        %v4345 = vmul.f32 %v4318, %v4343
        %v4346 = vsel %vm4218, %v4345, 0.0
        %4347 = vadd.xlane.f32.xlu0 %v4346
        %v4348 = vpop.xlane.xlu0 %4347
        %v4349 = vadd.f32 %v4338, %v4348
        %v4351 = vlaneseq
        %v4352 = vshrl.u32 %v4351, 7
        %v4353 = vsub.s32 0, %v4352
        %v4354 = vrot.slane %v4321, %v4353
        %v4356 = vmul.f32 %v4107, %v4354
        %v4357 = vsel %vm1231, %v4356, 0.0
        %4358 = vadd.xlane.f32.xlu0 %v4357
        %v4359 = vpop.xlane.xlu0 %4358
        %v4361 = vlaneseq
        %v4362 = vshrl.u32 %v4361, 7
        %v4363 = vsub.s32 0, %v4362
        %v4364 = vrot.slane %v4326, %v4363
        %v4366 = vmul.f32 %v4318, %v4364
        %v4367 = vsel %vm4218, %v4366, 0.0
        %4368 = vadd.xlane.f32.xlu0 %v4367
        %v4369 = vpop.xlane.xlu0 %4368
        %v4370 = vadd.f32 %v4359, %v4369
        %v4372 = vlaneseq
        %v4373 = vshrl.u32 %v4372, 7
        %v4374 = vsub.s32 0, %v4373
        %v4375 = vrot.slane %v4323, %v4374
        %v4377 = vmul.f32 %v4107, %v4375
        %v4378 = vpack.c.bf16 %v4377, %v4377
        %v4380 = vlaneseq
        %v4381 = vshrl.u32 %v4380, 7
        %v4382 = vsub.s32 0, %v4381
        %v4383 = vrot.slane %v4328, %v4382
        %v4385 = vmul.f32 %v4318, %v4383
        %v4386 = vpack.c.bf16 %v4385, %v4385
        %v4387 = vpack.c.bf16 %v4318, %v4318
        %v4389 = vsel %vm4218, %v4386, 0
        %v4392 = vsel %vm4218, %v4387, 0
        %4394 = vmatprep.subr.bf16.mxu0 0
        %4395 = vmatpush1.bf16.xpose.msra.mxu0 0
        %4396 = vmatprep.subr.bf16.mxu0 0
        %4397 = vmatpush1.bf16.xpose.msra.mxu0 0
        %4398 = vmatprep.subr.bf16.mxu0 0
        %4399 = vmatpush1.bf16.xpose.msra.mxu0 0
        %4400 = vmatprep.subr.bf16.mxu0 0
        %4401 = vmatpush1.bf16.xpose.msra.mxu0 0
        %4402 = vmatprep.subr.bf16.mxu0 0
        %4403 = vmatpush1.bf16.xpose.msra.mxu0 0
        %4404 = vmatprep.subr.bf16.mxu0 0
        %4405 = vmatpush1.bf16.xpose.msra.mxu0 0
        %4406 = vmatprep.subr.bf16.mxu0 0
        %4407 = vmatpush1.bf16.xpose.msra.mxu0 0
        %4408 = vmatprep.subr.bf16.mxu0 0
        %4409 = vmatpush1.bf16.xpose.msra.mxu0 %v4392
        %4410 = vmatprep.subr.bf16.mxu0 0
        %4411 = vmatpush2.bf16.xpose.msra.mxu0 0
        %4412 = vmatprep.subr.bf16.mxu0 0
        %4413 = vmatpush2.bf16.xpose.msra.mxu0 0
        %4414 = vmatprep.subr.bf16.mxu0 0
        %4415 = vmatpush2.bf16.xpose.msra.mxu0 0
        %4416 = vmatprep.subr.bf16.mxu0 0
        %4417 = vmatpush2.bf16.xpose.msra.mxu0 0
        %4418 = vmatprep.subr.bf16.mxu0 0
        %4419 = vmatpush2.bf16.xpose.msra.mxu0 0
        %4420 = vmatprep.subr.bf16.mxu0 0
        %4421 = vmatpush2.bf16.xpose.msra.mxu0 0
        %4422 = vmatprep.subr.bf16.mxu0 0
        %4423 = vmatpush2.bf16.xpose.msra.mxu0 0
        %4424 = vmatprep.subr.bf16.mxu0 0
        %4425 = vmatpush2.bf16.xpose.msra.mxu0 0
        %4426 = vmatprep.mubr.bf16.mxu0 0
        %4427 = vmatmul.mubr.bf16.gmra.mxu0 %v4389
        %v4428 = vpop.f32.mrf.mxu0
        %v4429 = vadd.f32 0.0, %v4428
        %v4430 = vpop.f32.mrf.mxu0
        %v4431 = vpop.f32.mrf.mxu0
        %v4432 = vpop.f32.mrf.mxu0
        %4433 = vdwg.mxu0
        %v4435 = vsel %vm1231, %v4378, 0
        %4437 = vmatprep.subr.bf16.mxu0 0
        %4438 = vmatpush1.bf16.xpose.msra.mxu0 0
        %4439 = vmatprep.subr.bf16.mxu0 0
        %4440 = vmatpush1.bf16.xpose.msra.mxu0 0
        %4441 = vmatprep.subr.bf16.mxu0 0
        %4442 = vmatpush1.bf16.xpose.msra.mxu0 0
        %4443 = vmatprep.subr.bf16.mxu0 0
        %4444 = vmatpush1.bf16.xpose.msra.mxu0 0
        %4445 = vmatprep.subr.bf16.mxu0 0
        %4446 = vmatpush1.bf16.xpose.msra.mxu0 0
        %4447 = vmatprep.subr.bf16.mxu0 0
        %4448 = vmatpush1.bf16.xpose.msra.mxu0 0
        %4449 = vmatprep.subr.bf16.mxu0 0
        %4450 = vmatpush1.bf16.xpose.msra.mxu0 0
        %4451 = vmatprep.subr.bf16.mxu0 0
        %4452 = vmatpush1.bf16.xpose.msra.mxu0 %v4116
        %4453 = vmatprep.subr.bf16.mxu0 0
        %4454 = vmatpush2.bf16.xpose.msra.mxu0 0
        %4455 = vmatprep.subr.bf16.mxu0 0
        %4456 = vmatpush2.bf16.xpose.msra.mxu0 0
        %4457 = vmatprep.subr.bf16.mxu0 0
        %4458 = vmatpush2.bf16.xpose.msra.mxu0 0
        %4459 = vmatprep.subr.bf16.mxu0 0
        %4460 = vmatpush2.bf16.xpose.msra.mxu0 0
        %4461 = vmatprep.subr.bf16.mxu0 0
        %4462 = vmatpush2.bf16.xpose.msra.mxu0 0
        %4463 = vmatprep.subr.bf16.mxu0 0
        %4464 = vmatpush2.bf16.xpose.msra.mxu0 0
        %4465 = vmatprep.subr.bf16.mxu0 0
        %4466 = vmatpush2.bf16.xpose.msra.mxu0 0
        %4467 = vmatprep.subr.bf16.mxu0 0
        %4468 = vmatpush2.bf16.xpose.msra.mxu0 0
        %4469 = vmatprep.mubr.bf16.mxu0 0
        %4470 = vmatmul.mubr.bf16.gmra.mxu0 %v4435
        %v4471 = vpop.f32.mrf.mxu0
        %v4472 = vadd.f32 %v4429, %v4471
        %v4473 = vpop.f32.mrf.mxu0
        %v4474 = vpop.f32.mrf.mxu0
        %v4475 = vpop.f32.mrf.mxu0
        %4476 = vdwg.mxu0
        %v4477 = vadd.f32 %v4472, %v4349
        %4478 = vxpose.xlu0.b32.start [1/16] %v4370, 128
        %4479 = vxpose.xlu0.b32.cont [2/16] 0.0, 128
        %4480 = vxpose.xlu0.b32.cont [3/16] 0.0, 128
        %4481 = vxpose.xlu0.b32.cont [4/16] 0.0, 128
        %4482 = vxpose.xlu0.b32.cont [5/16] 0.0, 128
        %4483 = vxpose.xlu0.b32.cont [6/16] 0.0, 128
        %4484 = vxpose.xlu0.b32.cont [7/16] 0.0, 128
        %4485 = vxpose.xlu0.b32.cont [8/16] 0.0, 128
        %4486 = vxpose.xlu0.b32.cont [9/16] 0.0, 128
        %4487 = vxpose.xlu0.b32.cont [10/16] 0.0, 128
        %4488 = vxpose.xlu0.b32.cont [11/16] 0.0, 128
        %4489 = vxpose.xlu0.b32.cont [12/16] 0.0, 128
        %4490 = vxpose.xlu0.b32.cont [13/16] 0.0, 128
        %4491 = vxpose.xlu0.b32.cont [14/16] 0.0, 128
        %4492 = vxpose.xlu0.b32.cont [15/16] 0.0, 128
        %4493 = vxpose.xlu0.b32.end [16/16] 0.0, 128
        %v4494 = vpop.trf.xlu0
        %v4495 = vpop.trf.xlu0
        %v4496 = vpop.trf.xlu0
        %v4497 = vpop.trf.xlu0
        %v4498 = vpop.trf.xlu0
        %v4499 = vpop.trf.xlu0
        %v4500 = vpop.trf.xlu0
        %v4501 = vpop.trf.xlu0
        %v4502 = vpop.trf.xlu0
        %v4503 = vpop.trf.xlu0
        %v4504 = vpop.trf.xlu0
        %v4505 = vpop.trf.xlu0
        %v4506 = vpop.trf.xlu0
        %v4507 = vpop.trf.xlu0
        %v4508 = vpop.trf.xlu0
        %v4509 = vpop.trf.xlu0
        %v4510 = vlaneseq
        %v4511 = vshrl.u32 %v4510, 7
        %v4512 = vsub.s32 0, %v4511
        %v4513 = vrot.slane %v4494, %v4512
        %v4514 = vadd.f32 %v4477, %v4513
        %v4515 = vld [vmem:[#allocation2] sm:$0x1]
        %v4517 = vlaneseq
        %v4518 = vshrl.u32 %v4517, 7
        %v4519 = vsub.s32 0, %v4518
        %v4520 = vrot.slane %v4515, %v4519
        %4521 = vset.pattern.permute.xlu0 0
        %4522 = vperm.xlu0 %4521, %v4520
        %v4523 = vpop.permute.xlu0 %4522
        %v4525 = vadd.f32 %v4514, %v4523
        %v4526 = vadd.f32 %v4525, %v1980
        %v4527 = vsel %vm1787, %v4526, -inf
        %4528 = vmax.xlane.f32.xlu0 %v4527
        %v4529 = vpop.xlane.xlu0 %4528
        %v4530 = vsub.f32 %v4526, %v4529
        %v4531 = vmul.f32 %v4530, 1.442695
        %v4532 = vpow.pop %v4531
        %v4533 = vsel %vm1787, %v4532, 0.0
        %4534 = vadd.xlane.f32.xlu0 %v4533
        %v4535 = vpop.xlane.xlu0 %4534
        %v4536 = vrcp.pop %v4535
        %v4537 = vmul.f32 %v4532, %v4536
        %v4538 = vpack.c.bf16 %v4537, %v4537
        %v4540 = vsel %vm1787, %v4538, 0
        %v4542 = vsel %vm2041, %v4112, 0
        %4544 = vmatprep.subr.bf16.mxu0 0
        %4545 = vmatpush1.bf16.msra.mxu0 0
        %4546 = vmatprep.subr.bf16.mxu0 0
        %4547 = vmatpush1.bf16.msra.mxu0 0
        %4548 = vmatprep.subr.bf16.mxu0 0
        %4549 = vmatpush1.bf16.msra.mxu0 0
        %4550 = vmatprep.subr.bf16.mxu0 0
        %4551 = vmatpush1.bf16.msra.mxu0 0
        %4552 = vmatprep.subr.bf16.mxu0 0
        %4553 = vmatpush1.bf16.msra.mxu0 0
        %4554 = vmatprep.subr.bf16.mxu0 0
        %4555 = vmatpush1.bf16.msra.mxu0 0
        %4556 = vmatprep.subr.bf16.mxu0 0
        %4557 = vmatpush1.bf16.msra.mxu0 0
        %4558 = vmatprep.subr.bf16.mxu0 0
        %4559 = vmatpush1.bf16.msra.mxu0 %v4542
        %4560 = vmatprep.subr.bf16.mxu0 0
        %4561 = vmatpush2.bf16.msra.mxu0 0
        %4562 = vmatprep.subr.bf16.mxu0 0
        %4563 = vmatpush2.bf16.msra.mxu0 0
        %4564 = vmatprep.subr.bf16.mxu0 0
        %4565 = vmatpush2.bf16.msra.mxu0 0
        %4566 = vmatprep.subr.bf16.mxu0 0
        %4567 = vmatpush2.bf16.msra.mxu0 0
        %4568 = vmatprep.subr.bf16.mxu0 0
        %4569 = vmatpush2.bf16.msra.mxu0 0
        %4570 = vmatprep.subr.bf16.mxu0 0
        %4571 = vmatpush2.bf16.msra.mxu0 0
        %4572 = vmatprep.subr.bf16.mxu0 0
        %4573 = vmatpush2.bf16.msra.mxu0 0
        %4574 = vmatprep.subr.bf16.mxu0 0
        %4575 = vmatpush2.bf16.msra.mxu0 0
        %4576 = vmatprep.mubr.bf16.mxu0 0
        %4577 = vmatmul.mubr.bf16.gmra.mxu0 %v4540
        %v4578 = vpop.f32.mrf.mxu0
        %v4579 = vadd.f32 0.0, %v4578
        %v4580 = vpop.f32.mrf.mxu0
        %v4581 = vpop.f32.mrf.mxu0
        %v4582 = vpop.f32.mrf.mxu0
        %4583 = vdwg.mxu0
        %v4584 = vsel %vm2041, %v4387, 0
        %4586 = vmatprep.subr.bf16.mxu0 0
        %4587 = vmatpush1.bf16.msra.mxu0 0
        %4588 = vmatprep.subr.bf16.mxu0 0
        %4589 = vmatpush1.bf16.msra.mxu0 0
        %4590 = vmatprep.subr.bf16.mxu0 0
        %4591 = vmatpush1.bf16.msra.mxu0 0
        %4592 = vmatprep.subr.bf16.mxu0 0
        %4593 = vmatpush1.bf16.msra.mxu0 0
        %4594 = vmatprep.subr.bf16.mxu0 0
        %4595 = vmatpush1.bf16.msra.mxu0 0
        %4596 = vmatprep.subr.bf16.mxu0 0
        %4597 = vmatpush1.bf16.msra.mxu0 0
        %4598 = vmatprep.subr.bf16.mxu0 0
        %4599 = vmatpush1.bf16.msra.mxu0 0
        %4600 = vmatprep.subr.bf16.mxu0 0
        %4601 = vmatpush1.bf16.msra.mxu0 %v4584
        %4602 = vmatprep.subr.bf16.mxu0 0
        %4603 = vmatpush2.bf16.msra.mxu0 0
        %4604 = vmatprep.subr.bf16.mxu0 0
        %4605 = vmatpush2.bf16.msra.mxu0 0
        %4606 = vmatprep.subr.bf16.mxu0 0
        %4607 = vmatpush2.bf16.msra.mxu0 0
        %4608 = vmatprep.subr.bf16.mxu0 0
        %4609 = vmatpush2.bf16.msra.mxu0 0
        %4610 = vmatprep.subr.bf16.mxu0 0
        %4611 = vmatpush2.bf16.msra.mxu0 0
        %4612 = vmatprep.subr.bf16.mxu0 0
        %4613 = vmatpush2.bf16.msra.mxu0 0
        %4614 = vmatprep.subr.bf16.mxu0 0
        %4615 = vmatpush2.bf16.msra.mxu0 0
        %4616 = vmatprep.subr.bf16.mxu0 0
        %4617 = vmatpush2.bf16.msra.mxu0 0
        %4618 = vmatprep.mubr.bf16.mxu0 0
        %4619 = vmatmul.mubr.bf16.gmra.mxu0 %v4540
        %v4620 = vpop.f32.mrf.mxu0
        %v4621 = vadd.f32 0.0, %v4620
        %v4622 = vpop.f32.mrf.mxu0
        %v4623 = vpop.f32.mrf.mxu0
        %v4624 = vpop.f32.mrf.mxu0
        %4625 = vdwg.mxu0
        %v4626 = vsel %vm2041, %v4538, 0
        %4628 = vmatprep.subr.bf16.mxu0 0
        %4629 = vmatpush1.bf16.msra.mxu0 0
        %4630 = vmatprep.subr.bf16.mxu0 0
        %4631 = vmatpush1.bf16.msra.mxu0 0
        %4632 = vmatprep.subr.bf16.mxu0 0
        %4633 = vmatpush1.bf16.msra.mxu0 0
        %4634 = vmatprep.subr.bf16.mxu0 0
        %4635 = vmatpush1.bf16.msra.mxu0 0
        %4636 = vmatprep.subr.bf16.mxu0 0
        %4637 = vmatpush1.bf16.msra.mxu0 0
        %4638 = vmatprep.subr.bf16.mxu0 0
        %4639 = vmatpush1.bf16.msra.mxu0 0
        %4640 = vmatprep.subr.bf16.mxu0 0
        %4641 = vmatpush1.bf16.msra.mxu0 0
        %4642 = vmatprep.subr.bf16.mxu0 0
        %4643 = vmatpush1.bf16.msra.mxu0 %v4626
        %4644 = vmatprep.subr.bf16.mxu0 0
        %4645 = vmatpush2.bf16.msra.mxu0 0
        %4646 = vmatprep.subr.bf16.mxu0 0
        %4647 = vmatpush2.bf16.msra.mxu0 0
        %4648 = vmatprep.subr.bf16.mxu0 0
        %4649 = vmatpush2.bf16.msra.mxu0 0
        %4650 = vmatprep.subr.bf16.mxu0 0
        %4651 = vmatpush2.bf16.msra.mxu0 0
        %4652 = vmatprep.subr.bf16.mxu0 0
        %4653 = vmatpush2.bf16.msra.mxu0 0
        %4654 = vmatprep.subr.bf16.mxu0 0
        %4655 = vmatpush2.bf16.msra.mxu0 0
        %4656 = vmatprep.subr.bf16.mxu0 0
        %4657 = vmatpush2.bf16.msra.mxu0 0
        %4658 = vmatprep.subr.bf16.mxu0 0
        %4659 = vmatpush2.bf16.msra.mxu0 0
        %4660 = vmatprep.mubr.bf16.mxu0 0
        %4661 = vmatmul.mubr.bf16.gmra.mxu0 %v4540
        %v4662 = vpop.f32.mrf.mxu0
        %v4663 = vadd.f32 0.0, %v4662
        %v4664 = vpop.f32.mrf.mxu0
        %v4665 = vpop.f32.mrf.mxu0
        %v4666 = vpop.f32.mrf.mxu0
        %4667 = vdwg.mxu0
        %v4668 = vpack.c.bf16 %v4663, %v4663
        %v4670 = vsel %vm1787, %v4668, 0
        %4672 = vmatprep.subr.bf16.mxu0 0
        %4673 = vmatpush1.bf16.msra.mxu0 0
        %4674 = vmatprep.subr.bf16.mxu0 0
        %4675 = vmatpush1.bf16.msra.mxu0 0
        %4676 = vmatprep.subr.bf16.mxu0 0
        %4677 = vmatpush1.bf16.msra.mxu0 0
        %4678 = vmatprep.subr.bf16.mxu0 0
        %4679 = vmatpush1.bf16.msra.mxu0 0
        %4680 = vmatprep.subr.bf16.mxu0 0
        %4681 = vmatpush1.bf16.msra.mxu0 0
        %4682 = vmatprep.subr.bf16.mxu0 0
        %4683 = vmatpush1.bf16.msra.mxu0 0
        %4684 = vmatprep.subr.bf16.mxu0 0
        %4685 = vmatpush1.bf16.msra.mxu0 0
        %4686 = vmatprep.subr.bf16.mxu0 0
        %4687 = vmatpush1.bf16.msra.mxu0 %v4542
        %4688 = vmatprep.subr.bf16.mxu0 0
        %4689 = vmatpush2.bf16.msra.mxu0 0
        %4690 = vmatprep.subr.bf16.mxu0 0
        %4691 = vmatpush2.bf16.msra.mxu0 0
        %4692 = vmatprep.subr.bf16.mxu0 0
        %4693 = vmatpush2.bf16.msra.mxu0 0
        %4694 = vmatprep.subr.bf16.mxu0 0
        %4695 = vmatpush2.bf16.msra.mxu0 0
        %4696 = vmatprep.subr.bf16.mxu0 0
        %4697 = vmatpush2.bf16.msra.mxu0 0
        %4698 = vmatprep.subr.bf16.mxu0 0
        %4699 = vmatpush2.bf16.msra.mxu0 0
        %4700 = vmatprep.subr.bf16.mxu0 0
        %4701 = vmatpush2.bf16.msra.mxu0 0
        %4702 = vmatprep.subr.bf16.mxu0 0
        %4703 = vmatpush2.bf16.msra.mxu0 0
        %4704 = vmatprep.mubr.bf16.mxu0 0
        %4705 = vmatmul.mubr.bf16.gmra.mxu0 %v4670
        %v4706 = vpop.f32.mrf.mxu0
        %v4707 = vadd.f32 0.0, %v4706
        %v4708 = vpop.f32.mrf.mxu0
        %v4709 = vpop.f32.mrf.mxu0
        %v4710 = vpop.f32.mrf.mxu0
        %4711 = vdwg.mxu0
        %4712 = vmatprep.subr.bf16.mxu0 0
        %4713 = vmatpush1.bf16.msra.mxu0 0
        %4714 = vmatprep.subr.bf16.mxu0 0
        %4715 = vmatpush1.bf16.msra.mxu0 0
        %4716 = vmatprep.subr.bf16.mxu0 0
        %4717 = vmatpush1.bf16.msra.mxu0 0
        %4718 = vmatprep.subr.bf16.mxu0 0
        %4719 = vmatpush1.bf16.msra.mxu0 0
        %4720 = vmatprep.subr.bf16.mxu0 0
        %4721 = vmatpush1.bf16.msra.mxu0 0
        %4722 = vmatprep.subr.bf16.mxu0 0
        %4723 = vmatpush1.bf16.msra.mxu0 0
        %4724 = vmatprep.subr.bf16.mxu0 0
        %4725 = vmatpush1.bf16.msra.mxu0 0
        %4726 = vmatprep.subr.bf16.mxu0 0
        %4727 = vmatpush1.bf16.msra.mxu0 %v4584
        %4728 = vmatprep.subr.bf16.mxu0 0
        %4729 = vmatpush2.bf16.msra.mxu0 0
        %4730 = vmatprep.subr.bf16.mxu0 0
        %4731 = vmatpush2.bf16.msra.mxu0 0
        %4732 = vmatprep.subr.bf16.mxu0 0
        %4733 = vmatpush2.bf16.msra.mxu0 0
        %4734 = vmatprep.subr.bf16.mxu0 0
        %4735 = vmatpush2.bf16.msra.mxu0 0
        %4736 = vmatprep.subr.bf16.mxu0 0
        %4737 = vmatpush2.bf16.msra.mxu0 0
        %4738 = vmatprep.subr.bf16.mxu0 0
        %4739 = vmatpush2.bf16.msra.mxu0 0
        %4740 = vmatprep.subr.bf16.mxu0 0
        %4741 = vmatpush2.bf16.msra.mxu0 0
        %4742 = vmatprep.subr.bf16.mxu0 0
        %4743 = vmatpush2.bf16.msra.mxu0 0
        %4744 = vmatprep.mubr.bf16.mxu0 0
        %4745 = vmatmul.mubr.bf16.gmra.mxu0 %v4670
        %v4746 = vpop.f32.mrf.mxu0
        %v4747 = vadd.f32 0.0, %v4746
        %v4748 = vpop.f32.mrf.mxu0
        %v4749 = vpop.f32.mrf.mxu0
        %v4750 = vpop.f32.mrf.mxu0
        %4751 = vdwg.mxu0
        %v4752 = vmul.f32 %v4107, %v4579
        %v4753 = vmul.f32 %v4318, %v4621
        %v4754 = vld [vmem:[%s47] sm:$0xff]
        %v4755 = vld [vmem:[%s47 + $0x8] sm:$0xff]
        %v4756 = vld [vmem:[%s47 + $0x10] sm:$0xff]
        %v4757 = vld [vmem:[%s47 + $0x18] sm:$0xff]
        %v4758 = vpack.c.bf16 %v4755, %v4754
        %v4759 = vpack.c.bf16 %v4757, %v4756
        %s4760 = scalar_lea.vmem %s47, 32
        %v4761 = vld [vmem:[%s4760] sm:$0xff]
        %v4762 = vld [vmem:[%s4760 + $0x8] sm:$0xff]
        %v4763 = vld [vmem:[%s4760 + $0x10] sm:$0xff]
        %v4764 = vld [vmem:[%s4760 + $0x18] sm:$0xff]
        %v4765 = vpack.c.bf16 %v4579, %v4579
        %v4766 = vpack.c.bf16 %v4762, %v4761
        %v4767 = vpack.c.bf16 %v4764, %v4763
        %v4769 = vsel %vm1231, %v4765, 0
        %4771 = vmatprep.subr.bf16.mxu0 0
        %4772 = vmatpush1.bf16.msra.mxu0 0
        %4773 = vmatprep.subr.bf16.mxu0 0
        %4774 = vmatpush1.bf16.msra.mxu0 0
        %4775 = vmatprep.subr.bf16.mxu0 0
        %4776 = vmatpush1.bf16.msra.mxu0 0
        %4777 = vmatprep.subr.bf16.mxu0 0
        %4778 = vmatpush1.bf16.msra.mxu0 0
        %4779 = vmatprep.subr.bf16.mxu0 0
        %4780 = vmatpush1.bf16.msra.mxu0 0
        %4781 = vmatprep.subr.bf16.mxu0 0
        %4782 = vmatpush1.bf16.msra.mxu0 0
        %4783 = vmatprep.subr.bf16.mxu0 0
        %4784 = vmatpush1.bf16.msra.mxu0 %v4767
        %4785 = vmatprep.subr.bf16.mxu0 0
        %4786 = vmatpush1.bf16.msra.mxu0 %v4766
        %4787 = vmatprep.subr.bf16.mxu0 0
        %4788 = vmatpush2.bf16.msra.mxu0 0
        %4789 = vmatprep.subr.bf16.mxu0 0
        %4790 = vmatpush2.bf16.msra.mxu0 0
        %4791 = vmatprep.subr.bf16.mxu0 0
        %4792 = vmatpush2.bf16.msra.mxu0 0
        %4793 = vmatprep.subr.bf16.mxu0 0
        %4794 = vmatpush2.bf16.msra.mxu0 0
        %4795 = vmatprep.subr.bf16.mxu0 0
        %4796 = vmatpush2.bf16.msra.mxu0 0
        %4797 = vmatprep.subr.bf16.mxu0 0
        %4798 = vmatpush2.bf16.msra.mxu0 0
        %4799 = vmatprep.subr.bf16.mxu0 0
        %4800 = vmatpush2.bf16.msra.mxu0 0
        %4801 = vmatprep.subr.bf16.mxu0 0
        %4802 = vmatpush2.bf16.msra.mxu0 0
        %4803 = vmatprep.mubr.bf16.mxu0 0
        %4804 = vmatmul.mubr.bf16.gmra.mxu0 %v4769
        %v4805 = vpop.f32.mrf.mxu0
        %v4806 = vadd.f32 0.0, %v4805
        %v4807 = vpop.f32.mrf.mxu0
        %v4808 = vpop.f32.mrf.mxu0
        %v4809 = vpop.f32.mrf.mxu0
        %4810 = vdwg.mxu0
        %4811 = vmatprep.subr.bf16.mxu0 0
        %4812 = vmatpush1.bf16.msra.mxu0 0
        %4813 = vmatprep.subr.bf16.mxu0 0
        %4814 = vmatpush1.bf16.msra.mxu0 0
        %4815 = vmatprep.subr.bf16.mxu0 0
        %4816 = vmatpush1.bf16.msra.mxu0 0
        %4817 = vmatprep.subr.bf16.mxu0 0
        %4818 = vmatpush1.bf16.msra.mxu0 0
        %4819 = vmatprep.subr.bf16.mxu0 0
        %4820 = vmatpush1.bf16.msra.mxu0 0
        %4821 = vmatprep.subr.bf16.mxu0 0
        %4822 = vmatpush1.bf16.msra.mxu0 0
        %4823 = vmatprep.subr.bf16.mxu0 0
        %4824 = vmatpush1.bf16.msra.mxu0 %v4759
        %4825 = vmatprep.subr.bf16.mxu0 0
        %4826 = vmatpush1.bf16.msra.mxu0 %v4758
        %4827 = vmatprep.subr.bf16.mxu0 0
        %4828 = vmatpush2.bf16.msra.mxu0 0
        %4829 = vmatprep.subr.bf16.mxu0 0
        %4830 = vmatpush2.bf16.msra.mxu0 0
        %4831 = vmatprep.subr.bf16.mxu0 0
        %4832 = vmatpush2.bf16.msra.mxu0 0
        %4833 = vmatprep.subr.bf16.mxu0 0
        %4834 = vmatpush2.bf16.msra.mxu0 0
        %4835 = vmatprep.subr.bf16.mxu0 0
        %4836 = vmatpush2.bf16.msra.mxu0 0
        %4837 = vmatprep.subr.bf16.mxu0 0
        %4838 = vmatpush2.bf16.msra.mxu0 0
        %4839 = vmatprep.subr.bf16.mxu0 0
        %4840 = vmatpush2.bf16.msra.mxu0 0
        %4841 = vmatprep.subr.bf16.mxu0 0
        %4842 = vmatpush2.bf16.msra.mxu0 0
        %4843 = vmatprep.mubr.bf16.mxu0 0
        %4844 = vmatmul.mubr.bf16.gmra.mxu0 %v4116
        %v4845 = vpop.f32.mrf.mxu0
        %v4846 = vadd.f32 %v4806, %v4845
        %v4847 = vpop.f32.mrf.mxu0
        %v4848 = vpop.f32.mrf.mxu0
        %v4849 = vpop.f32.mrf.mxu0
        %4850 = vdwg.mxu0
        %s4851 = scalar_lea.vmem %s47, 64
        %v4852 = vld [vmem:[%s4851] sm:$0xff]
        %v4853 = vld [vmem:[%s4851 + $0x8] sm:$0xff]
        %v4854 = vld [vmem:[%s4851 + $0x10] sm:$0xff]
        %v4855 = vld [vmem:[%s4851 + $0x18] sm:$0xff]
        %v4856 = vpack.c.bf16 %v4752, %v4752
        %v4857 = vpack.c.bf16 %v4853, %v4852
        %v4858 = vpack.c.bf16 %v4855, %v4854
        %v4860 = vsel %vm1231, %v4856, 0
        %4862 = vmatprep.subr.bf16.mxu0 0
        %4863 = vmatpush1.bf16.msra.mxu0 0
        %4864 = vmatprep.subr.bf16.mxu0 0
        %4865 = vmatpush1.bf16.msra.mxu0 0
        %4866 = vmatprep.subr.bf16.mxu0 0
        %4867 = vmatpush1.bf16.msra.mxu0 0
        %4868 = vmatprep.subr.bf16.mxu0 0
        %4869 = vmatpush1.bf16.msra.mxu0 0
        %4870 = vmatprep.subr.bf16.mxu0 0
        %4871 = vmatpush1.bf16.msra.mxu0 0
        %4872 = vmatprep.subr.bf16.mxu0 0
        %4873 = vmatpush1.bf16.msra.mxu0 0
        %4874 = vmatprep.subr.bf16.mxu0 0
        %4875 = vmatpush1.bf16.msra.mxu0 %v4858
        %4876 = vmatprep.subr.bf16.mxu0 0
        %4877 = vmatpush1.bf16.msra.mxu0 %v4857
        %4878 = vmatprep.subr.bf16.mxu0 0
        %4879 = vmatpush2.bf16.msra.mxu0 0
        %4880 = vmatprep.subr.bf16.mxu0 0
        %4881 = vmatpush2.bf16.msra.mxu0 0
        %4882 = vmatprep.subr.bf16.mxu0 0
        %4883 = vmatpush2.bf16.msra.mxu0 0
        %4884 = vmatprep.subr.bf16.mxu0 0
        %4885 = vmatpush2.bf16.msra.mxu0 0
        %4886 = vmatprep.subr.bf16.mxu0 0
        %4887 = vmatpush2.bf16.msra.mxu0 0
        %4888 = vmatprep.subr.bf16.mxu0 0
        %4889 = vmatpush2.bf16.msra.mxu0 0
        %4890 = vmatprep.subr.bf16.mxu0 0
        %4891 = vmatpush2.bf16.msra.mxu0 0
        %4892 = vmatprep.subr.bf16.mxu0 0
        %4893 = vmatpush2.bf16.msra.mxu0 0
        %4894 = vmatprep.mubr.bf16.mxu0 0
        %4895 = vmatmul.mubr.bf16.gmra.mxu0 %v4860
        %v4896 = vpop.f32.mrf.mxu0
        %v4897 = vadd.f32 0.0, %v4896
        %v4898 = vpop.f32.mrf.mxu0
        %v4899 = vpop.f32.mrf.mxu0
        %v4900 = vpop.f32.mrf.mxu0
        %4901 = vdwg.mxu0
        %v4902 = vadd.f32 %v4846, %v4897
        %s4903 = scalar_lea.vmem %s47, 96
        %v4904 = vld [vmem:[%s4903] sm:$0xff]
        %v4905 = vld [vmem:[%s4903 + $0x8] sm:$0xff]
        %v4906 = vld [vmem:[%s4903 + $0x10] sm:$0xff]
        %v4907 = vld [vmem:[%s4903 + $0x18] sm:$0xff]
        %v4908 = vpack.c.bf16 %v4707, %v4707
        %v4909 = vpack.c.bf16 %v4905, %v4904
        %v4910 = vpack.c.bf16 %v4907, %v4906
        %v4912 = vsel %vm1231, %v4908, 0
        %4914 = vmatprep.subr.bf16.mxu0 0
        %4915 = vmatpush1.bf16.msra.mxu0 0
        %4916 = vmatprep.subr.bf16.mxu0 0
        %4917 = vmatpush1.bf16.msra.mxu0 0
        %4918 = vmatprep.subr.bf16.mxu0 0
        %4919 = vmatpush1.bf16.msra.mxu0 0
        %4920 = vmatprep.subr.bf16.mxu0 0
        %4921 = vmatpush1.bf16.msra.mxu0 0
        %4922 = vmatprep.subr.bf16.mxu0 0
        %4923 = vmatpush1.bf16.msra.mxu0 0
        %4924 = vmatprep.subr.bf16.mxu0 0
        %4925 = vmatpush1.bf16.msra.mxu0 0
        %4926 = vmatprep.subr.bf16.mxu0 0
        %4927 = vmatpush1.bf16.msra.mxu0 %v4910
        %4928 = vmatprep.subr.bf16.mxu0 0
        %4929 = vmatpush1.bf16.msra.mxu0 %v4909
        %4930 = vmatprep.subr.bf16.mxu0 0
        %4931 = vmatpush2.bf16.msra.mxu0 0
        %4932 = vmatprep.subr.bf16.mxu0 0
        %4933 = vmatpush2.bf16.msra.mxu0 0
        %4934 = vmatprep.subr.bf16.mxu0 0
        %4935 = vmatpush2.bf16.msra.mxu0 0
        %4936 = vmatprep.subr.bf16.mxu0 0
        %4937 = vmatpush2.bf16.msra.mxu0 0
        %4938 = vmatprep.subr.bf16.mxu0 0
        %4939 = vmatpush2.bf16.msra.mxu0 0
        %4940 = vmatprep.subr.bf16.mxu0 0
        %4941 = vmatpush2.bf16.msra.mxu0 0
        %4942 = vmatprep.subr.bf16.mxu0 0
        %4943 = vmatpush2.bf16.msra.mxu0 0
        %4944 = vmatprep.subr.bf16.mxu0 0
        %4945 = vmatpush2.bf16.msra.mxu0 0
        %4946 = vmatprep.mubr.bf16.mxu0 0
        %4947 = vmatmul.mubr.bf16.gmra.mxu0 %v4912
        %v4948 = vpop.f32.mrf.mxu0
        %v4949 = vadd.f32 0.0, %v4948
        %v4950 = vpop.f32.mrf.mxu0
        %v4951 = vpop.f32.mrf.mxu0
        %v4952 = vpop.f32.mrf.mxu0
        %4953 = vdwg.mxu0
        %v4954 = vadd.f32 %v4902, %v4949
        %v4955 = vld [vmem:[%s49] sm:$0xff]
        %v4956 = vld [vmem:[%s49 + $0x8] sm:$0xff]
        %v4957 = vpack.c.bf16 %v4956, %v4955
        %4958 = vmatprep.subr.bf16.mxu0 0
        %4959 = vmatpush1.bf16.msra.mxu0 0
        %4960 = vmatprep.subr.bf16.mxu0 0
        %4961 = vmatpush1.bf16.msra.mxu0 0
        %4962 = vmatprep.subr.bf16.mxu0 0
        %4963 = vmatpush1.bf16.msra.mxu0 0
        %4964 = vmatprep.subr.bf16.mxu0 0
        %4965 = vmatpush1.bf16.msra.mxu0 0
        %4966 = vmatprep.subr.bf16.mxu0 0
        %4967 = vmatpush1.bf16.msra.mxu0 0
        %4968 = vmatprep.subr.bf16.mxu0 0
        %4969 = vmatpush1.bf16.msra.mxu0 0
        %4970 = vmatprep.subr.bf16.mxu0 0
        %4971 = vmatpush1.bf16.msra.mxu0 0
        %4972 = vmatprep.subr.bf16.mxu0 0
        %4973 = vmatpush1.bf16.msra.mxu0 %v4957
        %4974 = vmatprep.subr.bf16.mxu0 0
        %4975 = vmatpush2.bf16.msra.mxu0 0
        %4976 = vmatprep.subr.bf16.mxu0 0
        %4977 = vmatpush2.bf16.msra.mxu0 0
        %4978 = vmatprep.subr.bf16.mxu0 0
        %4979 = vmatpush2.bf16.msra.mxu0 0
        %4980 = vmatprep.subr.bf16.mxu0 0
        %4981 = vmatpush2.bf16.msra.mxu0 0
        %4982 = vmatprep.subr.bf16.mxu0 0
        %4983 = vmatpush2.bf16.msra.mxu0 0
        %4984 = vmatprep.subr.bf16.mxu0 0
        %4985 = vmatpush2.bf16.msra.mxu0 0
        %4986 = vmatprep.subr.bf16.mxu0 0
        %4987 = vmatpush2.bf16.msra.mxu0 0
        %4988 = vmatprep.subr.bf16.mxu0 0
        %4989 = vmatpush2.bf16.msra.mxu0 0
        %4990 = vmatprep.mubr.bf16.mxu0 0
        %4991 = vmatmul.mubr.bf16.gmra.mxu0 %v4392
        %v4992 = vpop.f32.mrf.mxu0
        %v4993 = vadd.f32 0.0, %v4992
        %v4994 = vpop.f32.mrf.mxu0
        %v4995 = vpop.f32.mrf.mxu0
        %v4996 = vpop.f32.mrf.mxu0
        %4997 = vdwg.mxu0
        %v4998 = vadd.f32 %v4954, %v4993
        %s4999 = scalar_lea.vmem %s49, 16
        %v5000 = vld [vmem:[%s4999] sm:$0xff]
        %v5001 = vld [vmem:[%s4999 + $0x8] sm:$0xff]
        %v5002 = vpack.c.bf16 %v4621, %v4621
        %v5003 = vpack.c.bf16 %v5001, %v5000
        %v5005 = vsel %vm4218, %v5002, 0
        %5007 = vmatprep.subr.bf16.mxu0 0
        %5008 = vmatpush1.bf16.msra.mxu0 0
        %5009 = vmatprep.subr.bf16.mxu0 0
        %5010 = vmatpush1.bf16.msra.mxu0 0
        %5011 = vmatprep.subr.bf16.mxu0 0
        %5012 = vmatpush1.bf16.msra.mxu0 0
        %5013 = vmatprep.subr.bf16.mxu0 0
        %5014 = vmatpush1.bf16.msra.mxu0 0
        %5015 = vmatprep.subr.bf16.mxu0 0
        %5016 = vmatpush1.bf16.msra.mxu0 0
        %5017 = vmatprep.subr.bf16.mxu0 0
        %5018 = vmatpush1.bf16.msra.mxu0 0
        %5019 = vmatprep.subr.bf16.mxu0 0
        %5020 = vmatpush1.bf16.msra.mxu0 0
        %5021 = vmatprep.subr.bf16.mxu0 0
        %5022 = vmatpush1.bf16.msra.mxu0 %v5003
        %5023 = vmatprep.subr.bf16.mxu0 0
        %5024 = vmatpush2.bf16.msra.mxu0 0
        %5025 = vmatprep.subr.bf16.mxu0 0
        %5026 = vmatpush2.bf16.msra.mxu0 0
        %5027 = vmatprep.subr.bf16.mxu0 0
        %5028 = vmatpush2.bf16.msra.mxu0 0
        %5029 = vmatprep.subr.bf16.mxu0 0
        %5030 = vmatpush2.bf16.msra.mxu0 0
        %5031 = vmatprep.subr.bf16.mxu0 0
        %5032 = vmatpush2.bf16.msra.mxu0 0
        %5033 = vmatprep.subr.bf16.mxu0 0
        %5034 = vmatpush2.bf16.msra.mxu0 0
        %5035 = vmatprep.subr.bf16.mxu0 0
        %5036 = vmatpush2.bf16.msra.mxu0 0
        %5037 = vmatprep.subr.bf16.mxu0 0
        %5038 = vmatpush2.bf16.msra.mxu0 0
        %5039 = vmatprep.mubr.bf16.mxu0 0
        %5040 = vmatmul.mubr.bf16.gmra.mxu0 %v5005
        %v5041 = vpop.f32.mrf.mxu0
        %v5042 = vadd.f32 0.0, %v5041
        %v5043 = vpop.f32.mrf.mxu0
        %v5044 = vpop.f32.mrf.mxu0
        %v5045 = vpop.f32.mrf.mxu0
        %5046 = vdwg.mxu0
        %v5047 = vadd.f32 %v4998, %v5042
        %s5048 = scalar_lea.vmem %s49, 32
        %v5049 = vld [vmem:[%s5048] sm:$0xff]
        %v5050 = vld [vmem:[%s5048 + $0x8] sm:$0xff]
        %v5051 = vpack.c.bf16 %v4753, %v4753
        %v5052 = vpack.c.bf16 %v5050, %v5049
        %v5054 = vsel %vm4218, %v5051, 0
        %5056 = vmatprep.subr.bf16.mxu0 0
        %5057 = vmatpush1.bf16.msra.mxu0 0
        %5058 = vmatprep.subr.bf16.mxu0 0
        %5059 = vmatpush1.bf16.msra.mxu0 0
        %5060 = vmatprep.subr.bf16.mxu0 0
        %5061 = vmatpush1.bf16.msra.mxu0 0
        %5062 = vmatprep.subr.bf16.mxu0 0
        %5063 = vmatpush1.bf16.msra.mxu0 0
        %5064 = vmatprep.subr.bf16.mxu0 0
        %5065 = vmatpush1.bf16.msra.mxu0 0
        %5066 = vmatprep.subr.bf16.mxu0 0
        %5067 = vmatpush1.bf16.msra.mxu0 0
        %5068 = vmatprep.subr.bf16.mxu0 0
        %5069 = vmatpush1.bf16.msra.mxu0 0
        %5070 = vmatprep.subr.bf16.mxu0 0
        %5071 = vmatpush1.bf16.msra.mxu0 %v5052
        %5072 = vmatprep.subr.bf16.mxu0 0
        %5073 = vmatpush2.bf16.msra.mxu0 0
        %5074 = vmatprep.subr.bf16.mxu0 0
        %5075 = vmatpush2.bf16.msra.mxu0 0
        %5076 = vmatprep.subr.bf16.mxu0 0
        %5077 = vmatpush2.bf16.msra.mxu0 0
        %5078 = vmatprep.subr.bf16.mxu0 0
        %5079 = vmatpush2.bf16.msra.mxu0 0
        %5080 = vmatprep.subr.bf16.mxu0 0
        %5081 = vmatpush2.bf16.msra.mxu0 0
        %5082 = vmatprep.subr.bf16.mxu0 0
        %5083 = vmatpush2.bf16.msra.mxu0 0
        %5084 = vmatprep.subr.bf16.mxu0 0
        %5085 = vmatpush2.bf16.msra.mxu0 0
        %5086 = vmatprep.subr.bf16.mxu0 0
        %5087 = vmatpush2.bf16.msra.mxu0 0
        %5088 = vmatprep.mubr.bf16.mxu0 0
        %5089 = vmatmul.mubr.bf16.gmra.mxu0 %v5054
        %v5090 = vpop.f32.mrf.mxu0
        %v5091 = vadd.f32 0.0, %v5090
        %v5092 = vpop.f32.mrf.mxu0
        %v5093 = vpop.f32.mrf.mxu0
        %v5094 = vpop.f32.mrf.mxu0
        %5095 = vdwg.mxu0
        %v5096 = vadd.f32 %v5047, %v5091
        %s5097 = scalar_lea.vmem %s49, 48
        %v5098 = vld [vmem:[%s5097] sm:$0xff]
        %v5099 = vld [vmem:[%s5097 + $0x8] sm:$0xff]
        %v5100 = vpack.c.bf16 %v4747, %v4747
        %v5101 = vpack.c.bf16 %v5099, %v5098
        %v5103 = vsel %vm4218, %v5100, 0
        %5105 = vmatprep.subr.bf16.mxu0 0
        %5106 = vmatpush1.bf16.msra.mxu0 0
        %5107 = vmatprep.subr.bf16.mxu0 0
        %5108 = vmatpush1.bf16.msra.mxu0 0
        %5109 = vmatprep.subr.bf16.mxu0 0
        %5110 = vmatpush1.bf16.msra.mxu0 0
        %5111 = vmatprep.subr.bf16.mxu0 0
        %5112 = vmatpush1.bf16.msra.mxu0 0
        %5113 = vmatprep.subr.bf16.mxu0 0
        %5114 = vmatpush1.bf16.msra.mxu0 0
        %5115 = vmatprep.subr.bf16.mxu0 0
        %5116 = vmatpush1.bf16.msra.mxu0 0
        %5117 = vmatprep.subr.bf16.mxu0 0
        %5118 = vmatpush1.bf16.msra.mxu0 0
        %5119 = vmatprep.subr.bf16.mxu0 0
        %5120 = vmatpush1.bf16.msra.mxu0 %v5101
        %5121 = vmatprep.subr.bf16.mxu0 0
        %5122 = vmatpush2.bf16.msra.mxu0 0
        %5123 = vmatprep.subr.bf16.mxu0 0
        %5124 = vmatpush2.bf16.msra.mxu0 0
        %5125 = vmatprep.subr.bf16.mxu0 0
        %5126 = vmatpush2.bf16.msra.mxu0 0
        %5127 = vmatprep.subr.bf16.mxu0 0
        %5128 = vmatpush2.bf16.msra.mxu0 0
        %5129 = vmatprep.subr.bf16.mxu0 0
        %5130 = vmatpush2.bf16.msra.mxu0 0
        %5131 = vmatprep.subr.bf16.mxu0 0
        %5132 = vmatpush2.bf16.msra.mxu0 0
        %5133 = vmatprep.subr.bf16.mxu0 0
        %5134 = vmatpush2.bf16.msra.mxu0 0
        %5135 = vmatprep.subr.bf16.mxu0 0
        %5136 = vmatpush2.bf16.msra.mxu0 0
        %5137 = vmatprep.mubr.bf16.mxu0 0
        %5138 = vmatmul.mubr.bf16.gmra.mxu0 %v5103
        %v5139 = vpop.f32.mrf.mxu0
        %v5140 = vadd.f32 0.0, %v5139
        %v5141 = vpop.f32.mrf.mxu0
        %v5142 = vpop.f32.mrf.mxu0
        %v5143 = vpop.f32.mrf.mxu0
        %5144 = vdwg.mxu0
        %v5145 = vadd.f32 %v5096, %v5140
        %v5146 = vld [vmem:[%s51] sm:$0x1]
        %v5148 = vlaneseq
        %v5149 = vshrl.u32 %v5148, 7
        %v5150 = vsub.s32 0, %v5149
        %v5151 = vrot.slane %v5146, %v5150
        %v5153 = vadd.f32 %v5145, %v5151
        %v5154 = vld [vmem:[%s53] sm:$0xff]
        %v5155 = vld [vmem:[%s53 + $0x8] sm:$0xff]
        %v5156 = vld [vmem:[%s53 + $0x10] sm:$0xff]
        %v5157 = vld [vmem:[%s53 + $0x18] sm:$0xff]
        %v5158 = vld [vmem:[%s53 + $0x20] sm:$0xff]
        %v5159 = vld [vmem:[%s53 + $0x28] sm:$0xff]
        %v5160 = vld [vmem:[%s53 + $0x30] sm:$0xff]
        %v5161 = vld [vmem:[%s53 + $0x38] sm:$0xff]
        %v5162 = vld [vmem:[%s53 + $0x40] sm:$0xff]
        %v5163 = vld [vmem:[%s53 + $0x48] sm:$0xff]
        %v5164 = vld [vmem:[%s53 + $0x50] sm:$0xff]
        %v5165 = vld [vmem:[%s53 + $0x58] sm:$0xff]
        %v5166 = vld [vmem:[%s53 + $0x60] sm:$0xff]
        %v5167 = vld [vmem:[%s53 + $0x68] sm:$0xff]
        %v5168 = vld [vmem:[%s53 + $0x70] sm:$0xff]
        %v5169 = vld [vmem:[%s53 + $0x78] sm:$0xff]
        %v5170 = vld [vmem:[%s53 + $0x80] sm:$0xff]
        %v5171 = vld [vmem:[%s53 + $0x88] sm:$0xff]
        %v5172 = vld [vmem:[%s53 + $0x90] sm:$0xff]
        %v5173 = vld [vmem:[%s53 + $0x98] sm:$0xff]
        %v5174 = vld [vmem:[%s53 + $0xa0] sm:$0xff]
        %v5175 = vld [vmem:[%s53 + $0xa8] sm:$0xff]
        %v5176 = vld [vmem:[%s53 + $0xb0] sm:$0xff]
        %v5177 = vld [vmem:[%s53 + $0xb8] sm:$0xff]
        %v5178 = vld [vmem:[%s53 + $0xc0] sm:$0xff]
        %v5179 = vld [vmem:[%s53 + $0xc8] sm:$0xff]
        %v5180 = vld [vmem:[%s53 + $0xd0] sm:$0xff]
        %v5181 = vld [vmem:[%s53 + $0xd8] sm:$0xff]
        %v5182 = vld [vmem:[%s53 + $0xe0] sm:$0xff]
        %v5183 = vld [vmem:[%s53 + $0xe8] sm:$0xff]
        %v5184 = vld [vmem:[%s53 + $0xf0] sm:$0xff]
        %v5185 = vld [vmem:[%s53 + $0xf8] sm:$0xff]
        %v5186 = vld [vmem:[%s53 + $0x100] sm:$0xff]
        %v5187 = vld [vmem:[%s53 + $0x108] sm:$0xff]
        %v5188 = vld [vmem:[%s53 + $0x110] sm:$0xff]
        %v5189 = vld [vmem:[%s53 + $0x118] sm:$0xff]
        %v5190 = vld [vmem:[%s53 + $0x120] sm:$0xff]
        %v5191 = vld [vmem:[%s53 + $0x128] sm:$0xff]
        %v5192 = vld [vmem:[%s53 + $0x130] sm:$0xff]
        %v5193 = vld [vmem:[%s53 + $0x138] sm:$0xff]
        %v5194 = vld [vmem:[%s53 + $0x140] sm:$0xff]
        %v5195 = vld [vmem:[%s53 + $0x148] sm:$0xff]
        %v5196 = vld [vmem:[%s53 + $0x150] sm:$0xff]
        %v5197 = vld [vmem:[%s53 + $0x158] sm:$0xff]
        %v5198 = vld [vmem:[%s53 + $0x160] sm:$0xff]
        %v5199 = vld [vmem:[%s53 + $0x168] sm:$0xff]
        %v5200 = vld [vmem:[%s53 + $0x170] sm:$0xff]
        %v5201 = vld [vmem:[%s53 + $0x178] sm:$0xff]
        %v5202 = vld [vmem:[%s55] sm:$0x1]
        %v5203 = vld [vmem:[%s55 + $0x1] sm:$0x1]
        %v5204 = vld [vmem:[%s55 + $0x2] sm:$0x1]
        %v5205 = vld [vmem:[%s55 + $0x3] sm:$0x1]
        %v5206 = vld [vmem:[%s55 + $0x4] sm:$0x1]
        %v5207 = vld [vmem:[%s55 + $0x5] sm:$0x1]
        %v5208 = vld [vmem:[%s55 + $0x6] sm:$0x1]
        %v5209 = vld [vmem:[%s55 + $0x7] sm:$0x1]
        %v5210 = vld [vmem:[%s55 + $0x8] sm:$0x1]
        %v5211 = vld [vmem:[%s55 + $0x9] sm:$0x1]
        %v5212 = vld [vmem:[%s55 + $0xa] sm:$0x1]
        %v5213 = vld [vmem:[%s55 + $0xb] sm:$0x1]
        %v5214 = vld [vmem:[%s57] sm:$0xff]
        %v5215 = vld [vmem:[%s57 + $0x8] sm:$0xff]
        %v5216 = vld [vmem:[%s57 + $0x10] sm:$0xff]
        %v5217 = vld [vmem:[%s57 + $0x18] sm:$0xff]
        %v5218 = vld [vmem:[%s59] sm:$0x1]
        %v5219 = vpack.c.bf16 %v5155, %v5154
        %v5220 = vpack.c.bf16 %v5157, %v5156
        %v5221 = vpack.c.bf16 %v5159, %v5158
        %v5222 = vpack.c.bf16 %v5161, %v5160
        %v5223 = vpack.c.bf16 %v5163, %v5162
        %v5224 = vpack.c.bf16 %v5165, %v5164
        %v5225 = vpack.c.bf16 %v5167, %v5166
        %v5226 = vpack.c.bf16 %v5169, %v5168
        %v5231 = vlaneseq
        %v5232 = vshrl.u32 %v5231, 7
        %v5233 = vsub.s32 0, %v5232
        %v5234 = vrot.slane %v5202, %v5233
        %v5235 = vlaneseq
        %v5236 = vshrl.u32 %v5235, 7
        %v5237 = vsub.s32 0, %v5236
        %v5238 = vrot.slane %v5203, %v5237
        %v5239 = vlaneseq
        %v5240 = vshrl.u32 %v5239, 7
        %v5241 = vsub.s32 0, %v5240
        %v5242 = vrot.slane %v5204, %v5241
        %v5243 = vlaneseq
        %v5244 = vshrl.u32 %v5243, 7
        %v5245 = vsub.s32 0, %v5244
        %v5246 = vrot.slane %v5205, %v5245
        %5251 = vmatprep.subr.bf16.mxu0 0
        %5252 = vmatpush1.bf16.msra.mxu0 0
        %5253 = vmatprep.subr.bf16.mxu0 0
        %5254 = vmatpush1.bf16.msra.mxu0 0
        %5255 = vmatprep.subr.bf16.mxu0 0
        %5256 = vmatpush1.bf16.msra.mxu0 0
        %5257 = vmatprep.subr.bf16.mxu0 0
        %5258 = vmatpush1.bf16.msra.mxu0 0
        %5259 = vmatprep.subr.bf16.mxu0 0
        %5260 = vmatpush1.bf16.msra.mxu0 0
        %5261 = vmatprep.subr.bf16.mxu0 0
        %5262 = vmatpush1.bf16.msra.mxu0 0
        %5263 = vmatprep.subr.bf16.mxu0 0
        %5264 = vmatpush1.bf16.msra.mxu0 %v5220
        %5265 = vmatprep.subr.bf16.mxu0 0
        %5266 = vmatpush1.bf16.msra.mxu0 %v5219
        %5267 = vmatprep.subr.bf16.mxu0 0
        %5268 = vmatpush2.bf16.msra.mxu0 0
        %5269 = vmatprep.subr.bf16.mxu0 0
        %5270 = vmatpush2.bf16.msra.mxu0 0
        %5271 = vmatprep.subr.bf16.mxu0 0
        %5272 = vmatpush2.bf16.msra.mxu0 0
        %5273 = vmatprep.subr.bf16.mxu0 0
        %5274 = vmatpush2.bf16.msra.mxu0 0
        %5275 = vmatprep.subr.bf16.mxu0 0
        %5276 = vmatpush2.bf16.msra.mxu0 0
        %5277 = vmatprep.subr.bf16.mxu0 0
        %5278 = vmatpush2.bf16.msra.mxu0 0
        %5279 = vmatprep.subr.bf16.mxu0 0
        %5280 = vmatpush2.bf16.msra.mxu0 0
        %5281 = vmatprep.subr.bf16.mxu0 0
        %5282 = vmatpush2.bf16.msra.mxu0 0
        %5283 = vmatprep.mubr.bf16.mxu0 0
        %5284 = vmatmul.mubr.bf16.gmra.mxu0 %v4116
        %v5285 = vpop.f32.mrf.mxu0
        %v5286 = vadd.f32 %v5234, %v5285
        %v5287 = vpop.f32.mrf.mxu0
        %v5288 = vpop.f32.mrf.mxu0
        %v5289 = vpop.f32.mrf.mxu0
        %5290 = vdwg.mxu0
        %5291 = vmatprep.subr.bf16.mxu0 0
        %5292 = vmatpush1.bf16.msra.mxu0 0
        %5293 = vmatprep.subr.bf16.mxu0 0
        %5294 = vmatpush1.bf16.msra.mxu0 0
        %5295 = vmatprep.subr.bf16.mxu0 0
        %5296 = vmatpush1.bf16.msra.mxu0 0
        %5297 = vmatprep.subr.bf16.mxu0 0
        %5298 = vmatpush1.bf16.msra.mxu0 0
        %5299 = vmatprep.subr.bf16.mxu0 0
        %5300 = vmatpush1.bf16.msra.mxu0 0
        %5301 = vmatprep.subr.bf16.mxu0 0
        %5302 = vmatpush1.bf16.msra.mxu0 0
        %5303 = vmatprep.subr.bf16.mxu0 0
        %5304 = vmatpush1.bf16.msra.mxu0 %v5222
        %5305 = vmatprep.subr.bf16.mxu0 0
        %5306 = vmatpush1.bf16.msra.mxu0 %v5221
        %5307 = vmatprep.subr.bf16.mxu0 0
        %5308 = vmatpush2.bf16.msra.mxu0 0
        %5309 = vmatprep.subr.bf16.mxu0 0
        %5310 = vmatpush2.bf16.msra.mxu0 0
        %5311 = vmatprep.subr.bf16.mxu0 0
        %5312 = vmatpush2.bf16.msra.mxu0 0
        %5313 = vmatprep.subr.bf16.mxu0 0
        %5314 = vmatpush2.bf16.msra.mxu0 0
        %5315 = vmatprep.subr.bf16.mxu0 0
        %5316 = vmatpush2.bf16.msra.mxu0 0
        %5317 = vmatprep.subr.bf16.mxu0 0
        %5318 = vmatpush2.bf16.msra.mxu0 0
        %5319 = vmatprep.subr.bf16.mxu0 0
        %5320 = vmatpush2.bf16.msra.mxu0 0
        %5321 = vmatprep.subr.bf16.mxu0 0
        %5322 = vmatpush2.bf16.msra.mxu0 0
        %5323 = vmatprep.mubr.bf16.mxu0 0
        %5324 = vmatmul.mubr.bf16.gmra.mxu0 %v4116
        %v5325 = vpop.f32.mrf.mxu0
        %v5326 = vadd.f32 %v5238, %v5325
        %v5327 = vpop.f32.mrf.mxu0
        %v5328 = vpop.f32.mrf.mxu0
        %v5329 = vpop.f32.mrf.mxu0
        %5330 = vdwg.mxu0
        %5331 = vmatprep.subr.bf16.mxu0 0
        %5332 = vmatpush1.bf16.msra.mxu0 0
        %5333 = vmatprep.subr.bf16.mxu0 0
        %5334 = vmatpush1.bf16.msra.mxu0 0
        %5335 = vmatprep.subr.bf16.mxu0 0
        %5336 = vmatpush1.bf16.msra.mxu0 0
        %5337 = vmatprep.subr.bf16.mxu0 0
        %5338 = vmatpush1.bf16.msra.mxu0 0
        %5339 = vmatprep.subr.bf16.mxu0 0
        %5340 = vmatpush1.bf16.msra.mxu0 0
        %5341 = vmatprep.subr.bf16.mxu0 0
        %5342 = vmatpush1.bf16.msra.mxu0 0
        %5343 = vmatprep.subr.bf16.mxu0 0
        %5344 = vmatpush1.bf16.msra.mxu0 %v5224
        %5345 = vmatprep.subr.bf16.mxu0 0
        %5346 = vmatpush1.bf16.msra.mxu0 %v5223
        %5347 = vmatprep.subr.bf16.mxu0 0
        %5348 = vmatpush2.bf16.msra.mxu0 0
        %5349 = vmatprep.subr.bf16.mxu0 0
        %5350 = vmatpush2.bf16.msra.mxu0 0
        %5351 = vmatprep.subr.bf16.mxu0 0
        %5352 = vmatpush2.bf16.msra.mxu0 0
        %5353 = vmatprep.subr.bf16.mxu0 0
        %5354 = vmatpush2.bf16.msra.mxu0 0
        %5355 = vmatprep.subr.bf16.mxu0 0
        %5356 = vmatpush2.bf16.msra.mxu0 0
        %5357 = vmatprep.subr.bf16.mxu0 0
        %5358 = vmatpush2.bf16.msra.mxu0 0
        %5359 = vmatprep.subr.bf16.mxu0 0
        %5360 = vmatpush2.bf16.msra.mxu0 0
        %5361 = vmatprep.subr.bf16.mxu0 0
        %5362 = vmatpush2.bf16.msra.mxu0 0
        %5363 = vmatprep.mubr.bf16.mxu0 0
        %5364 = vmatmul.mubr.bf16.gmra.mxu0 %v4116
        %v5365 = vpop.f32.mrf.mxu0
        %v5366 = vadd.f32 %v5242, %v5365
        %v5367 = vpop.f32.mrf.mxu0
        %v5368 = vpop.f32.mrf.mxu0
        %v5369 = vpop.f32.mrf.mxu0
        %5370 = vdwg.mxu0
        %5371 = vmatprep.subr.bf16.mxu0 0
        %5372 = vmatpush1.bf16.msra.mxu0 0
        %5373 = vmatprep.subr.bf16.mxu0 0
        %5374 = vmatpush1.bf16.msra.mxu0 0
        %5375 = vmatprep.subr.bf16.mxu0 0
        %5376 = vmatpush1.bf16.msra.mxu0 0
        %5377 = vmatprep.subr.bf16.mxu0 0
        %5378 = vmatpush1.bf16.msra.mxu0 0
        %5379 = vmatprep.subr.bf16.mxu0 0
        %5380 = vmatpush1.bf16.msra.mxu0 0
        %5381 = vmatprep.subr.bf16.mxu0 0
        %5382 = vmatpush1.bf16.msra.mxu0 0
        %5383 = vmatprep.subr.bf16.mxu0 0
        %5384 = vmatpush1.bf16.msra.mxu0 %v5226
        %5385 = vmatprep.subr.bf16.mxu0 0
        %5386 = vmatpush1.bf16.msra.mxu0 %v5225
        %5387 = vmatprep.subr.bf16.mxu0 0
        %5388 = vmatpush2.bf16.msra.mxu0 0
        %5389 = vmatprep.subr.bf16.mxu0 0
        %5390 = vmatpush2.bf16.msra.mxu0 0
        %5391 = vmatprep.subr.bf16.mxu0 0
        %5392 = vmatpush2.bf16.msra.mxu0 0
        %5393 = vmatprep.subr.bf16.mxu0 0
        %5394 = vmatpush2.bf16.msra.mxu0 0
        %5395 = vmatprep.subr.bf16.mxu0 0
        %5396 = vmatpush2.bf16.msra.mxu0 0
        %5397 = vmatprep.subr.bf16.mxu0 0
        %5398 = vmatpush2.bf16.msra.mxu0 0
        %5399 = vmatprep.subr.bf16.mxu0 0
        %5400 = vmatpush2.bf16.msra.mxu0 0
        %5401 = vmatprep.subr.bf16.mxu0 0
        %5402 = vmatpush2.bf16.msra.mxu0 0
        %5403 = vmatprep.mubr.bf16.mxu0 0
        %5404 = vmatmul.mubr.bf16.gmra.mxu0 %v4116
        %v5405 = vpop.f32.mrf.mxu0
        %v5406 = vadd.f32 %v5246, %v5405
        %v5407 = vpop.f32.mrf.mxu0
        %v5408 = vpop.f32.mrf.mxu0
        %v5409 = vpop.f32.mrf.mxu0
        %5410 = vdwg.mxu0
        %v5411 = vpack.c.bf16 %v5153, %v5153
        %v5412 = vpack.c.bf16 %v5171, %v5170
        %v5413 = vpack.c.bf16 %v5173, %v5172
        %v5414 = vpack.c.bf16 %v5175, %v5174
        %v5415 = vpack.c.bf16 %v5177, %v5176
        %v5416 = vpack.c.bf16 %v5179, %v5178
        %v5417 = vpack.c.bf16 %v5181, %v5180
        %v5418 = vpack.c.bf16 %v5183, %v5182
        %v5419 = vpack.c.bf16 %v5185, %v5184
        %v5420 = vpack.c.bf16 %v5187, %v5186
        %v5421 = vpack.c.bf16 %v5189, %v5188
        %v5422 = vpack.c.bf16 %v5191, %v5190
        %v5423 = vpack.c.bf16 %v5193, %v5192
        %v5424 = vpack.c.bf16 %v5195, %v5194
        %v5425 = vpack.c.bf16 %v5197, %v5196
        %v5426 = vpack.c.bf16 %v5199, %v5198
        %v5427 = vpack.c.bf16 %v5201, %v5200
        %v5436 = vlaneseq
        %v5437 = vshrl.u32 %v5436, 7
        %v5438 = vsub.s32 0, %v5437
        %v5439 = vrot.slane %v5206, %v5438
        %v5440 = vlaneseq
        %v5441 = vshrl.u32 %v5440, 7
        %v5442 = vsub.s32 0, %v5441
        %v5443 = vrot.slane %v5207, %v5442
        %v5444 = vlaneseq
        %v5445 = vshrl.u32 %v5444, 7
        %v5446 = vsub.s32 0, %v5445
        %v5447 = vrot.slane %v5208, %v5446
        %v5448 = vlaneseq
        %v5449 = vshrl.u32 %v5448, 7
        %v5450 = vsub.s32 0, %v5449
        %v5451 = vrot.slane %v5209, %v5450
        %v5452 = vlaneseq
        %v5453 = vshrl.u32 %v5452, 7
        %v5454 = vsub.s32 0, %v5453
        %v5455 = vrot.slane %v5210, %v5454
        %v5456 = vlaneseq
        %v5457 = vshrl.u32 %v5456, 7
        %v5458 = vsub.s32 0, %v5457
        %v5459 = vrot.slane %v5211, %v5458
        %v5460 = vlaneseq
        %v5461 = vshrl.u32 %v5460, 7
        %v5462 = vsub.s32 0, %v5461
        %v5463 = vrot.slane %v5212, %v5462
        %v5464 = vlaneseq
        %v5465 = vshrl.u32 %v5464, 7
        %v5466 = vsub.s32 0, %v5465
        %v5467 = vrot.slane %v5213, %v5466
        %v5477 = vsel %vm1231, %v5411, 0
        %5479 = vmatprep.subr.bf16.mxu0 0
        %5480 = vmatpush1.bf16.msra.mxu0 0
        %5481 = vmatprep.subr.bf16.mxu0 0
        %5482 = vmatpush1.bf16.msra.mxu0 0
        %5483 = vmatprep.subr.bf16.mxu0 0
        %5484 = vmatpush1.bf16.msra.mxu0 0
        %5485 = vmatprep.subr.bf16.mxu0 0
        %5486 = vmatpush1.bf16.msra.mxu0 0
        %5487 = vmatprep.subr.bf16.mxu0 0
        %5488 = vmatpush1.bf16.msra.mxu0 0
        %5489 = vmatprep.subr.bf16.mxu0 0
        %5490 = vmatpush1.bf16.msra.mxu0 0
        %5491 = vmatprep.subr.bf16.mxu0 0
        %5492 = vmatpush1.bf16.msra.mxu0 %v5413
        %5493 = vmatprep.subr.bf16.mxu0 0
        %5494 = vmatpush1.bf16.msra.mxu0 %v5412
        %5495 = vmatprep.subr.bf16.mxu0 0
        %5496 = vmatpush2.bf16.msra.mxu0 0
        %5497 = vmatprep.subr.bf16.mxu0 0
        %5498 = vmatpush2.bf16.msra.mxu0 0
        %5499 = vmatprep.subr.bf16.mxu0 0
        %5500 = vmatpush2.bf16.msra.mxu0 0
        %5501 = vmatprep.subr.bf16.mxu0 0
        %5502 = vmatpush2.bf16.msra.mxu0 0
        %5503 = vmatprep.subr.bf16.mxu0 0
        %5504 = vmatpush2.bf16.msra.mxu0 0
        %5505 = vmatprep.subr.bf16.mxu0 0
        %5506 = vmatpush2.bf16.msra.mxu0 0
        %5507 = vmatprep.subr.bf16.mxu0 0
        %5508 = vmatpush2.bf16.msra.mxu0 0
        %5509 = vmatprep.subr.bf16.mxu0 0
        %5510 = vmatpush2.bf16.msra.mxu0 0
        %5511 = vmatprep.mubr.bf16.mxu0 0
        %5512 = vmatmul.mubr.bf16.gmra.mxu0 %v5477
        %v5513 = vpop.f32.mrf.mxu0
        %v5514 = vadd.f32 %v5439, %v5513
        %v5515 = vpop.f32.mrf.mxu0
        %v5516 = vpop.f32.mrf.mxu0
        %v5517 = vpop.f32.mrf.mxu0
        %5518 = vdwg.mxu0
        %5519 = vmatprep.subr.bf16.mxu0 0
        %5520 = vmatpush1.bf16.msra.mxu0 0
        %5521 = vmatprep.subr.bf16.mxu0 0
        %5522 = vmatpush1.bf16.msra.mxu0 0
        %5523 = vmatprep.subr.bf16.mxu0 0
        %5524 = vmatpush1.bf16.msra.mxu0 0
        %5525 = vmatprep.subr.bf16.mxu0 0
        %5526 = vmatpush1.bf16.msra.mxu0 0
        %5527 = vmatprep.subr.bf16.mxu0 0
        %5528 = vmatpush1.bf16.msra.mxu0 0
        %5529 = vmatprep.subr.bf16.mxu0 0
        %5530 = vmatpush1.bf16.msra.mxu0 0
        %5531 = vmatprep.subr.bf16.mxu0 0
        %5532 = vmatpush1.bf16.msra.mxu0 %v5415
        %5533 = vmatprep.subr.bf16.mxu0 0
        %5534 = vmatpush1.bf16.msra.mxu0 %v5414
        %5535 = vmatprep.subr.bf16.mxu0 0
        %5536 = vmatpush2.bf16.msra.mxu0 0
        %5537 = vmatprep.subr.bf16.mxu0 0
        %5538 = vmatpush2.bf16.msra.mxu0 0
        %5539 = vmatprep.subr.bf16.mxu0 0
        %5540 = vmatpush2.bf16.msra.mxu0 0
        %5541 = vmatprep.subr.bf16.mxu0 0
        %5542 = vmatpush2.bf16.msra.mxu0 0
        %5543 = vmatprep.subr.bf16.mxu0 0
        %5544 = vmatpush2.bf16.msra.mxu0 0
        %5545 = vmatprep.subr.bf16.mxu0 0
        %5546 = vmatpush2.bf16.msra.mxu0 0
        %5547 = vmatprep.subr.bf16.mxu0 0
        %5548 = vmatpush2.bf16.msra.mxu0 0
        %5549 = vmatprep.subr.bf16.mxu0 0
        %5550 = vmatpush2.bf16.msra.mxu0 0
        %5551 = vmatprep.mubr.bf16.mxu0 0
        %5552 = vmatmul.mubr.bf16.gmra.mxu0 %v5477
        %v5553 = vpop.f32.mrf.mxu0
        %v5554 = vadd.f32 %v5443, %v5553
        %v5555 = vpop.f32.mrf.mxu0
        %v5556 = vpop.f32.mrf.mxu0
        %v5557 = vpop.f32.mrf.mxu0
        %5558 = vdwg.mxu0
        %5559 = vmatprep.subr.bf16.mxu0 0
        %5560 = vmatpush1.bf16.msra.mxu0 0
        %5561 = vmatprep.subr.bf16.mxu0 0
        %5562 = vmatpush1.bf16.msra.mxu0 0
        %5563 = vmatprep.subr.bf16.mxu0 0
        %5564 = vmatpush1.bf16.msra.mxu0 0
        %5565 = vmatprep.subr.bf16.mxu0 0
        %5566 = vmatpush1.bf16.msra.mxu0 0
        %5567 = vmatprep.subr.bf16.mxu0 0
        %5568 = vmatpush1.bf16.msra.mxu0 0
        %5569 = vmatprep.subr.bf16.mxu0 0
        %5570 = vmatpush1.bf16.msra.mxu0 0
        %5571 = vmatprep.subr.bf16.mxu0 0
        %5572 = vmatpush1.bf16.msra.mxu0 %v5417
        %5573 = vmatprep.subr.bf16.mxu0 0
        %5574 = vmatpush1.bf16.msra.mxu0 %v5416
        %5575 = vmatprep.subr.bf16.mxu0 0
        %5576 = vmatpush2.bf16.msra.mxu0 0
        %5577 = vmatprep.subr.bf16.mxu0 0
        %5578 = vmatpush2.bf16.msra.mxu0 0
        %5579 = vmatprep.subr.bf16.mxu0 0
        %5580 = vmatpush2.bf16.msra.mxu0 0
        %5581 = vmatprep.subr.bf16.mxu0 0
        %5582 = vmatpush2.bf16.msra.mxu0 0
        %5583 = vmatprep.subr.bf16.mxu0 0
        %5584 = vmatpush2.bf16.msra.mxu0 0
        %5585 = vmatprep.subr.bf16.mxu0 0
        %5586 = vmatpush2.bf16.msra.mxu0 0
        %5587 = vmatprep.subr.bf16.mxu0 0
        %5588 = vmatpush2.bf16.msra.mxu0 0
        %5589 = vmatprep.subr.bf16.mxu0 0
        %5590 = vmatpush2.bf16.msra.mxu0 0
        %5591 = vmatprep.mubr.bf16.mxu0 0
        %5592 = vmatmul.mubr.bf16.gmra.mxu0 %v5477
        %v5593 = vpop.f32.mrf.mxu0
        %v5594 = vadd.f32 %v5447, %v5593
        %v5595 = vpop.f32.mrf.mxu0
        %v5596 = vpop.f32.mrf.mxu0
        %v5597 = vpop.f32.mrf.mxu0
        %5598 = vdwg.mxu0
        %5599 = vmatprep.subr.bf16.mxu0 0
        %5600 = vmatpush1.bf16.msra.mxu0 0
        %5601 = vmatprep.subr.bf16.mxu0 0
        %5602 = vmatpush1.bf16.msra.mxu0 0
        %5603 = vmatprep.subr.bf16.mxu0 0
        %5604 = vmatpush1.bf16.msra.mxu0 0
        %5605 = vmatprep.subr.bf16.mxu0 0
        %5606 = vmatpush1.bf16.msra.mxu0 0
        %5607 = vmatprep.subr.bf16.mxu0 0
        %5608 = vmatpush1.bf16.msra.mxu0 0
        %5609 = vmatprep.subr.bf16.mxu0 0
        %5610 = vmatpush1.bf16.msra.mxu0 0
        %5611 = vmatprep.subr.bf16.mxu0 0
        %5612 = vmatpush1.bf16.msra.mxu0 %v5419
        %5613 = vmatprep.subr.bf16.mxu0 0
        %5614 = vmatpush1.bf16.msra.mxu0 %v5418
        %5615 = vmatprep.subr.bf16.mxu0 0
        %5616 = vmatpush2.bf16.msra.mxu0 0
        %5617 = vmatprep.subr.bf16.mxu0 0
        %5618 = vmatpush2.bf16.msra.mxu0 0
        %5619 = vmatprep.subr.bf16.mxu0 0
        %5620 = vmatpush2.bf16.msra.mxu0 0
        %5621 = vmatprep.subr.bf16.mxu0 0
        %5622 = vmatpush2.bf16.msra.mxu0 0
        %5623 = vmatprep.subr.bf16.mxu0 0
        %5624 = vmatpush2.bf16.msra.mxu0 0
        %5625 = vmatprep.subr.bf16.mxu0 0
        %5626 = vmatpush2.bf16.msra.mxu0 0
        %5627 = vmatprep.subr.bf16.mxu0 0
        %5628 = vmatpush2.bf16.msra.mxu0 0
        %5629 = vmatprep.subr.bf16.mxu0 0
        %5630 = vmatpush2.bf16.msra.mxu0 0
        %5631 = vmatprep.mubr.bf16.mxu0 0
        %5632 = vmatmul.mubr.bf16.gmra.mxu0 %v5477
        %v5633 = vpop.f32.mrf.mxu0
        %v5634 = vadd.f32 %v5451, %v5633
        %v5635 = vpop.f32.mrf.mxu0
        %v5636 = vpop.f32.mrf.mxu0
        %v5637 = vpop.f32.mrf.mxu0
        %5638 = vdwg.mxu0
        %5639 = vmatprep.subr.bf16.mxu0 0
        %5640 = vmatpush1.bf16.msra.mxu0 0
        %5641 = vmatprep.subr.bf16.mxu0 0
        %5642 = vmatpush1.bf16.msra.mxu0 0
        %5643 = vmatprep.subr.bf16.mxu0 0
        %5644 = vmatpush1.bf16.msra.mxu0 0
        %5645 = vmatprep.subr.bf16.mxu0 0
        %5646 = vmatpush1.bf16.msra.mxu0 0
        %5647 = vmatprep.subr.bf16.mxu0 0
        %5648 = vmatpush1.bf16.msra.mxu0 0
        %5649 = vmatprep.subr.bf16.mxu0 0
        %5650 = vmatpush1.bf16.msra.mxu0 0
        %5651 = vmatprep.subr.bf16.mxu0 0
        %5652 = vmatpush1.bf16.msra.mxu0 %v5421
        %5653 = vmatprep.subr.bf16.mxu0 0
        %5654 = vmatpush1.bf16.msra.mxu0 %v5420
        %5655 = vmatprep.subr.bf16.mxu0 0
        %5656 = vmatpush2.bf16.msra.mxu0 0
        %5657 = vmatprep.subr.bf16.mxu0 0
        %5658 = vmatpush2.bf16.msra.mxu0 0
        %5659 = vmatprep.subr.bf16.mxu0 0
        %5660 = vmatpush2.bf16.msra.mxu0 0
        %5661 = vmatprep.subr.bf16.mxu0 0
        %5662 = vmatpush2.bf16.msra.mxu0 0
        %5663 = vmatprep.subr.bf16.mxu0 0
        %5664 = vmatpush2.bf16.msra.mxu0 0
        %5665 = vmatprep.subr.bf16.mxu0 0
        %5666 = vmatpush2.bf16.msra.mxu0 0
        %5667 = vmatprep.subr.bf16.mxu0 0
        %5668 = vmatpush2.bf16.msra.mxu0 0
        %5669 = vmatprep.subr.bf16.mxu0 0
        %5670 = vmatpush2.bf16.msra.mxu0 0
        %5671 = vmatprep.mubr.bf16.mxu0 0
        %5672 = vmatmul.mubr.bf16.gmra.mxu0 %v5477
        %v5673 = vpop.f32.mrf.mxu0
        %v5674 = vadd.f32 %v5455, %v5673
        %v5675 = vpop.f32.mrf.mxu0
        %v5676 = vpop.f32.mrf.mxu0
        %v5677 = vpop.f32.mrf.mxu0
        %5678 = vdwg.mxu0
        %5679 = vmatprep.subr.bf16.mxu0 0
        %5680 = vmatpush1.bf16.msra.mxu0 0
        %5681 = vmatprep.subr.bf16.mxu0 0
        %5682 = vmatpush1.bf16.msra.mxu0 0
        %5683 = vmatprep.subr.bf16.mxu0 0
        %5684 = vmatpush1.bf16.msra.mxu0 0
        %5685 = vmatprep.subr.bf16.mxu0 0
        %5686 = vmatpush1.bf16.msra.mxu0 0
        %5687 = vmatprep.subr.bf16.mxu0 0
        %5688 = vmatpush1.bf16.msra.mxu0 0
        %5689 = vmatprep.subr.bf16.mxu0 0
        %5690 = vmatpush1.bf16.msra.mxu0 0
        %5691 = vmatprep.subr.bf16.mxu0 0
        %5692 = vmatpush1.bf16.msra.mxu0 %v5423
        %5693 = vmatprep.subr.bf16.mxu0 0
        %5694 = vmatpush1.bf16.msra.mxu0 %v5422
        %5695 = vmatprep.subr.bf16.mxu0 0
        %5696 = vmatpush2.bf16.msra.mxu0 0
        %5697 = vmatprep.subr.bf16.mxu0 0
        %5698 = vmatpush2.bf16.msra.mxu0 0
        %5699 = vmatprep.subr.bf16.mxu0 0
        %5700 = vmatpush2.bf16.msra.mxu0 0
        %5701 = vmatprep.subr.bf16.mxu0 0
        %5702 = vmatpush2.bf16.msra.mxu0 0
        %5703 = vmatprep.subr.bf16.mxu0 0
        %5704 = vmatpush2.bf16.msra.mxu0 0
        %5705 = vmatprep.subr.bf16.mxu0 0
        %5706 = vmatpush2.bf16.msra.mxu0 0
        %5707 = vmatprep.subr.bf16.mxu0 0
        %5708 = vmatpush2.bf16.msra.mxu0 0
        %5709 = vmatprep.subr.bf16.mxu0 0
        %5710 = vmatpush2.bf16.msra.mxu0 0
        %5711 = vmatprep.mubr.bf16.mxu0 0
        %5712 = vmatmul.mubr.bf16.gmra.mxu0 %v5477
        %v5713 = vpop.f32.mrf.mxu0
        %v5714 = vadd.f32 %v5459, %v5713
        %v5715 = vpop.f32.mrf.mxu0
        %v5716 = vpop.f32.mrf.mxu0
        %v5717 = vpop.f32.mrf.mxu0
        %5718 = vdwg.mxu0
        %5719 = vmatprep.subr.bf16.mxu0 0
        %5720 = vmatpush1.bf16.msra.mxu0 0
        %5721 = vmatprep.subr.bf16.mxu0 0
        %5722 = vmatpush1.bf16.msra.mxu0 0
        %5723 = vmatprep.subr.bf16.mxu0 0
        %5724 = vmatpush1.bf16.msra.mxu0 0
        %5725 = vmatprep.subr.bf16.mxu0 0
        %5726 = vmatpush1.bf16.msra.mxu0 0
        %5727 = vmatprep.subr.bf16.mxu0 0
        %5728 = vmatpush1.bf16.msra.mxu0 0
        %5729 = vmatprep.subr.bf16.mxu0 0
        %5730 = vmatpush1.bf16.msra.mxu0 0
        %5731 = vmatprep.subr.bf16.mxu0 0
        %5732 = vmatpush1.bf16.msra.mxu0 %v5425
        %5733 = vmatprep.subr.bf16.mxu0 0
        %5734 = vmatpush1.bf16.msra.mxu0 %v5424
        %5735 = vmatprep.subr.bf16.mxu0 0
        %5736 = vmatpush2.bf16.msra.mxu0 0
        %5737 = vmatprep.subr.bf16.mxu0 0
        %5738 = vmatpush2.bf16.msra.mxu0 0
        %5739 = vmatprep.subr.bf16.mxu0 0
        %5740 = vmatpush2.bf16.msra.mxu0 0
        %5741 = vmatprep.subr.bf16.mxu0 0
        %5742 = vmatpush2.bf16.msra.mxu0 0
        %5743 = vmatprep.subr.bf16.mxu0 0
        %5744 = vmatpush2.bf16.msra.mxu0 0
        %5745 = vmatprep.subr.bf16.mxu0 0
        %5746 = vmatpush2.bf16.msra.mxu0 0
        %5747 = vmatprep.subr.bf16.mxu0 0
        %5748 = vmatpush2.bf16.msra.mxu0 0
        %5749 = vmatprep.subr.bf16.mxu0 0
        %5750 = vmatpush2.bf16.msra.mxu0 0
        %5751 = vmatprep.mubr.bf16.mxu0 0
        %5752 = vmatmul.mubr.bf16.gmra.mxu0 %v5477
        %v5753 = vpop.f32.mrf.mxu0
        %v5754 = vadd.f32 %v5463, %v5753
        %v5755 = vpop.f32.mrf.mxu0
        %v5756 = vpop.f32.mrf.mxu0
        %v5757 = vpop.f32.mrf.mxu0
        %5758 = vdwg.mxu0
        %5759 = vmatprep.subr.bf16.mxu0 0
        %5760 = vmatpush1.bf16.msra.mxu0 0
        %5761 = vmatprep.subr.bf16.mxu0 0
        %5762 = vmatpush1.bf16.msra.mxu0 0
        %5763 = vmatprep.subr.bf16.mxu0 0
        %5764 = vmatpush1.bf16.msra.mxu0 0
        %5765 = vmatprep.subr.bf16.mxu0 0
        %5766 = vmatpush1.bf16.msra.mxu0 0
        %5767 = vmatprep.subr.bf16.mxu0 0
        %5768 = vmatpush1.bf16.msra.mxu0 0
        %5769 = vmatprep.subr.bf16.mxu0 0
        %5770 = vmatpush1.bf16.msra.mxu0 0
        %5771 = vmatprep.subr.bf16.mxu0 0
        %5772 = vmatpush1.bf16.msra.mxu0 %v5427
        %5773 = vmatprep.subr.bf16.mxu0 0
        %5774 = vmatpush1.bf16.msra.mxu0 %v5426
        %5775 = vmatprep.subr.bf16.mxu0 0
        %5776 = vmatpush2.bf16.msra.mxu0 0
        %5777 = vmatprep.subr.bf16.mxu0 0
        %5778 = vmatpush2.bf16.msra.mxu0 0
        %5779 = vmatprep.subr.bf16.mxu0 0
        %5780 = vmatpush2.bf16.msra.mxu0 0
        %5781 = vmatprep.subr.bf16.mxu0 0
        %5782 = vmatpush2.bf16.msra.mxu0 0
        %5783 = vmatprep.subr.bf16.mxu0 0
        %5784 = vmatpush2.bf16.msra.mxu0 0
        %5785 = vmatprep.subr.bf16.mxu0 0
        %5786 = vmatpush2.bf16.msra.mxu0 0
        %5787 = vmatprep.subr.bf16.mxu0 0
        %5788 = vmatpush2.bf16.msra.mxu0 0
        %5789 = vmatprep.subr.bf16.mxu0 0
        %5790 = vmatpush2.bf16.msra.mxu0 0
        %5791 = vmatprep.mubr.bf16.mxu0 0
        %5792 = vmatmul.mubr.bf16.gmra.mxu0 %v5477
        %v5793 = vpop.f32.mrf.mxu0
        %v5794 = vadd.f32 %v5467, %v5793
        %v5795 = vpop.f32.mrf.mxu0
        %v5796 = vpop.f32.mrf.mxu0
        %v5797 = vpop.f32.mrf.mxu0
        %5798 = vdwg.mxu0
        %v5799 = vpack.c.bf16 %v5286, %v5286
        %v5800 = vpack.c.bf16 %v5326, %v5326
        %v5801 = vpack.c.bf16 %v5366, %v5366
        %v5802 = vpack.c.bf16 %v5406, %v5406
        %v5803 = vpack.c.bf16 %v5514, %v5514
        %v5804 = vpack.c.bf16 %v5554, %v5554
        %v5805 = vpack.c.bf16 %v5594, %v5594
        %v5806 = vpack.c.bf16 %v5634, %v5634
        %v5808 = vsel %vm1787, %v5799, 0
        %v5811 = vsel %vm1787, %v5803, 0
        %5813 = vmatprep.subr.bf16.mxu0 0
        %5814 = vmatpush1.bf16.xpose.msra.mxu0 0
        %5815 = vmatprep.subr.bf16.mxu0 0
        %5816 = vmatpush1.bf16.xpose.msra.mxu0 0
        %5817 = vmatprep.subr.bf16.mxu0 0
        %5818 = vmatpush1.bf16.xpose.msra.mxu0 0
        %5819 = vmatprep.subr.bf16.mxu0 0
        %5820 = vmatpush1.bf16.xpose.msra.mxu0 0
        %5821 = vmatprep.subr.bf16.mxu0 0
        %5822 = vmatpush1.bf16.xpose.msra.mxu0 0
        %5823 = vmatprep.subr.bf16.mxu0 0
        %5824 = vmatpush1.bf16.xpose.msra.mxu0 0
        %5825 = vmatprep.subr.bf16.mxu0 0
        %5826 = vmatpush1.bf16.xpose.msra.mxu0 0
        %5827 = vmatprep.subr.bf16.mxu0 0
        %5828 = vmatpush1.bf16.xpose.msra.mxu0 %v5811
        %5829 = vmatprep.subr.bf16.mxu0 0
        %5830 = vmatpush2.bf16.xpose.msra.mxu0 0
        %5831 = vmatprep.subr.bf16.mxu0 0
        %5832 = vmatpush2.bf16.xpose.msra.mxu0 0
        %5833 = vmatprep.subr.bf16.mxu0 0
        %5834 = vmatpush2.bf16.xpose.msra.mxu0 0
        %5835 = vmatprep.subr.bf16.mxu0 0
        %5836 = vmatpush2.bf16.xpose.msra.mxu0 0
        %5837 = vmatprep.subr.bf16.mxu0 0
        %5838 = vmatpush2.bf16.xpose.msra.mxu0 0
        %5839 = vmatprep.subr.bf16.mxu0 0
        %5840 = vmatpush2.bf16.xpose.msra.mxu0 0
        %5841 = vmatprep.subr.bf16.mxu0 0
        %5842 = vmatpush2.bf16.xpose.msra.mxu0 0
        %5843 = vmatprep.subr.bf16.mxu0 0
        %5844 = vmatpush2.bf16.xpose.msra.mxu0 0
        %5845 = vmatprep.mubr.bf16.mxu0 0
        %5846 = vmatmul.mubr.bf16.gmra.mxu0 %v5808
        %v5847 = vpop.f32.mrf.mxu0
        %v5848 = vadd.f32 0.0, %v5847
        %v5849 = vpop.f32.mrf.mxu0
        %v5850 = vpop.f32.mrf.mxu0
        %v5851 = vpop.f32.mrf.mxu0
        %5852 = vdwg.mxu0
        %v5854 = vsel %vm1787, %v5800, 0
        %v5857 = vsel %vm1787, %v5804, 0
        %5859 = vmatprep.subr.bf16.mxu0 0
        %5860 = vmatpush1.bf16.xpose.msra.mxu0 0
        %5861 = vmatprep.subr.bf16.mxu0 0
        %5862 = vmatpush1.bf16.xpose.msra.mxu0 0
        %5863 = vmatprep.subr.bf16.mxu0 0
        %5864 = vmatpush1.bf16.xpose.msra.mxu0 0
        %5865 = vmatprep.subr.bf16.mxu0 0
        %5866 = vmatpush1.bf16.xpose.msra.mxu0 0
        %5867 = vmatprep.subr.bf16.mxu0 0
        %5868 = vmatpush1.bf16.xpose.msra.mxu0 0
        %5869 = vmatprep.subr.bf16.mxu0 0
        %5870 = vmatpush1.bf16.xpose.msra.mxu0 0
        %5871 = vmatprep.subr.bf16.mxu0 0
        %5872 = vmatpush1.bf16.xpose.msra.mxu0 0
        %5873 = vmatprep.subr.bf16.mxu0 0
        %5874 = vmatpush1.bf16.xpose.msra.mxu0 %v5857
        %5875 = vmatprep.subr.bf16.mxu0 0
        %5876 = vmatpush2.bf16.xpose.msra.mxu0 0
        %5877 = vmatprep.subr.bf16.mxu0 0
        %5878 = vmatpush2.bf16.xpose.msra.mxu0 0
        %5879 = vmatprep.subr.bf16.mxu0 0
        %5880 = vmatpush2.bf16.xpose.msra.mxu0 0
        %5881 = vmatprep.subr.bf16.mxu0 0
        %5882 = vmatpush2.bf16.xpose.msra.mxu0 0
        %5883 = vmatprep.subr.bf16.mxu0 0
        %5884 = vmatpush2.bf16.xpose.msra.mxu0 0
        %5885 = vmatprep.subr.bf16.mxu0 0
        %5886 = vmatpush2.bf16.xpose.msra.mxu0 0
        %5887 = vmatprep.subr.bf16.mxu0 0
        %5888 = vmatpush2.bf16.xpose.msra.mxu0 0
        %5889 = vmatprep.subr.bf16.mxu0 0
        %5890 = vmatpush2.bf16.xpose.msra.mxu0 0
        %5891 = vmatprep.mubr.bf16.mxu0 0
        %5892 = vmatmul.mubr.bf16.gmra.mxu0 %v5854
        %v5893 = vpop.f32.mrf.mxu0
        %v5894 = vadd.f32 0.0, %v5893
        %v5895 = vpop.f32.mrf.mxu0
        %v5896 = vpop.f32.mrf.mxu0
        %v5897 = vpop.f32.mrf.mxu0
        %5898 = vdwg.mxu0
        %v5900 = vsel %vm1787, %v5801, 0
        %v5903 = vsel %vm1787, %v5805, 0
        %5905 = vmatprep.subr.bf16.mxu0 0
        %5906 = vmatpush1.bf16.xpose.msra.mxu0 0
        %5907 = vmatprep.subr.bf16.mxu0 0
        %5908 = vmatpush1.bf16.xpose.msra.mxu0 0
        %5909 = vmatprep.subr.bf16.mxu0 0
        %5910 = vmatpush1.bf16.xpose.msra.mxu0 0
        %5911 = vmatprep.subr.bf16.mxu0 0
        %5912 = vmatpush1.bf16.xpose.msra.mxu0 0
        %5913 = vmatprep.subr.bf16.mxu0 0
        %5914 = vmatpush1.bf16.xpose.msra.mxu0 0
        %5915 = vmatprep.subr.bf16.mxu0 0
        %5916 = vmatpush1.bf16.xpose.msra.mxu0 0
        %5917 = vmatprep.subr.bf16.mxu0 0
        %5918 = vmatpush1.bf16.xpose.msra.mxu0 0
        %5919 = vmatprep.subr.bf16.mxu0 0
        %5920 = vmatpush1.bf16.xpose.msra.mxu0 %v5903
        %5921 = vmatprep.subr.bf16.mxu0 0
        %5922 = vmatpush2.bf16.xpose.msra.mxu0 0
        %5923 = vmatprep.subr.bf16.mxu0 0
        %5924 = vmatpush2.bf16.xpose.msra.mxu0 0
        %5925 = vmatprep.subr.bf16.mxu0 0
        %5926 = vmatpush2.bf16.xpose.msra.mxu0 0
        %5927 = vmatprep.subr.bf16.mxu0 0
        %5928 = vmatpush2.bf16.xpose.msra.mxu0 0
        %5929 = vmatprep.subr.bf16.mxu0 0
        %5930 = vmatpush2.bf16.xpose.msra.mxu0 0
        %5931 = vmatprep.subr.bf16.mxu0 0
        %5932 = vmatpush2.bf16.xpose.msra.mxu0 0
        %5933 = vmatprep.subr.bf16.mxu0 0
        %5934 = vmatpush2.bf16.xpose.msra.mxu0 0
        %5935 = vmatprep.subr.bf16.mxu0 0
        %5936 = vmatpush2.bf16.xpose.msra.mxu0 0
        %5937 = vmatprep.mubr.bf16.mxu0 0
        %5938 = vmatmul.mubr.bf16.gmra.mxu0 %v5900
        %v5939 = vpop.f32.mrf.mxu0
        %v5940 = vadd.f32 0.0, %v5939
        %v5941 = vpop.f32.mrf.mxu0
        %v5942 = vpop.f32.mrf.mxu0
        %v5943 = vpop.f32.mrf.mxu0
        %5944 = vdwg.mxu0
        %v5946 = vsel %vm1787, %v5802, 0
        %v5949 = vsel %vm1787, %v5806, 0
        %5951 = vmatprep.subr.bf16.mxu0 0
        %5952 = vmatpush1.bf16.xpose.msra.mxu0 0
        %5953 = vmatprep.subr.bf16.mxu0 0
        %5954 = vmatpush1.bf16.xpose.msra.mxu0 0
        %5955 = vmatprep.subr.bf16.mxu0 0
        %5956 = vmatpush1.bf16.xpose.msra.mxu0 0
        %5957 = vmatprep.subr.bf16.mxu0 0
        %5958 = vmatpush1.bf16.xpose.msra.mxu0 0
        %5959 = vmatprep.subr.bf16.mxu0 0
        %5960 = vmatpush1.bf16.xpose.msra.mxu0 0
        %5961 = vmatprep.subr.bf16.mxu0 0
        %5962 = vmatpush1.bf16.xpose.msra.mxu0 0
        %5963 = vmatprep.subr.bf16.mxu0 0
        %5964 = vmatpush1.bf16.xpose.msra.mxu0 0
        %5965 = vmatprep.subr.bf16.mxu0 0
        %5966 = vmatpush1.bf16.xpose.msra.mxu0 %v5949
        %5967 = vmatprep.subr.bf16.mxu0 0
        %5968 = vmatpush2.bf16.xpose.msra.mxu0 0
        %5969 = vmatprep.subr.bf16.mxu0 0
        %5970 = vmatpush2.bf16.xpose.msra.mxu0 0
        %5971 = vmatprep.subr.bf16.mxu0 0
        %5972 = vmatpush2.bf16.xpose.msra.mxu0 0
        %5973 = vmatprep.subr.bf16.mxu0 0
        %5974 = vmatpush2.bf16.xpose.msra.mxu0 0
        %5975 = vmatprep.subr.bf16.mxu0 0
        %5976 = vmatpush2.bf16.xpose.msra.mxu0 0
        %5977 = vmatprep.subr.bf16.mxu0 0
        %5978 = vmatpush2.bf16.xpose.msra.mxu0 0
        %5979 = vmatprep.subr.bf16.mxu0 0
        %5980 = vmatpush2.bf16.xpose.msra.mxu0 0
        %5981 = vmatprep.subr.bf16.mxu0 0
        %5982 = vmatpush2.bf16.xpose.msra.mxu0 0
        %5983 = vmatprep.mubr.bf16.mxu0 0
        %5984 = vmatmul.mubr.bf16.gmra.mxu0 %v5946
        %v5985 = vpop.f32.mrf.mxu0
        %v5986 = vadd.f32 0.0, %v5985
        %v5987 = vpop.f32.mrf.mxu0
        %v5988 = vpop.f32.mrf.mxu0
        %v5989 = vpop.f32.mrf.mxu0
        %5990 = vdwg.mxu0
        %v5991 = vmul.f32 %v5848, 0.35355338
        %v5992 = vmul.f32 %v5894, 0.35355338
        %v5993 = vmul.f32 %v5940, 0.35355338
        %v5994 = vmul.f32 %v5986, 0.35355338
        %v5995 = vadd.f32 %v5991, %v1980
        %v5996 = vadd.f32 %v5992, %v1980
        %v5997 = vadd.f32 %v5993, %v1980
        %v5998 = vadd.f32 %v5994, %v1980
        %v5999 = vsel %vm1787, %v5995, -inf
        %6000 = vmax.xlane.f32.xlu0 %v5999
        %v6001 = vpop.xlane.xlu0 %6000
        %v6002 = vsel %vm1787, %v5996, -inf
        %6003 = vmax.xlane.f32.xlu0 %v6002
        %v6004 = vpop.xlane.xlu0 %6003
        %v6005 = vsel %vm1787, %v5997, -inf
        %6006 = vmax.xlane.f32.xlu0 %v6005
        %v6007 = vpop.xlane.xlu0 %6006
        %v6008 = vsel %vm1787, %v5998, -inf
        %6009 = vmax.xlane.f32.xlu0 %v6008
        %v6010 = vpop.xlane.xlu0 %6009
        %v6011 = vsub.f32 %v5995, %v6001
        %v6012 = vsub.f32 %v5996, %v6004
        %v6013 = vsub.f32 %v5997, %v6007
        %v6014 = vsub.f32 %v5998, %v6010
        %v6015 = vmul.f32 %v6011, 1.442695
        %v6016 = vpow.pop %v6015
        %v6017 = vmul.f32 %v6012, 1.442695
        %v6018 = vpow.pop %v6017
        %v6019 = vmul.f32 %v6013, 1.442695
        %v6020 = vpow.pop %v6019
        %v6021 = vmul.f32 %v6014, 1.442695
        %v6022 = vpow.pop %v6021
        %v6023 = vsel %vm1787, %v6016, 0.0
        %6024 = vadd.xlane.f32.xlu0 %v6023
        %v6025 = vpop.xlane.xlu0 %6024
        %v6026 = vsel %vm1787, %v6018, 0.0
        %6027 = vadd.xlane.f32.xlu0 %v6026
        %v6028 = vpop.xlane.xlu0 %6027
        %v6029 = vsel %vm1787, %v6020, 0.0
        %6030 = vadd.xlane.f32.xlu0 %v6029
        %v6031 = vpop.xlane.xlu0 %6030
        %v6032 = vsel %vm1787, %v6022, 0.0
        %6033 = vadd.xlane.f32.xlu0 %v6032
        %v6034 = vpop.xlane.xlu0 %6033
        %v6035 = vrcp.pop %v6025
        %v6036 = vrcp.pop %v6028
        %v6037 = vrcp.pop %v6031
        %v6038 = vrcp.pop %v6034
        %v6039 = vmul.f32 %v6016, %v6035
        %v6040 = vmul.f32 %v6018, %v6036
        %v6041 = vmul.f32 %v6020, %v6037
        %v6042 = vmul.f32 %v6022, %v6038
        %v6043 = vpack.c.bf16 %v6039, %v6039
        %v6044 = vpack.c.bf16 %v6040, %v6040
        %v6045 = vpack.c.bf16 %v6041, %v6041
        %v6046 = vpack.c.bf16 %v6042, %v6042
        %v6047 = vpack.c.bf16 %v5674, %v5674
        %v6048 = vpack.c.bf16 %v5714, %v5714
        %v6049 = vpack.c.bf16 %v5754, %v5754
        %v6050 = vpack.c.bf16 %v5794, %v5794
        %v6052 = vsel %vm1787, %v6043, 0
        %v6055 = vsel %vm2041, %v6047, 0
        %6057 = vmatprep.subr.bf16.mxu0 0
        %6058 = vmatpush1.bf16.msra.mxu0 0
        %6059 = vmatprep.subr.bf16.mxu0 0
        %6060 = vmatpush1.bf16.msra.mxu0 0
        %6061 = vmatprep.subr.bf16.mxu0 0
        %6062 = vmatpush1.bf16.msra.mxu0 0
        %6063 = vmatprep.subr.bf16.mxu0 0
        %6064 = vmatpush1.bf16.msra.mxu0 0
        %6065 = vmatprep.subr.bf16.mxu0 0
        %6066 = vmatpush1.bf16.msra.mxu0 0
        %6067 = vmatprep.subr.bf16.mxu0 0
        %6068 = vmatpush1.bf16.msra.mxu0 0
        %6069 = vmatprep.subr.bf16.mxu0 0
        %6070 = vmatpush1.bf16.msra.mxu0 0
        %6071 = vmatprep.subr.bf16.mxu0 0
        %6072 = vmatpush1.bf16.msra.mxu0 %v6055
        %6073 = vmatprep.subr.bf16.mxu0 0
        %6074 = vmatpush2.bf16.msra.mxu0 0
        %6075 = vmatprep.subr.bf16.mxu0 0
        %6076 = vmatpush2.bf16.msra.mxu0 0
        %6077 = vmatprep.subr.bf16.mxu0 0
        %6078 = vmatpush2.bf16.msra.mxu0 0
        %6079 = vmatprep.subr.bf16.mxu0 0
        %6080 = vmatpush2.bf16.msra.mxu0 0
        %6081 = vmatprep.subr.bf16.mxu0 0
        %6082 = vmatpush2.bf16.msra.mxu0 0
        %6083 = vmatprep.subr.bf16.mxu0 0
        %6084 = vmatpush2.bf16.msra.mxu0 0
        %6085 = vmatprep.subr.bf16.mxu0 0
        %6086 = vmatpush2.bf16.msra.mxu0 0
        %6087 = vmatprep.subr.bf16.mxu0 0
        %6088 = vmatpush2.bf16.msra.mxu0 0
        %6089 = vmatprep.mubr.bf16.mxu0 0
        %6090 = vmatmul.mubr.bf16.gmra.mxu0 %v6052
        %v6091 = vpop.f32.mrf.mxu0
        %v6092 = vadd.f32 0.0, %v6091
        %v6093 = vpop.f32.mrf.mxu0
        %v6094 = vpop.f32.mrf.mxu0
        %v6095 = vpop.f32.mrf.mxu0
        %6096 = vdwg.mxu0
        %v6098 = vsel %vm1787, %v6044, 0
        %v6101 = vsel %vm2041, %v6048, 0
        %6103 = vmatprep.subr.bf16.mxu0 0
        %6104 = vmatpush1.bf16.msra.mxu0 0
        %6105 = vmatprep.subr.bf16.mxu0 0
        %6106 = vmatpush1.bf16.msra.mxu0 0
        %6107 = vmatprep.subr.bf16.mxu0 0
        %6108 = vmatpush1.bf16.msra.mxu0 0
        %6109 = vmatprep.subr.bf16.mxu0 0
        %6110 = vmatpush1.bf16.msra.mxu0 0
        %6111 = vmatprep.subr.bf16.mxu0 0
        %6112 = vmatpush1.bf16.msra.mxu0 0
        %6113 = vmatprep.subr.bf16.mxu0 0
        %6114 = vmatpush1.bf16.msra.mxu0 0
        %6115 = vmatprep.subr.bf16.mxu0 0
        %6116 = vmatpush1.bf16.msra.mxu0 0
        %6117 = vmatprep.subr.bf16.mxu0 0
        %6118 = vmatpush1.bf16.msra.mxu0 %v6101
        %6119 = vmatprep.subr.bf16.mxu0 0
        %6120 = vmatpush2.bf16.msra.mxu0 0
        %6121 = vmatprep.subr.bf16.mxu0 0
        %6122 = vmatpush2.bf16.msra.mxu0 0
        %6123 = vmatprep.subr.bf16.mxu0 0
        %6124 = vmatpush2.bf16.msra.mxu0 0
        %6125 = vmatprep.subr.bf16.mxu0 0
        %6126 = vmatpush2.bf16.msra.mxu0 0
        %6127 = vmatprep.subr.bf16.mxu0 0
        %6128 = vmatpush2.bf16.msra.mxu0 0
        %6129 = vmatprep.subr.bf16.mxu0 0
        %6130 = vmatpush2.bf16.msra.mxu0 0
        %6131 = vmatprep.subr.bf16.mxu0 0
        %6132 = vmatpush2.bf16.msra.mxu0 0
        %6133 = vmatprep.subr.bf16.mxu0 0
        %6134 = vmatpush2.bf16.msra.mxu0 0
        %6135 = vmatprep.mubr.bf16.mxu0 0
        %6136 = vmatmul.mubr.bf16.gmra.mxu0 %v6098
        %v6137 = vpop.f32.mrf.mxu0
        %v6138 = vadd.f32 0.0, %v6137
        %v6139 = vpop.f32.mrf.mxu0
        %v6140 = vpop.f32.mrf.mxu0
        %v6141 = vpop.f32.mrf.mxu0
        %6142 = vdwg.mxu0
        %v6144 = vsel %vm1787, %v6045, 0
        %v6147 = vsel %vm2041, %v6049, 0
        %6149 = vmatprep.subr.bf16.mxu0 0
        %6150 = vmatpush1.bf16.msra.mxu0 0
        %6151 = vmatprep.subr.bf16.mxu0 0
        %6152 = vmatpush1.bf16.msra.mxu0 0
        %6153 = vmatprep.subr.bf16.mxu0 0
        %6154 = vmatpush1.bf16.msra.mxu0 0
        %6155 = vmatprep.subr.bf16.mxu0 0
        %6156 = vmatpush1.bf16.msra.mxu0 0
        %6157 = vmatprep.subr.bf16.mxu0 0
        %6158 = vmatpush1.bf16.msra.mxu0 0
        %6159 = vmatprep.subr.bf16.mxu0 0
        %6160 = vmatpush1.bf16.msra.mxu0 0
        %6161 = vmatprep.subr.bf16.mxu0 0
        %6162 = vmatpush1.bf16.msra.mxu0 0
        %6163 = vmatprep.subr.bf16.mxu0 0
        %6164 = vmatpush1.bf16.msra.mxu0 %v6147
        %6165 = vmatprep.subr.bf16.mxu0 0
        %6166 = vmatpush2.bf16.msra.mxu0 0
        %6167 = vmatprep.subr.bf16.mxu0 0
        %6168 = vmatpush2.bf16.msra.mxu0 0
        %6169 = vmatprep.subr.bf16.mxu0 0
        %6170 = vmatpush2.bf16.msra.mxu0 0
        %6171 = vmatprep.subr.bf16.mxu0 0
        %6172 = vmatpush2.bf16.msra.mxu0 0
        %6173 = vmatprep.subr.bf16.mxu0 0
        %6174 = vmatpush2.bf16.msra.mxu0 0
        %6175 = vmatprep.subr.bf16.mxu0 0
        %6176 = vmatpush2.bf16.msra.mxu0 0
        %6177 = vmatprep.subr.bf16.mxu0 0
        %6178 = vmatpush2.bf16.msra.mxu0 0
        %6179 = vmatprep.subr.bf16.mxu0 0
        %6180 = vmatpush2.bf16.msra.mxu0 0
        %6181 = vmatprep.mubr.bf16.mxu0 0
        %6182 = vmatmul.mubr.bf16.gmra.mxu0 %v6144
        %v6183 = vpop.f32.mrf.mxu0
        %v6184 = vadd.f32 0.0, %v6183
        %v6185 = vpop.f32.mrf.mxu0
        %v6186 = vpop.f32.mrf.mxu0
        %v6187 = vpop.f32.mrf.mxu0
        %6188 = vdwg.mxu0
        %v6190 = vsel %vm1787, %v6046, 0
        %v6193 = vsel %vm2041, %v6050, 0
        %6195 = vmatprep.subr.bf16.mxu0 0
        %6196 = vmatpush1.bf16.msra.mxu0 0
        %6197 = vmatprep.subr.bf16.mxu0 0
        %6198 = vmatpush1.bf16.msra.mxu0 0
        %6199 = vmatprep.subr.bf16.mxu0 0
        %6200 = vmatpush1.bf16.msra.mxu0 0
        %6201 = vmatprep.subr.bf16.mxu0 0
        %6202 = vmatpush1.bf16.msra.mxu0 0
        %6203 = vmatprep.subr.bf16.mxu0 0
        %6204 = vmatpush1.bf16.msra.mxu0 0
        %6205 = vmatprep.subr.bf16.mxu0 0
        %6206 = vmatpush1.bf16.msra.mxu0 0
        %6207 = vmatprep.subr.bf16.mxu0 0
        %6208 = vmatpush1.bf16.msra.mxu0 0
        %6209 = vmatprep.subr.bf16.mxu0 0
        %6210 = vmatpush1.bf16.msra.mxu0 %v6193
        %6211 = vmatprep.subr.bf16.mxu0 0
        %6212 = vmatpush2.bf16.msra.mxu0 0
        %6213 = vmatprep.subr.bf16.mxu0 0
        %6214 = vmatpush2.bf16.msra.mxu0 0
        %6215 = vmatprep.subr.bf16.mxu0 0
        %6216 = vmatpush2.bf16.msra.mxu0 0
        %6217 = vmatprep.subr.bf16.mxu0 0
        %6218 = vmatpush2.bf16.msra.mxu0 0
        %6219 = vmatprep.subr.bf16.mxu0 0
        %6220 = vmatpush2.bf16.msra.mxu0 0
        %6221 = vmatprep.subr.bf16.mxu0 0
        %6222 = vmatpush2.bf16.msra.mxu0 0
        %6223 = vmatprep.subr.bf16.mxu0 0
        %6224 = vmatpush2.bf16.msra.mxu0 0
        %6225 = vmatprep.subr.bf16.mxu0 0
        %6226 = vmatpush2.bf16.msra.mxu0 0
        %6227 = vmatprep.mubr.bf16.mxu0 0
        %6228 = vmatmul.mubr.bf16.gmra.mxu0 %v6190
        %v6229 = vpop.f32.mrf.mxu0
        %v6230 = vadd.f32 0.0, %v6229
        %v6231 = vpop.f32.mrf.mxu0
        %v6232 = vpop.f32.mrf.mxu0
        %v6233 = vpop.f32.mrf.mxu0
        %6234 = vdwg.mxu0
        %v6235 = vpack.c.bf16 %v6092, %v6092
        %v6236 = vpack.c.bf16 %v6138, %v6138
        %v6237 = vpack.c.bf16 %v6184, %v6184
        %v6238 = vpack.c.bf16 %v6230, %v6230
        %v6239 = vpack.c.bf16 %v5214, %v5214
        %v6240 = vpack.c.bf16 %v5215, %v5215
        %v6241 = vpack.c.bf16 %v5216, %v5216
        %v6242 = vpack.c.bf16 %v5217, %v5217
        %v6244 = vsel %vm1787, %v6235, 0
        %v6247 = vsel %vm2041, %v6239, 0
        %6249 = vmatprep.subr.bf16.mxu0 0
        %6250 = vmatpush1.bf16.msra.mxu0 0
        %6251 = vmatprep.subr.bf16.mxu0 0
        %6252 = vmatpush1.bf16.msra.mxu0 0
        %6253 = vmatprep.subr.bf16.mxu0 0
        %6254 = vmatpush1.bf16.msra.mxu0 0
        %6255 = vmatprep.subr.bf16.mxu0 0
        %6256 = vmatpush1.bf16.msra.mxu0 0
        %6257 = vmatprep.subr.bf16.mxu0 0
        %6258 = vmatpush1.bf16.msra.mxu0 0
        %6259 = vmatprep.subr.bf16.mxu0 0
        %6260 = vmatpush1.bf16.msra.mxu0 0
        %6261 = vmatprep.subr.bf16.mxu0 0
        %6262 = vmatpush1.bf16.msra.mxu0 0
        %6263 = vmatprep.subr.bf16.mxu0 0
        %6264 = vmatpush1.bf16.msra.mxu0 %v6247
        %6265 = vmatprep.subr.bf16.mxu0 0
        %6266 = vmatpush2.bf16.msra.mxu0 0
        %6267 = vmatprep.subr.bf16.mxu0 0
        %6268 = vmatpush2.bf16.msra.mxu0 0
        %6269 = vmatprep.subr.bf16.mxu0 0
        %6270 = vmatpush2.bf16.msra.mxu0 0
        %6271 = vmatprep.subr.bf16.mxu0 0
        %6272 = vmatpush2.bf16.msra.mxu0 0
        %6273 = vmatprep.subr.bf16.mxu0 0
        %6274 = vmatpush2.bf16.msra.mxu0 0
        %6275 = vmatprep.subr.bf16.mxu0 0
        %6276 = vmatpush2.bf16.msra.mxu0 0
        %6277 = vmatprep.subr.bf16.mxu0 0
        %6278 = vmatpush2.bf16.msra.mxu0 0
        %6279 = vmatprep.subr.bf16.mxu0 0
        %6280 = vmatpush2.bf16.msra.mxu0 0
        %6281 = vmatprep.mubr.bf16.mxu0 0
        %6282 = vmatmul.mubr.bf16.gmra.mxu0 %v6244
        %v6283 = vpop.f32.mrf.mxu0
        %v6284 = vadd.f32 0.0, %v6283
        %v6285 = vpop.f32.mrf.mxu0
        %v6286 = vpop.f32.mrf.mxu0
        %v6287 = vpop.f32.mrf.mxu0
        %6288 = vdwg.mxu0
        %v6290 = vsel %vm1787, %v6236, 0
        %v6293 = vsel %vm2041, %v6240, 0
        %6295 = vmatprep.subr.bf16.mxu0 0
        %6296 = vmatpush1.bf16.msra.mxu0 0
        %6297 = vmatprep.subr.bf16.mxu0 0
        %6298 = vmatpush1.bf16.msra.mxu0 0
        %6299 = vmatprep.subr.bf16.mxu0 0
        %6300 = vmatpush1.bf16.msra.mxu0 0
        %6301 = vmatprep.subr.bf16.mxu0 0
        %6302 = vmatpush1.bf16.msra.mxu0 0
        %6303 = vmatprep.subr.bf16.mxu0 0
        %6304 = vmatpush1.bf16.msra.mxu0 0
        %6305 = vmatprep.subr.bf16.mxu0 0
        %6306 = vmatpush1.bf16.msra.mxu0 0
        %6307 = vmatprep.subr.bf16.mxu0 0
        %6308 = vmatpush1.bf16.msra.mxu0 0
        %6309 = vmatprep.subr.bf16.mxu0 0
        %6310 = vmatpush1.bf16.msra.mxu0 %v6293
        %6311 = vmatprep.subr.bf16.mxu0 0
        %6312 = vmatpush2.bf16.msra.mxu0 0
        %6313 = vmatprep.subr.bf16.mxu0 0
        %6314 = vmatpush2.bf16.msra.mxu0 0
        %6315 = vmatprep.subr.bf16.mxu0 0
        %6316 = vmatpush2.bf16.msra.mxu0 0
        %6317 = vmatprep.subr.bf16.mxu0 0
        %6318 = vmatpush2.bf16.msra.mxu0 0
        %6319 = vmatprep.subr.bf16.mxu0 0
        %6320 = vmatpush2.bf16.msra.mxu0 0
        %6321 = vmatprep.subr.bf16.mxu0 0
        %6322 = vmatpush2.bf16.msra.mxu0 0
        %6323 = vmatprep.subr.bf16.mxu0 0
        %6324 = vmatpush2.bf16.msra.mxu0 0
        %6325 = vmatprep.subr.bf16.mxu0 0
        %6326 = vmatpush2.bf16.msra.mxu0 0
        %6327 = vmatprep.mubr.bf16.mxu0 0
        %6328 = vmatmul.mubr.bf16.gmra.mxu0 %v6290
        %v6329 = vpop.f32.mrf.mxu0
        %v6330 = vadd.f32 0.0, %v6329
        %v6331 = vpop.f32.mrf.mxu0
        %v6332 = vpop.f32.mrf.mxu0
        %v6333 = vpop.f32.mrf.mxu0
        %6334 = vdwg.mxu0
        %v6336 = vsel %vm1787, %v6237, 0
        %v6339 = vsel %vm2041, %v6241, 0
        %6341 = vmatprep.subr.bf16.mxu0 0
        %6342 = vmatpush1.bf16.msra.mxu0 0
        %6343 = vmatprep.subr.bf16.mxu0 0
        %6344 = vmatpush1.bf16.msra.mxu0 0
        %6345 = vmatprep.subr.bf16.mxu0 0
        %6346 = vmatpush1.bf16.msra.mxu0 0
        %6347 = vmatprep.subr.bf16.mxu0 0
        %6348 = vmatpush1.bf16.msra.mxu0 0
        %6349 = vmatprep.subr.bf16.mxu0 0
        %6350 = vmatpush1.bf16.msra.mxu0 0
        %6351 = vmatprep.subr.bf16.mxu0 0
        %6352 = vmatpush1.bf16.msra.mxu0 0
        %6353 = vmatprep.subr.bf16.mxu0 0
        %6354 = vmatpush1.bf16.msra.mxu0 0
        %6355 = vmatprep.subr.bf16.mxu0 0
        %6356 = vmatpush1.bf16.msra.mxu0 %v6339
        %6357 = vmatprep.subr.bf16.mxu0 0
        %6358 = vmatpush2.bf16.msra.mxu0 0
        %6359 = vmatprep.subr.bf16.mxu0 0
        %6360 = vmatpush2.bf16.msra.mxu0 0
        %6361 = vmatprep.subr.bf16.mxu0 0
        %6362 = vmatpush2.bf16.msra.mxu0 0
        %6363 = vmatprep.subr.bf16.mxu0 0
        %6364 = vmatpush2.bf16.msra.mxu0 0
        %6365 = vmatprep.subr.bf16.mxu0 0
        %6366 = vmatpush2.bf16.msra.mxu0 0
        %6367 = vmatprep.subr.bf16.mxu0 0
        %6368 = vmatpush2.bf16.msra.mxu0 0
        %6369 = vmatprep.subr.bf16.mxu0 0
        %6370 = vmatpush2.bf16.msra.mxu0 0
        %6371 = vmatprep.subr.bf16.mxu0 0
        %6372 = vmatpush2.bf16.msra.mxu0 0
        %6373 = vmatprep.mubr.bf16.mxu0 0
        %6374 = vmatmul.mubr.bf16.gmra.mxu0 %v6336
        %v6375 = vpop.f32.mrf.mxu0
        %v6376 = vadd.f32 0.0, %v6375
        %v6377 = vpop.f32.mrf.mxu0
        %v6378 = vpop.f32.mrf.mxu0
        %v6379 = vpop.f32.mrf.mxu0
        %6380 = vdwg.mxu0
        %v6382 = vsel %vm1787, %v6238, 0
        %v6385 = vsel %vm2041, %v6242, 0
        %6387 = vmatprep.subr.bf16.mxu0 0
        %6388 = vmatpush1.bf16.msra.mxu0 0
        %6389 = vmatprep.subr.bf16.mxu0 0
        %6390 = vmatpush1.bf16.msra.mxu0 0
        %6391 = vmatprep.subr.bf16.mxu0 0
        %6392 = vmatpush1.bf16.msra.mxu0 0
        %6393 = vmatprep.subr.bf16.mxu0 0
        %6394 = vmatpush1.bf16.msra.mxu0 0
        %6395 = vmatprep.subr.bf16.mxu0 0
        %6396 = vmatpush1.bf16.msra.mxu0 0
        %6397 = vmatprep.subr.bf16.mxu0 0
        %6398 = vmatpush1.bf16.msra.mxu0 0
        %6399 = vmatprep.subr.bf16.mxu0 0
        %6400 = vmatpush1.bf16.msra.mxu0 0
        %6401 = vmatprep.subr.bf16.mxu0 0
        %6402 = vmatpush1.bf16.msra.mxu0 %v6385
        %6403 = vmatprep.subr.bf16.mxu0 0
        %6404 = vmatpush2.bf16.msra.mxu0 0
        %6405 = vmatprep.subr.bf16.mxu0 0
        %6406 = vmatpush2.bf16.msra.mxu0 0
        %6407 = vmatprep.subr.bf16.mxu0 0
        %6408 = vmatpush2.bf16.msra.mxu0 0
        %6409 = vmatprep.subr.bf16.mxu0 0
        %6410 = vmatpush2.bf16.msra.mxu0 0
        %6411 = vmatprep.subr.bf16.mxu0 0
        %6412 = vmatpush2.bf16.msra.mxu0 0
        %6413 = vmatprep.subr.bf16.mxu0 0
        %6414 = vmatpush2.bf16.msra.mxu0 0
        %6415 = vmatprep.subr.bf16.mxu0 0
        %6416 = vmatpush2.bf16.msra.mxu0 0
        %6417 = vmatprep.subr.bf16.mxu0 0
        %6418 = vmatpush2.bf16.msra.mxu0 0
        %6419 = vmatprep.mubr.bf16.mxu0 0
        %6420 = vmatmul.mubr.bf16.gmra.mxu0 %v6382
        %v6421 = vpop.f32.mrf.mxu0
        %v6422 = vadd.f32 0.0, %v6421
        %v6423 = vpop.f32.mrf.mxu0
        %v6424 = vpop.f32.mrf.mxu0
        %v6425 = vpop.f32.mrf.mxu0
        %6426 = vdwg.mxu0
        %v6427 = vsel %vm1231, %v6284, 0.0
        %v6428 = vsel %vm1231, %v6330, 0.0
        %v6429 = vadd.f32 %v6427, %v6428
        %v6430 = vsel %vm1231, %v6376, 0.0
        %v6431 = vadd.f32 %v6429, %v6430
        %v6432 = vsel %vm1231, %v6422, 0.0
        %v6433 = vadd.f32 %v6431, %v6432
        %v6435 = vlaneseq
        %v6436 = vshrl.u32 %v6435, 7
        %v6437 = vsub.s32 0, %v6436
        %v6438 = vrot.slane %v5218, %v6437
        %v6440 = vadd.f32 %v6433, %v6438
        %v6441 = vadd.f32 %v6440, %v4107
        %v6442 = vld [vmem:[%s61] sm:$0x1]
        %v6443 = vld [vmem:[%s63] sm:$0x1]
        %v6444 = vsel %vm1231, %v6441, 0.0
        %6445 = vadd.xlane.f32.xlu0 %v6444
        %v6446 = vpop.xlane.xlu0 %6445
        %v6447 = vmul.f32 %v6446, %v2435
        %v6448 = vsub.f32 %v6441, %v6447
        %v6449 = vmul.f32 %v6448, %v6448
        %v6450 = vsel %vm1231, %v6449, 0.0
        %6451 = vadd.xlane.f32.xlu0 %v6450
        %v6452 = vpop.xlane.xlu0 %6451
        %v6453 = vmul.f32 %v6452, %v2435
        %v6454 = vadd.f32 %v6453, 1e-05
        %v6455 = vrsqrt.pop %v6454
        %v6456 = vmul.f32 %v6448, %v6455
        %v6458 = vlaneseq
        %v6459 = vshrl.u32 %v6458, 7
        %v6460 = vsub.s32 0, %v6459
        %v6461 = vrot.slane %v6442, %v6460
        %v6463 = vmul.f32 %v6456, %v6461
        %v6465 = vlaneseq
        %v6466 = vshrl.u32 %v6465, 7
        %v6467 = vsub.s32 0, %v6466
        %v6468 = vrot.slane %v6443, %v6467
        %v6470 = vadd.f32 %v6463, %v6468
        %s6471 = scalar_lea.vmem %s9, 768
        %v6472 = vld [vmem:[%s6471] sm:$0xff]
        %v6473 = vld [vmem:[%s6471 + $0x8] sm:$0xff]
        %v6474 = vld [vmem:[%s6471 + $0x10] sm:$0xff]
        %v6475 = vld [vmem:[%s6471 + $0x18] sm:$0xff]
        %v6476 = vld [vmem:[%s6471 + $0x20] sm:$0xff]
        %v6477 = vld [vmem:[%s6471 + $0x28] sm:$0xff]
        %v6478 = vld [vmem:[%s6471 + $0x30] sm:$0xff]
        %v6479 = vld [vmem:[%s6471 + $0x38] sm:$0xff]
        %v6480 = vld [vmem:[%s6471 + $0x40] sm:$0xff]
        %v6481 = vld [vmem:[%s6471 + $0x48] sm:$0xff]
        %v6482 = vld [vmem:[%s6471 + $0x50] sm:$0xff]
        %v6483 = vld [vmem:[%s6471 + $0x58] sm:$0xff]
        %v6484 = vld [vmem:[%s6471 + $0x60] sm:$0xff]
        %v6485 = vld [vmem:[%s6471 + $0x68] sm:$0xff]
        %v6486 = vld [vmem:[%s6471 + $0x70] sm:$0xff]
        %v6487 = vld [vmem:[%s6471 + $0x78] sm:$0xff]
        %v6488 = vld [vmem:[%s6471 + $0x80] sm:$0xff]
        %v6489 = vld [vmem:[%s6471 + $0x88] sm:$0xff]
        %v6490 = vld [vmem:[%s6471 + $0x90] sm:$0xff]
        %v6491 = vld [vmem:[%s6471 + $0x98] sm:$0xff]
        %v6492 = vld [vmem:[%s6471 + $0xa0] sm:$0xff]
        %v6493 = vld [vmem:[%s6471 + $0xa8] sm:$0xff]
        %v6494 = vld [vmem:[%s6471 + $0xb0] sm:$0xff]
        %v6495 = vld [vmem:[%s6471 + $0xb8] sm:$0xff]
        %v6496 = vld [vmem:[%s6471 + $0xc0] sm:$0xff]
        %v6497 = vld [vmem:[%s6471 + $0xc8] sm:$0xff]
        %v6498 = vld [vmem:[%s6471 + $0xd0] sm:$0xff]
        %v6499 = vld [vmem:[%s6471 + $0xd8] sm:$0xff]
        %v6500 = vld [vmem:[%s6471 + $0xe0] sm:$0xff]
        %v6501 = vld [vmem:[%s6471 + $0xe8] sm:$0xff]
        %v6502 = vld [vmem:[%s6471 + $0xf0] sm:$0xff]
        %v6503 = vld [vmem:[%s6471 + $0xf8] sm:$0xff]
        %v6504 = vld [vmem:[%s6471 + $0x100] sm:$0xff]
        %v6505 = vld [vmem:[%s6471 + $0x108] sm:$0xff]
        %v6506 = vld [vmem:[%s6471 + $0x110] sm:$0xff]
        %v6507 = vld [vmem:[%s6471 + $0x118] sm:$0xff]
        %v6508 = vld [vmem:[%s6471 + $0x120] sm:$0xff]
        %v6509 = vld [vmem:[%s6471 + $0x128] sm:$0xff]
        %v6510 = vld [vmem:[%s6471 + $0x130] sm:$0xff]
        %v6511 = vld [vmem:[%s6471 + $0x138] sm:$0xff]
        %v6512 = vld [vmem:[%s6471 + $0x140] sm:$0xff]
        %v6513 = vld [vmem:[%s6471 + $0x148] sm:$0xff]
        %v6514 = vld [vmem:[%s6471 + $0x150] sm:$0xff]
        %v6515 = vld [vmem:[%s6471 + $0x158] sm:$0xff]
        %v6516 = vld [vmem:[%s6471 + $0x160] sm:$0xff]
        %v6517 = vld [vmem:[%s6471 + $0x168] sm:$0xff]
        %v6518 = vld [vmem:[%s6471 + $0x170] sm:$0xff]
        %v6519 = vld [vmem:[%s6471 + $0x178] sm:$0xff]
        %s6520 = scalar_lea.vmem %s11, 24
        %v6521 = vld [vmem:[%s6520] sm:$0x1]
        %v6522 = vld [vmem:[%s6520 + $0x1] sm:$0x1]
        %v6523 = vld [vmem:[%s6520 + $0x2] sm:$0x1]
        %v6524 = vld [vmem:[%s6520 + $0x3] sm:$0x1]
        %v6525 = vld [vmem:[%s6520 + $0x4] sm:$0x1]
        %v6526 = vld [vmem:[%s6520 + $0x5] sm:$0x1]
        %v6527 = vld [vmem:[%s6520 + $0x6] sm:$0x1]
        %v6528 = vld [vmem:[%s6520 + $0x7] sm:$0x1]
        %v6529 = vld [vmem:[%s6520 + $0x8] sm:$0x1]
        %v6530 = vld [vmem:[%s6520 + $0x9] sm:$0x1]
        %v6531 = vld [vmem:[%s6520 + $0xa] sm:$0x1]
        %v6532 = vld [vmem:[%s6520 + $0xb] sm:$0x1]
        %s6533 = scalar_lea.vmem %s13, 64
        %v6534 = vld [vmem:[%s6533] sm:$0xff]
        %v6535 = vld [vmem:[%s6533 + $0x8] sm:$0xff]
        %v6536 = vld [vmem:[%s6533 + $0x10] sm:$0xff]
        %v6537 = vld [vmem:[%s6533 + $0x18] sm:$0xff]
        %s6538 = scalar_lea.vmem %s15, 2
        %v6539 = vld [vmem:[%s6538] sm:$0x1]
        %v6540 = vpack.c.bf16 %v6470, %v6470
        %v6541 = vpack.c.bf16 %v6473, %v6472
        %v6542 = vpack.c.bf16 %v6475, %v6474
        %v6543 = vpack.c.bf16 %v6477, %v6476
        %v6544 = vpack.c.bf16 %v6479, %v6478
        %v6545 = vpack.c.bf16 %v6481, %v6480
        %v6546 = vpack.c.bf16 %v6483, %v6482
        %v6547 = vpack.c.bf16 %v6485, %v6484
        %v6548 = vpack.c.bf16 %v6487, %v6486
        %v6553 = vlaneseq
        %v6554 = vshrl.u32 %v6553, 7
        %v6555 = vsub.s32 0, %v6554
        %v6556 = vrot.slane %v6521, %v6555
        %v6557 = vlaneseq
        %v6558 = vshrl.u32 %v6557, 7
        %v6559 = vsub.s32 0, %v6558
        %v6560 = vrot.slane %v6522, %v6559
        %v6561 = vlaneseq
        %v6562 = vshrl.u32 %v6561, 7
        %v6563 = vsub.s32 0, %v6562
        %v6564 = vrot.slane %v6523, %v6563
        %v6565 = vlaneseq
        %v6566 = vshrl.u32 %v6565, 7
        %v6567 = vsub.s32 0, %v6566
        %v6568 = vrot.slane %v6524, %v6567
        %v6574 = vsel %vm1231, %v6540, 0
        %6576 = vmatprep.subr.bf16.mxu0 0
        %6577 = vmatpush1.bf16.msra.mxu0 0
        %6578 = vmatprep.subr.bf16.mxu0 0
        %6579 = vmatpush1.bf16.msra.mxu0 0
        %6580 = vmatprep.subr.bf16.mxu0 0
        %6581 = vmatpush1.bf16.msra.mxu0 0
        %6582 = vmatprep.subr.bf16.mxu0 0
        %6583 = vmatpush1.bf16.msra.mxu0 0
        %6584 = vmatprep.subr.bf16.mxu0 0
        %6585 = vmatpush1.bf16.msra.mxu0 0
        %6586 = vmatprep.subr.bf16.mxu0 0
        %6587 = vmatpush1.bf16.msra.mxu0 0
        %6588 = vmatprep.subr.bf16.mxu0 0
        %6589 = vmatpush1.bf16.msra.mxu0 %v6542
        %6590 = vmatprep.subr.bf16.mxu0 0
        %6591 = vmatpush1.bf16.msra.mxu0 %v6541
        %6592 = vmatprep.subr.bf16.mxu0 0
        %6593 = vmatpush2.bf16.msra.mxu0 0
        %6594 = vmatprep.subr.bf16.mxu0 0
        %6595 = vmatpush2.bf16.msra.mxu0 0
        %6596 = vmatprep.subr.bf16.mxu0 0
        %6597 = vmatpush2.bf16.msra.mxu0 0
        %6598 = vmatprep.subr.bf16.mxu0 0
        %6599 = vmatpush2.bf16.msra.mxu0 0
        %6600 = vmatprep.subr.bf16.mxu0 0
        %6601 = vmatpush2.bf16.msra.mxu0 0
        %6602 = vmatprep.subr.bf16.mxu0 0
        %6603 = vmatpush2.bf16.msra.mxu0 0
        %6604 = vmatprep.subr.bf16.mxu0 0
        %6605 = vmatpush2.bf16.msra.mxu0 0
        %6606 = vmatprep.subr.bf16.mxu0 0
        %6607 = vmatpush2.bf16.msra.mxu0 0
        %6608 = vmatprep.mubr.bf16.mxu0 0
        %6609 = vmatmul.mubr.bf16.gmra.mxu0 %v6574
        %v6610 = vpop.f32.mrf.mxu0
        %v6611 = vadd.f32 %v6556, %v6610
        %v6612 = vpop.f32.mrf.mxu0
        %v6613 = vpop.f32.mrf.mxu0
        %v6614 = vpop.f32.mrf.mxu0
        %6615 = vdwg.mxu0
        %6616 = vmatprep.subr.bf16.mxu0 0
        %6617 = vmatpush1.bf16.msra.mxu0 0
        %6618 = vmatprep.subr.bf16.mxu0 0
        %6619 = vmatpush1.bf16.msra.mxu0 0
        %6620 = vmatprep.subr.bf16.mxu0 0
        %6621 = vmatpush1.bf16.msra.mxu0 0
        %6622 = vmatprep.subr.bf16.mxu0 0
        %6623 = vmatpush1.bf16.msra.mxu0 0
        %6624 = vmatprep.subr.bf16.mxu0 0
        %6625 = vmatpush1.bf16.msra.mxu0 0
        %6626 = vmatprep.subr.bf16.mxu0 0
        %6627 = vmatpush1.bf16.msra.mxu0 0
        %6628 = vmatprep.subr.bf16.mxu0 0
        %6629 = vmatpush1.bf16.msra.mxu0 %v6544
        %6630 = vmatprep.subr.bf16.mxu0 0
        %6631 = vmatpush1.bf16.msra.mxu0 %v6543
        %6632 = vmatprep.subr.bf16.mxu0 0
        %6633 = vmatpush2.bf16.msra.mxu0 0
        %6634 = vmatprep.subr.bf16.mxu0 0
        %6635 = vmatpush2.bf16.msra.mxu0 0
        %6636 = vmatprep.subr.bf16.mxu0 0
        %6637 = vmatpush2.bf16.msra.mxu0 0
        %6638 = vmatprep.subr.bf16.mxu0 0
        %6639 = vmatpush2.bf16.msra.mxu0 0
        %6640 = vmatprep.subr.bf16.mxu0 0
        %6641 = vmatpush2.bf16.msra.mxu0 0
        %6642 = vmatprep.subr.bf16.mxu0 0
        %6643 = vmatpush2.bf16.msra.mxu0 0
        %6644 = vmatprep.subr.bf16.mxu0 0
        %6645 = vmatpush2.bf16.msra.mxu0 0
        %6646 = vmatprep.subr.bf16.mxu0 0
        %6647 = vmatpush2.bf16.msra.mxu0 0
        %6648 = vmatprep.mubr.bf16.mxu0 0
        %6649 = vmatmul.mubr.bf16.gmra.mxu0 %v6574
        %v6650 = vpop.f32.mrf.mxu0
        %v6651 = vadd.f32 %v6560, %v6650
        %v6652 = vpop.f32.mrf.mxu0
        %v6653 = vpop.f32.mrf.mxu0
        %v6654 = vpop.f32.mrf.mxu0
        %6655 = vdwg.mxu0
        %6656 = vmatprep.subr.bf16.mxu0 0
        %6657 = vmatpush1.bf16.msra.mxu0 0
        %6658 = vmatprep.subr.bf16.mxu0 0
        %6659 = vmatpush1.bf16.msra.mxu0 0
        %6660 = vmatprep.subr.bf16.mxu0 0
        %6661 = vmatpush1.bf16.msra.mxu0 0
        %6662 = vmatprep.subr.bf16.mxu0 0
        %6663 = vmatpush1.bf16.msra.mxu0 0
        %6664 = vmatprep.subr.bf16.mxu0 0
        %6665 = vmatpush1.bf16.msra.mxu0 0
        %6666 = vmatprep.subr.bf16.mxu0 0
        %6667 = vmatpush1.bf16.msra.mxu0 0
        %6668 = vmatprep.subr.bf16.mxu0 0
        %6669 = vmatpush1.bf16.msra.mxu0 %v6546
        %6670 = vmatprep.subr.bf16.mxu0 0
        %6671 = vmatpush1.bf16.msra.mxu0 %v6545
        %6672 = vmatprep.subr.bf16.mxu0 0
        %6673 = vmatpush2.bf16.msra.mxu0 0
        %6674 = vmatprep.subr.bf16.mxu0 0
        %6675 = vmatpush2.bf16.msra.mxu0 0
        %6676 = vmatprep.subr.bf16.mxu0 0
        %6677 = vmatpush2.bf16.msra.mxu0 0
        %6678 = vmatprep.subr.bf16.mxu0 0
        %6679 = vmatpush2.bf16.msra.mxu0 0
        %6680 = vmatprep.subr.bf16.mxu0 0
        %6681 = vmatpush2.bf16.msra.mxu0 0
        %6682 = vmatprep.subr.bf16.mxu0 0
        %6683 = vmatpush2.bf16.msra.mxu0 0
        %6684 = vmatprep.subr.bf16.mxu0 0
        %6685 = vmatpush2.bf16.msra.mxu0 0
        %6686 = vmatprep.subr.bf16.mxu0 0
        %6687 = vmatpush2.bf16.msra.mxu0 0
        %6688 = vmatprep.mubr.bf16.mxu0 0
        %6689 = vmatmul.mubr.bf16.gmra.mxu0 %v6574
        %v6690 = vpop.f32.mrf.mxu0
        %v6691 = vadd.f32 %v6564, %v6690
        %v6692 = vpop.f32.mrf.mxu0
        %v6693 = vpop.f32.mrf.mxu0
        %v6694 = vpop.f32.mrf.mxu0
        %6695 = vdwg.mxu0
        %6696 = vmatprep.subr.bf16.mxu0 0
        %6697 = vmatpush1.bf16.msra.mxu0 0
        %6698 = vmatprep.subr.bf16.mxu0 0
        %6699 = vmatpush1.bf16.msra.mxu0 0
        %6700 = vmatprep.subr.bf16.mxu0 0
        %6701 = vmatpush1.bf16.msra.mxu0 0
        %6702 = vmatprep.subr.bf16.mxu0 0
        %6703 = vmatpush1.bf16.msra.mxu0 0
        %6704 = vmatprep.subr.bf16.mxu0 0
        %6705 = vmatpush1.bf16.msra.mxu0 0
        %6706 = vmatprep.subr.bf16.mxu0 0
        %6707 = vmatpush1.bf16.msra.mxu0 0
        %6708 = vmatprep.subr.bf16.mxu0 0
        %6709 = vmatpush1.bf16.msra.mxu0 %v6548
        %6710 = vmatprep.subr.bf16.mxu0 0
        %6711 = vmatpush1.bf16.msra.mxu0 %v6547
        %6712 = vmatprep.subr.bf16.mxu0 0
        %6713 = vmatpush2.bf16.msra.mxu0 0
        %6714 = vmatprep.subr.bf16.mxu0 0
        %6715 = vmatpush2.bf16.msra.mxu0 0
        %6716 = vmatprep.subr.bf16.mxu0 0
        %6717 = vmatpush2.bf16.msra.mxu0 0
        %6718 = vmatprep.subr.bf16.mxu0 0
        %6719 = vmatpush2.bf16.msra.mxu0 0
        %6720 = vmatprep.subr.bf16.mxu0 0
        %6721 = vmatpush2.bf16.msra.mxu0 0
        %6722 = vmatprep.subr.bf16.mxu0 0
        %6723 = vmatpush2.bf16.msra.mxu0 0
        %6724 = vmatprep.subr.bf16.mxu0 0
        %6725 = vmatpush2.bf16.msra.mxu0 0
        %6726 = vmatprep.subr.bf16.mxu0 0
        %6727 = vmatpush2.bf16.msra.mxu0 0
        %6728 = vmatprep.mubr.bf16.mxu0 0
        %6729 = vmatmul.mubr.bf16.gmra.mxu0 %v6574
        %v6730 = vpop.f32.mrf.mxu0
        %v6731 = vadd.f32 %v6568, %v6730
        %v6732 = vpop.f32.mrf.mxu0
        %v6733 = vpop.f32.mrf.mxu0
        %v6734 = vpop.f32.mrf.mxu0
        %6735 = vdwg.mxu0
        %v6736 = vpack.c.bf16 %v6489, %v6488
        %v6737 = vpack.c.bf16 %v6491, %v6490
        %v6738 = vpack.c.bf16 %v6493, %v6492
        %v6739 = vpack.c.bf16 %v6495, %v6494
        %v6740 = vpack.c.bf16 %v6497, %v6496
        %v6741 = vpack.c.bf16 %v6499, %v6498
        %v6742 = vpack.c.bf16 %v6501, %v6500
        %v6743 = vpack.c.bf16 %v6503, %v6502
        %v6744 = vpack.c.bf16 %v6505, %v6504
        %v6745 = vpack.c.bf16 %v6507, %v6506
        %v6746 = vpack.c.bf16 %v6509, %v6508
        %v6747 = vpack.c.bf16 %v6511, %v6510
        %v6748 = vpack.c.bf16 %v6513, %v6512
        %v6749 = vpack.c.bf16 %v6515, %v6514
        %v6750 = vpack.c.bf16 %v6517, %v6516
        %v6751 = vpack.c.bf16 %v6519, %v6518
        %v6760 = vlaneseq
        %v6761 = vshrl.u32 %v6760, 7
        %v6762 = vsub.s32 0, %v6761
        %v6763 = vrot.slane %v6525, %v6762
        %v6764 = vlaneseq
        %v6765 = vshrl.u32 %v6764, 7
        %v6766 = vsub.s32 0, %v6765
        %v6767 = vrot.slane %v6526, %v6766
        %v6768 = vlaneseq
        %v6769 = vshrl.u32 %v6768, 7
        %v6770 = vsub.s32 0, %v6769
        %v6771 = vrot.slane %v6527, %v6770
        %v6772 = vlaneseq
        %v6773 = vshrl.u32 %v6772, 7
        %v6774 = vsub.s32 0, %v6773
        %v6775 = vrot.slane %v6528, %v6774
        %v6776 = vlaneseq
        %v6777 = vshrl.u32 %v6776, 7
        %v6778 = vsub.s32 0, %v6777
        %v6779 = vrot.slane %v6529, %v6778
        %v6780 = vlaneseq
        %v6781 = vshrl.u32 %v6780, 7
        %v6782 = vsub.s32 0, %v6781
        %v6783 = vrot.slane %v6530, %v6782
        %v6784 = vlaneseq
        %v6785 = vshrl.u32 %v6784, 7
        %v6786 = vsub.s32 0, %v6785
        %v6787 = vrot.slane %v6531, %v6786
        %v6788 = vlaneseq
        %v6789 = vshrl.u32 %v6788, 7
        %v6790 = vsub.s32 0, %v6789
        %v6791 = vrot.slane %v6532, %v6790
        %6800 = vmatprep.subr.bf16.mxu0 0
        %6801 = vmatpush1.bf16.msra.mxu0 0
        %6802 = vmatprep.subr.bf16.mxu0 0
        %6803 = vmatpush1.bf16.msra.mxu0 0
        %6804 = vmatprep.subr.bf16.mxu0 0
        %6805 = vmatpush1.bf16.msra.mxu0 0
        %6806 = vmatprep.subr.bf16.mxu0 0
        %6807 = vmatpush1.bf16.msra.mxu0 0
        %6808 = vmatprep.subr.bf16.mxu0 0
        %6809 = vmatpush1.bf16.msra.mxu0 0
        %6810 = vmatprep.subr.bf16.mxu0 0
        %6811 = vmatpush1.bf16.msra.mxu0 0
        %6812 = vmatprep.subr.bf16.mxu0 0
        %6813 = vmatpush1.bf16.msra.mxu0 %v6737
        %6814 = vmatprep.subr.bf16.mxu0 0
        %6815 = vmatpush1.bf16.msra.mxu0 %v6736
        %6816 = vmatprep.subr.bf16.mxu0 0
        %6817 = vmatpush2.bf16.msra.mxu0 0
        %6818 = vmatprep.subr.bf16.mxu0 0
        %6819 = vmatpush2.bf16.msra.mxu0 0
        %6820 = vmatprep.subr.bf16.mxu0 0
        %6821 = vmatpush2.bf16.msra.mxu0 0
        %6822 = vmatprep.subr.bf16.mxu0 0
        %6823 = vmatpush2.bf16.msra.mxu0 0
        %6824 = vmatprep.subr.bf16.mxu0 0
        %6825 = vmatpush2.bf16.msra.mxu0 0
        %6826 = vmatprep.subr.bf16.mxu0 0
        %6827 = vmatpush2.bf16.msra.mxu0 0
        %6828 = vmatprep.subr.bf16.mxu0 0
        %6829 = vmatpush2.bf16.msra.mxu0 0
        %6830 = vmatprep.subr.bf16.mxu0 0
        %6831 = vmatpush2.bf16.msra.mxu0 0
        %6832 = vmatprep.mubr.bf16.mxu0 0
        %6833 = vmatmul.mubr.bf16.gmra.mxu0 %v6574
        %v6834 = vpop.f32.mrf.mxu0
        %v6835 = vadd.f32 %v6763, %v6834
        %v6836 = vpop.f32.mrf.mxu0
        %v6837 = vpop.f32.mrf.mxu0
        %v6838 = vpop.f32.mrf.mxu0
        %6839 = vdwg.mxu0
        %6840 = vmatprep.subr.bf16.mxu0 0
        %6841 = vmatpush1.bf16.msra.mxu0 0
        %6842 = vmatprep.subr.bf16.mxu0 0
        %6843 = vmatpush1.bf16.msra.mxu0 0
        %6844 = vmatprep.subr.bf16.mxu0 0
        %6845 = vmatpush1.bf16.msra.mxu0 0
        %6846 = vmatprep.subr.bf16.mxu0 0
        %6847 = vmatpush1.bf16.msra.mxu0 0
        %6848 = vmatprep.subr.bf16.mxu0 0
        %6849 = vmatpush1.bf16.msra.mxu0 0
        %6850 = vmatprep.subr.bf16.mxu0 0
        %6851 = vmatpush1.bf16.msra.mxu0 0
        %6852 = vmatprep.subr.bf16.mxu0 0
        %6853 = vmatpush1.bf16.msra.mxu0 %v6739
        %6854 = vmatprep.subr.bf16.mxu0 0
        %6855 = vmatpush1.bf16.msra.mxu0 %v6738
        %6856 = vmatprep.subr.bf16.mxu0 0
        %6857 = vmatpush2.bf16.msra.mxu0 0
        %6858 = vmatprep.subr.bf16.mxu0 0
        %6859 = vmatpush2.bf16.msra.mxu0 0
        %6860 = vmatprep.subr.bf16.mxu0 0
        %6861 = vmatpush2.bf16.msra.mxu0 0
        %6862 = vmatprep.subr.bf16.mxu0 0
        %6863 = vmatpush2.bf16.msra.mxu0 0
        %6864 = vmatprep.subr.bf16.mxu0 0
        %6865 = vmatpush2.bf16.msra.mxu0 0
        %6866 = vmatprep.subr.bf16.mxu0 0
        %6867 = vmatpush2.bf16.msra.mxu0 0
        %6868 = vmatprep.subr.bf16.mxu0 0
        %6869 = vmatpush2.bf16.msra.mxu0 0
        %6870 = vmatprep.subr.bf16.mxu0 0
        %6871 = vmatpush2.bf16.msra.mxu0 0
        %6872 = vmatprep.mubr.bf16.mxu0 0
        %6873 = vmatmul.mubr.bf16.gmra.mxu0 %v6574
        %v6874 = vpop.f32.mrf.mxu0
        %v6875 = vadd.f32 %v6767, %v6874
        %v6876 = vpop.f32.mrf.mxu0
        %v6877 = vpop.f32.mrf.mxu0
        %v6878 = vpop.f32.mrf.mxu0
        %6879 = vdwg.mxu0
        %6880 = vmatprep.subr.bf16.mxu0 0
        %6881 = vmatpush1.bf16.msra.mxu0 0
        %6882 = vmatprep.subr.bf16.mxu0 0
        %6883 = vmatpush1.bf16.msra.mxu0 0
        %6884 = vmatprep.subr.bf16.mxu0 0
        %6885 = vmatpush1.bf16.msra.mxu0 0
        %6886 = vmatprep.subr.bf16.mxu0 0
        %6887 = vmatpush1.bf16.msra.mxu0 0
        %6888 = vmatprep.subr.bf16.mxu0 0
        %6889 = vmatpush1.bf16.msra.mxu0 0
        %6890 = vmatprep.subr.bf16.mxu0 0
        %6891 = vmatpush1.bf16.msra.mxu0 0
        %6892 = vmatprep.subr.bf16.mxu0 0
        %6893 = vmatpush1.bf16.msra.mxu0 %v6741
        %6894 = vmatprep.subr.bf16.mxu0 0
        %6895 = vmatpush1.bf16.msra.mxu0 %v6740
        %6896 = vmatprep.subr.bf16.mxu0 0
        %6897 = vmatpush2.bf16.msra.mxu0 0
        %6898 = vmatprep.subr.bf16.mxu0 0
        %6899 = vmatpush2.bf16.msra.mxu0 0
        %6900 = vmatprep.subr.bf16.mxu0 0
        %6901 = vmatpush2.bf16.msra.mxu0 0
        %6902 = vmatprep.subr.bf16.mxu0 0
        %6903 = vmatpush2.bf16.msra.mxu0 0
        %6904 = vmatprep.subr.bf16.mxu0 0
        %6905 = vmatpush2.bf16.msra.mxu0 0
        %6906 = vmatprep.subr.bf16.mxu0 0
        %6907 = vmatpush2.bf16.msra.mxu0 0
        %6908 = vmatprep.subr.bf16.mxu0 0
        %6909 = vmatpush2.bf16.msra.mxu0 0
        %6910 = vmatprep.subr.bf16.mxu0 0
        %6911 = vmatpush2.bf16.msra.mxu0 0
        %6912 = vmatprep.mubr.bf16.mxu0 0
        %6913 = vmatmul.mubr.bf16.gmra.mxu0 %v6574
        %v6914 = vpop.f32.mrf.mxu0
        %v6915 = vadd.f32 %v6771, %v6914
        %v6916 = vpop.f32.mrf.mxu0
        %v6917 = vpop.f32.mrf.mxu0
        %v6918 = vpop.f32.mrf.mxu0
        %6919 = vdwg.mxu0
        %6920 = vmatprep.subr.bf16.mxu0 0
        %6921 = vmatpush1.bf16.msra.mxu0 0
        %6922 = vmatprep.subr.bf16.mxu0 0
        %6923 = vmatpush1.bf16.msra.mxu0 0
        %6924 = vmatprep.subr.bf16.mxu0 0
        %6925 = vmatpush1.bf16.msra.mxu0 0
        %6926 = vmatprep.subr.bf16.mxu0 0
        %6927 = vmatpush1.bf16.msra.mxu0 0
        %6928 = vmatprep.subr.bf16.mxu0 0
        %6929 = vmatpush1.bf16.msra.mxu0 0
        %6930 = vmatprep.subr.bf16.mxu0 0
        %6931 = vmatpush1.bf16.msra.mxu0 0
        %6932 = vmatprep.subr.bf16.mxu0 0
        %6933 = vmatpush1.bf16.msra.mxu0 %v6743
        %6934 = vmatprep.subr.bf16.mxu0 0
        %6935 = vmatpush1.bf16.msra.mxu0 %v6742
        %6936 = vmatprep.subr.bf16.mxu0 0
        %6937 = vmatpush2.bf16.msra.mxu0 0
        %6938 = vmatprep.subr.bf16.mxu0 0
        %6939 = vmatpush2.bf16.msra.mxu0 0
        %6940 = vmatprep.subr.bf16.mxu0 0
        %6941 = vmatpush2.bf16.msra.mxu0 0
        %6942 = vmatprep.subr.bf16.mxu0 0
        %6943 = vmatpush2.bf16.msra.mxu0 0
        %6944 = vmatprep.subr.bf16.mxu0 0
        %6945 = vmatpush2.bf16.msra.mxu0 0
        %6946 = vmatprep.subr.bf16.mxu0 0
        %6947 = vmatpush2.bf16.msra.mxu0 0
        %6948 = vmatprep.subr.bf16.mxu0 0
        %6949 = vmatpush2.bf16.msra.mxu0 0
        %6950 = vmatprep.subr.bf16.mxu0 0
        %6951 = vmatpush2.bf16.msra.mxu0 0
        %6952 = vmatprep.mubr.bf16.mxu0 0
        %6953 = vmatmul.mubr.bf16.gmra.mxu0 %v6574
        %v6954 = vpop.f32.mrf.mxu0
        %v6955 = vadd.f32 %v6775, %v6954
        %v6956 = vpop.f32.mrf.mxu0
        %v6957 = vpop.f32.mrf.mxu0
        %v6958 = vpop.f32.mrf.mxu0
        %6959 = vdwg.mxu0
        %6960 = vmatprep.subr.bf16.mxu0 0
        %6961 = vmatpush1.bf16.msra.mxu0 0
        %6962 = vmatprep.subr.bf16.mxu0 0
        %6963 = vmatpush1.bf16.msra.mxu0 0
        %6964 = vmatprep.subr.bf16.mxu0 0
        %6965 = vmatpush1.bf16.msra.mxu0 0
        %6966 = vmatprep.subr.bf16.mxu0 0
        %6967 = vmatpush1.bf16.msra.mxu0 0
        %6968 = vmatprep.subr.bf16.mxu0 0
        %6969 = vmatpush1.bf16.msra.mxu0 0
        %6970 = vmatprep.subr.bf16.mxu0 0
        %6971 = vmatpush1.bf16.msra.mxu0 0
        %6972 = vmatprep.subr.bf16.mxu0 0
        %6973 = vmatpush1.bf16.msra.mxu0 %v6745
        %6974 = vmatprep.subr.bf16.mxu0 0
        %6975 = vmatpush1.bf16.msra.mxu0 %v6744
        %6976 = vmatprep.subr.bf16.mxu0 0
        %6977 = vmatpush2.bf16.msra.mxu0 0
        %6978 = vmatprep.subr.bf16.mxu0 0
        %6979 = vmatpush2.bf16.msra.mxu0 0
        %6980 = vmatprep.subr.bf16.mxu0 0
        %6981 = vmatpush2.bf16.msra.mxu0 0
        %6982 = vmatprep.subr.bf16.mxu0 0
        %6983 = vmatpush2.bf16.msra.mxu0 0
        %6984 = vmatprep.subr.bf16.mxu0 0
        %6985 = vmatpush2.bf16.msra.mxu0 0
        %6986 = vmatprep.subr.bf16.mxu0 0
        %6987 = vmatpush2.bf16.msra.mxu0 0
        %6988 = vmatprep.subr.bf16.mxu0 0
        %6989 = vmatpush2.bf16.msra.mxu0 0
        %6990 = vmatprep.subr.bf16.mxu0 0
        %6991 = vmatpush2.bf16.msra.mxu0 0
        %6992 = vmatprep.mubr.bf16.mxu0 0
        %6993 = vmatmul.mubr.bf16.gmra.mxu0 %v6574
        %v6994 = vpop.f32.mrf.mxu0
        %v6995 = vadd.f32 %v6779, %v6994
        %v6996 = vpop.f32.mrf.mxu0
        %v6997 = vpop.f32.mrf.mxu0
        %v6998 = vpop.f32.mrf.mxu0
        %6999 = vdwg.mxu0
        %7000 = vmatprep.subr.bf16.mxu0 0
        %7001 = vmatpush1.bf16.msra.mxu0 0
        %7002 = vmatprep.subr.bf16.mxu0 0
        %7003 = vmatpush1.bf16.msra.mxu0 0
        %7004 = vmatprep.subr.bf16.mxu0 0
        %7005 = vmatpush1.bf16.msra.mxu0 0
        %7006 = vmatprep.subr.bf16.mxu0 0
        %7007 = vmatpush1.bf16.msra.mxu0 0
        %7008 = vmatprep.subr.bf16.mxu0 0
        %7009 = vmatpush1.bf16.msra.mxu0 0
        %7010 = vmatprep.subr.bf16.mxu0 0
        %7011 = vmatpush1.bf16.msra.mxu0 0
        %7012 = vmatprep.subr.bf16.mxu0 0
        %7013 = vmatpush1.bf16.msra.mxu0 %v6747
        %7014 = vmatprep.subr.bf16.mxu0 0
        %7015 = vmatpush1.bf16.msra.mxu0 %v6746
        %7016 = vmatprep.subr.bf16.mxu0 0
        %7017 = vmatpush2.bf16.msra.mxu0 0
        %7018 = vmatprep.subr.bf16.mxu0 0
        %7019 = vmatpush2.bf16.msra.mxu0 0
        %7020 = vmatprep.subr.bf16.mxu0 0
        %7021 = vmatpush2.bf16.msra.mxu0 0
        %7022 = vmatprep.subr.bf16.mxu0 0
        %7023 = vmatpush2.bf16.msra.mxu0 0
        %7024 = vmatprep.subr.bf16.mxu0 0
        %7025 = vmatpush2.bf16.msra.mxu0 0
        %7026 = vmatprep.subr.bf16.mxu0 0
        %7027 = vmatpush2.bf16.msra.mxu0 0
        %7028 = vmatprep.subr.bf16.mxu0 0
        %7029 = vmatpush2.bf16.msra.mxu0 0
        %7030 = vmatprep.subr.bf16.mxu0 0
        %7031 = vmatpush2.bf16.msra.mxu0 0
        %7032 = vmatprep.mubr.bf16.mxu0 0
        %7033 = vmatmul.mubr.bf16.gmra.mxu0 %v6574
        %v7034 = vpop.f32.mrf.mxu0
        %v7035 = vadd.f32 %v6783, %v7034
        %v7036 = vpop.f32.mrf.mxu0
        %v7037 = vpop.f32.mrf.mxu0
        %v7038 = vpop.f32.mrf.mxu0
        %7039 = vdwg.mxu0
        %7040 = vmatprep.subr.bf16.mxu0 0
        %7041 = vmatpush1.bf16.msra.mxu0 0
        %7042 = vmatprep.subr.bf16.mxu0 0
        %7043 = vmatpush1.bf16.msra.mxu0 0
        %7044 = vmatprep.subr.bf16.mxu0 0
        %7045 = vmatpush1.bf16.msra.mxu0 0
        %7046 = vmatprep.subr.bf16.mxu0 0
        %7047 = vmatpush1.bf16.msra.mxu0 0
        %7048 = vmatprep.subr.bf16.mxu0 0
        %7049 = vmatpush1.bf16.msra.mxu0 0
        %7050 = vmatprep.subr.bf16.mxu0 0
        %7051 = vmatpush1.bf16.msra.mxu0 0
        %7052 = vmatprep.subr.bf16.mxu0 0
        %7053 = vmatpush1.bf16.msra.mxu0 %v6749
        %7054 = vmatprep.subr.bf16.mxu0 0
        %7055 = vmatpush1.bf16.msra.mxu0 %v6748
        %7056 = vmatprep.subr.bf16.mxu0 0
        %7057 = vmatpush2.bf16.msra.mxu0 0
        %7058 = vmatprep.subr.bf16.mxu0 0
        %7059 = vmatpush2.bf16.msra.mxu0 0
        %7060 = vmatprep.subr.bf16.mxu0 0
        %7061 = vmatpush2.bf16.msra.mxu0 0
        %7062 = vmatprep.subr.bf16.mxu0 0
        %7063 = vmatpush2.bf16.msra.mxu0 0
        %7064 = vmatprep.subr.bf16.mxu0 0
        %7065 = vmatpush2.bf16.msra.mxu0 0
        %7066 = vmatprep.subr.bf16.mxu0 0
        %7067 = vmatpush2.bf16.msra.mxu0 0
        %7068 = vmatprep.subr.bf16.mxu0 0
        %7069 = vmatpush2.bf16.msra.mxu0 0
        %7070 = vmatprep.subr.bf16.mxu0 0
        %7071 = vmatpush2.bf16.msra.mxu0 0
        %7072 = vmatprep.mubr.bf16.mxu0 0
        %7073 = vmatmul.mubr.bf16.gmra.mxu0 %v6574
        %v7074 = vpop.f32.mrf.mxu0
        %v7075 = vadd.f32 %v6787, %v7074
        %v7076 = vpop.f32.mrf.mxu0
        %v7077 = vpop.f32.mrf.mxu0
        %v7078 = vpop.f32.mrf.mxu0
        %7079 = vdwg.mxu0
        %7080 = vmatprep.subr.bf16.mxu0 0
        %7081 = vmatpush1.bf16.msra.mxu0 0
        %7082 = vmatprep.subr.bf16.mxu0 0
        %7083 = vmatpush1.bf16.msra.mxu0 0
        %7084 = vmatprep.subr.bf16.mxu0 0
        %7085 = vmatpush1.bf16.msra.mxu0 0
        %7086 = vmatprep.subr.bf16.mxu0 0
        %7087 = vmatpush1.bf16.msra.mxu0 0
        %7088 = vmatprep.subr.bf16.mxu0 0
        %7089 = vmatpush1.bf16.msra.mxu0 0
        %7090 = vmatprep.subr.bf16.mxu0 0
        %7091 = vmatpush1.bf16.msra.mxu0 0
        %7092 = vmatprep.subr.bf16.mxu0 0
        %7093 = vmatpush1.bf16.msra.mxu0 %v6751
        %7094 = vmatprep.subr.bf16.mxu0 0
        %7095 = vmatpush1.bf16.msra.mxu0 %v6750
        %7096 = vmatprep.subr.bf16.mxu0 0
        %7097 = vmatpush2.bf16.msra.mxu0 0
        %7098 = vmatprep.subr.bf16.mxu0 0
        %7099 = vmatpush2.bf16.msra.mxu0 0
        %7100 = vmatprep.subr.bf16.mxu0 0
        %7101 = vmatpush2.bf16.msra.mxu0 0
        %7102 = vmatprep.subr.bf16.mxu0 0
        %7103 = vmatpush2.bf16.msra.mxu0 0
        %7104 = vmatprep.subr.bf16.mxu0 0
        %7105 = vmatpush2.bf16.msra.mxu0 0
        %7106 = vmatprep.subr.bf16.mxu0 0
        %7107 = vmatpush2.bf16.msra.mxu0 0
        %7108 = vmatprep.subr.bf16.mxu0 0
        %7109 = vmatpush2.bf16.msra.mxu0 0
        %7110 = vmatprep.subr.bf16.mxu0 0
        %7111 = vmatpush2.bf16.msra.mxu0 0
        %7112 = vmatprep.mubr.bf16.mxu0 0
        %7113 = vmatmul.mubr.bf16.gmra.mxu0 %v6574
        %v7114 = vpop.f32.mrf.mxu0
        %v7115 = vadd.f32 %v6791, %v7114
        %v7116 = vpop.f32.mrf.mxu0
        %v7117 = vpop.f32.mrf.mxu0
        %v7118 = vpop.f32.mrf.mxu0
        %7119 = vdwg.mxu0
        %v7120 = vpack.c.bf16 %v6611, %v6611
        %v7121 = vpack.c.bf16 %v6651, %v6651
        %v7122 = vpack.c.bf16 %v6691, %v6691
        %v7123 = vpack.c.bf16 %v6731, %v6731
        %v7124 = vpack.c.bf16 %v6835, %v6835
        %v7125 = vpack.c.bf16 %v6875, %v6875
        %v7126 = vpack.c.bf16 %v6915, %v6915
        %v7127 = vpack.c.bf16 %v6955, %v6955
        %v7129 = vsel %vm1787, %v7120, 0
        %v7132 = vsel %vm1787, %v7124, 0
        %7134 = vmatprep.subr.bf16.mxu0 0
        %7135 = vmatpush1.bf16.xpose.msra.mxu0 0
        %7136 = vmatprep.subr.bf16.mxu0 0
        %7137 = vmatpush1.bf16.xpose.msra.mxu0 0
        %7138 = vmatprep.subr.bf16.mxu0 0
        %7139 = vmatpush1.bf16.xpose.msra.mxu0 0
        %7140 = vmatprep.subr.bf16.mxu0 0
        %7141 = vmatpush1.bf16.xpose.msra.mxu0 0
        %7142 = vmatprep.subr.bf16.mxu0 0
        %7143 = vmatpush1.bf16.xpose.msra.mxu0 0
        %7144 = vmatprep.subr.bf16.mxu0 0
        %7145 = vmatpush1.bf16.xpose.msra.mxu0 0
        %7146 = vmatprep.subr.bf16.mxu0 0
        %7147 = vmatpush1.bf16.xpose.msra.mxu0 0
        %7148 = vmatprep.subr.bf16.mxu0 0
        %7149 = vmatpush1.bf16.xpose.msra.mxu0 %v7132
        %7150 = vmatprep.subr.bf16.mxu0 0
        %7151 = vmatpush2.bf16.xpose.msra.mxu0 0
        %7152 = vmatprep.subr.bf16.mxu0 0
        %7153 = vmatpush2.bf16.xpose.msra.mxu0 0
        %7154 = vmatprep.subr.bf16.mxu0 0
        %7155 = vmatpush2.bf16.xpose.msra.mxu0 0
        %7156 = vmatprep.subr.bf16.mxu0 0
        %7157 = vmatpush2.bf16.xpose.msra.mxu0 0
        %7158 = vmatprep.subr.bf16.mxu0 0
        %7159 = vmatpush2.bf16.xpose.msra.mxu0 0
        %7160 = vmatprep.subr.bf16.mxu0 0
        %7161 = vmatpush2.bf16.xpose.msra.mxu0 0
        %7162 = vmatprep.subr.bf16.mxu0 0
        %7163 = vmatpush2.bf16.xpose.msra.mxu0 0
        %7164 = vmatprep.subr.bf16.mxu0 0
        %7165 = vmatpush2.bf16.xpose.msra.mxu0 0
        %7166 = vmatprep.mubr.bf16.mxu0 0
        %7167 = vmatmul.mubr.bf16.gmra.mxu0 %v7129
        %v7168 = vpop.f32.mrf.mxu0
        %v7169 = vadd.f32 0.0, %v7168
        %v7170 = vpop.f32.mrf.mxu0
        %v7171 = vpop.f32.mrf.mxu0
        %v7172 = vpop.f32.mrf.mxu0
        %7173 = vdwg.mxu0
        %v7175 = vsel %vm1787, %v7121, 0
        %v7178 = vsel %vm1787, %v7125, 0
        %7180 = vmatprep.subr.bf16.mxu0 0
        %7181 = vmatpush1.bf16.xpose.msra.mxu0 0
        %7182 = vmatprep.subr.bf16.mxu0 0
        %7183 = vmatpush1.bf16.xpose.msra.mxu0 0
        %7184 = vmatprep.subr.bf16.mxu0 0
        %7185 = vmatpush1.bf16.xpose.msra.mxu0 0
        %7186 = vmatprep.subr.bf16.mxu0 0
        %7187 = vmatpush1.bf16.xpose.msra.mxu0 0
        %7188 = vmatprep.subr.bf16.mxu0 0
        %7189 = vmatpush1.bf16.xpose.msra.mxu0 0
        %7190 = vmatprep.subr.bf16.mxu0 0
        %7191 = vmatpush1.bf16.xpose.msra.mxu0 0
        %7192 = vmatprep.subr.bf16.mxu0 0
        %7193 = vmatpush1.bf16.xpose.msra.mxu0 0
        %7194 = vmatprep.subr.bf16.mxu0 0
        %7195 = vmatpush1.bf16.xpose.msra.mxu0 %v7178
        %7196 = vmatprep.subr.bf16.mxu0 0
        %7197 = vmatpush2.bf16.xpose.msra.mxu0 0
        %7198 = vmatprep.subr.bf16.mxu0 0
        %7199 = vmatpush2.bf16.xpose.msra.mxu0 0
        %7200 = vmatprep.subr.bf16.mxu0 0
        %7201 = vmatpush2.bf16.xpose.msra.mxu0 0
        %7202 = vmatprep.subr.bf16.mxu0 0
        %7203 = vmatpush2.bf16.xpose.msra.mxu0 0
        %7204 = vmatprep.subr.bf16.mxu0 0
        %7205 = vmatpush2.bf16.xpose.msra.mxu0 0
        %7206 = vmatprep.subr.bf16.mxu0 0
        %7207 = vmatpush2.bf16.xpose.msra.mxu0 0
        %7208 = vmatprep.subr.bf16.mxu0 0
        %7209 = vmatpush2.bf16.xpose.msra.mxu0 0
        %7210 = vmatprep.subr.bf16.mxu0 0
        %7211 = vmatpush2.bf16.xpose.msra.mxu0 0
        %7212 = vmatprep.mubr.bf16.mxu0 0
        %7213 = vmatmul.mubr.bf16.gmra.mxu0 %v7175
        %v7214 = vpop.f32.mrf.mxu0
        %v7215 = vadd.f32 0.0, %v7214
        %v7216 = vpop.f32.mrf.mxu0
        %v7217 = vpop.f32.mrf.mxu0
        %v7218 = vpop.f32.mrf.mxu0
        %7219 = vdwg.mxu0
        %v7221 = vsel %vm1787, %v7122, 0
        %v7224 = vsel %vm1787, %v7126, 0
        %7226 = vmatprep.subr.bf16.mxu0 0
        %7227 = vmatpush1.bf16.xpose.msra.mxu0 0
        %7228 = vmatprep.subr.bf16.mxu0 0
        %7229 = vmatpush1.bf16.xpose.msra.mxu0 0
        %7230 = vmatprep.subr.bf16.mxu0 0
        %7231 = vmatpush1.bf16.xpose.msra.mxu0 0
        %7232 = vmatprep.subr.bf16.mxu0 0
        %7233 = vmatpush1.bf16.xpose.msra.mxu0 0
        %7234 = vmatprep.subr.bf16.mxu0 0
        %7235 = vmatpush1.bf16.xpose.msra.mxu0 0
        %7236 = vmatprep.subr.bf16.mxu0 0
        %7237 = vmatpush1.bf16.xpose.msra.mxu0 0
        %7238 = vmatprep.subr.bf16.mxu0 0
        %7239 = vmatpush1.bf16.xpose.msra.mxu0 0
        %7240 = vmatprep.subr.bf16.mxu0 0
        %7241 = vmatpush1.bf16.xpose.msra.mxu0 %v7224
        %7242 = vmatprep.subr.bf16.mxu0 0
        %7243 = vmatpush2.bf16.xpose.msra.mxu0 0
        %7244 = vmatprep.subr.bf16.mxu0 0
        %7245 = vmatpush2.bf16.xpose.msra.mxu0 0
        %7246 = vmatprep.subr.bf16.mxu0 0
        %7247 = vmatpush2.bf16.xpose.msra.mxu0 0
        %7248 = vmatprep.subr.bf16.mxu0 0
        %7249 = vmatpush2.bf16.xpose.msra.mxu0 0
        %7250 = vmatprep.subr.bf16.mxu0 0
        %7251 = vmatpush2.bf16.xpose.msra.mxu0 0
        %7252 = vmatprep.subr.bf16.mxu0 0
        %7253 = vmatpush2.bf16.xpose.msra.mxu0 0
        %7254 = vmatprep.subr.bf16.mxu0 0
        %7255 = vmatpush2.bf16.xpose.msra.mxu0 0
        %7256 = vmatprep.subr.bf16.mxu0 0
        %7257 = vmatpush2.bf16.xpose.msra.mxu0 0
        %7258 = vmatprep.mubr.bf16.mxu0 0
        %7259 = vmatmul.mubr.bf16.gmra.mxu0 %v7221
        %v7260 = vpop.f32.mrf.mxu0
        %v7261 = vadd.f32 0.0, %v7260
        %v7262 = vpop.f32.mrf.mxu0
        %v7263 = vpop.f32.mrf.mxu0
        %v7264 = vpop.f32.mrf.mxu0
        %7265 = vdwg.mxu0
        %v7267 = vsel %vm1787, %v7123, 0
        %v7270 = vsel %vm1787, %v7127, 0
        %7272 = vmatprep.subr.bf16.mxu0 0
        %7273 = vmatpush1.bf16.xpose.msra.mxu0 0
        %7274 = vmatprep.subr.bf16.mxu0 0
        %7275 = vmatpush1.bf16.xpose.msra.mxu0 0
        %7276 = vmatprep.subr.bf16.mxu0 0
        %7277 = vmatpush1.bf16.xpose.msra.mxu0 0
        %7278 = vmatprep.subr.bf16.mxu0 0
        %7279 = vmatpush1.bf16.xpose.msra.mxu0 0
        %7280 = vmatprep.subr.bf16.mxu0 0
        %7281 = vmatpush1.bf16.xpose.msra.mxu0 0
        %7282 = vmatprep.subr.bf16.mxu0 0
        %7283 = vmatpush1.bf16.xpose.msra.mxu0 0
        %7284 = vmatprep.subr.bf16.mxu0 0
        %7285 = vmatpush1.bf16.xpose.msra.mxu0 0
        %7286 = vmatprep.subr.bf16.mxu0 0
        %7287 = vmatpush1.bf16.xpose.msra.mxu0 %v7270
        %7288 = vmatprep.subr.bf16.mxu0 0
        %7289 = vmatpush2.bf16.xpose.msra.mxu0 0
        %7290 = vmatprep.subr.bf16.mxu0 0
        %7291 = vmatpush2.bf16.xpose.msra.mxu0 0
        %7292 = vmatprep.subr.bf16.mxu0 0
        %7293 = vmatpush2.bf16.xpose.msra.mxu0 0
        %7294 = vmatprep.subr.bf16.mxu0 0
        %7295 = vmatpush2.bf16.xpose.msra.mxu0 0
        %7296 = vmatprep.subr.bf16.mxu0 0
        %7297 = vmatpush2.bf16.xpose.msra.mxu0 0
        %7298 = vmatprep.subr.bf16.mxu0 0
        %7299 = vmatpush2.bf16.xpose.msra.mxu0 0
        %7300 = vmatprep.subr.bf16.mxu0 0
        %7301 = vmatpush2.bf16.xpose.msra.mxu0 0
        %7302 = vmatprep.subr.bf16.mxu0 0
        %7303 = vmatpush2.bf16.xpose.msra.mxu0 0
        %7304 = vmatprep.mubr.bf16.mxu0 0
        %7305 = vmatmul.mubr.bf16.gmra.mxu0 %v7267
        %v7306 = vpop.f32.mrf.mxu0
        %v7307 = vadd.f32 0.0, %v7306
        %v7308 = vpop.f32.mrf.mxu0
        %v7309 = vpop.f32.mrf.mxu0
        %v7310 = vpop.f32.mrf.mxu0
        %7311 = vdwg.mxu0
        %v7312 = vmul.f32 %v7169, 0.35355338
        %v7313 = vmul.f32 %v7215, 0.35355338
        %v7314 = vmul.f32 %v7261, 0.35355338
        %v7315 = vmul.f32 %v7307, 0.35355338
        %v7316 = vadd.f32 %v7312, %v1980
        %v7317 = vadd.f32 %v7313, %v1980
        %v7318 = vadd.f32 %v7314, %v1980
        %v7319 = vadd.f32 %v7315, %v1980
        %v7320 = vsel %vm1787, %v7316, -inf
        %7321 = vmax.xlane.f32.xlu0 %v7320
        %v7322 = vpop.xlane.xlu0 %7321
        %v7323 = vsel %vm1787, %v7317, -inf
        %7324 = vmax.xlane.f32.xlu0 %v7323
        %v7325 = vpop.xlane.xlu0 %7324
        %v7326 = vsel %vm1787, %v7318, -inf
        %7327 = vmax.xlane.f32.xlu0 %v7326
        %v7328 = vpop.xlane.xlu0 %7327
        %v7329 = vsel %vm1787, %v7319, -inf
        %7330 = vmax.xlane.f32.xlu0 %v7329
        %v7331 = vpop.xlane.xlu0 %7330
        %v7332 = vsub.f32 %v7316, %v7322
        %v7333 = vsub.f32 %v7317, %v7325
        %v7334 = vsub.f32 %v7318, %v7328
        %v7335 = vsub.f32 %v7319, %v7331
        %v7336 = vmul.f32 %v7332, 1.442695
        %v7337 = vpow.pop %v7336
        %v7338 = vmul.f32 %v7333, 1.442695
        %v7339 = vpow.pop %v7338
        %v7340 = vmul.f32 %v7334, 1.442695
        %v7341 = vpow.pop %v7340
        %v7342 = vmul.f32 %v7335, 1.442695
        %v7343 = vpow.pop %v7342
        %v7344 = vsel %vm1787, %v7337, 0.0
        %7345 = vadd.xlane.f32.xlu0 %v7344
        %v7346 = vpop.xlane.xlu0 %7345
        %v7347 = vsel %vm1787, %v7339, 0.0
        %7348 = vadd.xlane.f32.xlu0 %v7347
        %v7349 = vpop.xlane.xlu0 %7348
        %v7350 = vsel %vm1787, %v7341, 0.0
        %7351 = vadd.xlane.f32.xlu0 %v7350
        %v7352 = vpop.xlane.xlu0 %7351
        %v7353 = vsel %vm1787, %v7343, 0.0
        %7354 = vadd.xlane.f32.xlu0 %v7353
        %v7355 = vpop.xlane.xlu0 %7354
        %v7356 = vrcp.pop %v7346
        %v7357 = vrcp.pop %v7349
        %v7358 = vrcp.pop %v7352
        %v7359 = vrcp.pop %v7355
        %v7360 = vmul.f32 %v7337, %v7356
        %v7361 = vmul.f32 %v7339, %v7357
        %v7362 = vmul.f32 %v7341, %v7358
        %v7363 = vmul.f32 %v7343, %v7359
        %v7364 = vpack.c.bf16 %v7360, %v7360
        %v7365 = vpack.c.bf16 %v7361, %v7361
        %v7366 = vpack.c.bf16 %v7362, %v7362
        %v7367 = vpack.c.bf16 %v7363, %v7363
        %v7368 = vpack.c.bf16 %v6995, %v6995
        %v7369 = vpack.c.bf16 %v7035, %v7035
        %v7370 = vpack.c.bf16 %v7075, %v7075
        %v7371 = vpack.c.bf16 %v7115, %v7115
        %v7373 = vsel %vm1787, %v7364, 0
        %v7376 = vsel %vm2041, %v7368, 0
        %7378 = vmatprep.subr.bf16.mxu0 0
        %7379 = vmatpush1.bf16.msra.mxu0 0
        %7380 = vmatprep.subr.bf16.mxu0 0
        %7381 = vmatpush1.bf16.msra.mxu0 0
        %7382 = vmatprep.subr.bf16.mxu0 0
        %7383 = vmatpush1.bf16.msra.mxu0 0
        %7384 = vmatprep.subr.bf16.mxu0 0
        %7385 = vmatpush1.bf16.msra.mxu0 0
        %7386 = vmatprep.subr.bf16.mxu0 0
        %7387 = vmatpush1.bf16.msra.mxu0 0
        %7388 = vmatprep.subr.bf16.mxu0 0
        %7389 = vmatpush1.bf16.msra.mxu0 0
        %7390 = vmatprep.subr.bf16.mxu0 0
        %7391 = vmatpush1.bf16.msra.mxu0 0
        %7392 = vmatprep.subr.bf16.mxu0 0
        %7393 = vmatpush1.bf16.msra.mxu0 %v7376
        %7394 = vmatprep.subr.bf16.mxu0 0
        %7395 = vmatpush2.bf16.msra.mxu0 0
        %7396 = vmatprep.subr.bf16.mxu0 0
        %7397 = vmatpush2.bf16.msra.mxu0 0
        %7398 = vmatprep.subr.bf16.mxu0 0
        %7399 = vmatpush2.bf16.msra.mxu0 0
        %7400 = vmatprep.subr.bf16.mxu0 0
        %7401 = vmatpush2.bf16.msra.mxu0 0
        %7402 = vmatprep.subr.bf16.mxu0 0
        %7403 = vmatpush2.bf16.msra.mxu0 0
        %7404 = vmatprep.subr.bf16.mxu0 0
        %7405 = vmatpush2.bf16.msra.mxu0 0
        %7406 = vmatprep.subr.bf16.mxu0 0
        %7407 = vmatpush2.bf16.msra.mxu0 0
        %7408 = vmatprep.subr.bf16.mxu0 0
        %7409 = vmatpush2.bf16.msra.mxu0 0
        %7410 = vmatprep.mubr.bf16.mxu0 0
        %7411 = vmatmul.mubr.bf16.gmra.mxu0 %v7373
        %v7412 = vpop.f32.mrf.mxu0
        %v7413 = vadd.f32 0.0, %v7412
        %v7414 = vpop.f32.mrf.mxu0
        %v7415 = vpop.f32.mrf.mxu0
        %v7416 = vpop.f32.mrf.mxu0
        %7417 = vdwg.mxu0
        %v7419 = vsel %vm1787, %v7365, 0
        %v7422 = vsel %vm2041, %v7369, 0
        %7424 = vmatprep.subr.bf16.mxu0 0
        %7425 = vmatpush1.bf16.msra.mxu0 0
        %7426 = vmatprep.subr.bf16.mxu0 0
        %7427 = vmatpush1.bf16.msra.mxu0 0
        %7428 = vmatprep.subr.bf16.mxu0 0
        %7429 = vmatpush1.bf16.msra.mxu0 0
        %7430 = vmatprep.subr.bf16.mxu0 0
        %7431 = vmatpush1.bf16.msra.mxu0 0
        %7432 = vmatprep.subr.bf16.mxu0 0
        %7433 = vmatpush1.bf16.msra.mxu0 0
        %7434 = vmatprep.subr.bf16.mxu0 0
        %7435 = vmatpush1.bf16.msra.mxu0 0
        %7436 = vmatprep.subr.bf16.mxu0 0
        %7437 = vmatpush1.bf16.msra.mxu0 0
        %7438 = vmatprep.subr.bf16.mxu0 0
        %7439 = vmatpush1.bf16.msra.mxu0 %v7422
        %7440 = vmatprep.subr.bf16.mxu0 0
        %7441 = vmatpush2.bf16.msra.mxu0 0
        %7442 = vmatprep.subr.bf16.mxu0 0
        %7443 = vmatpush2.bf16.msra.mxu0 0
        %7444 = vmatprep.subr.bf16.mxu0 0
        %7445 = vmatpush2.bf16.msra.mxu0 0
        %7446 = vmatprep.subr.bf16.mxu0 0
        %7447 = vmatpush2.bf16.msra.mxu0 0
        %7448 = vmatprep.subr.bf16.mxu0 0
        %7449 = vmatpush2.bf16.msra.mxu0 0
        %7450 = vmatprep.subr.bf16.mxu0 0
        %7451 = vmatpush2.bf16.msra.mxu0 0
        %7452 = vmatprep.subr.bf16.mxu0 0
        %7453 = vmatpush2.bf16.msra.mxu0 0
        %7454 = vmatprep.subr.bf16.mxu0 0
        %7455 = vmatpush2.bf16.msra.mxu0 0
        %7456 = vmatprep.mubr.bf16.mxu0 0
        %7457 = vmatmul.mubr.bf16.gmra.mxu0 %v7419
        %v7458 = vpop.f32.mrf.mxu0
        %v7459 = vadd.f32 0.0, %v7458
        %v7460 = vpop.f32.mrf.mxu0
        %v7461 = vpop.f32.mrf.mxu0
        %v7462 = vpop.f32.mrf.mxu0
        %7463 = vdwg.mxu0
        %v7465 = vsel %vm1787, %v7366, 0
        %v7468 = vsel %vm2041, %v7370, 0
        %7470 = vmatprep.subr.bf16.mxu0 0
        %7471 = vmatpush1.bf16.msra.mxu0 0
        %7472 = vmatprep.subr.bf16.mxu0 0
        %7473 = vmatpush1.bf16.msra.mxu0 0
        %7474 = vmatprep.subr.bf16.mxu0 0
        %7475 = vmatpush1.bf16.msra.mxu0 0
        %7476 = vmatprep.subr.bf16.mxu0 0
        %7477 = vmatpush1.bf16.msra.mxu0 0
        %7478 = vmatprep.subr.bf16.mxu0 0
        %7479 = vmatpush1.bf16.msra.mxu0 0
        %7480 = vmatprep.subr.bf16.mxu0 0
        %7481 = vmatpush1.bf16.msra.mxu0 0
        %7482 = vmatprep.subr.bf16.mxu0 0
        %7483 = vmatpush1.bf16.msra.mxu0 0
        %7484 = vmatprep.subr.bf16.mxu0 0
        %7485 = vmatpush1.bf16.msra.mxu0 %v7468
        %7486 = vmatprep.subr.bf16.mxu0 0
        %7487 = vmatpush2.bf16.msra.mxu0 0
        %7488 = vmatprep.subr.bf16.mxu0 0
        %7489 = vmatpush2.bf16.msra.mxu0 0
        %7490 = vmatprep.subr.bf16.mxu0 0
        %7491 = vmatpush2.bf16.msra.mxu0 0
        %7492 = vmatprep.subr.bf16.mxu0 0
        %7493 = vmatpush2.bf16.msra.mxu0 0
        %7494 = vmatprep.subr.bf16.mxu0 0
        %7495 = vmatpush2.bf16.msra.mxu0 0
        %7496 = vmatprep.subr.bf16.mxu0 0
        %7497 = vmatpush2.bf16.msra.mxu0 0
        %7498 = vmatprep.subr.bf16.mxu0 0
        %7499 = vmatpush2.bf16.msra.mxu0 0
        %7500 = vmatprep.subr.bf16.mxu0 0
        %7501 = vmatpush2.bf16.msra.mxu0 0
        %7502 = vmatprep.mubr.bf16.mxu0 0
        %7503 = vmatmul.mubr.bf16.gmra.mxu0 %v7465
        %v7504 = vpop.f32.mrf.mxu0
        %v7505 = vadd.f32 0.0, %v7504
        %v7506 = vpop.f32.mrf.mxu0
        %v7507 = vpop.f32.mrf.mxu0
        %v7508 = vpop.f32.mrf.mxu0
        %7509 = vdwg.mxu0
        %v7511 = vsel %vm1787, %v7367, 0
        %v7514 = vsel %vm2041, %v7371, 0
        %7516 = vmatprep.subr.bf16.mxu0 0
        %7517 = vmatpush1.bf16.msra.mxu0 0
        %7518 = vmatprep.subr.bf16.mxu0 0
        %7519 = vmatpush1.bf16.msra.mxu0 0
        %7520 = vmatprep.subr.bf16.mxu0 0
        %7521 = vmatpush1.bf16.msra.mxu0 0
        %7522 = vmatprep.subr.bf16.mxu0 0
        %7523 = vmatpush1.bf16.msra.mxu0 0
        %7524 = vmatprep.subr.bf16.mxu0 0
        %7525 = vmatpush1.bf16.msra.mxu0 0
        %7526 = vmatprep.subr.bf16.mxu0 0
        %7527 = vmatpush1.bf16.msra.mxu0 0
        %7528 = vmatprep.subr.bf16.mxu0 0
        %7529 = vmatpush1.bf16.msra.mxu0 0
        %7530 = vmatprep.subr.bf16.mxu0 0
        %7531 = vmatpush1.bf16.msra.mxu0 %v7514
        %7532 = vmatprep.subr.bf16.mxu0 0
        %7533 = vmatpush2.bf16.msra.mxu0 0
        %7534 = vmatprep.subr.bf16.mxu0 0
        %7535 = vmatpush2.bf16.msra.mxu0 0
        %7536 = vmatprep.subr.bf16.mxu0 0
        %7537 = vmatpush2.bf16.msra.mxu0 0
        %7538 = vmatprep.subr.bf16.mxu0 0
        %7539 = vmatpush2.bf16.msra.mxu0 0
        %7540 = vmatprep.subr.bf16.mxu0 0
        %7541 = vmatpush2.bf16.msra.mxu0 0
        %7542 = vmatprep.subr.bf16.mxu0 0
        %7543 = vmatpush2.bf16.msra.mxu0 0
        %7544 = vmatprep.subr.bf16.mxu0 0
        %7545 = vmatpush2.bf16.msra.mxu0 0
        %7546 = vmatprep.subr.bf16.mxu0 0
        %7547 = vmatpush2.bf16.msra.mxu0 0
        %7548 = vmatprep.mubr.bf16.mxu0 0
        %7549 = vmatmul.mubr.bf16.gmra.mxu0 %v7511
        %v7550 = vpop.f32.mrf.mxu0
        %v7551 = vadd.f32 0.0, %v7550
        %v7552 = vpop.f32.mrf.mxu0
        %v7553 = vpop.f32.mrf.mxu0
        %v7554 = vpop.f32.mrf.mxu0
        %7555 = vdwg.mxu0
        %v7556 = vpack.c.bf16 %v7413, %v7413
        %v7557 = vpack.c.bf16 %v7459, %v7459
        %v7558 = vpack.c.bf16 %v7505, %v7505
        %v7559 = vpack.c.bf16 %v7551, %v7551
        %v7560 = vpack.c.bf16 %v6534, %v6534
        %v7561 = vpack.c.bf16 %v6535, %v6535
        %v7562 = vpack.c.bf16 %v6536, %v6536
        %v7563 = vpack.c.bf16 %v6537, %v6537
        %v7565 = vsel %vm1787, %v7556, 0
        %v7568 = vsel %vm2041, %v7560, 0
        %7570 = vmatprep.subr.bf16.mxu0 0
        %7571 = vmatpush1.bf16.msra.mxu0 0
        %7572 = vmatprep.subr.bf16.mxu0 0
        %7573 = vmatpush1.bf16.msra.mxu0 0
        %7574 = vmatprep.subr.bf16.mxu0 0
        %7575 = vmatpush1.bf16.msra.mxu0 0
        %7576 = vmatprep.subr.bf16.mxu0 0
        %7577 = vmatpush1.bf16.msra.mxu0 0
        %7578 = vmatprep.subr.bf16.mxu0 0
        %7579 = vmatpush1.bf16.msra.mxu0 0
        %7580 = vmatprep.subr.bf16.mxu0 0
        %7581 = vmatpush1.bf16.msra.mxu0 0
        %7582 = vmatprep.subr.bf16.mxu0 0
        %7583 = vmatpush1.bf16.msra.mxu0 0
        %7584 = vmatprep.subr.bf16.mxu0 0
        %7585 = vmatpush1.bf16.msra.mxu0 %v7568
        %7586 = vmatprep.subr.bf16.mxu0 0
        %7587 = vmatpush2.bf16.msra.mxu0 0
        %7588 = vmatprep.subr.bf16.mxu0 0
        %7589 = vmatpush2.bf16.msra.mxu0 0
        %7590 = vmatprep.subr.bf16.mxu0 0
        %7591 = vmatpush2.bf16.msra.mxu0 0
        %7592 = vmatprep.subr.bf16.mxu0 0
        %7593 = vmatpush2.bf16.msra.mxu0 0
        %7594 = vmatprep.subr.bf16.mxu0 0
        %7595 = vmatpush2.bf16.msra.mxu0 0
        %7596 = vmatprep.subr.bf16.mxu0 0
        %7597 = vmatpush2.bf16.msra.mxu0 0
        %7598 = vmatprep.subr.bf16.mxu0 0
        %7599 = vmatpush2.bf16.msra.mxu0 0
        %7600 = vmatprep.subr.bf16.mxu0 0
        %7601 = vmatpush2.bf16.msra.mxu0 0
        %7602 = vmatprep.mubr.bf16.mxu0 0
        %7603 = vmatmul.mubr.bf16.gmra.mxu0 %v7565
        %v7604 = vpop.f32.mrf.mxu0
        %v7605 = vadd.f32 0.0, %v7604
        %v7606 = vpop.f32.mrf.mxu0
        %v7607 = vpop.f32.mrf.mxu0
        %v7608 = vpop.f32.mrf.mxu0
        %7609 = vdwg.mxu0
        %v7611 = vsel %vm1787, %v7557, 0
        %v7614 = vsel %vm2041, %v7561, 0
        %7616 = vmatprep.subr.bf16.mxu0 0
        %7617 = vmatpush1.bf16.msra.mxu0 0
        %7618 = vmatprep.subr.bf16.mxu0 0
        %7619 = vmatpush1.bf16.msra.mxu0 0
        %7620 = vmatprep.subr.bf16.mxu0 0
        %7621 = vmatpush1.bf16.msra.mxu0 0
        %7622 = vmatprep.subr.bf16.mxu0 0
        %7623 = vmatpush1.bf16.msra.mxu0 0
        %7624 = vmatprep.subr.bf16.mxu0 0
        %7625 = vmatpush1.bf16.msra.mxu0 0
        %7626 = vmatprep.subr.bf16.mxu0 0
        %7627 = vmatpush1.bf16.msra.mxu0 0
        %7628 = vmatprep.subr.bf16.mxu0 0
        %7629 = vmatpush1.bf16.msra.mxu0 0
        %7630 = vmatprep.subr.bf16.mxu0 0
        %7631 = vmatpush1.bf16.msra.mxu0 %v7614
        %7632 = vmatprep.subr.bf16.mxu0 0
        %7633 = vmatpush2.bf16.msra.mxu0 0
        %7634 = vmatprep.subr.bf16.mxu0 0
        %7635 = vmatpush2.bf16.msra.mxu0 0
        %7636 = vmatprep.subr.bf16.mxu0 0
        %7637 = vmatpush2.bf16.msra.mxu0 0
        %7638 = vmatprep.subr.bf16.mxu0 0
        %7639 = vmatpush2.bf16.msra.mxu0 0
        %7640 = vmatprep.subr.bf16.mxu0 0
        %7641 = vmatpush2.bf16.msra.mxu0 0
        %7642 = vmatprep.subr.bf16.mxu0 0
        %7643 = vmatpush2.bf16.msra.mxu0 0
        %7644 = vmatprep.subr.bf16.mxu0 0
        %7645 = vmatpush2.bf16.msra.mxu0 0
        %7646 = vmatprep.subr.bf16.mxu0 0
        %7647 = vmatpush2.bf16.msra.mxu0 0
        %7648 = vmatprep.mubr.bf16.mxu0 0
        %7649 = vmatmul.mubr.bf16.gmra.mxu0 %v7611
        %v7650 = vpop.f32.mrf.mxu0
        %v7651 = vadd.f32 0.0, %v7650
        %v7652 = vpop.f32.mrf.mxu0
        %v7653 = vpop.f32.mrf.mxu0
        %v7654 = vpop.f32.mrf.mxu0
        %7655 = vdwg.mxu0
        %v7657 = vsel %vm1787, %v7558, 0
        %v7660 = vsel %vm2041, %v7562, 0
        %7662 = vmatprep.subr.bf16.mxu0 0
        %7663 = vmatpush1.bf16.msra.mxu0 0
        %7664 = vmatprep.subr.bf16.mxu0 0
        %7665 = vmatpush1.bf16.msra.mxu0 0
        %7666 = vmatprep.subr.bf16.mxu0 0
        %7667 = vmatpush1.bf16.msra.mxu0 0
        %7668 = vmatprep.subr.bf16.mxu0 0
        %7669 = vmatpush1.bf16.msra.mxu0 0
        %7670 = vmatprep.subr.bf16.mxu0 0
        %7671 = vmatpush1.bf16.msra.mxu0 0
        %7672 = vmatprep.subr.bf16.mxu0 0
        %7673 = vmatpush1.bf16.msra.mxu0 0
        %7674 = vmatprep.subr.bf16.mxu0 0
        %7675 = vmatpush1.bf16.msra.mxu0 0
        %7676 = vmatprep.subr.bf16.mxu0 0
        %7677 = vmatpush1.bf16.msra.mxu0 %v7660
        %7678 = vmatprep.subr.bf16.mxu0 0
        %7679 = vmatpush2.bf16.msra.mxu0 0
        %7680 = vmatprep.subr.bf16.mxu0 0
        %7681 = vmatpush2.bf16.msra.mxu0 0
        %7682 = vmatprep.subr.bf16.mxu0 0
        %7683 = vmatpush2.bf16.msra.mxu0 0
        %7684 = vmatprep.subr.bf16.mxu0 0
        %7685 = vmatpush2.bf16.msra.mxu0 0
        %7686 = vmatprep.subr.bf16.mxu0 0
        %7687 = vmatpush2.bf16.msra.mxu0 0
        %7688 = vmatprep.subr.bf16.mxu0 0
        %7689 = vmatpush2.bf16.msra.mxu0 0
        %7690 = vmatprep.subr.bf16.mxu0 0
        %7691 = vmatpush2.bf16.msra.mxu0 0
        %7692 = vmatprep.subr.bf16.mxu0 0
        %7693 = vmatpush2.bf16.msra.mxu0 0
        %7694 = vmatprep.mubr.bf16.mxu0 0
        %7695 = vmatmul.mubr.bf16.gmra.mxu0 %v7657
        %v7696 = vpop.f32.mrf.mxu0
        %v7697 = vadd.f32 0.0, %v7696
        %v7698 = vpop.f32.mrf.mxu0
        %v7699 = vpop.f32.mrf.mxu0
        %v7700 = vpop.f32.mrf.mxu0
        %7701 = vdwg.mxu0
        %v7703 = vsel %vm1787, %v7559, 0
        %v7706 = vsel %vm2041, %v7563, 0
        %7708 = vmatprep.subr.bf16.mxu0 0
        %7709 = vmatpush1.bf16.msra.mxu0 0
        %7710 = vmatprep.subr.bf16.mxu0 0
        %7711 = vmatpush1.bf16.msra.mxu0 0
        %7712 = vmatprep.subr.bf16.mxu0 0
        %7713 = vmatpush1.bf16.msra.mxu0 0
        %7714 = vmatprep.subr.bf16.mxu0 0
        %7715 = vmatpush1.bf16.msra.mxu0 0
        %7716 = vmatprep.subr.bf16.mxu0 0
        %7717 = vmatpush1.bf16.msra.mxu0 0
        %7718 = vmatprep.subr.bf16.mxu0 0
        %7719 = vmatpush1.bf16.msra.mxu0 0
        %7720 = vmatprep.subr.bf16.mxu0 0
        %7721 = vmatpush1.bf16.msra.mxu0 0
        %7722 = vmatprep.subr.bf16.mxu0 0
        %7723 = vmatpush1.bf16.msra.mxu0 %v7706
        %7724 = vmatprep.subr.bf16.mxu0 0
        %7725 = vmatpush2.bf16.msra.mxu0 0
        %7726 = vmatprep.subr.bf16.mxu0 0
        %7727 = vmatpush2.bf16.msra.mxu0 0
        %7728 = vmatprep.subr.bf16.mxu0 0
        %7729 = vmatpush2.bf16.msra.mxu0 0
        %7730 = vmatprep.subr.bf16.mxu0 0
        %7731 = vmatpush2.bf16.msra.mxu0 0
        %7732 = vmatprep.subr.bf16.mxu0 0
        %7733 = vmatpush2.bf16.msra.mxu0 0
        %7734 = vmatprep.subr.bf16.mxu0 0
        %7735 = vmatpush2.bf16.msra.mxu0 0
        %7736 = vmatprep.subr.bf16.mxu0 0
        %7737 = vmatpush2.bf16.msra.mxu0 0
        %7738 = vmatprep.subr.bf16.mxu0 0
        %7739 = vmatpush2.bf16.msra.mxu0 0
        %7740 = vmatprep.mubr.bf16.mxu0 0
        %7741 = vmatmul.mubr.bf16.gmra.mxu0 %v7703
        %v7742 = vpop.f32.mrf.mxu0
        %v7743 = vadd.f32 0.0, %v7742
        %v7744 = vpop.f32.mrf.mxu0
        %v7745 = vpop.f32.mrf.mxu0
        %v7746 = vpop.f32.mrf.mxu0
        %7747 = vdwg.mxu0
        %v7748 = vsel %vm1231, %v7605, 0.0
        %v7749 = vsel %vm1231, %v7651, 0.0
        %v7750 = vadd.f32 %v7748, %v7749
        %v7751 = vsel %vm1231, %v7697, 0.0
        %v7752 = vadd.f32 %v7750, %v7751
        %v7753 = vsel %vm1231, %v7743, 0.0
        %v7754 = vadd.f32 %v7752, %v7753
        %v7756 = vlaneseq
        %v7757 = vshrl.u32 %v7756, 7
        %v7758 = vsub.s32 0, %v7757
        %v7759 = vrot.slane %v6539, %v7758
        %v7761 = vadd.f32 %v7754, %v7759
        %v7762 = vadd.f32 %v7761, %v6470
        %s7763 = scalar_lea.vmem %s17, 2
        %v7764 = vld [vmem:[%s7763] sm:$0x1]
        %s7765 = scalar_lea.vmem %s19, 2
        %v7766 = vld [vmem:[%s7765] sm:$0x1]
        %v7767 = vsel %vm1231, %v7762, 0.0
        %7768 = vadd.xlane.f32.xlu0 %v7767
        %v7769 = vpop.xlane.xlu0 %7768
        %v7770 = vmul.f32 %v7769, %v2435
        %v7771 = vsub.f32 %v7762, %v7770
        %v7772 = vmul.f32 %v7771, %v7771
        %v7773 = vsel %vm1231, %v7772, 0.0
        %7774 = vadd.xlane.f32.xlu0 %v7773
        %v7775 = vpop.xlane.xlu0 %7774
        %v7776 = vmul.f32 %v7775, %v2435
        %v7777 = vadd.f32 %v7776, 1e-05
        %v7778 = vrsqrt.pop %v7777
        %v7779 = vmul.f32 %v7771, %v7778
        %v7781 = vlaneseq
        %v7782 = vshrl.u32 %v7781, 7
        %v7783 = vsub.s32 0, %v7782
        %v7784 = vrot.slane %v7764, %v7783
        %v7786 = vmul.f32 %v7779, %v7784
        %v7788 = vlaneseq
        %v7789 = vshrl.u32 %v7788, 7
        %v7790 = vsub.s32 0, %v7789
        %v7791 = vrot.slane %v7766, %v7790
        %v7793 = vadd.f32 %v7786, %v7791
        %s7794 = scalar_lea.vmem %s21, 64
        %v7795 = vld [vmem:[%s7794] sm:$0xff]
        %v7796 = vld [vmem:[%s7794 + $0x8] sm:$0xff]
        %v7797 = vld [vmem:[%s7794 + $0x10] sm:$0xff]
        %v7798 = vld [vmem:[%s7794 + $0x18] sm:$0xff]
        %v7799 = vpack.c.bf16 %v7793, %v7793
        %v7800 = vpack.c.bf16 %v7796, %v7795
        %v7801 = vpack.c.bf16 %v7798, %v7797
        %s7802 = scalar_lea.vmem %s23, 2
        %v7803 = vld [vmem:[%s7802] sm:$0x1]
        %v7805 = vlaneseq
        %v7806 = vshrl.u32 %v7805, 7
        %v7807 = vsub.s32 0, %v7806
        %v7808 = vrot.slane %v7803, %v7807
        %v7811 = vsel %vm1231, %v7799, 0
        %7813 = vmatprep.subr.bf16.mxu0 0
        %7814 = vmatpush1.bf16.msra.mxu0 0
        %7815 = vmatprep.subr.bf16.mxu0 0
        %7816 = vmatpush1.bf16.msra.mxu0 0
        %7817 = vmatprep.subr.bf16.mxu0 0
        %7818 = vmatpush1.bf16.msra.mxu0 0
        %7819 = vmatprep.subr.bf16.mxu0 0
        %7820 = vmatpush1.bf16.msra.mxu0 0
        %7821 = vmatprep.subr.bf16.mxu0 0
        %7822 = vmatpush1.bf16.msra.mxu0 0
        %7823 = vmatprep.subr.bf16.mxu0 0
        %7824 = vmatpush1.bf16.msra.mxu0 0
        %7825 = vmatprep.subr.bf16.mxu0 0
        %7826 = vmatpush1.bf16.msra.mxu0 %v7801
        %7827 = vmatprep.subr.bf16.mxu0 0
        %7828 = vmatpush1.bf16.msra.mxu0 %v7800
        %7829 = vmatprep.subr.bf16.mxu0 0
        %7830 = vmatpush2.bf16.msra.mxu0 0
        %7831 = vmatprep.subr.bf16.mxu0 0
        %7832 = vmatpush2.bf16.msra.mxu0 0
        %7833 = vmatprep.subr.bf16.mxu0 0
        %7834 = vmatpush2.bf16.msra.mxu0 0
        %7835 = vmatprep.subr.bf16.mxu0 0
        %7836 = vmatpush2.bf16.msra.mxu0 0
        %7837 = vmatprep.subr.bf16.mxu0 0
        %7838 = vmatpush2.bf16.msra.mxu0 0
        %7839 = vmatprep.subr.bf16.mxu0 0
        %7840 = vmatpush2.bf16.msra.mxu0 0
        %7841 = vmatprep.subr.bf16.mxu0 0
        %7842 = vmatpush2.bf16.msra.mxu0 0
        %7843 = vmatprep.subr.bf16.mxu0 0
        %7844 = vmatpush2.bf16.msra.mxu0 0
        %7845 = vmatprep.mubr.bf16.mxu0 0
        %7846 = vmatmul.mubr.bf16.gmra.mxu0 %v7811
        %v7847 = vpop.f32.mrf.mxu0
        %v7848 = vadd.f32 %v7808, %v7847
        %v7849 = vpop.f32.mrf.mxu0
        %v7850 = vpop.f32.mrf.mxu0
        %v7851 = vpop.f32.mrf.mxu0
        %7852 = vdwg.mxu0
        %v7853 = vmul.f32 %v7848, %v7848
        %v7854 = vmul.f32 %v7848, %v7853
        %v7855 = vmul.f32 %v7854, 0.044715
        %v7856 = vadd.f32 %v7848, %v7855
        %v7857 = vmul.f32 %v7856, 0.7978846
        %v7858 = vtanh.pop %v7857
        %v7859 = vadd.f32 %v7858, 1.0
        %v7860 = vmul.f32 %v7859, 0.5
        %v7861 = vmul.f32 %v7848, %v7860
        %s7862 = scalar_lea.vmem %s25, 128
        %v7863 = vld [vmem:[%s7862] sm:$0xff]
        %v7864 = vld [vmem:[%s7862 + $0x8] sm:$0xff]
        %v7865 = vld [vmem:[%s7862 + $0x10] sm:$0xff]
        %v7866 = vld [vmem:[%s7862 + $0x18] sm:$0xff]
        %v7867 = vld [vmem:[%s7862 + $0x20] sm:$0xff]
        %v7868 = vld [vmem:[%s7862 + $0x28] sm:$0xff]
        %v7869 = vld [vmem:[%s7862 + $0x30] sm:$0xff]
        %v7870 = vld [vmem:[%s7862 + $0x38] sm:$0xff]
        %v7871 = vpack.c.bf16 %v7861, %v7861
        %v7872 = vpack.c.bf16 %v7864, %v7863
        %v7873 = vpack.c.bf16 %v7866, %v7865
        %v7874 = vpack.c.bf16 %v7868, %v7867
        %v7875 = vpack.c.bf16 %v7870, %v7869
        %s7876 = scalar_lea.vmem %s27, 2
        %v7877 = vld [vmem:[%s7876] sm:$0x1]
        %v7879 = vlaneseq
        %v7880 = vshrl.u32 %v7879, 7
        %v7881 = vsub.s32 0, %v7880
        %v7882 = vrot.slane %v7877, %v7881
        %v7885 = vsel %vm2546, %v7871, 0
        %7887 = vmatprep.subr.bf16.mxu0 0
        %7888 = vmatpush1.bf16.msra.mxu0 0
        %7889 = vmatprep.subr.bf16.mxu0 0
        %7890 = vmatpush1.bf16.msra.mxu0 0
        %7891 = vmatprep.subr.bf16.mxu0 0
        %7892 = vmatpush1.bf16.msra.mxu0 0
        %7893 = vmatprep.subr.bf16.mxu0 0
        %7894 = vmatpush1.bf16.msra.mxu0 0
        %7895 = vmatprep.subr.bf16.mxu0 0
        %7896 = vmatpush1.bf16.msra.mxu0 %v7875
        %7897 = vmatprep.subr.bf16.mxu0 0
        %7898 = vmatpush1.bf16.msra.mxu0 %v7874
        %7899 = vmatprep.subr.bf16.mxu0 0
        %7900 = vmatpush1.bf16.msra.mxu0 %v7873
        %7901 = vmatprep.subr.bf16.mxu0 0
        %7902 = vmatpush1.bf16.msra.mxu0 %v7872
        %7903 = vmatprep.subr.bf16.mxu0 0
        %7904 = vmatpush2.bf16.msra.mxu0 0
        %7905 = vmatprep.subr.bf16.mxu0 0
        %7906 = vmatpush2.bf16.msra.mxu0 0
        %7907 = vmatprep.subr.bf16.mxu0 0
        %7908 = vmatpush2.bf16.msra.mxu0 0
        %7909 = vmatprep.subr.bf16.mxu0 0
        %7910 = vmatpush2.bf16.msra.mxu0 0
        %7911 = vmatprep.subr.bf16.mxu0 0
        %7912 = vmatpush2.bf16.msra.mxu0 0
        %7913 = vmatprep.subr.bf16.mxu0 0
        %7914 = vmatpush2.bf16.msra.mxu0 0
        %7915 = vmatprep.subr.bf16.mxu0 0
        %7916 = vmatpush2.bf16.msra.mxu0 0
        %7917 = vmatprep.subr.bf16.mxu0 0
        %7918 = vmatpush2.bf16.msra.mxu0 0
        %7919 = vmatprep.mubr.bf16.mxu0 0
        %7920 = vmatmul.mubr.bf16.gmra.mxu0 %v7885
        %v7921 = vpop.f32.mrf.mxu0
        %v7922 = vadd.f32 %v7882, %v7921
        %v7923 = vpop.f32.mrf.mxu0
        %v7924 = vpop.f32.mrf.mxu0
        %v7925 = vpop.f32.mrf.mxu0
        %7926 = vdwg.mxu0
        %v7927 = vadd.f32 %v7922, %v7793
        %s7928 = scalar_lea.vmem %s29, 2
        %v7929 = vld [vmem:[%s7928] sm:$0x1]
        %s7930 = scalar_lea.vmem %s31, 2
        %v7931 = vld [vmem:[%s7930] sm:$0x1]
        %v7932 = vsel %vm1231, %v7927, 0.0
        %7933 = vadd.xlane.f32.xlu0 %v7932
        %v7934 = vpop.xlane.xlu0 %7933
        %v7935 = vmul.f32 %v7934, %v2435
        %v7936 = vsub.f32 %v7927, %v7935
        %v7937 = vmul.f32 %v7936, %v7936
        %v7938 = vsel %vm1231, %v7937, 0.0
        %7939 = vadd.xlane.f32.xlu0 %v7938
        %v7940 = vpop.xlane.xlu0 %7939
        %v7941 = vmul.f32 %v7940, %v2435
        %v7942 = vadd.f32 %v7941, 1e-05
        %v7943 = vrsqrt.pop %v7942
        %v7944 = vmul.f32 %v7936, %v7943
        %v7946 = vlaneseq
        %v7947 = vshrl.u32 %v7946, 7
        %v7948 = vsub.s32 0, %v7947
        %v7949 = vrot.slane %v7929, %v7948
        %v7951 = vmul.f32 %v7944, %v7949
        %v7953 = vlaneseq
        %v7954 = vshrl.u32 %v7953, 7
        %v7955 = vsub.s32 0, %v7954
        %v7956 = vrot.slane %v7931, %v7955
        %v7958 = vadd.f32 %v7951, %v7956
        %7959 = vst.msk [vmem:[%s1120] sm:$0xff] %vm1231, %v7958
        %s7960 = sand.u32 %s781, 1
        %s7961 = scalar_lea.sflag [#allocation6], %s7960
        %s7962 = sand.u32 %s781, 1
        %s7963 = smul.addr %s7962, 8
        %s7964 = scalar_lea.vmem [#allocation5], %s7963
        // Predicated region
        $region225: #{ktnet_forward.1} parent=215 // pred_check
          %p7965 = pneg %p791
        $region226: #{ktnet_forward.1} parent=215 // pred_check_branch
          %7967 = sbr.rel (%p7965) target = $region228
        $region227: #{ktnet_forward.1} parent=215 // pred_region
          %s7969 = ssub.s32 128, 128
          %7970 = vsyncadd %s7961, %s7969
          %s7971 = smul.addr %s81, 128
          %s7972 = scalar_lea.hbm %s65, %s7971
          %s7974 = sshll.u32 %s7964, 4
          %s7975 = int_to_ptr.vmem [resolvable:$true] %s7974
          %7977 = dma.vmem_to_hbm [thread:$0]  %s7975, 128, %s7972, %s7961
        $region228: #{ktnet_forward.1} parent=215 // pred_fallthru
          _
      $region216: #{ktnet_forward.1} parent=5 // pred_fallthru
        _
      %p7978 = scmp.le.s32.totalorder 2, %s76
      // Predicated region
      $region229: #{ktnet_forward.1} parent=5 // pred_check
        %p7979 = pneg %p7978
      $region230: #{ktnet_forward.1} parent=5 // pred_check_branch
        %7981 = sbr.rel (%p7979) target = $region232
      $region231: #{ktnet_forward.1} parent=5 // pred_region
        %s7982 = ssub.s32 %s76, 2
        // Predicated region
        $region233: #{ktnet_forward.1} parent=231 // pred_check
          %p7983 = pneg %p797
        $region234: #{ktnet_forward.1} parent=231 // pred_check_branch
          %7985 = sbr.rel (%p7983) target = $region236
        $region235: #{ktnet_forward.1} parent=231 // pred_region
          %s7986 = sand.u32 %s782, 1
          %s7987 = scalar_lea.sflag [#allocation6], %s7986
          %s7988 = sand.u32 %s782, 1
          %s7989 = smul.addr %s7988, 8
          %s7990 = scalar_lea.vmem [#allocation5], %s7989
          %7991 = dma.done %s7987, 128
        $region236: #{ktnet_forward.1} parent=231 // pred_fallthru
          _
      $region232: #{ktnet_forward.1} parent=5 // pred_fallthru
        _
    $region6: #{ktnet_forward.1} parent=1 // loop_footer
      %s80 = sadd.s32 1, %s76
    $region7: #{ktnet_forward.1} parent=1 // loop_footer_branch
      %75 = sbr.rel target = $region3
    $region8: #{ktnet_forward.1} parent=1 // loop_exit
      _
    %7992 = vsyncpa [#allocation6], 1
    %s7993 = scalar_lea.sflag [#allocation6], 1
    %7994 = vsyncpa %s7993, 1

</llo_original>
